<compile_context>
chip_gen: v6e
topology: v6e:2x2x1
jax: 0.10.0
libtpu: 0.0.40
codegen_flags: <defaults>
</compile_context>

<pallas_src>
import math
from functools import partial

import numpy as np
import jax
import jax.numpy as jnp
from jax.experimental import pallas as pl
from jax.experimental.pallas import tpu as pltpu


# ----------------------------- Pallas kernels -----------------------------

def _round_up(x, m):
    return ((x + m - 1) // m) * m


def _mm_kernel(a_ref, b_ref, bias_ref, o_ref, *, activation):
    # Full-K block: no K grid axis, no accumulator scratch, no pl.when phases.
    out = jnp.dot(a_ref[...], b_ref[...], preferred_element_type=jnp.float32)
    out = out + bias_ref[...]
    if activation == "relu":
        out = jnp.maximum(out, 0.0)
    o_ref[...] = out.astype(o_ref.dtype)


def pack_linear(w_kn, bias):
    """Pre-pack a (K, N) weight + (N,) bias once: bf16 cast + zero padding.

    Returns arrays only (safe to pass through jax.jit as a pytree)."""
    K, N = w_kn.shape
    Kp = _round_up(K, 32)     # full-K block (K <= 576 everywhere in this net)
    Np = _round_up(N, 128)    # lane-dense output stores
    w_p = jnp.pad(w_kn.astype(jnp.bfloat16), ((0, Kp - K), (0, Np - N)))
    b_p = jnp.pad(bias.astype(jnp.float32), ((0, Np - N),)).reshape(1, Np)
    return {"w": w_p, "b": b_p}


def _pick_tm(M):
    # Big M tiles (few grid steps) but keep >=2 parallel M-steps when M allows
    # so v7x's two TensorCores both get work; VMEM is never the constraint here.
    if M >= 2048:
        return 1024
    if M >= 1024:
        return 512
    if M >= 512:
        return 256
    return _round_up(M, 8)


def linear(a, packed, n_out, activation="none", out_dtype=jnp.bfloat16):
    """act(a @ W + b) with W/b pre-packed by pack_linear.  a: (M, K)."""
    M, K = a.shape
    w_p, b_p = packed["w"], packed["b"]
    Kp, Np = w_p.shape
    tm = _pick_tm(M)
    Mp = _round_up(M, tm)
    tn = 256 if Np % 256 == 0 else 128
    a_p = jnp.pad(a.astype(jnp.bfloat16), ((0, Mp - M), (0, Kp - K)))
    # Grid ordered (N-tiles, M-tiles): the weight / bias block index only
    # changes on the OUTER axis, so Pallas skips redundant weight DMAs across
    # the inner M steps.
    grid = (Np // tn, Mp // tm)
    out = pl.pallas_call(
        partial(_mm_kernel, activation=activation),
        out_shape=jax.ShapeDtypeStruct((Mp, Np), out_dtype),
        grid_spec=pltpu.PrefetchScalarGridSpec(
            num_scalar_prefetch=0, grid=grid,
            in_specs=[pl.BlockSpec((tm, Kp), lambda j, i: (i, 0)),
                      pl.BlockSpec((Kp, tn), lambda j, i: (0, j)),
                      pl.BlockSpec((1, tn), lambda j, i: (0, j))],
            out_specs=pl.BlockSpec((tm, tn), lambda j, i: (i, j))),
        compiler_params=pltpu.CompilerParams(
            dimension_semantics=("parallel", "parallel")),
    )(a_p, w_p, b_p)
    return out[:M, :n_out]


def _attn_pool_kernel(x_ref, wi_ref, bi_ref, wo_ref, bo_ref, o_ref, *,
                      num_heads, scale):
    """Fused: QKV projection -> 4-head attention -> out projection -> token mean."""
    x = x_ref[0]                                        # (S, E) bf16
    S, E = x.shape
    dh = E // num_heads
    qkv = jnp.dot(x, wi_ref[...],
                  preferred_element_type=jnp.float32) + bi_ref[...]   # (S, 3E) f32
    wo = wo_ref[...]                                    # (E, E) bf16
    acc = jnp.zeros((S, E), jnp.float32)
    for h in range(num_heads):                          # static unroll
        lo = h * dh
        qh = (qkv[:, lo:lo + dh] * scale).astype(jnp.bfloat16)
        kh = qkv[:, E + lo:E + lo + dh].astype(jnp.bfloat16)
        vh = qkv[:, 2 * E + lo:2 * E + lo + dh].astype(jnp.bfloat16)
        s = jax.lax.dot_general(qh, kh, (((1,), (1,)), ((), ())),
                                preferred_element_type=jnp.float32)   # (S, S)
        m = jnp.max(s, axis=-1, keepdims=True)
        p = jnp.exp(s - m)
        l = jnp.sum(p, axis=-1, keepdims=True)
        oh = jnp.dot(p.astype(jnp.bfloat16), vh,
                     preferred_element_type=jnp.float32)              # (S, dh)
        oh = oh / l                                     # exact normalization
        # Fused out-projection, accumulated per head: out = sum_h o_h @ Wout[h*dh:]
        # (no head concatenation / lane relayout, no separate projection call).
        acc = acc + jnp.dot(oh.astype(jnp.bfloat16), wo[lo:lo + dh, :],
                            preferred_element_type=jnp.float32)
    out = acc + bo_ref[...]
    # Fused global average pool over tokens -> single tiny (1, E) store.
    o_ref[0] = jnp.mean(out, axis=0, keepdims=True)


def attention_pooled(x, p, num_heads=4):
    """MHA (packed heads) + out-projection + mean over tokens, one kernel per batch.

    x: (B, S, E) bf16  ->  (B, E) f32 pooled features."""
    B, S, E = x.shape
    scale = 1.0 / math.sqrt(E // num_heads)
    out = pl.pallas_call(
        partial(_attn_pool_kernel, num_heads=num_heads, scale=scale),
        out_shape=jax.ShapeDtypeStruct((B, 1, E), jnp.float32),
        grid_spec=pltpu.PrefetchScalarGridSpec(
            num_scalar_prefetch=0, grid=(B,),
            in_specs=[pl.BlockSpec((1, S, E), lambda b: (b, 0, 0)),
                      pl.BlockSpec((E, 3 * E), lambda b: (0, 0)),
                      pl.BlockSpec((1, 3 * E), lambda b: (0, 0)),
                      pl.BlockSpec((E, E), lambda b: (0, 0)),
                      pl.BlockSpec((1, E), lambda b: (0, 0))],
            out_specs=pl.BlockSpec((1, 1, E), lambda b: (b, 0, 0))),
        compiler_params=pltpu.CompilerParams(
            dimension_semantics=("parallel",)),
    )(x, p["attn_in_w"], p["attn_in_b"], p["attn_out_w"], p["attn_out_b"])
    return out[:, 0, :]


# ------------------------------- conv glue --------------------------------

def conv2d_3x3(x, packed, cout, stride=1, activation="relu"):
    """x: NHWC bf16, weight pre-packed as (9*Cin, Cout) matmul; padding=1."""
    N, H, W, Cin = x.shape
    xp = jnp.pad(x.astype(jnp.bfloat16), ((0, 0), (1, 1), (1, 1), (0, 0)))
    Ho = (H + 2 - 3) // stride + 1
    Wo = (W + 2 - 3) // stride + 1
    patches = []
    for ky in range(3):
        for kx in range(3):
            patches.append(xp[:, ky:ky + stride * Ho:stride,
                               kx:kx + stride * Wo:stride, :])
    # col is built directly in bf16 (no f32 write + re-cast).
    # TODO(synk): fold the 9 taps into the matmul kernel (tap grid axis + f32
    # accumulator scratch) to avoid the 9x activation materialization entirely.
    col = jnp.concatenate(patches, axis=-1).reshape(N * Ho * Wo, 9 * Cin)
    y = linear(col, packed, cout, activation)
    return y.reshape(N, Ho, Wo, cout)


def conv_transpose_2x2_s2(x, packed, cout, activation="relu"):
    """Fused 2x2/stride-2 transposed conv: one (Cin, 4*Cout) matmul, then
    interleave the 4 (dy, dx) phases.  Each output pixel receives exactly one
    tap, so per-tap bias + ReLU equals ReLU after the deconv."""
    N, H, W, Cin = x.shape
    y = linear(x.reshape(N * H * W, Cin), packed, 4 * cout, activation)
    y = y.reshape(N, H, W, 2, 2, cout)                         # (.., dy, dx, C)
    y = jnp.transpose(y, (0, 1, 3, 2, 4, 5)).reshape(N, 2 * H, 2 * W, cout)
    return y


def max_pool_2x2(x):
    N, H, W, C = x.shape
    return x.reshape(N, H // 2, 2, W // 2, 2, C).max(axis=(2, 4))


def _adaptive_pool_matrix(in_size, out_size):
    # Exact PyTorch AdaptiveAvgPool bin formula (fallback path only).
    P = np.zeros((out_size, in_size), dtype=np.float32)
    for o in range(out_size):
        s = (o * in_size) // out_size
        e = -(-((o + 1) * in_size) // out_size)
        P[o, s:e] = 1.0 / (e - s)
    return jnp.asarray(P)


def adaptive_avg_pool2d(x, out_hw):
    N, H, W, C = x.shape
    Ph = _adaptive_pool_matrix(H, out_hw[0])
    Pw = _adaptive_pool_matrix(W, out_hw[1])
    y = jnp.einsum('oh,nhwc->nowc', Ph, x.astype(jnp.float32))
    y = jnp.einsum('pw,nowc->nopc', Pw, y)
    return y


# ------------------------------ parameters --------------------------------

def init_params(key, num_classes=10):
    keys = iter(jax.random.split(key, 32))

    def w(*shape, scale=0.05):
        return jax.random.normal(next(keys), shape, jnp.float32) * scale

    # PyTorch layouts: Conv2d OIHW, ConvTranspose2d (in, out, kh, kw),
    # Linear / in_proj (out, in).
    raw = {
        "conv1_w": w(32, 3, 3, 3),    "conv1_b": w(32),
        "conv2_w": w(64, 32, 3, 3),   "conv2_b": w(64),
        "enc1_w":  w(64, 64, 3, 3),   "enc1_b":  w(64),
        "enc2_w":  w(128, 64, 3, 3),  "enc2_b":  w(128),
        "deconv_w": w(128, 64, 2, 2), "deconv_b": w(64),
        "outc_w":  w(64, 64, 3, 3),   "outc_b":  w(64),
        "attn_in_w":  w(192, 64),     "attn_in_b":  w(192),
        "attn_out_w": w(64, 64),      "attn_out_b": w(64),
        "fc_w": w(num_classes, 64),   "fc_b": w(num_classes),
    }
    return raw


def _conv3x3_to_kn(w_oihw):
    # OIHW -> (ky, kx, Cin, Cout) -> (9*Cin, Cout); matches im2col tap order.
    cout, cin = w_oihw.shape[0], w_oihw.shape[1]
    return jnp.transpose(w_oihw, (2, 3, 1, 0)).reshape(9 * cin, cout)


def pack_params(raw):
    """One-time repack of all weights into padded bf16 matmul form (arrays only)."""
    p = {}
    p["conv1"] = pack_linear(_conv3x3_to_kn(raw["conv1_w"]), raw["conv1_b"])
    p["conv2"] = pack_linear(_conv3x3_to_kn(raw["conv2_w"]), raw["conv2_b"])
    p["enc1"] = pack_linear(_conv3x3_to_kn(raw["enc1_w"]), raw["enc1_b"])
    p["enc2"] = pack_linear(_conv3x3_to_kn(raw["enc2_w"]), raw["enc2_b"])
    # ConvTranspose2d: fuse the 4 (dy, dx) taps along the output dim.
    wd = raw["deconv_w"]                                       # (Cin,Cout,2,2)
    wd_m = jnp.concatenate(
        [wd[:, :, dy, dx] for dy in range(2) for dx in range(2)], axis=1)
    p["deconv"] = pack_linear(wd_m, jnp.tile(raw["deconv_b"], 4))
    p["outc"] = pack_linear(_conv3x3_to_kn(raw["outc_w"]), raw["outc_b"])
    # Attention: weights in (K, N) orientation, unpadded (E=64, 3E=192 blocks
    # pass full-dim BlockSpecs).
    p["attn_in_w"] = raw["attn_in_w"].T.astype(jnp.bfloat16)       # (64, 192)
    p["attn_in_b"] = raw["attn_in_b"].astype(jnp.float32).reshape(1, -1)
    p["attn_out_w"] = raw["attn_out_w"].T.astype(jnp.bfloat16)     # (64, 64)
    p["attn_out_b"] = raw["attn_out_b"].astype(jnp.float32).reshape(1, -1)
    # Tiny final FC stays in plain jnp (f32).
    p["fc_w_t"] = raw["fc_w"].T.astype(jnp.float32)                # (64, nc)
    p["fc_b"] = raw["fc_b"].astype(jnp.float32)
    return p


# --------------------------------- network ---------------------------------

def forward(params, x_nchw):
    # NCHW (PyTorch) -> NHWC (kernel layout), bf16 activations throughout.
    x = jnp.transpose(x_nchw, (0, 2, 3, 1)).astype(jnp.bfloat16)
    x = conv2d_3x3(x, params["conv1"], 32, activation="relu")         # 32x32x32
    x = conv2d_3x3(x, params["conv2"], 64, stride=2, activation="relu")  # 16x16x64
    x = conv2d_3x3(x, params["enc1"], 64, activation="relu")          # 16x16x64
    x = max_pool_2x2(x)                                               # 8x8x64
    x = conv2d_3x3(x, params["enc2"], 128, activation="relu")         # 8x8x128
    x = conv_transpose_2x2_s2(x, params["deconv"], 64, activation="relu")  # 16x16x64
    x = conv2d_3x3(x, params["outc"], 64, activation="relu")          # 16x16x64

    N, H, W, C = x.shape
    if 32 % H != 0 or 32 % W != 0:
        # General fallback: exact PyTorch adaptive average pool to 32x32.
        x = adaptive_avg_pool2d(x, (32, 32))
        N, H, W, C = x.shape
    # else: AdaptiveAvgPool2d(H->32) is a pure integer nearest replication.
    # Softmax attention is exactly invariant to uniformly duplicated keys /
    # values, duplicated queries give identical outputs, and the only
    # downstream op is a mean over tokens -> running attention on the
    # un-upsampled HxW map is exactly equivalent (up to fp rounding).
    seq = x.reshape(N, H * W, C).astype(jnp.bfloat16)
    pooled = attention_pooled(seq, params, num_heads=4)    # (N, 64) f32
    logits = pooled @ params["fc_w_t"] + params["fc_b"]    # tiny tail: plain jnp
    return logits


if __name__ == "__main__":
    key = jax.random.PRNGKey(0)
    pkey, xkey = jax.random.split(key)
    params = pack_params(init_params(pkey, num_classes=10))
    x = jax.random.normal(xkey, (2, 3, 32, 32), jnp.float32)

    fwd = jax.jit(forward)
    out = fwd(params, x)
    jax.block_until_ready(out)
    assert out.shape == (2, 10)
    print("KERNEL_OK")
</pallas_src>

<mosaic_0001>
module attributes {stable_mosaic.version = 11 : i64} {
  func.func @_mm_kernel(%arg0: i32, %arg1: i32, %arg2: memref<1024x32xbf16, #tpu.memory_space<vmem>>, %arg3: memref<32x128xbf16, #tpu.memory_space<vmem>>, %arg4: memref<1x128xf32, #tpu.memory_space<vmem>>, %arg5: memref<1024x128xbf16, #tpu.memory_space<vmem>>) attributes {dimension_semantics = [#tpu.dimension_semantics<parallel>, #tpu.dimension_semantics<parallel>], iteration_bounds = array<i64: 1, 2>, scalar_prefetch = 0 : i64, scratch_operands = 0 : i64, tpu.core_type = #tpu.core_type<tc>, window_params = [{transform_indices = @transform_0, window_bounds = array<i64: 1024, 32>}, {transform_indices = @transform_1, window_bounds = array<i64: 32, 128>}, {transform_indices = @transform_2, window_bounds = array<i64: 1, 128>}, {transform_indices = @transform_3, window_bounds = array<i64: 1024, 128>}]} {
    %c0 = arith.constant 0 : index
    %c0_0 = arith.constant 0 : index
    %0 = vector.load %arg2[%c0, %c0_0] : memref<1024x32xbf16, #tpu.memory_space<vmem>>, vector<1024x32xbf16>
    %c0_1 = arith.constant 0 : index
    %c0_2 = arith.constant 0 : index
    %1 = vector.load %arg3[%c0_1, %c0_2] : memref<32x128xbf16, #tpu.memory_space<vmem>>, vector<32x128xbf16>
    %cst = arith.constant dense<0.000000e+00> : vector<1024x128xf32>
    %2 = tpu.matmul %0, %1, %cst {dimension_numbers = #tpu.dot_dimension_numbers<[1], [0], [0], [1], [0, 0, 1, 1], [], []>} : vector<1024x32xbf16>, vector<32x128xbf16>, vector<1024x128xf32> -> vector<1024x128xf32>
    %c0_3 = arith.constant 0 : index
    %c0_4 = arith.constant 0 : index
    %3 = vector.load %arg4[%c0_3, %c0_4] : memref<1x128xf32, #tpu.memory_space<vmem>>, vector<1x128xf32>
    %4 = vector.broadcast %3 : vector<1x128xf32> to vector<1024x128xf32>
    %5 = arith.addf %2, %4 : vector<1024x128xf32>
    %cst_5 = arith.constant 0.000000e+00 : f32
    %6 = vector.broadcast %cst_5 : f32 to vector<1024x128xf32>
    %7 = arith.maximumf %5, %6 : vector<1024x128xf32>
    %8 = arith.truncf %7 : vector<1024x128xf32> to vector<1024x128xbf16>
    %c0_6 = arith.constant 0 : index
    %c0_7 = arith.constant 0 : index
    %9 = vector.load %arg5[%c0_6, %c0_7] : memref<1024x128xbf16, #tpu.memory_space<vmem>>, vector<1024x128xbf16>
    tpu.vector_store %arg5[%c0_6, %c0_7], %8 {strides = array<i32>} : memref<1024x128xbf16, #tpu.memory_space<vmem>>, vector<1024x128xbf16>,
    return
  }
  func.func @transform_0(%arg0: i32, %arg1: i32) -> (i32, i32) {
    %c0_i32 = arith.constant 0 : i32
    %c0_i32_0 = arith.constant 0 : i32
    return %arg1, %c0_i32 : i32, i32
  }
  func.func @transform_1(%arg0: i32, %arg1: i32) -> (i32, i32) {
    %c0_i32 = arith.constant 0 : i32
    %c0_i32_0 = arith.constant 0 : i32
    return %c0_i32, %arg0 : i32, i32
  }
  func.func @transform_2(%arg0: i32, %arg1: i32) -> (i32, i32) {
    %c0_i32 = arith.constant 0 : i32
    %c0_i32_0 = arith.constant 0 : i32
    return %c0_i32, %arg0 : i32, i32
  }
  func.func @transform_3(%arg0: i32, %arg1: i32) -> (i32, i32) {
    %c0_i32 = arith.constant 0 : i32
    return %arg1, %arg0 : i32, i32
  }
}

module attributes {stable_mosaic.version = 11 : i64} {
  func.func @_mm_kernel(%arg0: i32, %arg1: i32, %arg2: memref<256x288xbf16, #tpu.memory_space<vmem>>, %arg3: memref<288x128xbf16, #tpu.memory_space<vmem>>, %arg4: memref<1x128xf32, #tpu.memory_space<vmem>>, %arg5: memref<256x128xbf16, #tpu.memory_space<vmem>>) attributes {dimension_semantics = [#tpu.dimension_semantics<parallel>, #tpu.dimension_semantics<parallel>], iteration_bounds = array<i64: 1, 2>, scalar_prefetch = 0 : i64, scratch_operands = 0 : i64, tpu.core_type = #tpu.core_type<tc>, window_params = [{transform_indices = @transform_0, window_bounds = array<i64: 256, 288>}, {transform_indices = @transform_1, window_bounds = array<i64: 288, 128>}, {transform_indices = @transform_2, window_bounds = array<i64: 1, 128>}, {transform_indices = @transform_3, window_bounds = array<i64: 256, 128>}]} {
    %c0 = arith.constant 0 : index
    %c0_0 = arith.constant 0 : index
    %0 = vector.load %arg2[%c0, %c0_0] : memref<256x288xbf16, #tpu.memory_space<vmem>>, vector<256x288xbf16>
    %c0_1 = arith.constant 0 : index
    %c0_2 = arith.constant 0 : index
    %1 = vector.load %arg3[%c0_1, %c0_2] : memref<288x128xbf16, #tpu.memory_space<vmem>>, vector<288x128xbf16>
    %cst = arith.constant dense<0.000000e+00> : vector<256x128xf32>
    %2 = tpu.matmul %0, %1, %cst {dimension_numbers = #tpu.dot_dimension_numbers<[1], [0], [0], [1], [0, 0, 1, 1], [], []>} : vector<256x288xbf16>, vector<288x128xbf16>, vector<256x128xf32> -> vector<256x128xf32>
    %c0_3 = arith.constant 0 : index
    %c0_4 = arith.constant 0 : index
    %3 = vector.load %arg4[%c0_3, %c0_4] : memref<1x128xf32, #tpu.memory_space<vmem>>, vector<1x128xf32>
    %4 = vector.broadcast %3 : vector<1x128xf32> to vector<256x128xf32>
    %5 = arith.addf %2, %4 : vector<256x128xf32>
    %cst_5 = arith.constant 0.000000e+00 : f32
    %6 = vector.broadcast %cst_5 : f32 to vector<256x128xf32>
    %7 = arith.maximumf %5, %6 : vector<256x128xf32>
    %8 = arith.truncf %7 : vector<256x128xf32> to vector<256x128xbf16>
    %c0_6 = arith.constant 0 : index
    %c0_7 = arith.constant 0 : index
    %9 = vector.load %arg5[%c0_6, %c0_7] : memref<256x128xbf16, #tpu.memory_space<vmem>>, vector<256x128xbf16>
    tpu.vector_store %arg5[%c0_6, %c0_7], %8 {strides = array<i32>} : memref<256x128xbf16, #tpu.memory_space<vmem>>, vector<256x128xbf16>,
    return
  }
  func.func @transform_0(%arg0: i32, %arg1: i32) -> (i32, i32) {
    %c0_i32 = arith.constant 0 : i32
    %c0_i32_0 = arith.constant 0 : i32
    return %arg1, %c0_i32 : i32, i32
  }
  func.func @transform_1(%arg0: i32, %arg1: i32) -> (i32, i32) {
    %c0_i32 = arith.constant 0 : i32
    %c0_i32_0 = arith.constant 0 : i32
    return %c0_i32, %arg0 : i32, i32
  }
  func.func @transform_2(%arg0: i32, %arg1: i32) -> (i32, i32) {
    %c0_i32 = arith.constant 0 : i32
    %c0_i32_0 = arith.constant 0 : i32
    return %c0_i32, %arg0 : i32, i32
  }
  func.func @transform_3(%arg0: i32, %arg1: i32) -> (i32, i32) {
    %c0_i32 = arith.constant 0 : i32
    return %arg1, %arg0 : i32, i32
  }
}

module attributes {stable_mosaic.version = 11 : i64} {
  func.func @_mm_kernel(%arg0: i32, %arg1: i32, %arg2: memref<256x576xbf16, #tpu.memory_space<vmem>>, %arg3: memref<576x128xbf16, #tpu.memory_space<vmem>>, %arg4: memref<1x128xf32, #tpu.memory_space<vmem>>, %arg5: memref<256x128xbf16, #tpu.memory_space<vmem>>) attributes {dimension_semantics = [#tpu.dimension_semantics<parallel>, #tpu.dimension_semantics<parallel>], iteration_bounds = array<i64: 1, 2>, scalar_prefetch = 0 : i64, scratch_operands = 0 : i64, tpu.core_type = #tpu.core_type<tc>, window_params = [{transform_indices = @transform_0, window_bounds = array<i64: 256, 576>}, {transform_indices = @transform_1, window_bounds = array<i64: 576, 128>}, {transform_indices = @transform_2, window_bounds = array<i64: 1, 128>}, {transform_indices = @transform_3, window_bounds = array<i64: 256, 128>}]} {
    %c0 = arith.constant 0 : index
    %c0_0 = arith.constant 0 : index
    %0 = vector.load %arg2[%c0, %c0_0] : memref<256x576xbf16, #tpu.memory_space<vmem>>, vector<256x576xbf16>
    %c0_1 = arith.constant 0 : index
    %c0_2 = arith.constant 0 : index
    %1 = vector.load %arg3[%c0_1, %c0_2] : memref<576x128xbf16, #tpu.memory_space<vmem>>, vector<576x128xbf16>
    %cst = arith.constant dense<0.000000e+00> : vector<256x128xf32>
    %2 = tpu.matmul %0, %1, %cst {dimension_numbers = #tpu.dot_dimension_numbers<[1], [0], [0], [1], [0, 0, 1, 1], [], []>} : vector<256x576xbf16>, vector<576x128xbf16>, vector<256x128xf32> -> vector<256x128xf32>
    %c0_3 = arith.constant 0 : index
    %c0_4 = arith.constant 0 : index
    %3 = vector.load %arg4[%c0_3, %c0_4] : memref<1x128xf32, #tpu.memory_space<vmem>>, vector<1x128xf32>
    %4 = vector.broadcast %3 : vector<1x128xf32> to vector<256x128xf32>
    %5 = arith.addf %2, %4 : vector<256x128xf32>
    %cst_5 = arith.constant 0.000000e+00 : f32
    %6 = vector.broadcast %cst_5 : f32 to vector<256x128xf32>
    %7 = arith.maximumf %5, %6 : vector<256x128xf32>
    %8 = arith.truncf %7 : vector<256x128xf32> to vector<256x128xbf16>
    %c0_6 = arith.constant 0 : index
    %c0_7 = arith.constant 0 : index
    %9 = vector.load %arg5[%c0_6, %c0_7] : memref<256x128xbf16, #tpu.memory_space<vmem>>, vector<256x128xbf16>
    tpu.vector_store %arg5[%c0_6, %c0_7], %8 {strides = array<i32>} : memref<256x128xbf16, #tpu.memory_space<vmem>>, vector<256x128xbf16>,
    return
  }
  func.func @transform_0(%arg0: i32, %arg1: i32) -> (i32, i32) {
    %c0_i32 = arith.constant 0 : i32
    %c0_i32_0 = arith.constant 0 : i32
    return %arg1, %c0_i32 : i32, i32
  }
  func.func @transform_1(%arg0: i32, %arg1: i32) -> (i32, i32) {
    %c0_i32 = arith.constant 0 : i32
    %c0_i32_0 = arith.constant 0 : i32
    return %c0_i32, %arg0 : i32, i32
  }
  func.func @transform_2(%arg0: i32, %arg1: i32) -> (i32, i32) {
    %c0_i32 = arith.constant 0 : i32
    %c0_i32_0 = arith.constant 0 : i32
    return %c0_i32, %arg0 : i32, i32
  }
  func.func @transform_3(%arg0: i32, %arg1: i32) -> (i32, i32) {
    %c0_i32 = arith.constant 0 : i32
    return %arg1, %arg0 : i32, i32
  }
}

module attributes {stable_mosaic.version = 11 : i64} {
  func.func @_mm_kernel(%arg0: i32, %arg1: i32, %arg2: memref<128x576xbf16, #tpu.memory_space<vmem>>, %arg3: memref<576x128xbf16, #tpu.memory_space<vmem>>, %arg4: memref<1x128xf32, #tpu.memory_space<vmem>>, %arg5: memref<128x128xbf16, #tpu.memory_space<vmem>>) attributes {dimension_semantics = [#tpu.dimension_semantics<parallel>, #tpu.dimension_semantics<parallel>], iteration_bounds = array<i64: 1, 1>, scalar_prefetch = 0 : i64, scratch_operands = 0 : i64, tpu.core_type = #tpu.core_type<tc>, window_params = [{transform_indices = @transform_0, window_bounds = array<i64: 128, 576>}, {transform_indices = @transform_1, window_bounds = array<i64: 576, 128>}, {transform_indices = @transform_2, window_bounds = array<i64: 1, 128>}, {transform_indices = @transform_3, window_bounds = array<i64: 128, 128>}]} {
    %c0 = arith.constant 0 : index
    %c0_0 = arith.constant 0 : index
    %0 = vector.load %arg2[%c0, %c0_0] : memref<128x576xbf16, #tpu.memory_space<vmem>>, vector<128x576xbf16>
    %c0_1 = arith.constant 0 : index
    %c0_2 = arith.constant 0 : index
    %1 = vector.load %arg3[%c0_1, %c0_2] : memref<576x128xbf16, #tpu.memory_space<vmem>>, vector<576x128xbf16>
    %cst = arith.constant dense<0.000000e+00> : vector<128x128xf32>
    %2 = tpu.matmul %0, %1, %cst {dimension_numbers = #tpu.dot_dimension_numbers<[1], [0], [0], [1], [0, 0, 1, 1], [], []>} : vector<128x576xbf16>, vector<576x128xbf16>, vector<128x128xf32> -> vector<128x128xf32>
    %c0_3 = arith.constant 0 : index
    %c0_4 = arith.constant 0 : index
    %3 = vector.load %arg4[%c0_3, %c0_4] : memref<1x128xf32, #tpu.memory_space<vmem>>, vector<1x128xf32>
    %4 = vector.broadcast %3 : vector<1x128xf32> to vector<128x128xf32>
    %5 = arith.addf %2, %4 : vector<128x128xf32>
    %cst_5 = arith.constant 0.000000e+00 : f32
    %6 = vector.broadcast %cst_5 : f32 to vector<128x128xf32>
    %7 = arith.maximumf %5, %6 : vector<128x128xf32>
    %8 = arith.truncf %7 : vector<128x128xf32> to vector<128x128xbf16>
    %c0_6 = arith.constant 0 : index
    %c0_7 = arith.constant 0 : index
    %9 = vector.load %arg5[%c0_6, %c0_7] : memref<128x128xbf16, #tpu.memory_space<vmem>>, vector<128x128xbf16>
    tpu.vector_store %arg5[%c0_6, %c0_7], %8 {strides = array<i32>} : memref<128x128xbf16, #tpu.memory_space<vmem>>, vector<128x128xbf16>,
    return
  }
  func.func @transform_0(%arg0: i32, %arg1: i32) -> (i32, i32) {
    %c0_i32 = arith.constant 0 : i32
    %c0_i32_0 = arith.constant 0 : i32
    return %arg1, %c0_i32 : i32, i32
  }
  func.func @transform_1(%arg0: i32, %arg1: i32) -> (i32, i32) {
    %c0_i32 = arith.constant 0 : i32
    %c0_i32_0 = arith.constant 0 : i32
    return %c0_i32, %arg0 : i32, i32
  }
  func.func @transform_2(%arg0: i32, %arg1: i32) -> (i32, i32) {
    %c0_i32 = arith.constant 0 : i32
    %c0_i32_0 = arith.constant 0 : i32
    return %c0_i32, %arg0 : i32, i32
  }
  func.func @transform_3(%arg0: i32, %arg1: i32) -> (i32, i32) {
    %c0_i32 = arith.constant 0 : i32
    return %arg1, %arg0 : i32, i32
  }
}

module attributes {stable_mosaic.version = 11 : i64} {
  func.func @_mm_kernel(%arg0: i32, %arg1: i32, %arg2: memref<128x128xbf16, #tpu.memory_space<vmem>>, %arg3: memref<128x256xbf16, #tpu.memory_space<vmem>>, %arg4: memref<1x256xf32, #tpu.memory_space<vmem>>, %arg5: memref<128x256xbf16, #tpu.memory_space<vmem>>) attributes {dimension_semantics = [#tpu.dimension_semantics<parallel>, #tpu.dimension_semantics<parallel>], iteration_bounds = array<i64: 1, 1>, scalar_prefetch = 0 : i64, scratch_operands = 0 : i64, tpu.core_type = #tpu.core_type<tc>, window_params = [{transform_indices = @transform_0, window_bounds = array<i64: 128, 128>}, {transform_indices = @transform_1, window_bounds = array<i64: 128, 256>}, {transform_indices = @transform_2, window_bounds = array<i64: 1, 256>}, {transform_indices = @transform_3, window_bounds = array<i64: 128, 256>}]} {
    %c0 = arith.constant 0 : index
    %c0_0 = arith.constant 0 : index
    %0 = vector.load %arg2[%c0, %c0_0] : memref<128x128xbf16, #tpu.memory_space<vmem>>, vector<128x128xbf16>
    %c0_1 = arith.constant 0 : index
    %c0_2 = arith.constant 0 : index
    %1 = vector.load %arg3[%c0_1, %c0_2] : memref<128x256xbf16, #tpu.memory_space<vmem>>, vector<128x256xbf16>
    %cst = arith.constant dense<0.000000e+00> : vector<128x256xf32>
    %2 = tpu.matmul %0, %1, %cst {dimension_numbers = #tpu.dot_dimension_numbers<[1], [0], [0], [1], [0, 0, 1, 1], [], []>} : vector<128x128xbf16>, vector<128x256xbf16>, vector<128x256xf32> -> vector<128x256xf32>
    %c0_3 = arith.constant 0 : index
    %c0_4 = arith.constant 0 : index
    %3 = vector.load %arg4[%c0_3, %c0_4] : memref<1x256xf32, #tpu.memory_space<vmem>>, vector<1x256xf32>
    %4 = vector.broadcast %3 : vector<1x256xf32> to vector<128x256xf32>
    %5 = arith.addf %2, %4 : vector<128x256xf32>
    %cst_5 = arith.constant 0.000000e+00 : f32
    %6 = vector.broadcast %cst_5 : f32 to vector<128x256xf32>
    %7 = arith.maximumf %5, %6 : vector<128x256xf32>
    %8 = arith.truncf %7 : vector<128x256xf32> to vector<128x256xbf16>
    %c0_6 = arith.constant 0 : index
    %c0_7 = arith.constant 0 : index
    %9 = vector.load %arg5[%c0_6, %c0_7] : memref<128x256xbf16, #tpu.memory_space<vmem>>, vector<128x256xbf16>
    tpu.vector_store %arg5[%c0_6, %c0_7], %8 {strides = array<i32>} : memref<128x256xbf16, #tpu.memory_space<vmem>>, vector<128x256xbf16>,
    return
  }
  func.func @transform_0(%arg0: i32, %arg1: i32) -> (i32, i32) {
    %c0_i32 = arith.constant 0 : i32
    %c0_i32_0 = arith.constant 0 : i32
    return %arg1, %c0_i32 : i32, i32
  }
  func.func @transform_1(%arg0: i32, %arg1: i32) -> (i32, i32) {
    %c0_i32 = arith.constant 0 : i32
    %c0_i32_0 = arith.constant 0 : i32
    return %c0_i32, %arg0 : i32, i32
  }
  func.func @transform_2(%arg0: i32, %arg1: i32) -> (i32, i32) {
    %c0_i32 = arith.constant 0 : i32
    %c0_i32_0 = arith.constant 0 : i32
    return %c0_i32, %arg0 : i32, i32
  }
  func.func @transform_3(%arg0: i32, %arg1: i32) -> (i32, i32) {
    %c0_i32 = arith.constant 0 : i32
    return %arg1, %arg0 : i32, i32
  }
}

module attributes {stable_mosaic.version = 11 : i64} {
  func.func @_attn_pool_kernel(%arg0: i32, %arg1: memref<1x256x64xbf16, #tpu.memory_space<vmem>>, %arg2: memref<64x192xbf16, #tpu.memory_space<vmem>>, %arg3: memref<1x192xf32, #tpu.memory_space<vmem>>, %arg4: memref<64x64xbf16, #tpu.memory_space<vmem>>, %arg5: memref<1x64xf32, #tpu.memory_space<vmem>>, %arg6: memref<1x1x64xf32, #tpu.memory_space<vmem>>) attributes {dimension_semantics = [#tpu.dimension_semantics<parallel>], iteration_bounds = array<i64: 2>, scalar_prefetch = 0 : i64, scratch_operands = 0 : i64, tpu.core_type = #tpu.core_type<tc>, window_params = [{transform_indices = @transform_0, window_bounds = array<i64: 1, 256, 64>}, {pipeline_mode = #tpu.pipeline_mode<synchronous>, transform_indices = @transform_1, window_bounds = array<i64: 64, 192>}, {pipeline_mode = #tpu.pipeline_mode<synchronous>, transform_indices = @transform_2, window_bounds = array<i64: 1, 192>}, {pipeline_mode = #tpu.pipeline_mode<synchronous>, transform_indices = @transform_3, window_bounds = array<i64: 64, 64>}, {pipeline_mode = #tpu.pipeline_mode<synchronous>, transform_indices = @transform_4, window_bounds = array<i64: 1, 64>}, {transform_indices = @transform_5, window_bounds = array<i64: 1, 1, 64>}]} {
    %c0 = arith.constant 0 : index
    %c0_0 = arith.constant 0 : index
    %c0_1 = arith.constant 0 : index
    %0 = vector.load %arg1[%c0, %c0_0, %c0_1] : memref<1x256x64xbf16, #tpu.memory_space<vmem>>, vector<1x256x64xbf16>
    %1 = vector.shape_cast %0 : vector<1x256x64xbf16> to vector<256x64xbf16>
    %c0_2 = arith.constant 0 : index
    %c0_3 = arith.constant 0 : index
    %2 = vector.load %arg2[%c0_2, %c0_3] : memref<64x192xbf16, #tpu.memory_space<vmem>>, vector<64x192xbf16>
    %cst = arith.constant dense<0.000000e+00> : vector<256x192xf32>
    %3 = tpu.matmul %1, %2, %cst {dimension_numbers = #tpu.dot_dimension_numbers<[1], [0], [0], [1], [0, 0, 1, 1], [], []>} : vector<256x64xbf16>, vector<64x192xbf16>, vector<256x192xf32> -> vector<256x192xf32>
    %c0_4 = arith.constant 0 : index
    %c0_5 = arith.constant 0 : index
    %4 = vector.load %arg3[%c0_4, %c0_5] : memref<1x192xf32, #tpu.memory_space<vmem>>, vector<1x192xf32>
    %5 = vector.broadcast %4 : vector<1x192xf32> to vector<256x192xf32>
    %6 = arith.addf %3, %5 : vector<256x192xf32>
    %c0_6 = arith.constant 0 : index
    %c0_7 = arith.constant 0 : index
    %7 = vector.load %arg4[%c0_6, %c0_7] : memref<64x64xbf16, #tpu.memory_space<vmem>>, vector<64x64xbf16>
    %cst_8 = arith.constant 0.000000e+00 : f32
    %8 = vector.broadcast %cst_8 : f32 to vector<256x64xf32>
    %9 = vector.extract_strided_slice %6 {offsets = [0, 0], sizes = [256, 16], strides = [1, 1]} : vector<256x192xf32> to vector<256x16xf32>
    %cst_9 = arith.constant 2.500000e-01 : f32
    %10 = vector.broadcast %cst_9 : f32 to vector<256x16xf32>
    %11 = arith.mulf %9, %10 : vector<256x16xf32>
    %12 = arith.truncf %11 : vector<256x16xf32> to vector<256x16xbf16>
    %13 = vector.extract_strided_slice %6 {offsets = [0, 64], sizes = [256, 16], strides = [1, 1]} : vector<256x192xf32> to vector<256x16xf32>
    %14 = arith.truncf %13 : vector<256x16xf32> to vector<256x16xbf16>
    %15 = vector.extract_strided_slice %6 {offsets = [0, 128], sizes = [256, 16], strides = [1, 1]} : vector<256x192xf32> to vector<256x16xf32>
    %16 = arith.truncf %15 : vector<256x16xf32> to vector<256x16xbf16>
    %cst_10 = arith.constant dense<0.000000e+00> : vector<256x256xf32>
    %17 = tpu.matmul %12, %14, %cst_10 {dimension_numbers = #tpu.dot_dimension_numbers<[1], [1], [0], [0], [0, 0, 1, 0], [], []>} : vector<256x16xbf16>, vector<256x16xbf16>, vector<256x256xf32> -> vector<256x256xf32>
    %cst_11 = arith.constant dense<0xFF800000> : vector<256xf32>
    %18 = vector.multi_reduction <maximumf>, %17, %cst_11 [1] : vector<256x256xf32> to vector<256xf32>
    %19 = vector.shape_cast %18 : vector<256xf32> to vector<256x1xf32>
    %20 = vector.broadcast %19 : vector<256x1xf32> to vector<256x256xf32>
    %21 = arith.subf %17, %20 : vector<256x256xf32>
    %22 = math.exp %21 : vector<256x256xf32>
    %cst_12 = arith.constant dense<0.000000e+00> : vector<256xf32>
    %23 = vector.multi_reduction <add>, %22, %cst_12 [1] : vector<256x256xf32> to vector<256xf32>
    %24 = vector.shape_cast %23 : vector<256xf32> to vector<256x1xf32>
    %25 = arith.truncf %22 : vector<256x256xf32> to vector<256x256xbf16>
    %cst_13 = arith.constant dense<0.000000e+00> : vector<256x16xf32>
    %26 = tpu.matmul %25, %16, %cst_13 {dimension_numbers = #tpu.dot_dimension_numbers<[1], [0], [0], [1], [0, 0, 1, 1], [], []>} : vector<256x256xbf16>, vector<256x16xbf16>, vector<256x16xf32> -> vector<256x16xf32>
    %27 = vector.broadcast %24 : vector<256x1xf32> to vector<256x16xf32>
    %28 = arith.divf %26, %27 : vector<256x16xf32>
    %29 = arith.truncf %28 : vector<256x16xf32> to vector<256x16xbf16>
    %30 = vector.extract_strided_slice %7 {offsets = [0, 0], sizes = [16, 64], strides = [1, 1]} : vector<64x64xbf16> to vector<16x64xbf16>
    %cst_14 = arith.constant dense<0.000000e+00> : vector<256x64xf32>
    %31 = tpu.matmul %29, %30, %cst_14 {dimension_numbers = #tpu.dot_dimension_numbers<[1], [0], [0], [1], [0, 0, 1, 1], [], []>} : vector<256x16xbf16>, vector<16x64xbf16>, vector<256x64xf32> -> vector<256x64xf32>
    %32 = arith.addf %8, %31 : vector<256x64xf32>
    %33 = vector.extract_strided_slice %6 {offsets = [0, 16], sizes = [256, 16], strides = [1, 1]} : vector<256x192xf32> to vector<256x16xf32>
    %cst_15 = arith.constant 2.500000e-01 : f32
    %34 = vector.broadcast %cst_15 : f32 to vector<256x16xf32>
    %35 = arith.mulf %33, %34 : vector<256x16xf32>
    %36 = arith.truncf %35 : vector<256x16xf32> to vector<256x16xbf16>
    %37 = vector.extract_strided_slice %6 {offsets = [0, 80], sizes = [256, 16], strides = [1, 1]} : vector<256x192xf32> to vector<256x16xf32>
    %38 = arith.truncf %37 : vector<256x16xf32> to vector<256x16xbf16>
    %39 = vector.extract_strided_slice %6 {offsets = [0, 144], sizes = [256, 16], strides = [1, 1]} : vector<256x192xf32> to vector<256x16xf32>
    %40 = arith.truncf %39 : vector<256x16xf32> to vector<256x16xbf16>
    %cst_16 = arith.constant dense<0.000000e+00> : vector<256x256xf32>
    %41 = tpu.matmul %36, %38, %cst_16 {dimension_numbers = #tpu.dot_dimension_numbers<[1], [1], [0], [0], [0, 0, 1, 0], [], []>} : vector<256x16xbf16>, vector<256x16xbf16>, vector<256x256xf32> -> vector<256x256xf32>
    %cst_17 = arith.constant dense<0xFF800000> : vector<256xf32>
    %42 = vector.multi_reduction <maximumf>, %41, %cst_17 [1] : vector<256x256xf32> to vector<256xf32>
    %43 = vector.shape_cast %42 : vector<256xf32> to vector<256x1xf32>
    %44 = vector.broadcast %43 : vector<256x1xf32> to vector<256x256xf32>
    %45 = arith.subf %41, %44 : vector<256x256xf32>
    %46 = math.exp %45 : vector<256x256xf32>
    %cst_18 = arith.constant dense<0.000000e+00> : vector<256xf32>
    %47 = vector.multi_reduction <add>, %46, %cst_18 [1] : vector<256x256xf32> to vector<256xf32>
    %48 = vector.shape_cast %47 : vector<256xf32> to vector<256x1xf32>
    %49 = arith.truncf %46 : vector<256x256xf32> to vector<256x256xbf16>
    %cst_19 = arith.constant dense<0.000000e+00> : vector<256x16xf32>
    %50 = tpu.matmul %49, %40, %cst_19 {dimension_numbers = #tpu.dot_dimension_numbers<[1], [0], [0], [1], [0, 0, 1, 1], [], []>} : vector<256x256xbf16>, vector<256x16xbf16>, vector<256x16xf32> -> vector<256x16xf32>
    %51 = vector.broadcast %48 : vector<256x1xf32> to vector<256x16xf32>
    %52 = arith.divf %50, %51 : vector<256x16xf32>
    %53 = arith.truncf %52 : vector<256x16xf32> to vector<256x16xbf16>
    %54 = vector.extract_strided_slice %7 {offsets = [16, 0], sizes = [16, 64], strides = [1, 1]} : vector<64x64xbf16> to vector<16x64xbf16>
    %cst_20 = arith.constant dense<0.000000e+00> : vector<256x64xf32>
    %55 = tpu.matmul %53, %54, %cst_20 {dimension_numbers = #tpu.dot_dimension_numbers<[1], [0], [0], [1], [0, 0, 1, 1], [], []>} : vector<256x16xbf16>, vector<16x64xbf16>, vector<256x64xf32> -> vector<256x64xf32>
    %56 = arith.addf %32, %55 : vector<256x64xf32>
    %57 = vector.extract_strided_slice %6 {offsets = [0, 32], sizes = [256, 16], strides = [1, 1]} : vector<256x192xf32> to vector<256x16xf32>
    %cst_21 = arith.constant 2.500000e-01 : f32
    %58 = vector.broadcast %cst_21 : f32 to vector<256x16xf32>
    %59 = arith.mulf %57, %58 : vector<256x16xf32>
    %60 = arith.truncf %59 : vector<256x16xf32> to vector<256x16xbf16>
    %61 = vector.extract_strided_slice %6 {offsets = [0, 96], sizes = [256, 16], strides = [1, 1]} : vector<256x192xf32> to vector<256x16xf32>
    %62 = arith.truncf %61 : vector<256x16xf32> to vector<256x16xbf16>
    %63 = vector.extract_strided_slice %6 {offsets = [0, 160], sizes = [256, 16], strides = [1, 1]} : vector<256x192xf32> to vector<256x16xf32>
    %64 = arith.truncf %63 : vector<256x16xf32> to vector<256x16xbf16>
    %cst_22 = arith.constant dense<0.000000e+00> : vector<256x256xf32>
    %65 = tpu.matmul %60, %62, %cst_22 {dimension_numbers = #tpu.dot_dimension_numbers<[1], [1], [0], [0], [0, 0, 1, 0], [], []>} : vector<256x16xbf16>, vector<256x16xbf16>, vector<256x256xf32> -> vector<256x256xf32>
    %cst_23 = arith.constant dense<0xFF800000> : vector<256xf32>
    %66 = vector.multi_reduction <maximumf>, %65, %cst_23 [1] : vector<256x256xf32> to vector<256xf32>
    %67 = vector.shape_cast %66 : vector<256xf32> to vector<256x1xf32>
    %68 = vector.broadcast %67 : vector<256x1xf32> to vector<256x256xf32>
    %69 = arith.subf %65, %68 : vector<256x256xf32>
    %70 = math.exp %69 : vector<256x256xf32>
    %cst_24 = arith.constant dense<0.000000e+00> : vector<256xf32>
    %71 = vector.multi_reduction <add>, %70, %cst_24 [1] : vector<256x256xf32> to vector<256xf32>
    %72 = vector.shape_cast %71 : vector<256xf32> to vector<256x1xf32>
    %73 = arith.truncf %70 : vector<256x256xf32> to vector<256x256xbf16>
    %cst_25 = arith.constant dense<0.000000e+00> : vector<256x16xf32>
    %74 = tpu.matmul %73, %64, %cst_25 {dimension_numbers = #tpu.dot_dimension_numbers<[1], [0], [0], [1], [0, 0, 1, 1], [], []>} : vector<256x256xbf16>, vector<256x16xbf16>, vector<256x16xf32> -> vector<256x16xf32>
    %75 = vector.broadcast %72 : vector<256x1xf32> to vector<256x16xf32>
    %76 = arith.divf %74, %75 : vector<256x16xf32>
    %77 = arith.truncf %76 : vector<256x16xf32> to vector<256x16xbf16>
    %78 = vector.extract_strided_slice %7 {offsets = [32, 0], sizes = [16, 64], strides = [1, 1]} : vector<64x64xbf16> to vector<16x64xbf16>
    %cst_26 = arith.constant dense<0.000000e+00> : vector<256x64xf32>
    %79 = tpu.matmul %77, %78, %cst_26 {dimension_numbers = #tpu.dot_dimension_numbers<[1], [0], [0], [1], [0, 0, 1, 1], [], []>} : vector<256x16xbf16>, vector<16x64xbf16>, vector<256x64xf32> -> vector<256x64xf32>
    %80 = arith.addf %56, %79 : vector<256x64xf32>
    %81 = vector.extract_strided_slice %6 {offsets = [0, 48], sizes = [256, 16], strides = [1, 1]} : vector<256x192xf32> to vector<256x16xf32>
    %cst_27 = arith.constant 2.500000e-01 : f32
    %82 = vector.broadcast %cst_27 : f32 to vector<256x16xf32>
    %83 = arith.mulf %81, %82 : vector<256x16xf32>
    %84 = arith.truncf %83 : vector<256x16xf32> to vector<256x16xbf16>
    %85 = vector.extract_strided_slice %6 {offsets = [0, 112], sizes = [256, 16], strides = [1, 1]} : vector<256x192xf32> to vector<256x16xf32>
    %86 = arith.truncf %85 : vector<256x16xf32> to vector<256x16xbf16>
    %87 = vector.extract_strided_slice %6 {offsets = [0, 176], sizes = [256, 16], strides = [1, 1]} : vector<256x192xf32> to vector<256x16xf32>
    %88 = arith.truncf %87 : vector<256x16xf32> to vector<256x16xbf16>
    %cst_28 = arith.constant dense<0.000000e+00> : vector<256x256xf32>
    %89 = tpu.matmul %84, %86, %cst_28 {dimension_numbers = #tpu.dot_dimension_numbers<[1], [1], [0], [0], [0, 0, 1, 0], [], []>} : vector<256x16xbf16>, vector<256x16xbf16>, vector<256x256xf32> -> vector<256x256xf32>
    %cst_29 = arith.constant dense<0xFF800000> : vector<256xf32>
    %90 = vector.multi_reduction <maximumf>, %89, %cst_29 [1] : vector<256x256xf32> to vector<256xf32>
    %91 = vector.shape_cast %90 : vector<256xf32> to vector<256x1xf32>
    %92 = vector.broadcast %91 : vector<256x1xf32> to vector<256x256xf32>
    %93 = arith.subf %89, %92 : vector<256x256xf32>
    %94 = math.exp %93 : vector<256x256xf32>
    %cst_30 = arith.constant dense<0.000000e+00> : vector<256xf32>
    %95 = vector.multi_reduction <add>, %94, %cst_30 [1] : vector<256x256xf32> to vector<256xf32>
    %96 = vector.shape_cast %95 : vector<256xf32> to vector<256x1xf32>
    %97 = arith.truncf %94 : vector<256x256xf32> to vector<256x256xbf16>
    %cst_31 = arith.constant dense<0.000000e+00> : vector<256x16xf32>
    %98 = tpu.matmul %97, %88, %cst_31 {dimension_numbers = #tpu.dot_dimension_numbers<[1], [0], [0], [1], [0, 0, 1, 1], [], []>} : vector<256x256xbf16>, vector<256x16xbf16>, vector<256x16xf32> -> vector<256x16xf32>
    %99 = vector.broadcast %96 : vector<256x1xf32> to vector<256x16xf32>
    %100 = arith.divf %98, %99 : vector<256x16xf32>
    %101 = arith.truncf %100 : vector<256x16xf32> to vector<256x16xbf16>
    %102 = vector.extract_strided_slice %7 {offsets = [48, 0], sizes = [16, 64], strides = [1, 1]} : vector<64x64xbf16> to vector<16x64xbf16>
    %cst_32 = arith.constant dense<0.000000e+00> : vector<256x64xf32>
    %103 = tpu.matmul %101, %102, %cst_32 {dimension_numbers = #tpu.dot_dimension_numbers<[1], [0], [0], [1], [0, 0, 1, 1], [], []>} : vector<256x16xbf16>, vector<16x64xbf16>, vector<256x64xf32> -> vector<256x64xf32>
    %104 = arith.addf %80, %103 : vector<256x64xf32>
    %c0_33 = arith.constant 0 : index
    %c0_34 = arith.constant 0 : index
    %105 = vector.load %arg5[%c0_33, %c0_34] : memref<1x64xf32, #tpu.memory_space<vmem>>, vector<1x64xf32>
    %106 = vector.broadcast %105 : vector<1x64xf32> to vector<256x64xf32>
    %107 = arith.addf %104, %106 : vector<256x64xf32>
    %cst_35 = arith.constant dense<0.000000e+00> : vector<64xf32>
    %108 = vector.multi_reduction <add>, %107, %cst_35 [0] : vector<256x64xf32> to vector<64xf32>
    %109 = vector.shape_cast %108 : vector<64xf32> to vector<1x64xf32>
    %cst_36 = arith.constant 2.560000e+02 : f32
    %110 = vector.broadcast %cst_36 : f32 to vector<1x64xf32>
    %111 = arith.divf %109, %110 : vector<1x64xf32>
    %c0_37 = arith.constant 0 : index
    %c0_38 = arith.constant 0 : index
    %c0_39 = arith.constant 0 : index
    %112 = vector.load %arg6[%c0_37, %c0_38, %c0_39] : memref<1x1x64xf32, #tpu.memory_space<vmem>>, vector<1x1x64xf32>
    %113 = vector.shape_cast %112 : vector<1x1x64xf32> to vector<1x64xf32>
    %114 = vector.shape_cast %111 : vector<1x64xf32> to vector<1x1x64xf32>
    tpu.vector_store %arg6[%c0_37, %c0_38, %c0_39], %114 {strides = array<i32>} : memref<1x1x64xf32, #tpu.memory_space<vmem>>, vector<1x1x64xf32>,
    return
  }
  func.func @transform_0(%arg0: i32) -> (i32, i32, i32) {
    %c0_i32 = arith.constant 0 : i32
    %c0_i32_0 = arith.constant 0 : i32
    %c0_i32_1 = arith.constant 0 : i32
    return %arg0, %c0_i32, %c0_i32_0 : i32, i32, i32
  }
  func.func @transform_1(%arg0: i32) -> (i32, i32) {
    %c0_i32 = arith.constant 0 : i32
    %c0_i32_0 = arith.constant 0 : i32
    %c0_i32_1 = arith.constant 0 : i32
    return %c0_i32, %c0_i32_0 : i32, i32
  }
  func.func @transform_2(%arg0: i32) -> (i32, i32) {
    %c0_i32 = arith.constant 0 : i32
    %c0_i32_0 = arith.constant 0 : i32
    %c0_i32_1 = arith.constant 0 : i32
    return %c0_i32, %c0_i32_0 : i32, i32
  }
  func.func @transform_3(%arg0: i32) -> (i32, i32) {
    %c0_i32 = arith.constant 0 : i32
    %c0_i32_0 = arith.constant 0 : i32
    %c0_i32_1 = arith.constant 0 : i32
    return %c0_i32, %c0_i32_0 : i32, i32
  }
  func.func @transform_4(%arg0: i32) -> (i32, i32) {
    %c0_i32 = arith.constant 0 : i32
    %c0_i32_0 = arith.constant 0 : i32
    %c0_i32_1 = arith.constant 0 : i32
    return %c0_i32, %c0_i32_0 : i32, i32
  }
  func.func @transform_5(%arg0: i32) -> (i32, i32, i32) {
    %c0_i32 = arith.constant 0 : i32
    %c0_i32_0 = arith.constant 0 : i32
    %c0_i32_1 = arith.constant 0 : i32
    return %arg0, %c0_i32, %c0_i32_0 : i32, i32, i32
  }
}

</mosaic_0001>

<llo_original>
// kernel: forward.7
$region0: #{forward.7}
  #allocation0 [shape = 'u32[]', space=smem, size = 0x4, offset = 0x4, fixed_abs, tag = 'smem constant byte address 0x4 - core index']
  #allocation1 [shape = 'u32[144,128]{1,0:T(1,128)}', space=vmem, size = 0x12000, scoped, tag = 'internal scratch']
  %s0 = inlined_call_operand.vmem [shape: bf16[2048,32], index: 0, kind: input, shape index: {}]
  %s1 = inlined_call_operand.vmem [shape: bf16[32,128], index: 1, kind: input, shape index: {}]
  %s2 = inlined_call_operand.vmem [shape: f32[1,128], index: 2, kind: input, shape index: {}]
  %s3 = inlined_call_operand.vmem [shape: bf16[2048,128], index: 3, kind: output, shape index: {}]
  %s4 = sld [smem:[#allocation0]]
  $region45: #{forward.7} parent=0
    _
  %s6 = ssub.s32 1, %s4
  %s7 = scalar_select 0, %s6, %s4
  loop: start=0, step=1, limit=4
  $region2: #{forward.7} parent=0 // loop_pre_header
    _
  $region3: #{forward.7} parent=0 // loop_header
    %s9 = sphi 0, %s13
    %p10 = scmp.ge.s32.totalorder %s9, 4
    %s16 = sphi 0, %s28
    %s17 = sphi 0, %s24
    %s18 = sphi 0, %s16
    %s19 = sphi 0, %s17
    %s20 = sphi 0, %s18
    %s21 = sphi 0, %s19
    %s31 = sphi 0, %s33
    %s34 = sphi 0, %s31
    %s35 = sphi 0, %s34
    %s51 = sphi 0, %s35
    %s57 = sphi 0, %s59
    %s60 = sphi 0, %s57
    %s61 = sphi 0, %s60
    %s77 = sphi 0, %s61
    %s83 = sphi 0, %s85
    %s86 = sphi 0, %s83
    %s87 = sphi 0, %s86
    %s103 = sphi 0, %s87
    %s111 = sphi 0, %s113
    %s114 = sphi 0, %s111
    %s115 = sphi 0, %s114
    %s131 = sphi 0, %s115
  $region4: #{forward.7} parent=0 // loop_header_branch
    %12 = sbr.rel (%p10) target = $region8
  $region5: #{forward.7} parent=0 // loop_body
    %s14 = ssub.s32 %s9, 1
    %s15 = ssub.s32 %s9, 2
    %s22 = sadd.s32 1, %s17
    %p23 = scmp.ge.s32.totalorder %s22, 2
    %s24 = scalar_select %p23, 0, %s22
    %s25 = sadd.s32 1, %s16
    %s26 = scalar_select %p23, %s25, %s16
    %p27 = scmp.ge.s32.totalorder %s26, 1
    %s28 = scalar_select %p27, 0, %s26
    %s29 = ssub.s32 %s17, %s24
    %p30 = scmp.eq.s32.totalorder %s29, 0
    %s32 = sadd.s32 %s31, 1
    %s33 = scalar_select %p30, %s31, %s32
    %p36 = pneg %p30
    %p37 = scmp.eq.s32.totalorder %s9, 1
    %p38 = por %p36, %p37
    %p39 = scmp.ne.s32.totalorder %s31, %s34
    %p40 = scmp.eq.s32.totalorder %s9, 0
    %p41 = por %p39, %p40
    %p42 = scmp.ne.s32.totalorder %s31, %s34
    %p43 = scmp.eq.s32.totalorder %s14, 1
    %p44 = por %p42, %p43
    %p45 = scmp.ne.s32.totalorder %s34, %s35
    %p46 = scmp.eq.s32.totalorder %s14, 0
    %p47 = por %p45, %p46
    %p48 = scmp.ne.s32.totalorder %s34, %s35
    %p49 = scmp.eq.s32.totalorder %s15, 1
    %p50 = por %p48, %p49
    %p52 = scmp.ne.s32.totalorder %s35, %s51
    %p53 = scmp.eq.s32.totalorder %s15, 0
    %p54 = por %p52, %p53
    %s55 = ssub.s32 %s16, %s28
    %p56 = scmp.eq.s32.totalorder %s55, 0
    %s58 = sadd.s32 %s57, 1
    %s59 = scalar_select %p56, %s57, %s58
    %p62 = pneg %p56
    %p63 = scmp.eq.s32.totalorder %s9, 1
    %p64 = por %p62, %p63
    %p65 = scmp.ne.s32.totalorder %s57, %s60
    %p66 = scmp.eq.s32.totalorder %s9, 0
    %p67 = por %p65, %p66
    %p68 = scmp.ne.s32.totalorder %s57, %s60
    %p69 = scmp.eq.s32.totalorder %s14, 1
    %p70 = por %p68, %p69
    %p71 = scmp.ne.s32.totalorder %s60, %s61
    %p72 = scmp.eq.s32.totalorder %s14, 0
    %p73 = por %p71, %p72
    %p74 = scmp.ne.s32.totalorder %s60, %s61
    %p75 = scmp.eq.s32.totalorder %s15, 1
    %p76 = por %p74, %p75
    %p78 = scmp.ne.s32.totalorder %s61, %s77
    %p79 = scmp.eq.s32.totalorder %s15, 0
    %p80 = por %p78, %p79
    %s81 = ssub.s32 %s16, %s28
    %p82 = scmp.eq.s32.totalorder %s81, 0
    %s84 = sadd.s32 %s83, 1
    %s85 = scalar_select %p82, %s83, %s84
    %p88 = pneg %p82
    %p89 = scmp.eq.s32.totalorder %s9, 1
    %p90 = por %p88, %p89
    %p91 = scmp.ne.s32.totalorder %s83, %s86
    %p92 = scmp.eq.s32.totalorder %s9, 0
    %p93 = por %p91, %p92
    %p94 = scmp.ne.s32.totalorder %s83, %s86
    %p95 = scmp.eq.s32.totalorder %s14, 1
    %p96 = por %p94, %p95
    %p97 = scmp.ne.s32.totalorder %s86, %s87
    %p98 = scmp.eq.s32.totalorder %s14, 0
    %p99 = por %p97, %p98
    %p100 = scmp.ne.s32.totalorder %s86, %s87
    %p101 = scmp.eq.s32.totalorder %s15, 1
    %p102 = por %p100, %p101
    %p104 = scmp.ne.s32.totalorder %s87, %s103
    %p105 = scmp.eq.s32.totalorder %s15, 0
    %p106 = por %p104, %p105
    %s107 = ssub.s32 %s17, %s24
    %s108 = ssub.s32 %s16, %s28
    %s109 = sor.u32 %s107, %s108
    %p110 = scmp.eq.s32.totalorder %s109, 0
    %s112 = sadd.s32 %s111, 1
    %s113 = scalar_select %p110, %s111, %s112
    %p116 = pneg %p110
    %p117 = scmp.eq.s32.totalorder %s9, 1
    %p118 = por %p116, %p117
    %p119 = scmp.ne.s32.totalorder %s111, %s114
    %p120 = scmp.eq.s32.totalorder %s9, 0
    %p121 = por %p119, %p120
    %p122 = scmp.ne.s32.totalorder %s111, %s114
    %p123 = scmp.eq.s32.totalorder %s14, 1
    %p124 = por %p122, %p123
    %p125 = scmp.ne.s32.totalorder %s114, %s115
    %p126 = scmp.eq.s32.totalorder %s14, 0
    %p127 = por %p125, %p126
    %p128 = scmp.ne.s32.totalorder %s114, %s115
    %p129 = scmp.eq.s32.totalorder %s15, 1
    %p130 = por %p128, %p129
    %p132 = scmp.ne.s32.totalorder %s115, %s131
    %p133 = scmp.eq.s32.totalorder %s15, 0
    %p134 = por %p132, %p133
    %p135 = scmp.le.s32.totalorder 1, %s9
    %p136 = scmp.lt.s32.totalorder %s9, 3
    %p137 = pnand %p135, %p136
    %p138 = pneg %p137
    // Predicated region
    $region9: #{forward.7} parent=5 // pred_check
      _
    $region10: #{forward.7} parent=5 // pred_check_branch
      %140 = sbr.rel (%p137) target = $region12
    $region11: #{forward.7} parent=5 // pred_region
      %s141 = ssub.s32 %s9, 1
      // Predicated region
      $region13: #{forward.7} parent=11 // pred_check
        %p142 = pneg %p73
      $region14: #{forward.7} parent=11 // pred_check_branch
        %144 = sbr.rel (%p142) target = $region16
      $region15: #{forward.7} parent=11 // pred_region
        %p145 = scmp.lt.s32.totalorder %s18, 0
        %s146 = scalar_select %p145, %s18, 0
        %s147 = smul.addr %s146, 4
        %s148 = scalar_lea.vmem %s1, %s147
      $region16: #{forward.7} parent=11 // pred_fallthru
        _
      // Predicated region
      $region17: #{forward.7} parent=11 // pred_check
        %p149 = pneg %p99
      $region18: #{forward.7} parent=11 // pred_check_branch
        %151 = sbr.rel (%p149) target = $region20
      $region19: #{forward.7} parent=11 // pred_region
        %p152 = scmp.lt.s32.totalorder %s18, 0
        %s153 = scalar_select %p152, %s18, 0
        %s154 = scalar_lea.vmem %s2, %s153
      $region20: #{forward.7} parent=11 // pred_fallthru
        _
    $region12: #{forward.7} parent=5 // pred_fallthru
      _
    %p155 = scmp.lt.s32.totalorder %s9, 2
    // Predicated region
    $region21: #{forward.7} parent=5 // pred_check
      %p156 = pneg %p155
    $region22: #{forward.7} parent=5 // pred_check_branch
      %158 = sbr.rel (%p156) target = $region24
    $region23: #{forward.7} parent=5 // pred_region
      // Predicated region
      $region25: #{forward.7} parent=23 // pred_check
        %p159 = pneg %p41
      $region26: #{forward.7} parent=23 // pred_check_branch
        %161 = sbr.rel (%p159) target = $region28
      $region27: #{forward.7} parent=23 // pred_region
        %s162 = smul.u32 128, %s17
        %p163 = scmp.lt.s32.totalorder %s162, 255
        %s164 = scalar_select %p163, %s162, 255
        %s165 = smul.addr %s164, 4
        %s166 = scalar_lea.vmem %s0, %s165
        %s167 = smul.u32 128, %s17
      $region28: #{forward.7} parent=23 // pred_fallthru
        _
    $region24: #{forward.7} parent=5 // pred_fallthru
      _
    %p168 = scmp.le.s32.totalorder 1, %s9
    %p169 = scmp.lt.s32.totalorder %s9, 3
    %p170 = pnand %p168, %p169
    %p171 = pneg %p170
    // Predicated region
    $region29: #{forward.7} parent=5 // pred_check
      _
    $region30: #{forward.7} parent=5 // pred_check_branch
      %173 = sbr.rel (%p170) target = $region32
    $region31: #{forward.7} parent=5 // pred_region
      %s174 = ssub.s32 %s9, 1
      %s175 = smul.u32 128, %s19
      %p176 = scmp.lt.s32.totalorder %s175, 255
      %s177 = scalar_select %p176, %s175, 255
      %s178 = smul.addr %s177, 4
      %s179 = scalar_lea.vmem %s0, %s178
      %p180 = pneg %p47
      %p181 = pneg %p44
      %p182 = scmp.lt.s32.totalorder %s18, 0
      %s183 = scalar_select %p182, %s18, 0
      %s184 = smul.addr %s183, 4
      %s185 = scalar_lea.vmem %s1, %s184
      %p186 = pneg %p73
      %p187 = pneg %p70
      %p188 = scmp.lt.s32.totalorder %s18, 0
      %s189 = scalar_select %p188, %s18, 0
      %s190 = scalar_lea.vmem %s2, %s189
      %p191 = pneg %p99
      %p192 = pneg %p96
      %p193 = pneg %p127
      %p194 = pneg %p124
      %s195 = smul.u32 128, %s19
      %p196 = scmp.lt.s32.totalorder %s195, 255
      %s197 = scalar_select %p196, %s195, 255
      %p198 = scmp.lt.s32.totalorder %s18, 0
      %s199 = scalar_select %p198, %s18, 0
      %s200 = sadd.s32 %s199, %s197
      %s201 = smul.addr %s200, 4
      %s202 = scalar_lea.vmem %s3, %s201
      %s203 = smul.u32 128, %s19
      %p204 = scmp.lt.s32.totalorder %s203, 255
      %s205 = scalar_select %p204, %s203, 255
      %s206 = smul.addr %s205, 4
      %s207 = scalar_lea.vmem %s0, %s206
      %s208 = smul.u32 128, %s19
      %p209 = scmp.lt.s32.totalorder %s18, 0
      %s210 = scalar_select %p209, %s18, 0
      %s211 = smul.addr %s210, 4
      %s212 = scalar_lea.vmem %s1, %s211
      %p213 = scmp.lt.s32.totalorder %s18, 0
      %s214 = scalar_select %p213, %s18, 0
      %s215 = scalar_lea.vmem %s2, %s214
      %s216 = smul.u32 128, %s19
      %p217 = scmp.lt.s32.totalorder %s216, 255
      %s218 = scalar_select %p217, %s216, 255
      %p219 = scmp.lt.s32.totalorder %s18, 0
      %s220 = scalar_select %p219, %s18, 0
      %s221 = sadd.s32 %s220, %s218
      %s222 = smul.addr %s221, 4
      %s223 = scalar_lea.vmem %s3, %s222
      %s224 = smul.u32 128, %s19
      %v226 = vld [vmem:[%s207] sm:$0xf]
      %v227 = vld [vmem:[%s207 + $0x4] sm:$0xf]
      %v228 = vld [vmem:[%s207 + $0x8] sm:$0xf]
      %v229 = vld [vmem:[%s207 + $0xc] sm:$0xf]
      %v230 = vld [vmem:[%s207 + $0x10] sm:$0xf]
      %v231 = vld [vmem:[%s207 + $0x14] sm:$0xf]
      %v232 = vld [vmem:[%s207 + $0x18] sm:$0xf]
      %v233 = vld [vmem:[%s207 + $0x1c] sm:$0xf]
      %v234 = vld [vmem:[%s207 + $0x20] sm:$0xf]
      %v235 = vld [vmem:[%s207 + $0x24] sm:$0xf]
      %v236 = vld [vmem:[%s207 + $0x28] sm:$0xf]
      %v237 = vld [vmem:[%s207 + $0x2c] sm:$0xf]
      %v238 = vld [vmem:[%s207 + $0x30] sm:$0xf]
      %v239 = vld [vmem:[%s207 + $0x34] sm:$0xf]
      %v240 = vld [vmem:[%s207 + $0x38] sm:$0xf]
      %v241 = vld [vmem:[%s207 + $0x3c] sm:$0xf]
      %v242 = vld [vmem:[%s207 + $0x40] sm:$0xf]
      %v243 = vld [vmem:[%s207 + $0x44] sm:$0xf]
      %v244 = vld [vmem:[%s207 + $0x48] sm:$0xf]
      %v245 = vld [vmem:[%s207 + $0x4c] sm:$0xf]
      %v246 = vld [vmem:[%s207 + $0x50] sm:$0xf]
      %v247 = vld [vmem:[%s207 + $0x54] sm:$0xf]
      %v248 = vld [vmem:[%s207 + $0x58] sm:$0xf]
      %v249 = vld [vmem:[%s207 + $0x5c] sm:$0xf]
      %v250 = vld [vmem:[%s207 + $0x60] sm:$0xf]
      %v251 = vld [vmem:[%s207 + $0x64] sm:$0xf]
      %v252 = vld [vmem:[%s207 + $0x68] sm:$0xf]
      %v253 = vld [vmem:[%s207 + $0x6c] sm:$0xf]
      %v254 = vld [vmem:[%s207 + $0x70] sm:$0xf]
      %v255 = vld [vmem:[%s207 + $0x74] sm:$0xf]
      %v256 = vld [vmem:[%s207 + $0x78] sm:$0xf]
      %v257 = vld [vmem:[%s207 + $0x7c] sm:$0xf]
      %v258 = vld [vmem:[%s207 + $0x80] sm:$0xf]
      %v259 = vld [vmem:[%s207 + $0x84] sm:$0xf]
      %v260 = vld [vmem:[%s207 + $0x88] sm:$0xf]
      %v261 = vld [vmem:[%s207 + $0x8c] sm:$0xf]
      %v262 = vld [vmem:[%s207 + $0x90] sm:$0xf]
      %v263 = vld [vmem:[%s207 + $0x94] sm:$0xf]
      %v264 = vld [vmem:[%s207 + $0x98] sm:$0xf]
      %v265 = vld [vmem:[%s207 + $0x9c] sm:$0xf]
      %v266 = vld [vmem:[%s207 + $0xa0] sm:$0xf]
      %v267 = vld [vmem:[%s207 + $0xa4] sm:$0xf]
      %v268 = vld [vmem:[%s207 + $0xa8] sm:$0xf]
      %v269 = vld [vmem:[%s207 + $0xac] sm:$0xf]
      %v270 = vld [vmem:[%s207 + $0xb0] sm:$0xf]
      %v271 = vld [vmem:[%s207 + $0xb4] sm:$0xf]
      %v272 = vld [vmem:[%s207 + $0xb8] sm:$0xf]
      %v273 = vld [vmem:[%s207 + $0xbc] sm:$0xf]
      %v274 = vld [vmem:[%s207 + $0xc0] sm:$0xf]
      %v275 = vld [vmem:[%s207 + $0xc4] sm:$0xf]
      %v276 = vld [vmem:[%s207 + $0xc8] sm:$0xf]
      %v277 = vld [vmem:[%s207 + $0xcc] sm:$0xf]
      %v278 = vld [vmem:[%s207 + $0xd0] sm:$0xf]
      %v279 = vld [vmem:[%s207 + $0xd4] sm:$0xf]
      %v280 = vld [vmem:[%s207 + $0xd8] sm:$0xf]
      %v281 = vld [vmem:[%s207 + $0xdc] sm:$0xf]
      %v282 = vld [vmem:[%s207 + $0xe0] sm:$0xf]
      %v283 = vld [vmem:[%s207 + $0xe4] sm:$0xf]
      %v284 = vld [vmem:[%s207 + $0xe8] sm:$0xf]
      %v285 = vld [vmem:[%s207 + $0xec] sm:$0xf]
      %v286 = vld [vmem:[%s207 + $0xf0] sm:$0xf]
      %v287 = vld [vmem:[%s207 + $0xf4] sm:$0xf]
      %v288 = vld [vmem:[%s207 + $0xf8] sm:$0xf]
      %v289 = vld [vmem:[%s207 + $0xfc] sm:$0xf]
      %v290 = vld [vmem:[%s207 + $0x100] sm:$0xf]
      %v291 = vld [vmem:[%s207 + $0x104] sm:$0xf]
      %v292 = vld [vmem:[%s207 + $0x108] sm:$0xf]
      %v293 = vld [vmem:[%s207 + $0x10c] sm:$0xf]
      %v294 = vld [vmem:[%s207 + $0x110] sm:$0xf]
      %v295 = vld [vmem:[%s207 + $0x114] sm:$0xf]
      %v296 = vld [vmem:[%s207 + $0x118] sm:$0xf]
      %v297 = vld [vmem:[%s207 + $0x11c] sm:$0xf]
      %v298 = vld [vmem:[%s207 + $0x120] sm:$0xf]
      %v299 = vld [vmem:[%s207 + $0x124] sm:$0xf]
      %v300 = vld [vmem:[%s207 + $0x128] sm:$0xf]
      %v301 = vld [vmem:[%s207 + $0x12c] sm:$0xf]
      %v302 = vld [vmem:[%s207 + $0x130] sm:$0xf]
      %v303 = vld [vmem:[%s207 + $0x134] sm:$0xf]
      %v304 = vld [vmem:[%s207 + $0x138] sm:$0xf]
      %v305 = vld [vmem:[%s207 + $0x13c] sm:$0xf]
      %v306 = vld [vmem:[%s207 + $0x140] sm:$0xf]
      %v307 = vld [vmem:[%s207 + $0x144] sm:$0xf]
      %v308 = vld [vmem:[%s207 + $0x148] sm:$0xf]
      %v309 = vld [vmem:[%s207 + $0x14c] sm:$0xf]
      %v310 = vld [vmem:[%s207 + $0x150] sm:$0xf]
      %v311 = vld [vmem:[%s207 + $0x154] sm:$0xf]
      %v312 = vld [vmem:[%s207 + $0x158] sm:$0xf]
      %v313 = vld [vmem:[%s207 + $0x15c] sm:$0xf]
      %v314 = vld [vmem:[%s207 + $0x160] sm:$0xf]
      %v315 = vld [vmem:[%s207 + $0x164] sm:$0xf]
      %v316 = vld [vmem:[%s207 + $0x168] sm:$0xf]
      %v317 = vld [vmem:[%s207 + $0x16c] sm:$0xf]
      %v318 = vld [vmem:[%s207 + $0x170] sm:$0xf]
      %v319 = vld [vmem:[%s207 + $0x174] sm:$0xf]
      %v320 = vld [vmem:[%s207 + $0x178] sm:$0xf]
      %v321 = vld [vmem:[%s207 + $0x17c] sm:$0xf]
      %v322 = vld [vmem:[%s207 + $0x180] sm:$0xf]
      %v323 = vld [vmem:[%s207 + $0x184] sm:$0xf]
      %v324 = vld [vmem:[%s207 + $0x188] sm:$0xf]
      %v325 = vld [vmem:[%s207 + $0x18c] sm:$0xf]
      %v326 = vld [vmem:[%s207 + $0x190] sm:$0xf]
      %v327 = vld [vmem:[%s207 + $0x194] sm:$0xf]
      %v328 = vld [vmem:[%s207 + $0x198] sm:$0xf]
      %v329 = vld [vmem:[%s207 + $0x19c] sm:$0xf]
      %v330 = vld [vmem:[%s207 + $0x1a0] sm:$0xf]
      %v331 = vld [vmem:[%s207 + $0x1a4] sm:$0xf]
      %v332 = vld [vmem:[%s207 + $0x1a8] sm:$0xf]
      %v333 = vld [vmem:[%s207 + $0x1ac] sm:$0xf]
      %v334 = vld [vmem:[%s207 + $0x1b0] sm:$0xf]
      %v335 = vld [vmem:[%s207 + $0x1b4] sm:$0xf]
      %v336 = vld [vmem:[%s207 + $0x1b8] sm:$0xf]
      %v337 = vld [vmem:[%s207 + $0x1bc] sm:$0xf]
      %v338 = vld [vmem:[%s207 + $0x1c0] sm:$0xf]
      %v339 = vld [vmem:[%s207 + $0x1c4] sm:$0xf]
      %v340 = vld [vmem:[%s207 + $0x1c8] sm:$0xf]
      %v341 = vld [vmem:[%s207 + $0x1cc] sm:$0xf]
      %v342 = vld [vmem:[%s207 + $0x1d0] sm:$0xf]
      %v343 = vld [vmem:[%s207 + $0x1d4] sm:$0xf]
      %v344 = vld [vmem:[%s207 + $0x1d8] sm:$0xf]
      %v345 = vld [vmem:[%s207 + $0x1dc] sm:$0xf]
      %v346 = vld [vmem:[%s207 + $0x1e0] sm:$0xf]
      %v347 = vld [vmem:[%s207 + $0x1e4] sm:$0xf]
      %v348 = vld [vmem:[%s207 + $0x1e8] sm:$0xf]
      %v349 = vld [vmem:[%s207 + $0x1ec] sm:$0xf]
      %v350 = vld [vmem:[%s207 + $0x1f0] sm:$0xf]
      %v351 = vld [vmem:[%s207 + $0x1f4] sm:$0xf]
      %v352 = vld [vmem:[%s207 + $0x1f8] sm:$0xf]
      %v353 = vld [vmem:[%s207 + $0x1fc] sm:$0xf]
      %v354 = vld [vmem:[%s212] sm:$0xf]
      %v355 = vld [vmem:[%s212 + $0x4] sm:$0xf]
      %v356 = vld [vmem:[%s212 + $0x8] sm:$0xf]
      %v357 = vld [vmem:[%s212 + $0xc] sm:$0xf]
      %v358 = vld [vmem:[%s215] sm:$0x1]
      %v360 = vlaneseq
      %v361 = vshrl.u32 %v360, 7
      %v362 = vsub.s32 0, %v361
      %v363 = vrot.slane %v358, %v362
      %v493 = vunpack.c.l.b16 %v226
      %v494 = vunpack.c.l.b16 %v227
      %v495 = vunpack.c.l.b16 %v228
      %v496 = vunpack.c.l.b16 %v229
      %v497 = vunpack.c.l.b16 %v230
      %v498 = vunpack.c.l.b16 %v231
      %v499 = vunpack.c.l.b16 %v232
      %v500 = vunpack.c.l.b16 %v233
      %v501 = vunpack.c.l.b16 %v234
      %v502 = vunpack.c.l.b16 %v235
      %v503 = vunpack.c.l.b16 %v236
      %v504 = vunpack.c.l.b16 %v237
      %v505 = vunpack.c.l.b16 %v238
      %v506 = vunpack.c.l.b16 %v239
      %v507 = vunpack.c.l.b16 %v240
      %v508 = vunpack.c.l.b16 %v241
      %v509 = vunpack.c.l.b16 %v242
      %v510 = vunpack.c.l.b16 %v243
      %v511 = vunpack.c.l.b16 %v244
      %v512 = vunpack.c.l.b16 %v245
      %v513 = vunpack.c.l.b16 %v246
      %v514 = vunpack.c.l.b16 %v247
      %v515 = vunpack.c.l.b16 %v248
      %v516 = vunpack.c.l.b16 %v249
      %v517 = vunpack.c.l.b16 %v250
      %v518 = vunpack.c.l.b16 %v251
      %v519 = vunpack.c.l.b16 %v252
      %v520 = vunpack.c.l.b16 %v253
      %v521 = vunpack.c.l.b16 %v254
      %v522 = vunpack.c.l.b16 %v255
      %v523 = vunpack.c.l.b16 %v256
      %v524 = vunpack.c.l.b16 %v257
      %v525 = vunpack.c.l.b16 %v258
      %v526 = vunpack.c.l.b16 %v259
      %v527 = vunpack.c.l.b16 %v260
      %v528 = vunpack.c.l.b16 %v261
      %v529 = vunpack.c.l.b16 %v262
      %v530 = vunpack.c.l.b16 %v263
      %v531 = vunpack.c.l.b16 %v264
      %v532 = vunpack.c.l.b16 %v265
      %v533 = vunpack.c.l.b16 %v266
      %v534 = vunpack.c.l.b16 %v267
      %v535 = vunpack.c.l.b16 %v268
      %v536 = vunpack.c.l.b16 %v269
      %v537 = vunpack.c.l.b16 %v270
      %v538 = vunpack.c.l.b16 %v271
      %v539 = vunpack.c.l.b16 %v272
      %v540 = vunpack.c.l.b16 %v273
      %v541 = vunpack.c.l.b16 %v274
      %v542 = vunpack.c.l.b16 %v275
      %v543 = vunpack.c.l.b16 %v276
      %v544 = vunpack.c.l.b16 %v277
      %v545 = vunpack.c.l.b16 %v278
      %v546 = vunpack.c.l.b16 %v279
      %v547 = vunpack.c.l.b16 %v280
      %v548 = vunpack.c.l.b16 %v281
      %v549 = vunpack.c.l.b16 %v282
      %v550 = vunpack.c.l.b16 %v283
      %v551 = vunpack.c.l.b16 %v284
      %v552 = vunpack.c.l.b16 %v285
      %v553 = vunpack.c.l.b16 %v286
      %v554 = vunpack.c.l.b16 %v287
      %v555 = vunpack.c.l.b16 %v288
      %v556 = vunpack.c.l.b16 %v289
      %v557 = vunpack.c.l.b16 %v290
      %v558 = vunpack.c.l.b16 %v291
      %v559 = vunpack.c.l.b16 %v292
      %v560 = vunpack.c.l.b16 %v293
      %v561 = vunpack.c.l.b16 %v294
      %v562 = vunpack.c.l.b16 %v295
      %v563 = vunpack.c.l.b16 %v296
      %v564 = vunpack.c.l.b16 %v297
      %v565 = vunpack.c.l.b16 %v298
      %v566 = vunpack.c.l.b16 %v299
      %v567 = vunpack.c.l.b16 %v300
      %v568 = vunpack.c.l.b16 %v301
      %v569 = vunpack.c.l.b16 %v302
      %v570 = vunpack.c.l.b16 %v303
      %v571 = vunpack.c.l.b16 %v304
      %v572 = vunpack.c.l.b16 %v305
      %v573 = vunpack.c.l.b16 %v306
      %v574 = vunpack.c.l.b16 %v307
      %v575 = vunpack.c.l.b16 %v308
      %v576 = vunpack.c.l.b16 %v309
      %v577 = vunpack.c.l.b16 %v310
      %v578 = vunpack.c.l.b16 %v311
      %v579 = vunpack.c.l.b16 %v312
      %v580 = vunpack.c.l.b16 %v313
      %v581 = vunpack.c.l.b16 %v314
      %v582 = vunpack.c.l.b16 %v315
      %v583 = vunpack.c.l.b16 %v316
      %v584 = vunpack.c.l.b16 %v317
      %v585 = vunpack.c.l.b16 %v318
      %v586 = vunpack.c.l.b16 %v319
      %v587 = vunpack.c.l.b16 %v320
      %v588 = vunpack.c.l.b16 %v321
      %v589 = vunpack.c.l.b16 %v322
      %v590 = vunpack.c.l.b16 %v323
      %v591 = vunpack.c.l.b16 %v324
      %v592 = vunpack.c.l.b16 %v325
      %v593 = vunpack.c.l.b16 %v326
      %v594 = vunpack.c.l.b16 %v327
      %v595 = vunpack.c.l.b16 %v328
      %v596 = vunpack.c.l.b16 %v329
      %v597 = vunpack.c.l.b16 %v330
      %v598 = vunpack.c.l.b16 %v331
      %v599 = vunpack.c.l.b16 %v332
      %v600 = vunpack.c.l.b16 %v333
      %v601 = vunpack.c.l.b16 %v334
      %v602 = vunpack.c.l.b16 %v335
      %v603 = vunpack.c.l.b16 %v336
      %v604 = vunpack.c.l.b16 %v337
      %v605 = vunpack.c.l.b16 %v338
      %v606 = vunpack.c.l.b16 %v339
      %v607 = vunpack.c.l.b16 %v340
      %v608 = vunpack.c.l.b16 %v341
      %v609 = vunpack.c.l.b16 %v342
      %v610 = vunpack.c.l.b16 %v343
      %v611 = vunpack.c.l.b16 %v344
      %v612 = vunpack.c.l.b16 %v345
      %v613 = vunpack.c.l.b16 %v346
      %v614 = vunpack.c.l.b16 %v347
      %v615 = vunpack.c.l.b16 %v348
      %v616 = vunpack.c.l.b16 %v349
      %v617 = vunpack.c.l.b16 %v350
      %v618 = vunpack.c.l.b16 %v351
      %v619 = vunpack.c.l.b16 %v352
      %v620 = vunpack.c.l.b16 %v353
      %v621 = vpack.c.b16 %v494, %v493
      %v622 = vpack.c.b16 %v496, %v495
      %v623 = vpack.c.b16 %v498, %v497
      %v624 = vpack.c.b16 %v500, %v499
      %v625 = vpack.c.b16 %v502, %v501
      %v626 = vpack.c.b16 %v504, %v503
      %v627 = vpack.c.b16 %v506, %v505
      %v628 = vpack.c.b16 %v508, %v507
      %v629 = vpack.c.b16 %v510, %v509
      %v630 = vpack.c.b16 %v512, %v511
      %v631 = vpack.c.b16 %v514, %v513
      %v632 = vpack.c.b16 %v516, %v515
      %v633 = vpack.c.b16 %v518, %v517
      %v634 = vpack.c.b16 %v520, %v519
      %v635 = vpack.c.b16 %v522, %v521
      %v636 = vpack.c.b16 %v524, %v523
      %v637 = vpack.c.b16 %v526, %v525
      %v638 = vpack.c.b16 %v528, %v527
      %v639 = vpack.c.b16 %v530, %v529
      %v640 = vpack.c.b16 %v532, %v531
      %v641 = vpack.c.b16 %v534, %v533
      %v642 = vpack.c.b16 %v536, %v535
      %v643 = vpack.c.b16 %v538, %v537
      %v644 = vpack.c.b16 %v540, %v539
      %v645 = vpack.c.b16 %v542, %v541
      %v646 = vpack.c.b16 %v544, %v543
      %v647 = vpack.c.b16 %v546, %v545
      %v648 = vpack.c.b16 %v548, %v547
      %v649 = vpack.c.b16 %v550, %v549
      %v650 = vpack.c.b16 %v552, %v551
      %v651 = vpack.c.b16 %v554, %v553
      %v652 = vpack.c.b16 %v556, %v555
      %v653 = vpack.c.b16 %v558, %v557
      %v654 = vpack.c.b16 %v560, %v559
      %v655 = vpack.c.b16 %v562, %v561
      %v656 = vpack.c.b16 %v564, %v563
      %v657 = vpack.c.b16 %v566, %v565
      %v658 = vpack.c.b16 %v568, %v567
      %v659 = vpack.c.b16 %v570, %v569
      %v660 = vpack.c.b16 %v572, %v571
      %v661 = vpack.c.b16 %v574, %v573
      %v662 = vpack.c.b16 %v576, %v575
      %v663 = vpack.c.b16 %v578, %v577
      %v664 = vpack.c.b16 %v580, %v579
      %v665 = vpack.c.b16 %v582, %v581
      %v666 = vpack.c.b16 %v584, %v583
      %v667 = vpack.c.b16 %v586, %v585
      %v668 = vpack.c.b16 %v588, %v587
      %v669 = vpack.c.b16 %v590, %v589
      %v670 = vpack.c.b16 %v592, %v591
      %v671 = vpack.c.b16 %v594, %v593
      %v672 = vpack.c.b16 %v596, %v595
      %v673 = vpack.c.b16 %v598, %v597
      %v674 = vpack.c.b16 %v600, %v599
      %v675 = vpack.c.b16 %v602, %v601
      %v676 = vpack.c.b16 %v604, %v603
      %v677 = vpack.c.b16 %v606, %v605
      %v678 = vpack.c.b16 %v608, %v607
      %v679 = vpack.c.b16 %v610, %v609
      %v680 = vpack.c.b16 %v612, %v611
      %v681 = vpack.c.b16 %v614, %v613
      %v682 = vpack.c.b16 %v616, %v615
      %v683 = vpack.c.b16 %v618, %v617
      %v684 = vpack.c.b16 %v620, %v619
      %v689 = vunpack.c.l.b16 %v354
      %v690 = vunpack.c.l.b16 %v355
      %v691 = vunpack.c.l.b16 %v356
      %v692 = vunpack.c.l.b16 %v357
      %v693 = vpack.c.b16 %v690, %v689
      %v694 = vpack.c.b16 %v692, %v691
      %vm697 = vcmask 261120
      %v699 = vsel %vm697, %v621, 0
      %v702 = vsel %vm697, %v622, 0
      %v705 = vsel %vm697, %v623, 0
      %v708 = vsel %vm697, %v624, 0
      %v711 = vsel %vm697, %v625, 0
      %v714 = vsel %vm697, %v626, 0
      %v717 = vsel %vm697, %v627, 0
      %v720 = vsel %vm697, %v628, 0
      %v723 = vsel %vm697, %v629, 0
      %v726 = vsel %vm697, %v630, 0
      %v729 = vsel %vm697, %v631, 0
      %v732 = vsel %vm697, %v632, 0
      %v735 = vsel %vm697, %v633, 0
      %v738 = vsel %vm697, %v634, 0
      %v741 = vsel %vm697, %v635, 0
      %v744 = vsel %vm697, %v636, 0
      %v747 = vsel %vm697, %v637, 0
      %v750 = vsel %vm697, %v638, 0
      %v753 = vsel %vm697, %v639, 0
      %v756 = vsel %vm697, %v640, 0
      %v759 = vsel %vm697, %v641, 0
      %v762 = vsel %vm697, %v642, 0
      %v765 = vsel %vm697, %v643, 0
      %v768 = vsel %vm697, %v644, 0
      %v771 = vsel %vm697, %v645, 0
      %v774 = vsel %vm697, %v646, 0
      %v777 = vsel %vm697, %v647, 0
      %v780 = vsel %vm697, %v648, 0
      %v783 = vsel %vm697, %v649, 0
      %v786 = vsel %vm697, %v650, 0
      %v789 = vsel %vm697, %v651, 0
      %v792 = vsel %vm697, %v652, 0
      %v795 = vsel %vm697, %v653, 0
      %v798 = vsel %vm697, %v654, 0
      %v801 = vsel %vm697, %v655, 0
      %v804 = vsel %vm697, %v656, 0
      %v807 = vsel %vm697, %v657, 0
      %v810 = vsel %vm697, %v658, 0
      %v813 = vsel %vm697, %v659, 0
      %v816 = vsel %vm697, %v660, 0
      %v819 = vsel %vm697, %v661, 0
      %v822 = vsel %vm697, %v662, 0
      %v825 = vsel %vm697, %v663, 0
      %v828 = vsel %vm697, %v664, 0
      %v831 = vsel %vm697, %v665, 0
      %v834 = vsel %vm697, %v666, 0
      %v837 = vsel %vm697, %v667, 0
      %v840 = vsel %vm697, %v668, 0
      %v843 = vsel %vm697, %v669, 0
      %v846 = vsel %vm697, %v670, 0
      %v849 = vsel %vm697, %v671, 0
      %v852 = vsel %vm697, %v672, 0
      %v855 = vsel %vm697, %v673, 0
      %v858 = vsel %vm697, %v674, 0
      %v861 = vsel %vm697, %v675, 0
      %v864 = vsel %vm697, %v676, 0
      %v867 = vsel %vm697, %v677, 0
      %v870 = vsel %vm697, %v678, 0
      %v873 = vsel %vm697, %v679, 0
      %v876 = vsel %vm697, %v680, 0
      %v879 = vsel %vm697, %v681, 0
      %v882 = vsel %vm697, %v682, 0
      %v885 = vsel %vm697, %v683, 0
      %v888 = vsel %vm697, %v684, 0
      %890 = vmatprep.subr.bf16.mxu0 0
      %891 = vmatpush1.bf16.msra.mxu0 0
      %892 = vmatprep.subr.bf16.mxu0 0
      %893 = vmatpush1.bf16.msra.mxu0 0
      %894 = vmatprep.subr.bf16.mxu0 0
      %895 = vmatpush1.bf16.msra.mxu0 0
      %896 = vmatprep.subr.bf16.mxu0 0
      %897 = vmatpush1.bf16.msra.mxu0 0
      %898 = vmatprep.subr.bf16.mxu0 0
      %899 = vmatpush1.bf16.msra.mxu0 0
      %900 = vmatprep.subr.bf16.mxu0 0
      %901 = vmatpush1.bf16.msra.mxu0 0
      %902 = vmatprep.subr.bf16.mxu0 0
      %903 = vmatpush1.bf16.msra.mxu0 %v694
      %904 = vmatprep.subr.bf16.mxu0 0
      %905 = vmatpush1.bf16.msra.mxu0 %v693
      %906 = vmatprep.subr.bf16.mxu0 0
      %907 = vmatpush2.bf16.msra.mxu0 0
      %908 = vmatprep.subr.bf16.mxu0 0
      %909 = vmatpush2.bf16.msra.mxu0 0
      %910 = vmatprep.subr.bf16.mxu0 0
      %911 = vmatpush2.bf16.msra.mxu0 0
      %912 = vmatprep.subr.bf16.mxu0 0
      %913 = vmatpush2.bf16.msra.mxu0 0
      %914 = vmatprep.subr.bf16.mxu0 0
      %915 = vmatpush2.bf16.msra.mxu0 0
      %916 = vmatprep.subr.bf16.mxu0 0
      %917 = vmatpush2.bf16.msra.mxu0 0
      %918 = vmatprep.subr.bf16.mxu0 0
      %919 = vmatpush2.bf16.msra.mxu0 0
      %920 = vmatprep.subr.bf16.mxu0 0
      %921 = vmatpush2.bf16.msra.mxu0 0
      %922 = vmatprep.mubr.bf16.mxu0 0
      %923 = vmatmul.mubr.bf16.gmra.mxu0 %v699
      %v924 = vpop.f32.mrf.mxu0
      %v925 = vadd.f32 %v363, %v924
      %v926 = vpop.f32.mrf.mxu0
      %v927 = vpop.f32.mrf.mxu0
      %v928 = vadd.f32 %v363, %v927
      %v929 = vpop.f32.mrf.mxu0
      %930 = vmatprep.mubr.bf16.mxu0 0
      %931 = vmatmul.mubr.bf16.gmra.mxu0 %v702
      %v932 = vpop.f32.mrf.mxu0
      %v933 = vadd.f32 %v363, %v932
      %v934 = vpop.f32.mrf.mxu0
      %v935 = vpop.f32.mrf.mxu0
      %v936 = vadd.f32 %v363, %v935
      %v937 = vpop.f32.mrf.mxu0
      %938 = vmatprep.mubr.bf16.mxu0 0
      %939 = vmatmul.mubr.bf16.gmra.mxu0 %v705
      %v940 = vpop.f32.mrf.mxu0
      %v941 = vadd.f32 %v363, %v940
      %v942 = vpop.f32.mrf.mxu0
      %v943 = vpop.f32.mrf.mxu0
      %v944 = vadd.f32 %v363, %v943
      %v945 = vpop.f32.mrf.mxu0
      %946 = vmatprep.mubr.bf16.mxu0 0
      %947 = vmatmul.mubr.bf16.gmra.mxu0 %v708
      %v948 = vpop.f32.mrf.mxu0
      %v949 = vadd.f32 %v363, %v948
      %v950 = vpop.f32.mrf.mxu0
      %v951 = vpop.f32.mrf.mxu0
      %v952 = vadd.f32 %v363, %v951
      %v953 = vpop.f32.mrf.mxu0
      %954 = vmatprep.mubr.bf16.mxu0 0
      %955 = vmatmul.mubr.bf16.gmra.mxu0 %v711
      %v956 = vpop.f32.mrf.mxu0
      %v957 = vadd.f32 %v363, %v956
      %v958 = vpop.f32.mrf.mxu0
      %v959 = vpop.f32.mrf.mxu0
      %v960 = vadd.f32 %v363, %v959
      %v961 = vpop.f32.mrf.mxu0
      %962 = vmatprep.mubr.bf16.mxu0 0
      %963 = vmatmul.mubr.bf16.gmra.mxu0 %v714
      %v964 = vpop.f32.mrf.mxu0
      %v965 = vadd.f32 %v363, %v964
      %v966 = vpop.f32.mrf.mxu0
      %v967 = vpop.f32.mrf.mxu0
      %v968 = vadd.f32 %v363, %v967
      %v969 = vpop.f32.mrf.mxu0
      %970 = vmatprep.mubr.bf16.mxu0 0
      %971 = vmatmul.mubr.bf16.gmra.mxu0 %v717
      %v972 = vpop.f32.mrf.mxu0
      %v973 = vadd.f32 %v363, %v972
      %v974 = vpop.f32.mrf.mxu0
      %v975 = vpop.f32.mrf.mxu0
      %v976 = vadd.f32 %v363, %v975
      %v977 = vpop.f32.mrf.mxu0
      %978 = vmatprep.mubr.bf16.mxu0 0
      %979 = vmatmul.mubr.bf16.gmra.mxu0 %v720
      %v980 = vpop.f32.mrf.mxu0
      %v981 = vadd.f32 %v363, %v980
      %v982 = vpop.f32.mrf.mxu0
      %v983 = vpop.f32.mrf.mxu0
      %v984 = vadd.f32 %v363, %v983
      %v985 = vpop.f32.mrf.mxu0
      %986 = vmatprep.mubr.bf16.mxu0 0
      %987 = vmatmul.mubr.bf16.gmra.mxu0 %v723
      %v988 = vpop.f32.mrf.mxu0
      %v989 = vadd.f32 %v363, %v988
      %v990 = vpop.f32.mrf.mxu0
      %v991 = vpop.f32.mrf.mxu0
      %v992 = vadd.f32 %v363, %v991
      %v993 = vpop.f32.mrf.mxu0
      %994 = vmatprep.mubr.bf16.mxu0 0
      %995 = vmatmul.mubr.bf16.gmra.mxu0 %v726
      %v996 = vpop.f32.mrf.mxu0
      %v997 = vadd.f32 %v363, %v996
      %v998 = vpop.f32.mrf.mxu0
      %v999 = vpop.f32.mrf.mxu0
      %v1000 = vadd.f32 %v363, %v999
      %v1001 = vpop.f32.mrf.mxu0
      %1002 = vmatprep.mubr.bf16.mxu0 0
      %1003 = vmatmul.mubr.bf16.gmra.mxu0 %v729
      %v1004 = vpop.f32.mrf.mxu0
      %v1005 = vadd.f32 %v363, %v1004
      %v1006 = vpop.f32.mrf.mxu0
      %v1007 = vpop.f32.mrf.mxu0
      %v1008 = vadd.f32 %v363, %v1007
      %v1009 = vpop.f32.mrf.mxu0
      %1010 = vmatprep.mubr.bf16.mxu0 0
      %1011 = vmatmul.mubr.bf16.gmra.mxu0 %v732
      %v1012 = vpop.f32.mrf.mxu0
      %v1013 = vadd.f32 %v363, %v1012
      %v1014 = vpop.f32.mrf.mxu0
      %v1015 = vpop.f32.mrf.mxu0
      %v1016 = vadd.f32 %v363, %v1015
      %v1017 = vpop.f32.mrf.mxu0
      %1018 = vmatprep.mubr.bf16.mxu0 0
      %1019 = vmatmul.mubr.bf16.gmra.mxu0 %v735
      %v1020 = vpop.f32.mrf.mxu0
      %v1021 = vadd.f32 %v363, %v1020
      %v1022 = vpop.f32.mrf.mxu0
      %v1023 = vpop.f32.mrf.mxu0
      %v1024 = vadd.f32 %v363, %v1023
      %v1025 = vpop.f32.mrf.mxu0
      %1026 = vmatprep.mubr.bf16.mxu0 0
      %1027 = vmatmul.mubr.bf16.gmra.mxu0 %v738
      %v1028 = vpop.f32.mrf.mxu0
      %v1029 = vadd.f32 %v363, %v1028
      %v1030 = vpop.f32.mrf.mxu0
      %v1031 = vpop.f32.mrf.mxu0
      %v1032 = vadd.f32 %v363, %v1031
      %v1033 = vpop.f32.mrf.mxu0
      %1034 = vmatprep.mubr.bf16.mxu0 0
      %1035 = vmatmul.mubr.bf16.gmra.mxu0 %v741
      %v1036 = vpop.f32.mrf.mxu0
      %v1037 = vadd.f32 %v363, %v1036
      %v1038 = vpop.f32.mrf.mxu0
      %v1039 = vpop.f32.mrf.mxu0
      %v1040 = vadd.f32 %v363, %v1039
      %v1041 = vpop.f32.mrf.mxu0
      %1042 = vmatprep.mubr.bf16.mxu0 0
      %1043 = vmatmul.mubr.bf16.gmra.mxu0 %v744
      %v1044 = vpop.f32.mrf.mxu0
      %v1045 = vadd.f32 %v363, %v1044
      %v1046 = vpop.f32.mrf.mxu0
      %v1047 = vpop.f32.mrf.mxu0
      %v1048 = vadd.f32 %v363, %v1047
      %v1049 = vpop.f32.mrf.mxu0
      %1050 = vmatprep.mubr.bf16.mxu0 0
      %1051 = vmatmul.mubr.bf16.gmra.mxu0 %v747
      %v1052 = vpop.f32.mrf.mxu0
      %v1053 = vadd.f32 %v363, %v1052
      %v1054 = vpop.f32.mrf.mxu0
      %v1055 = vpop.f32.mrf.mxu0
      %v1056 = vadd.f32 %v363, %v1055
      %v1057 = vpop.f32.mrf.mxu0
      %1058 = vmatprep.mubr.bf16.mxu0 0
      %1059 = vmatmul.mubr.bf16.gmra.mxu0 %v750
      %v1060 = vpop.f32.mrf.mxu0
      %v1061 = vadd.f32 %v363, %v1060
      %v1062 = vpop.f32.mrf.mxu0
      %v1063 = vpop.f32.mrf.mxu0
      %v1064 = vadd.f32 %v363, %v1063
      %v1065 = vpop.f32.mrf.mxu0
      %1066 = vmatprep.mubr.bf16.mxu0 0
      %1067 = vmatmul.mubr.bf16.gmra.mxu0 %v753
      %v1068 = vpop.f32.mrf.mxu0
      %v1069 = vadd.f32 %v363, %v1068
      %v1070 = vpop.f32.mrf.mxu0
      %v1071 = vpop.f32.mrf.mxu0
      %v1072 = vadd.f32 %v363, %v1071
      %v1073 = vpop.f32.mrf.mxu0
      %1074 = vmatprep.mubr.bf16.mxu0 0
      %1075 = vmatmul.mubr.bf16.gmra.mxu0 %v756
      %v1076 = vpop.f32.mrf.mxu0
      %v1077 = vadd.f32 %v363, %v1076
      %v1078 = vpop.f32.mrf.mxu0
      %v1079 = vpop.f32.mrf.mxu0
      %v1080 = vadd.f32 %v363, %v1079
      %v1081 = vpop.f32.mrf.mxu0
      %1082 = vmatprep.mubr.bf16.mxu0 0
      %1083 = vmatmul.mubr.bf16.gmra.mxu0 %v759
      %v1084 = vpop.f32.mrf.mxu0
      %v1085 = vadd.f32 %v363, %v1084
      %v1086 = vpop.f32.mrf.mxu0
      %v1087 = vpop.f32.mrf.mxu0
      %v1088 = vadd.f32 %v363, %v1087
      %v1089 = vpop.f32.mrf.mxu0
      %1090 = vmatprep.mubr.bf16.mxu0 0
      %1091 = vmatmul.mubr.bf16.gmra.mxu0 %v762
      %v1092 = vpop.f32.mrf.mxu0
      %v1093 = vadd.f32 %v363, %v1092
      %v1094 = vpop.f32.mrf.mxu0
      %v1095 = vpop.f32.mrf.mxu0
      %v1096 = vadd.f32 %v363, %v1095
      %v1097 = vpop.f32.mrf.mxu0
      %1098 = vmatprep.mubr.bf16.mxu0 0
      %1099 = vmatmul.mubr.bf16.gmra.mxu0 %v765
      %v1100 = vpop.f32.mrf.mxu0
      %v1101 = vadd.f32 %v363, %v1100
      %v1102 = vpop.f32.mrf.mxu0
      %v1103 = vpop.f32.mrf.mxu0
      %v1104 = vadd.f32 %v363, %v1103
      %v1105 = vpop.f32.mrf.mxu0
      %1106 = vmatprep.mubr.bf16.mxu0 0
      %1107 = vmatmul.mubr.bf16.gmra.mxu0 %v768
      %v1108 = vpop.f32.mrf.mxu0
      %v1109 = vadd.f32 %v363, %v1108
      %v1110 = vpop.f32.mrf.mxu0
      %v1111 = vpop.f32.mrf.mxu0
      %v1112 = vadd.f32 %v363, %v1111
      %v1113 = vpop.f32.mrf.mxu0
      %1114 = vmatprep.mubr.bf16.mxu0 0
      %1115 = vmatmul.mubr.bf16.gmra.mxu0 %v771
      %v1116 = vpop.f32.mrf.mxu0
      %v1117 = vadd.f32 %v363, %v1116
      %v1118 = vpop.f32.mrf.mxu0
      %v1119 = vpop.f32.mrf.mxu0
      %v1120 = vadd.f32 %v363, %v1119
      %v1121 = vpop.f32.mrf.mxu0
      %1122 = vmatprep.mubr.bf16.mxu0 0
      %1123 = vmatmul.mubr.bf16.gmra.mxu0 %v774
      %v1124 = vpop.f32.mrf.mxu0
      %v1125 = vadd.f32 %v363, %v1124
      %v1126 = vpop.f32.mrf.mxu0
      %v1127 = vpop.f32.mrf.mxu0
      %v1128 = vadd.f32 %v363, %v1127
      %v1129 = vpop.f32.mrf.mxu0
      %1130 = vmatprep.mubr.bf16.mxu0 0
      %1131 = vmatmul.mubr.bf16.gmra.mxu0 %v777
      %v1132 = vpop.f32.mrf.mxu0
      %v1133 = vadd.f32 %v363, %v1132
      %v1134 = vpop.f32.mrf.mxu0
      %v1135 = vpop.f32.mrf.mxu0
      %v1136 = vadd.f32 %v363, %v1135
      %v1137 = vpop.f32.mrf.mxu0
      %1138 = vmatprep.mubr.bf16.mxu0 0
      %1139 = vmatmul.mubr.bf16.gmra.mxu0 %v780
      %v1140 = vpop.f32.mrf.mxu0
      %v1141 = vadd.f32 %v363, %v1140
      %v1142 = vpop.f32.mrf.mxu0
      %v1143 = vpop.f32.mrf.mxu0
      %v1144 = vadd.f32 %v363, %v1143
      %v1145 = vpop.f32.mrf.mxu0
      %1146 = vmatprep.mubr.bf16.mxu0 0
      %1147 = vmatmul.mubr.bf16.gmra.mxu0 %v783
      %v1148 = vpop.f32.mrf.mxu0
      %v1149 = vadd.f32 %v363, %v1148
      %v1150 = vpop.f32.mrf.mxu0
      %v1151 = vpop.f32.mrf.mxu0
      %v1152 = vadd.f32 %v363, %v1151
      %v1153 = vpop.f32.mrf.mxu0
      %1154 = vmatprep.mubr.bf16.mxu0 0
      %1155 = vmatmul.mubr.bf16.gmra.mxu0 %v786
      %v1156 = vpop.f32.mrf.mxu0
      %v1157 = vadd.f32 %v363, %v1156
      %v1158 = vpop.f32.mrf.mxu0
      %v1159 = vpop.f32.mrf.mxu0
      %v1160 = vadd.f32 %v363, %v1159
      %v1161 = vpop.f32.mrf.mxu0
      %1162 = vmatprep.mubr.bf16.mxu0 0
      %1163 = vmatmul.mubr.bf16.gmra.mxu0 %v789
      %v1164 = vpop.f32.mrf.mxu0
      %v1165 = vadd.f32 %v363, %v1164
      %v1166 = vpop.f32.mrf.mxu0
      %v1167 = vpop.f32.mrf.mxu0
      %v1168 = vadd.f32 %v363, %v1167
      %v1169 = vpop.f32.mrf.mxu0
      %1170 = vmatprep.mubr.bf16.mxu0 0
      %1171 = vmatmul.mubr.bf16.gmra.mxu0 %v792
      %v1172 = vpop.f32.mrf.mxu0
      %v1173 = vadd.f32 %v363, %v1172
      %v1174 = vpop.f32.mrf.mxu0
      %v1175 = vpop.f32.mrf.mxu0
      %v1176 = vadd.f32 %v363, %v1175
      %v1177 = vpop.f32.mrf.mxu0
      %1178 = vmatprep.mubr.bf16.mxu0 0
      %1179 = vmatmul.mubr.bf16.gmra.mxu0 %v795
      %v1180 = vpop.f32.mrf.mxu0
      %v1181 = vadd.f32 %v363, %v1180
      %v1182 = vpop.f32.mrf.mxu0
      %v1183 = vpop.f32.mrf.mxu0
      %v1184 = vadd.f32 %v363, %v1183
      %v1185 = vpop.f32.mrf.mxu0
      %1186 = vmatprep.mubr.bf16.mxu0 0
      %1187 = vmatmul.mubr.bf16.gmra.mxu0 %v798
      %v1188 = vpop.f32.mrf.mxu0
      %v1189 = vadd.f32 %v363, %v1188
      %v1190 = vpop.f32.mrf.mxu0
      %v1191 = vpop.f32.mrf.mxu0
      %v1192 = vadd.f32 %v363, %v1191
      %v1193 = vpop.f32.mrf.mxu0
      %1194 = vmatprep.mubr.bf16.mxu0 0
      %1195 = vmatmul.mubr.bf16.gmra.mxu0 %v801
      %v1196 = vpop.f32.mrf.mxu0
      %v1197 = vadd.f32 %v363, %v1196
      %v1198 = vpop.f32.mrf.mxu0
      %v1199 = vpop.f32.mrf.mxu0
      %v1200 = vadd.f32 %v363, %v1199
      %v1201 = vpop.f32.mrf.mxu0
      %1202 = vmatprep.mubr.bf16.mxu0 0
      %1203 = vmatmul.mubr.bf16.gmra.mxu0 %v804
      %v1204 = vpop.f32.mrf.mxu0
      %v1205 = vadd.f32 %v363, %v1204
      %v1206 = vpop.f32.mrf.mxu0
      %v1207 = vpop.f32.mrf.mxu0
      %v1208 = vadd.f32 %v363, %v1207
      %v1209 = vpop.f32.mrf.mxu0
      %1210 = vmatprep.mubr.bf16.mxu0 0
      %1211 = vmatmul.mubr.bf16.gmra.mxu0 %v807
      %v1212 = vpop.f32.mrf.mxu0
      %v1213 = vadd.f32 %v363, %v1212
      %v1214 = vpop.f32.mrf.mxu0
      %v1215 = vpop.f32.mrf.mxu0
      %v1216 = vadd.f32 %v363, %v1215
      %v1217 = vpop.f32.mrf.mxu0
      %1218 = vmatprep.mubr.bf16.mxu0 0
      %1219 = vmatmul.mubr.bf16.gmra.mxu0 %v810
      %v1220 = vpop.f32.mrf.mxu0
      %v1221 = vadd.f32 %v363, %v1220
      %v1222 = vpop.f32.mrf.mxu0
      %v1223 = vpop.f32.mrf.mxu0
      %v1224 = vadd.f32 %v363, %v1223
      %v1225 = vpop.f32.mrf.mxu0
      %1226 = vmatprep.mubr.bf16.mxu0 0
      %1227 = vmatmul.mubr.bf16.gmra.mxu0 %v813
      %v1228 = vpop.f32.mrf.mxu0
      %v1229 = vadd.f32 %v363, %v1228
      %v1230 = vpop.f32.mrf.mxu0
      %v1231 = vpop.f32.mrf.mxu0
      %v1232 = vadd.f32 %v363, %v1231
      %v1233 = vpop.f32.mrf.mxu0
      %1234 = vmatprep.mubr.bf16.mxu0 0
      %1235 = vmatmul.mubr.bf16.gmra.mxu0 %v816
      %v1236 = vpop.f32.mrf.mxu0
      %v1237 = vadd.f32 %v363, %v1236
      %v1238 = vpop.f32.mrf.mxu0
      %v1239 = vpop.f32.mrf.mxu0
      %v1240 = vadd.f32 %v363, %v1239
      %v1241 = vpop.f32.mrf.mxu0
      %1242 = vmatprep.mubr.bf16.mxu0 0
      %1243 = vmatmul.mubr.bf16.gmra.mxu0 %v819
      %v1244 = vpop.f32.mrf.mxu0
      %v1245 = vadd.f32 %v363, %v1244
      %v1246 = vpop.f32.mrf.mxu0
      %v1247 = vpop.f32.mrf.mxu0
      %v1248 = vadd.f32 %v363, %v1247
      %v1249 = vpop.f32.mrf.mxu0
      %1250 = vmatprep.mubr.bf16.mxu0 0
      %1251 = vmatmul.mubr.bf16.gmra.mxu0 %v822
      %v1252 = vpop.f32.mrf.mxu0
      %v1253 = vadd.f32 %v363, %v1252
      %v1254 = vpop.f32.mrf.mxu0
      %v1255 = vpop.f32.mrf.mxu0
      %v1256 = vadd.f32 %v363, %v1255
      %v1257 = vpop.f32.mrf.mxu0
      %1258 = vmatprep.mubr.bf16.mxu0 0
      %1259 = vmatmul.mubr.bf16.gmra.mxu0 %v825
      %v1260 = vpop.f32.mrf.mxu0
      %v1261 = vadd.f32 %v363, %v1260
      %v1262 = vpop.f32.mrf.mxu0
      %v1263 = vpop.f32.mrf.mxu0
      %v1264 = vadd.f32 %v363, %v1263
      %v1265 = vpop.f32.mrf.mxu0
      %1266 = vmatprep.mubr.bf16.mxu0 0
      %1267 = vmatmul.mubr.bf16.gmra.mxu0 %v828
      %v1268 = vpop.f32.mrf.mxu0
      %v1269 = vadd.f32 %v363, %v1268
      %v1270 = vpop.f32.mrf.mxu0
      %v1271 = vpop.f32.mrf.mxu0
      %v1272 = vadd.f32 %v363, %v1271
      %v1273 = vpop.f32.mrf.mxu0
      %1274 = vmatprep.mubr.bf16.mxu0 0
      %1275 = vmatmul.mubr.bf16.gmra.mxu0 %v831
      %v1276 = vpop.f32.mrf.mxu0
      %v1277 = vadd.f32 %v363, %v1276
      %v1278 = vpop.f32.mrf.mxu0
      %v1279 = vpop.f32.mrf.mxu0
      %v1280 = vadd.f32 %v363, %v1279
      %v1281 = vpop.f32.mrf.mxu0
      %1282 = vmatprep.mubr.bf16.mxu0 0
      %1283 = vmatmul.mubr.bf16.gmra.mxu0 %v834
      %v1284 = vpop.f32.mrf.mxu0
      %v1285 = vadd.f32 %v363, %v1284
      %v1286 = vpop.f32.mrf.mxu0
      %v1287 = vpop.f32.mrf.mxu0
      %v1288 = vadd.f32 %v363, %v1287
      %v1289 = vpop.f32.mrf.mxu0
      %1290 = vmatprep.mubr.bf16.mxu0 0
      %1291 = vmatmul.mubr.bf16.gmra.mxu0 %v837
      %v1292 = vpop.f32.mrf.mxu0
      %v1293 = vadd.f32 %v363, %v1292
      %v1294 = vpop.f32.mrf.mxu0
      %v1295 = vpop.f32.mrf.mxu0
      %v1296 = vadd.f32 %v363, %v1295
      %v1297 = vpop.f32.mrf.mxu0
      %1298 = vmatprep.mubr.bf16.mxu0 0
      %1299 = vmatmul.mubr.bf16.gmra.mxu0 %v840
      %v1300 = vpop.f32.mrf.mxu0
      %v1301 = vadd.f32 %v363, %v1300
      %v1302 = vpop.f32.mrf.mxu0
      %v1303 = vpop.f32.mrf.mxu0
      %v1304 = vadd.f32 %v363, %v1303
      %v1305 = vpop.f32.mrf.mxu0
      %1306 = vmatprep.mubr.bf16.mxu0 0
      %1307 = vmatmul.mubr.bf16.gmra.mxu0 %v843
      %v1308 = vpop.f32.mrf.mxu0
      %v1309 = vadd.f32 %v363, %v1308
      %v1310 = vpop.f32.mrf.mxu0
      %v1311 = vpop.f32.mrf.mxu0
      %v1312 = vadd.f32 %v363, %v1311
      %v1313 = vpop.f32.mrf.mxu0
      %1314 = vmatprep.mubr.bf16.mxu0 0
      %1315 = vmatmul.mubr.bf16.gmra.mxu0 %v846
      %v1316 = vpop.f32.mrf.mxu0
      %v1317 = vadd.f32 %v363, %v1316
      %v1318 = vpop.f32.mrf.mxu0
      %v1319 = vpop.f32.mrf.mxu0
      %v1320 = vadd.f32 %v363, %v1319
      %v1321 = vpop.f32.mrf.mxu0
      %1322 = vmatprep.mubr.bf16.mxu0 0
      %1323 = vmatmul.mubr.bf16.gmra.mxu0 %v849
      %v1324 = vpop.f32.mrf.mxu0
      %v1325 = vadd.f32 %v363, %v1324
      %v1326 = vpop.f32.mrf.mxu0
      %v1327 = vpop.f32.mrf.mxu0
      %v1328 = vadd.f32 %v363, %v1327
      %v1329 = vpop.f32.mrf.mxu0
      %1330 = vmatprep.mubr.bf16.mxu0 0
      %1331 = vmatmul.mubr.bf16.gmra.mxu0 %v852
      %v1332 = vpop.f32.mrf.mxu0
      %v1333 = vadd.f32 %v363, %v1332
      %v1334 = vpop.f32.mrf.mxu0
      %v1335 = vpop.f32.mrf.mxu0
      %v1336 = vadd.f32 %v363, %v1335
      %v1337 = vpop.f32.mrf.mxu0
      %1338 = vmatprep.mubr.bf16.mxu0 0
      %1339 = vmatmul.mubr.bf16.gmra.mxu0 %v855
      %v1340 = vpop.f32.mrf.mxu0
      %v1341 = vadd.f32 %v363, %v1340
      %v1342 = vpop.f32.mrf.mxu0
      %v1343 = vpop.f32.mrf.mxu0
      %v1344 = vadd.f32 %v363, %v1343
      %v1345 = vpop.f32.mrf.mxu0
      %1346 = vmatprep.mubr.bf16.mxu0 0
      %1347 = vmatmul.mubr.bf16.gmra.mxu0 %v858
      %v1348 = vpop.f32.mrf.mxu0
      %v1349 = vadd.f32 %v363, %v1348
      %v1350 = vpop.f32.mrf.mxu0
      %v1351 = vpop.f32.mrf.mxu0
      %v1352 = vadd.f32 %v363, %v1351
      %v1353 = vpop.f32.mrf.mxu0
      %1354 = vmatprep.mubr.bf16.mxu0 0
      %1355 = vmatmul.mubr.bf16.gmra.mxu0 %v861
      %v1356 = vpop.f32.mrf.mxu0
      %v1357 = vadd.f32 %v363, %v1356
      %v1358 = vpop.f32.mrf.mxu0
      %v1359 = vpop.f32.mrf.mxu0
      %v1360 = vadd.f32 %v363, %v1359
      %v1361 = vpop.f32.mrf.mxu0
      %1362 = vmatprep.mubr.bf16.mxu0 0
      %1363 = vmatmul.mubr.bf16.gmra.mxu0 %v864
      %v1364 = vpop.f32.mrf.mxu0
      %v1365 = vadd.f32 %v363, %v1364
      %v1366 = vpop.f32.mrf.mxu0
      %v1367 = vpop.f32.mrf.mxu0
      %v1368 = vadd.f32 %v363, %v1367
      %v1369 = vpop.f32.mrf.mxu0
      %1370 = vmatprep.mubr.bf16.mxu0 0
      %1371 = vmatmul.mubr.bf16.gmra.mxu0 %v867
      %v1372 = vpop.f32.mrf.mxu0
      %v1373 = vadd.f32 %v363, %v1372
      %v1374 = vpop.f32.mrf.mxu0
      %v1375 = vpop.f32.mrf.mxu0
      %v1376 = vadd.f32 %v363, %v1375
      %v1377 = vpop.f32.mrf.mxu0
      %1378 = vmatprep.mubr.bf16.mxu0 0
      %1379 = vmatmul.mubr.bf16.gmra.mxu0 %v870
      %v1380 = vpop.f32.mrf.mxu0
      %v1381 = vadd.f32 %v363, %v1380
      %v1382 = vpop.f32.mrf.mxu0
      %v1383 = vpop.f32.mrf.mxu0
      %v1384 = vadd.f32 %v363, %v1383
      %v1385 = vpop.f32.mrf.mxu0
      %1386 = vmatprep.mubr.bf16.mxu0 0
      %1387 = vmatmul.mubr.bf16.gmra.mxu0 %v873
      %v1388 = vpop.f32.mrf.mxu0
      %v1389 = vadd.f32 %v363, %v1388
      %v1390 = vpop.f32.mrf.mxu0
      %v1391 = vpop.f32.mrf.mxu0
      %v1392 = vadd.f32 %v363, %v1391
      %v1393 = vpop.f32.mrf.mxu0
      %1394 = vmatprep.mubr.bf16.mxu0 0
      %1395 = vmatmul.mubr.bf16.gmra.mxu0 %v876
      %v1396 = vpop.f32.mrf.mxu0
      %v1397 = vadd.f32 %v363, %v1396
      %v1398 = vpop.f32.mrf.mxu0
      %v1399 = vpop.f32.mrf.mxu0
      %v1400 = vadd.f32 %v363, %v1399
      %v1401 = vpop.f32.mrf.mxu0
      %1402 = vmatprep.mubr.bf16.mxu0 0
      %1403 = vmatmul.mubr.bf16.gmra.mxu0 %v879
      %v1404 = vpop.f32.mrf.mxu0
      %v1405 = vadd.f32 %v363, %v1404
      %v1406 = vpop.f32.mrf.mxu0
      %v1407 = vpop.f32.mrf.mxu0
      %v1408 = vadd.f32 %v363, %v1407
      %v1409 = vpop.f32.mrf.mxu0
      %1410 = vmatprep.mubr.bf16.mxu0 0
      %1411 = vmatmul.mubr.bf16.gmra.mxu0 %v882
      %v1412 = vpop.f32.mrf.mxu0
      %v1413 = vadd.f32 %v363, %v1412
      %v1414 = vpop.f32.mrf.mxu0
      %v1415 = vpop.f32.mrf.mxu0
      %v1416 = vadd.f32 %v363, %v1415
      %v1417 = vpop.f32.mrf.mxu0
      %1418 = vmatprep.mubr.bf16.mxu0 0
      %1419 = vmatmul.mubr.bf16.gmra.mxu0 %v885
      %v1420 = vpop.f32.mrf.mxu0
      %v1421 = vadd.f32 %v363, %v1420
      %v1422 = vpop.f32.mrf.mxu0
      %v1423 = vpop.f32.mrf.mxu0
      %v1424 = vadd.f32 %v363, %v1423
      %v1425 = vpop.f32.mrf.mxu0
      %1426 = vmatprep.mubr.bf16.mxu0 0
      %1427 = vmatmul.mubr.bf16.gmra.mxu0 %v888
      %v1428 = vpop.f32.mrf.mxu0
      %v1429 = vadd.f32 %v363, %v1428
      %v1430 = vpop.f32.mrf.mxu0
      %v1431 = vpop.f32.mrf.mxu0
      %v1432 = vadd.f32 %v363, %v1431
      %v1433 = vpop.f32.mrf.mxu0
      %1434 = vdwg.mxu0
      %v1435 = vmax.f32 %v925, 0.0
      %v1436 = vmax.f32 %v928, 0.0
      %v1437 = vmax.f32 %v933, 0.0
      %v1438 = vmax.f32 %v936, 0.0
      %v1439 = vmax.f32 %v941, 0.0
      %v1440 = vmax.f32 %v944, 0.0
      %v1441 = vmax.f32 %v949, 0.0
      %v1442 = vmax.f32 %v952, 0.0
      %v1443 = vmax.f32 %v957, 0.0
      %v1444 = vmax.f32 %v960, 0.0
      %v1445 = vmax.f32 %v965, 0.0
      %v1446 = vmax.f32 %v968, 0.0
      %v1447 = vmax.f32 %v973, 0.0
      %v1448 = vmax.f32 %v976, 0.0
      %v1449 = vmax.f32 %v981, 0.0
      %v1450 = vmax.f32 %v984, 0.0
      %v1451 = vmax.f32 %v989, 0.0
      %v1452 = vmax.f32 %v992, 0.0
      %v1453 = vmax.f32 %v997, 0.0
      %v1454 = vmax.f32 %v1000, 0.0
      %v1455 = vmax.f32 %v1005, 0.0
      %v1456 = vmax.f32 %v1008, 0.0
      %v1457 = vmax.f32 %v1013, 0.0
      %v1458 = vmax.f32 %v1016, 0.0
      %v1459 = vmax.f32 %v1021, 0.0
      %v1460 = vmax.f32 %v1024, 0.0
      %v1461 = vmax.f32 %v1029, 0.0
      %v1462 = vmax.f32 %v1032, 0.0
      %v1463 = vmax.f32 %v1037, 0.0
      %v1464 = vmax.f32 %v1040, 0.0
      %v1465 = vmax.f32 %v1045, 0.0
      %v1466 = vmax.f32 %v1048, 0.0
      %v1467 = vmax.f32 %v1053, 0.0
      %v1468 = vmax.f32 %v1056, 0.0
      %v1469 = vmax.f32 %v1061, 0.0
      %v1470 = vmax.f32 %v1064, 0.0
      %v1471 = vmax.f32 %v1069, 0.0
      %v1472 = vmax.f32 %v1072, 0.0
      %v1473 = vmax.f32 %v1077, 0.0
      %v1474 = vmax.f32 %v1080, 0.0
      %v1475 = vmax.f32 %v1085, 0.0
      %v1476 = vmax.f32 %v1088, 0.0
      %v1477 = vmax.f32 %v1093, 0.0
      %v1478 = vmax.f32 %v1096, 0.0
      %v1479 = vmax.f32 %v1101, 0.0
      %v1480 = vmax.f32 %v1104, 0.0
      %v1481 = vmax.f32 %v1109, 0.0
      %v1482 = vmax.f32 %v1112, 0.0
      %v1483 = vmax.f32 %v1117, 0.0
      %v1484 = vmax.f32 %v1120, 0.0
      %v1485 = vmax.f32 %v1125, 0.0
      %v1486 = vmax.f32 %v1128, 0.0
      %v1487 = vmax.f32 %v1133, 0.0
      %v1488 = vmax.f32 %v1136, 0.0
      %v1489 = vmax.f32 %v1141, 0.0
      %v1490 = vmax.f32 %v1144, 0.0
      %v1491 = vmax.f32 %v1149, 0.0
      %v1492 = vmax.f32 %v1152, 0.0
      %v1493 = vmax.f32 %v1157, 0.0
      %v1494 = vmax.f32 %v1160, 0.0
      %v1495 = vmax.f32 %v1165, 0.0
      %v1496 = vmax.f32 %v1168, 0.0
      %v1497 = vmax.f32 %v1173, 0.0
      %v1498 = vmax.f32 %v1176, 0.0
      %v1499 = vmax.f32 %v1181, 0.0
      %v1500 = vmax.f32 %v1184, 0.0
      %v1501 = vmax.f32 %v1189, 0.0
      %v1502 = vmax.f32 %v1192, 0.0
      %v1503 = vmax.f32 %v1197, 0.0
      %v1504 = vmax.f32 %v1200, 0.0
      %v1505 = vmax.f32 %v1205, 0.0
      %v1506 = vmax.f32 %v1208, 0.0
      %v1507 = vmax.f32 %v1213, 0.0
      %v1508 = vmax.f32 %v1216, 0.0
      %v1509 = vmax.f32 %v1221, 0.0
      %v1510 = vmax.f32 %v1224, 0.0
      %v1511 = vmax.f32 %v1229, 0.0
      %v1512 = vmax.f32 %v1232, 0.0
      %v1513 = vmax.f32 %v1237, 0.0
      %v1514 = vmax.f32 %v1240, 0.0
      %v1515 = vmax.f32 %v1245, 0.0
      %v1516 = vmax.f32 %v1248, 0.0
      %v1517 = vmax.f32 %v1253, 0.0
      %v1518 = vmax.f32 %v1256, 0.0
      %v1519 = vmax.f32 %v1261, 0.0
      %v1520 = vmax.f32 %v1264, 0.0
      %v1521 = vmax.f32 %v1269, 0.0
      %v1522 = vmax.f32 %v1272, 0.0
      %v1523 = vmax.f32 %v1277, 0.0
      %v1524 = vmax.f32 %v1280, 0.0
      %v1525 = vmax.f32 %v1285, 0.0
      %v1526 = vmax.f32 %v1288, 0.0
      %v1527 = vmax.f32 %v1293, 0.0
      %v1528 = vmax.f32 %v1296, 0.0
      %v1529 = vmax.f32 %v1301, 0.0
      %v1530 = vmax.f32 %v1304, 0.0
      %v1531 = vmax.f32 %v1309, 0.0
      %v1532 = vmax.f32 %v1312, 0.0
      %v1533 = vmax.f32 %v1317, 0.0
      %v1534 = vmax.f32 %v1320, 0.0
      %v1535 = vmax.f32 %v1325, 0.0
      %v1536 = vmax.f32 %v1328, 0.0
      %v1537 = vmax.f32 %v1333, 0.0
      %v1538 = vmax.f32 %v1336, 0.0
      %v1539 = vmax.f32 %v1341, 0.0
      %v1540 = vmax.f32 %v1344, 0.0
      %v1541 = vmax.f32 %v1349, 0.0
      %v1542 = vmax.f32 %v1352, 0.0
      %v1543 = vmax.f32 %v1357, 0.0
      %v1544 = vmax.f32 %v1360, 0.0
      %v1545 = vmax.f32 %v1365, 0.0
      %v1546 = vmax.f32 %v1368, 0.0
      %v1547 = vmax.f32 %v1373, 0.0
      %v1548 = vmax.f32 %v1376, 0.0
      %v1549 = vmax.f32 %v1381, 0.0
      %v1550 = vmax.f32 %v1384, 0.0
      %v1551 = vmax.f32 %v1389, 0.0
      %v1552 = vmax.f32 %v1392, 0.0
      %v1553 = vmax.f32 %v1397, 0.0
      %v1554 = vmax.f32 %v1400, 0.0
      %v1555 = vmax.f32 %v1405, 0.0
      %v1556 = vmax.f32 %v1408, 0.0
      %v1557 = vmax.f32 %v1413, 0.0
      %v1558 = vmax.f32 %v1416, 0.0
      %v1559 = vmax.f32 %v1421, 0.0
      %v1560 = vmax.f32 %v1424, 0.0
      %v1561 = vmax.f32 %v1429, 0.0
      %v1562 = vmax.f32 %v1432, 0.0
      %v1563 = vpack.c.bf16 %v1436, %v1435
      %v1564 = vpack.c.bf16 %v1438, %v1437
      %v1565 = vpack.c.bf16 %v1440, %v1439
      %v1566 = vpack.c.bf16 %v1442, %v1441
      %v1567 = vpack.c.bf16 %v1444, %v1443
      %v1568 = vpack.c.bf16 %v1446, %v1445
      %v1569 = vpack.c.bf16 %v1448, %v1447
      %v1570 = vpack.c.bf16 %v1450, %v1449
      %v1571 = vpack.c.bf16 %v1452, %v1451
      %v1572 = vpack.c.bf16 %v1454, %v1453
      %v1573 = vpack.c.bf16 %v1456, %v1455
      %v1574 = vpack.c.bf16 %v1458, %v1457
      %v1575 = vpack.c.bf16 %v1460, %v1459
      %v1576 = vpack.c.bf16 %v1462, %v1461
      %v1577 = vpack.c.bf16 %v1464, %v1463
      %v1578 = vpack.c.bf16 %v1466, %v1465
      %v1579 = vpack.c.bf16 %v1468, %v1467
      %v1580 = vpack.c.bf16 %v1470, %v1469
      %v1581 = vpack.c.bf16 %v1472, %v1471
      %v1582 = vpack.c.bf16 %v1474, %v1473
      %v1583 = vpack.c.bf16 %v1476, %v1475
      %v1584 = vpack.c.bf16 %v1478, %v1477
      %v1585 = vpack.c.bf16 %v1480, %v1479
      %v1586 = vpack.c.bf16 %v1482, %v1481
      %v1587 = vpack.c.bf16 %v1484, %v1483
      %v1588 = vpack.c.bf16 %v1486, %v1485
      %v1589 = vpack.c.bf16 %v1488, %v1487
      %v1590 = vpack.c.bf16 %v1490, %v1489
      %v1591 = vpack.c.bf16 %v1492, %v1491
      %v1592 = vpack.c.bf16 %v1494, %v1493
      %v1593 = vpack.c.bf16 %v1496, %v1495
      %v1594 = vpack.c.bf16 %v1498, %v1497
      %v1595 = vpack.c.bf16 %v1500, %v1499
      %v1596 = vpack.c.bf16 %v1502, %v1501
      %v1597 = vpack.c.bf16 %v1504, %v1503
      %v1598 = vpack.c.bf16 %v1506, %v1505
      %v1599 = vpack.c.bf16 %v1508, %v1507
      %v1600 = vpack.c.bf16 %v1510, %v1509
      %v1601 = vpack.c.bf16 %v1512, %v1511
      %v1602 = vpack.c.bf16 %v1514, %v1513
      %v1603 = vpack.c.bf16 %v1516, %v1515
      %v1604 = vpack.c.bf16 %v1518, %v1517
      %v1605 = vpack.c.bf16 %v1520, %v1519
      %v1606 = vpack.c.bf16 %v1522, %v1521
      %v1607 = vpack.c.bf16 %v1524, %v1523
      %v1608 = vpack.c.bf16 %v1526, %v1525
      %v1609 = vpack.c.bf16 %v1528, %v1527
      %v1610 = vpack.c.bf16 %v1530, %v1529
      %v1611 = vpack.c.bf16 %v1532, %v1531
      %v1612 = vpack.c.bf16 %v1534, %v1533
      %v1613 = vpack.c.bf16 %v1536, %v1535
      %v1614 = vpack.c.bf16 %v1538, %v1537
      %v1615 = vpack.c.bf16 %v1540, %v1539
      %v1616 = vpack.c.bf16 %v1542, %v1541
      %v1617 = vpack.c.bf16 %v1544, %v1543
      %v1618 = vpack.c.bf16 %v1546, %v1545
      %v1619 = vpack.c.bf16 %v1548, %v1547
      %v1620 = vpack.c.bf16 %v1550, %v1549
      %v1621 = vpack.c.bf16 %v1552, %v1551
      %v1622 = vpack.c.bf16 %v1554, %v1553
      %v1623 = vpack.c.bf16 %v1556, %v1555
      %v1624 = vpack.c.bf16 %v1558, %v1557
      %v1625 = vpack.c.bf16 %v1560, %v1559
      %v1626 = vpack.c.bf16 %v1562, %v1561
      %v1691 = vunpack.c.l.b16 %v1563
      %v1692 = vunpack.c.h.b16 %v1563
      %v1693 = vunpack.c.l.b16 %v1564
      %v1694 = vunpack.c.h.b16 %v1564
      %v1695 = vunpack.c.l.b16 %v1565
      %v1696 = vunpack.c.h.b16 %v1565
      %v1697 = vunpack.c.l.b16 %v1566
      %v1698 = vunpack.c.h.b16 %v1566
      %v1699 = vunpack.c.l.b16 %v1567
      %v1700 = vunpack.c.h.b16 %v1567
      %v1701 = vunpack.c.l.b16 %v1568
      %v1702 = vunpack.c.h.b16 %v1568
      %v1703 = vunpack.c.l.b16 %v1569
      %v1704 = vunpack.c.h.b16 %v1569
      %v1705 = vunpack.c.l.b16 %v1570
      %v1706 = vunpack.c.h.b16 %v1570
      %v1707 = vunpack.c.l.b16 %v1571
      %v1708 = vunpack.c.h.b16 %v1571
      %v1709 = vunpack.c.l.b16 %v1572
      %v1710 = vunpack.c.h.b16 %v1572
      %v1711 = vunpack.c.l.b16 %v1573
      %v1712 = vunpack.c.h.b16 %v1573
      %v1713 = vunpack.c.l.b16 %v1574
      %v1714 = vunpack.c.h.b16 %v1574
      %v1715 = vunpack.c.l.b16 %v1575
      %v1716 = vunpack.c.h.b16 %v1575
      %v1717 = vunpack.c.l.b16 %v1576
      %v1718 = vunpack.c.h.b16 %v1576
      %v1719 = vunpack.c.l.b16 %v1577
      %v1720 = vunpack.c.h.b16 %v1577
      %v1721 = vunpack.c.l.b16 %v1578
      %v1722 = vunpack.c.h.b16 %v1578
      %v1723 = vunpack.c.l.b16 %v1579
      %v1724 = vunpack.c.h.b16 %v1579
      %v1725 = vunpack.c.l.b16 %v1580
      %v1726 = vunpack.c.h.b16 %v1580
      %v1727 = vunpack.c.l.b16 %v1581
      %v1728 = vunpack.c.h.b16 %v1581
      %v1729 = vunpack.c.l.b16 %v1582
      %v1730 = vunpack.c.h.b16 %v1582
      %v1731 = vunpack.c.l.b16 %v1583
      %v1732 = vunpack.c.h.b16 %v1583
      %v1733 = vunpack.c.l.b16 %v1584
      %v1734 = vunpack.c.h.b16 %v1584
      %v1735 = vunpack.c.l.b16 %v1585
      %v1736 = vunpack.c.h.b16 %v1585
      %v1737 = vunpack.c.l.b16 %v1586
      %v1738 = vunpack.c.h.b16 %v1586
      %v1739 = vunpack.c.l.b16 %v1587
      %v1740 = vunpack.c.h.b16 %v1587
      %v1741 = vunpack.c.l.b16 %v1588
      %v1742 = vunpack.c.h.b16 %v1588
      %v1743 = vunpack.c.l.b16 %v1589
      %v1744 = vunpack.c.h.b16 %v1589
      %v1745 = vunpack.c.l.b16 %v1590
      %v1746 = vunpack.c.h.b16 %v1590
      %v1747 = vunpack.c.l.b16 %v1591
      %v1748 = vunpack.c.h.b16 %v1591
      %v1749 = vunpack.c.l.b16 %v1592
      %v1750 = vunpack.c.h.b16 %v1592
      %v1751 = vunpack.c.l.b16 %v1593
      %v1752 = vunpack.c.h.b16 %v1593
      %v1753 = vunpack.c.l.b16 %v1594
      %v1754 = vunpack.c.h.b16 %v1594
      %v1755 = vunpack.c.l.b16 %v1595
      %v1756 = vunpack.c.h.b16 %v1595
      %v1757 = vunpack.c.l.b16 %v1596
      %v1758 = vunpack.c.h.b16 %v1596
      %v1759 = vunpack.c.l.b16 %v1597
      %v1760 = vunpack.c.h.b16 %v1597
      %v1761 = vunpack.c.l.b16 %v1598
      %v1762 = vunpack.c.h.b16 %v1598
      %v1763 = vunpack.c.l.b16 %v1599
      %v1764 = vunpack.c.h.b16 %v1599
      %v1765 = vunpack.c.l.b16 %v1600
      %v1766 = vunpack.c.h.b16 %v1600
      %v1767 = vunpack.c.l.b16 %v1601
      %v1768 = vunpack.c.h.b16 %v1601
      %v1769 = vunpack.c.l.b16 %v1602
      %v1770 = vunpack.c.h.b16 %v1602
      %v1771 = vunpack.c.l.b16 %v1603
      %v1772 = vunpack.c.h.b16 %v1603
      %v1773 = vunpack.c.l.b16 %v1604
      %v1774 = vunpack.c.h.b16 %v1604
      %v1775 = vunpack.c.l.b16 %v1605
      %v1776 = vunpack.c.h.b16 %v1605
      %v1777 = vunpack.c.l.b16 %v1606
      %v1778 = vunpack.c.h.b16 %v1606
      %v1779 = vunpack.c.l.b16 %v1607
      %v1780 = vunpack.c.h.b16 %v1607
      %v1781 = vunpack.c.l.b16 %v1608
      %v1782 = vunpack.c.h.b16 %v1608
      %v1783 = vunpack.c.l.b16 %v1609
      %v1784 = vunpack.c.h.b16 %v1609
      %v1785 = vunpack.c.l.b16 %v1610
      %v1786 = vunpack.c.h.b16 %v1610
      %v1787 = vunpack.c.l.b16 %v1611
      %v1788 = vunpack.c.h.b16 %v1611
      %v1789 = vunpack.c.l.b16 %v1612
      %v1790 = vunpack.c.h.b16 %v1612
      %v1791 = vunpack.c.l.b16 %v1613
      %v1792 = vunpack.c.h.b16 %v1613
      %v1793 = vunpack.c.l.b16 %v1614
      %v1794 = vunpack.c.h.b16 %v1614
      %v1795 = vunpack.c.l.b16 %v1615
      %v1796 = vunpack.c.h.b16 %v1615
      %v1797 = vunpack.c.l.b16 %v1616
      %v1798 = vunpack.c.h.b16 %v1616
      %v1799 = vunpack.c.l.b16 %v1617
      %v1800 = vunpack.c.h.b16 %v1617
      %v1801 = vunpack.c.l.b16 %v1618
      %v1802 = vunpack.c.h.b16 %v1618
      %v1803 = vunpack.c.l.b16 %v1619
      %v1804 = vunpack.c.h.b16 %v1619
      %v1805 = vunpack.c.l.b16 %v1620
      %v1806 = vunpack.c.h.b16 %v1620
      %v1807 = vunpack.c.l.b16 %v1621
      %v1808 = vunpack.c.h.b16 %v1621
      %v1809 = vunpack.c.l.b16 %v1622
      %v1810 = vunpack.c.h.b16 %v1622
      %v1811 = vunpack.c.l.b16 %v1623
      %v1812 = vunpack.c.h.b16 %v1623
      %v1813 = vunpack.c.l.b16 %v1624
      %v1814 = vunpack.c.h.b16 %v1624
      %v1815 = vunpack.c.l.b16 %v1625
      %v1816 = vunpack.c.h.b16 %v1625
      %v1817 = vunpack.c.l.b16 %v1626
      %v1818 = vunpack.c.h.b16 %v1626
      %v1819 = vpack.c.b16 %v1691, %v1691
      %v1820 = vpack.c.b16 %v1692, %v1692
      %v1821 = vpack.c.b16 %v1693, %v1693
      %v1822 = vpack.c.b16 %v1694, %v1694
      %v1823 = vpack.c.b16 %v1695, %v1695
      %v1824 = vpack.c.b16 %v1696, %v1696
      %v1825 = vpack.c.b16 %v1697, %v1697
      %v1826 = vpack.c.b16 %v1698, %v1698
      %v1827 = vpack.c.b16 %v1699, %v1699
      %v1828 = vpack.c.b16 %v1700, %v1700
      %v1829 = vpack.c.b16 %v1701, %v1701
      %v1830 = vpack.c.b16 %v1702, %v1702
      %v1831 = vpack.c.b16 %v1703, %v1703
      %v1832 = vpack.c.b16 %v1704, %v1704
      %v1833 = vpack.c.b16 %v1705, %v1705
      %v1834 = vpack.c.b16 %v1706, %v1706
      %v1835 = vpack.c.b16 %v1707, %v1707
      %v1836 = vpack.c.b16 %v1708, %v1708
      %v1837 = vpack.c.b16 %v1709, %v1709
      %v1838 = vpack.c.b16 %v1710, %v1710
      %v1839 = vpack.c.b16 %v1711, %v1711
      %v1840 = vpack.c.b16 %v1712, %v1712
      %v1841 = vpack.c.b16 %v1713, %v1713
      %v1842 = vpack.c.b16 %v1714, %v1714
      %v1843 = vpack.c.b16 %v1715, %v1715
      %v1844 = vpack.c.b16 %v1716, %v1716
      %v1845 = vpack.c.b16 %v1717, %v1717
      %v1846 = vpack.c.b16 %v1718, %v1718
      %v1847 = vpack.c.b16 %v1719, %v1719
      %v1848 = vpack.c.b16 %v1720, %v1720
      %v1849 = vpack.c.b16 %v1721, %v1721
      %v1850 = vpack.c.b16 %v1722, %v1722
      %v1851 = vpack.c.b16 %v1723, %v1723
      %v1852 = vpack.c.b16 %v1724, %v1724
      %v1853 = vpack.c.b16 %v1725, %v1725
      %v1854 = vpack.c.b16 %v1726, %v1726
      %v1855 = vpack.c.b16 %v1727, %v1727
      %v1856 = vpack.c.b16 %v1728, %v1728
      %v1857 = vpack.c.b16 %v1729, %v1729
      %v1858 = vpack.c.b16 %v1730, %v1730
      %v1859 = vpack.c.b16 %v1731, %v1731
      %v1860 = vpack.c.b16 %v1732, %v1732
      %v1861 = vpack.c.b16 %v1733, %v1733
      %v1862 = vpack.c.b16 %v1734, %v1734
      %v1863 = vpack.c.b16 %v1735, %v1735
      %v1864 = vpack.c.b16 %v1736, %v1736
      %v1865 = vpack.c.b16 %v1737, %v1737
      %v1866 = vpack.c.b16 %v1738, %v1738
      %v1867 = vpack.c.b16 %v1739, %v1739
      %v1868 = vpack.c.b16 %v1740, %v1740
      %v1869 = vpack.c.b16 %v1741, %v1741
      %v1870 = vpack.c.b16 %v1742, %v1742
      %v1871 = vpack.c.b16 %v1743, %v1743
      %v1872 = vpack.c.b16 %v1744, %v1744
      %v1873 = vpack.c.b16 %v1745, %v1745
      %v1874 = vpack.c.b16 %v1746, %v1746
      %v1875 = vpack.c.b16 %v1747, %v1747
      %v1876 = vpack.c.b16 %v1748, %v1748
      %v1877 = vpack.c.b16 %v1749, %v1749
      %v1878 = vpack.c.b16 %v1750, %v1750
      %v1879 = vpack.c.b16 %v1751, %v1751
      %v1880 = vpack.c.b16 %v1752, %v1752
      %v1881 = vpack.c.b16 %v1753, %v1753
      %v1882 = vpack.c.b16 %v1754, %v1754
      %v1883 = vpack.c.b16 %v1755, %v1755
      %v1884 = vpack.c.b16 %v1756, %v1756
      %v1885 = vpack.c.b16 %v1757, %v1757
      %v1886 = vpack.c.b16 %v1758, %v1758
      %v1887 = vpack.c.b16 %v1759, %v1759
      %v1888 = vpack.c.b16 %v1760, %v1760
      %v1889 = vpack.c.b16 %v1761, %v1761
      %v1890 = vpack.c.b16 %v1762, %v1762
      %v1891 = vpack.c.b16 %v1763, %v1763
      %v1892 = vpack.c.b16 %v1764, %v1764
      %v1893 = vpack.c.b16 %v1765, %v1765
      %v1894 = vpack.c.b16 %v1766, %v1766
      %v1895 = vpack.c.b16 %v1767, %v1767
      %v1896 = vpack.c.b16 %v1768, %v1768
      %v1897 = vpack.c.b16 %v1769, %v1769
      %v1898 = vpack.c.b16 %v1770, %v1770
      %v1899 = vpack.c.b16 %v1771, %v1771
      %v1900 = vpack.c.b16 %v1772, %v1772
      %v1901 = vpack.c.b16 %v1773, %v1773
      %v1902 = vpack.c.b16 %v1774, %v1774
      %v1903 = vpack.c.b16 %v1775, %v1775
      %v1904 = vpack.c.b16 %v1776, %v1776
      %v1905 = vpack.c.b16 %v1777, %v1777
      %v1906 = vpack.c.b16 %v1778, %v1778
      %v1907 = vpack.c.b16 %v1779, %v1779
      %v1908 = vpack.c.b16 %v1780, %v1780
      %v1909 = vpack.c.b16 %v1781, %v1781
      %v1910 = vpack.c.b16 %v1782, %v1782
      %v1911 = vpack.c.b16 %v1783, %v1783
      %v1912 = vpack.c.b16 %v1784, %v1784
      %v1913 = vpack.c.b16 %v1785, %v1785
      %v1914 = vpack.c.b16 %v1786, %v1786
      %v1915 = vpack.c.b16 %v1787, %v1787
      %v1916 = vpack.c.b16 %v1788, %v1788
      %v1917 = vpack.c.b16 %v1789, %v1789
      %v1918 = vpack.c.b16 %v1790, %v1790
      %v1919 = vpack.c.b16 %v1791, %v1791
      %v1920 = vpack.c.b16 %v1792, %v1792
      %v1921 = vpack.c.b16 %v1793, %v1793
      %v1922 = vpack.c.b16 %v1794, %v1794
      %v1923 = vpack.c.b16 %v1795, %v1795
      %v1924 = vpack.c.b16 %v1796, %v1796
      %v1925 = vpack.c.b16 %v1797, %v1797
      %v1926 = vpack.c.b16 %v1798, %v1798
      %v1927 = vpack.c.b16 %v1799, %v1799
      %v1928 = vpack.c.b16 %v1800, %v1800
      %v1929 = vpack.c.b16 %v1801, %v1801
      %v1930 = vpack.c.b16 %v1802, %v1802
      %v1931 = vpack.c.b16 %v1803, %v1803
      %v1932 = vpack.c.b16 %v1804, %v1804
      %v1933 = vpack.c.b16 %v1805, %v1805
      %v1934 = vpack.c.b16 %v1806, %v1806
      %v1935 = vpack.c.b16 %v1807, %v1807
      %v1936 = vpack.c.b16 %v1808, %v1808
      %v1937 = vpack.c.b16 %v1809, %v1809
      %v1938 = vpack.c.b16 %v1810, %v1810
      %v1939 = vpack.c.b16 %v1811, %v1811
      %v1940 = vpack.c.b16 %v1812, %v1812
      %v1941 = vpack.c.b16 %v1813, %v1813
      %v1942 = vpack.c.b16 %v1814, %v1814
      %v1943 = vpack.c.b16 %v1815, %v1815
      %v1944 = vpack.c.b16 %v1816, %v1816
      %v1945 = vpack.c.b16 %v1817, %v1817
      %v1946 = vpack.c.b16 %v1818, %v1818
      %2075 = vst [vmem:[%s223] sm:$0xf] %v1819
      %2076 = vst [vmem:[%s223 + $0x4] sm:$0xf] %v1820
      %2077 = vst [vmem:[%s223 + $0x8] sm:$0xf] %v1821
      %2078 = vst [vmem:[%s223 + $0xc] sm:$0xf] %v1822
      %2079 = vst [vmem:[%s223 + $0x10] sm:$0xf] %v1823
      %2080 = vst [vmem:[%s223 + $0x14] sm:$0xf] %v1824
      %2081 = vst [vmem:[%s223 + $0x18] sm:$0xf] %v1825
      %2082 = vst [vmem:[%s223 + $0x1c] sm:$0xf] %v1826
      %2083 = vst [vmem:[%s223 + $0x20] sm:$0xf] %v1827
      %2084 = vst [vmem:[%s223 + $0x24] sm:$0xf] %v1828
      %2085 = vst [vmem:[%s223 + $0x28] sm:$0xf] %v1829
      %2086 = vst [vmem:[%s223 + $0x2c] sm:$0xf] %v1830
      %2087 = vst [vmem:[%s223 + $0x30] sm:$0xf] %v1831
      %2088 = vst [vmem:[%s223 + $0x34] sm:$0xf] %v1832
      %2089 = vst [vmem:[%s223 + $0x38] sm:$0xf] %v1833
      %2090 = vst [vmem:[%s223 + $0x3c] sm:$0xf] %v1834
      %2091 = vst [vmem:[%s223 + $0x40] sm:$0xf] %v1835
      %2092 = vst [vmem:[%s223 + $0x44] sm:$0xf] %v1836
      %2093 = vst [vmem:[%s223 + $0x48] sm:$0xf] %v1837
      %2094 = vst [vmem:[%s223 + $0x4c] sm:$0xf] %v1838
      %2095 = vst [vmem:[%s223 + $0x50] sm:$0xf] %v1839
      %2096 = vst [vmem:[%s223 + $0x54] sm:$0xf] %v1840
      %2097 = vst [vmem:[%s223 + $0x58] sm:$0xf] %v1841
      %2098 = vst [vmem:[%s223 + $0x5c] sm:$0xf] %v1842
      %2099 = vst [vmem:[%s223 + $0x60] sm:$0xf] %v1843
      %2100 = vst [vmem:[%s223 + $0x64] sm:$0xf] %v1844
      %2101 = vst [vmem:[%s223 + $0x68] sm:$0xf] %v1845
      %2102 = vst [vmem:[%s223 + $0x6c] sm:$0xf] %v1846
      %2103 = vst [vmem:[%s223 + $0x70] sm:$0xf] %v1847
      %2104 = vst [vmem:[%s223 + $0x74] sm:$0xf] %v1848
      %2105 = vst [vmem:[%s223 + $0x78] sm:$0xf] %v1849
      %2106 = vst [vmem:[%s223 + $0x7c] sm:$0xf] %v1850
      %2107 = vst [vmem:[%s223 + $0x80] sm:$0xf] %v1851
      %2108 = vst [vmem:[%s223 + $0x84] sm:$0xf] %v1852
      %2109 = vst [vmem:[%s223 + $0x88] sm:$0xf] %v1853
      %2110 = vst [vmem:[%s223 + $0x8c] sm:$0xf] %v1854
      %2111 = vst [vmem:[%s223 + $0x90] sm:$0xf] %v1855
      %2112 = vst [vmem:[%s223 + $0x94] sm:$0xf] %v1856
      %2113 = vst [vmem:[%s223 + $0x98] sm:$0xf] %v1857
      %2114 = vst [vmem:[%s223 + $0x9c] sm:$0xf] %v1858
      %2115 = vst [vmem:[%s223 + $0xa0] sm:$0xf] %v1859
      %2116 = vst [vmem:[%s223 + $0xa4] sm:$0xf] %v1860
      %2117 = vst [vmem:[%s223 + $0xa8] sm:$0xf] %v1861
      %2118 = vst [vmem:[%s223 + $0xac] sm:$0xf] %v1862
      %2119 = vst [vmem:[%s223 + $0xb0] sm:$0xf] %v1863
      %2120 = vst [vmem:[%s223 + $0xb4] sm:$0xf] %v1864
      %2121 = vst [vmem:[%s223 + $0xb8] sm:$0xf] %v1865
      %2122 = vst [vmem:[%s223 + $0xbc] sm:$0xf] %v1866
      %2123 = vst [vmem:[%s223 + $0xc0] sm:$0xf] %v1867
      %2124 = vst [vmem:[%s223 + $0xc4] sm:$0xf] %v1868
      %2125 = vst [vmem:[%s223 + $0xc8] sm:$0xf] %v1869
      %2126 = vst [vmem:[%s223 + $0xcc] sm:$0xf] %v1870
      %2127 = vst [vmem:[%s223 + $0xd0] sm:$0xf] %v1871
      %2128 = vst [vmem:[%s223 + $0xd4] sm:$0xf] %v1872
      %2129 = vst [vmem:[%s223 + $0xd8] sm:$0xf] %v1873
      %2130 = vst [vmem:[%s223 + $0xdc] sm:$0xf] %v1874
      %2131 = vst [vmem:[%s223 + $0xe0] sm:$0xf] %v1875
      %2132 = vst [vmem:[%s223 + $0xe4] sm:$0xf] %v1876
      %2133 = vst [vmem:[%s223 + $0xe8] sm:$0xf] %v1877
      %2134 = vst [vmem:[%s223 + $0xec] sm:$0xf] %v1878
      %2135 = vst [vmem:[%s223 + $0xf0] sm:$0xf] %v1879
      %2136 = vst [vmem:[%s223 + $0xf4] sm:$0xf] %v1880
      %2137 = vst [vmem:[%s223 + $0xf8] sm:$0xf] %v1881
      %2138 = vst [vmem:[%s223 + $0xfc] sm:$0xf] %v1882
      %2139 = vst [vmem:[%s223 + $0x100] sm:$0xf] %v1883
      %2140 = vst [vmem:[%s223 + $0x104] sm:$0xf] %v1884
      %2141 = vst [vmem:[%s223 + $0x108] sm:$0xf] %v1885
      %2142 = vst [vmem:[%s223 + $0x10c] sm:$0xf] %v1886
      %2143 = vst [vmem:[%s223 + $0x110] sm:$0xf] %v1887
      %2144 = vst [vmem:[%s223 + $0x114] sm:$0xf] %v1888
      %2145 = vst [vmem:[%s223 + $0x118] sm:$0xf] %v1889
      %2146 = vst [vmem:[%s223 + $0x11c] sm:$0xf] %v1890
      %2147 = vst [vmem:[%s223 + $0x120] sm:$0xf] %v1891
      %2148 = vst [vmem:[%s223 + $0x124] sm:$0xf] %v1892
      %2149 = vst [vmem:[%s223 + $0x128] sm:$0xf] %v1893
      %2150 = vst [vmem:[%s223 + $0x12c] sm:$0xf] %v1894
      %2151 = vst [vmem:[%s223 + $0x130] sm:$0xf] %v1895
      %2152 = vst [vmem:[%s223 + $0x134] sm:$0xf] %v1896
      %2153 = vst [vmem:[%s223 + $0x138] sm:$0xf] %v1897
      %2154 = vst [vmem:[%s223 + $0x13c] sm:$0xf] %v1898
      %2155 = vst [vmem:[%s223 + $0x140] sm:$0xf] %v1899
      %2156 = vst [vmem:[%s223 + $0x144] sm:$0xf] %v1900
      %2157 = vst [vmem:[%s223 + $0x148] sm:$0xf] %v1901
      %2158 = vst [vmem:[%s223 + $0x14c] sm:$0xf] %v1902
      %2159 = vst [vmem:[%s223 + $0x150] sm:$0xf] %v1903
      %2160 = vst [vmem:[%s223 + $0x154] sm:$0xf] %v1904
      %2161 = vst [vmem:[%s223 + $0x158] sm:$0xf] %v1905
      %2162 = vst [vmem:[%s223 + $0x15c] sm:$0xf] %v1906
      %2163 = vst [vmem:[%s223 + $0x160] sm:$0xf] %v1907
      %2164 = vst [vmem:[%s223 + $0x164] sm:$0xf] %v1908
      %2165 = vst [vmem:[%s223 + $0x168] sm:$0xf] %v1909
      %2166 = vst [vmem:[%s223 + $0x16c] sm:$0xf] %v1910
      %2167 = vst [vmem:[%s223 + $0x170] sm:$0xf] %v1911
      %2168 = vst [vmem:[%s223 + $0x174] sm:$0xf] %v1912
      %2169 = vst [vmem:[%s223 + $0x178] sm:$0xf] %v1913
      %2170 = vst [vmem:[%s223 + $0x17c] sm:$0xf] %v1914
      %2171 = vst [vmem:[%s223 + $0x180] sm:$0xf] %v1915
      %2172 = vst [vmem:[%s223 + $0x184] sm:$0xf] %v1916
      %2173 = vst [vmem:[%s223 + $0x188] sm:$0xf] %v1917
      %2174 = vst [vmem:[%s223 + $0x18c] sm:$0xf] %v1918
      %2175 = vst [vmem:[%s223 + $0x190] sm:$0xf] %v1919
      %2176 = vst [vmem:[%s223 + $0x194] sm:$0xf] %v1920
      %2177 = vst [vmem:[%s223 + $0x198] sm:$0xf] %v1921
      %2178 = vst [vmem:[%s223 + $0x19c] sm:$0xf] %v1922
      %2179 = vst [vmem:[%s223 + $0x1a0] sm:$0xf] %v1923
      %2180 = vst [vmem:[%s223 + $0x1a4] sm:$0xf] %v1924
      %2181 = vst [vmem:[%s223 + $0x1a8] sm:$0xf] %v1925
      %2182 = vst [vmem:[%s223 + $0x1ac] sm:$0xf] %v1926
      %2183 = vst [vmem:[%s223 + $0x1b0] sm:$0xf] %v1927
      %2184 = vst [vmem:[%s223 + $0x1b4] sm:$0xf] %v1928
      %2185 = vst [vmem:[%s223 + $0x1b8] sm:$0xf] %v1929
      %2186 = vst [vmem:[%s223 + $0x1bc] sm:$0xf] %v1930
      %2187 = vst [vmem:[%s223 + $0x1c0] sm:$0xf] %v1931
      %2188 = vst [vmem:[%s223 + $0x1c4] sm:$0xf] %v1932
      %2189 = vst [vmem:[%s223 + $0x1c8] sm:$0xf] %v1933
      %2190 = vst [vmem:[%s223 + $0x1cc] sm:$0xf] %v1934
      %2191 = vst [vmem:[%s223 + $0x1d0] sm:$0xf] %v1935
      %2192 = vst [vmem:[%s223 + $0x1d4] sm:$0xf] %v1936
      %2193 = vst [vmem:[%s223 + $0x1d8] sm:$0xf] %v1937
      %2194 = vst [vmem:[%s223 + $0x1dc] sm:$0xf] %v1938
      %2195 = vst [vmem:[%s223 + $0x1e0] sm:$0xf] %v1939
      %2196 = vst [vmem:[%s223 + $0x1e4] sm:$0xf] %v1940
      %2197 = vst [vmem:[%s223 + $0x1e8] sm:$0xf] %v1941
      %2198 = vst [vmem:[%s223 + $0x1ec] sm:$0xf] %v1942
      %2199 = vst [vmem:[%s223 + $0x1f0] sm:$0xf] %v1943
      %2200 = vst [vmem:[%s223 + $0x1f4] sm:$0xf] %v1944
      %2201 = vst [vmem:[%s223 + $0x1f8] sm:$0xf] %v1945
      %2202 = vst [vmem:[%s223 + $0x1fc] sm:$0xf] %v1946
      %s2203 = smul.u32 128, %s19
      %p2204 = scmp.lt.s32.totalorder %s2203, 255
      %s2205 = scalar_select %p2204, %s2203, 255
      %p2206 = scmp.lt.s32.totalorder %s18, 0
      %s2207 = scalar_select %p2206, %s18, 0
      %s2208 = sadd.s32 %s2207, %s2205
      %s2209 = smul.addr %s2208, 4
      %s2210 = scalar_lea.vmem %s3, %s2209
      // Predicated region
      $region33: #{forward.7} parent=31 // pred_check
        %p2211 = pneg %p124
      $region34: #{forward.7} parent=31 // pred_check_branch
        %2213 = sbr.rel (%p2211) target = $region36
      $region35: #{forward.7} parent=31 // pred_region
        %s2214 = smul.u32 128, %s19
      $region36: #{forward.7} parent=31 // pred_fallthru
        _
    $region32: #{forward.7} parent=5 // pred_fallthru
      _
    %p2215 = scmp.le.s32.totalorder 2, %s9
    // Predicated region
    $region37: #{forward.7} parent=5 // pred_check
      %p2216 = pneg %p2215
    $region38: #{forward.7} parent=5 // pred_check_branch
      %2218 = sbr.rel (%p2216) target = $region40
    $region39: #{forward.7} parent=5 // pred_region
      %s2219 = ssub.s32 %s9, 2
      // Predicated region
      $region41: #{forward.7} parent=39 // pred_check
        %p2220 = pneg %p130
      $region42: #{forward.7} parent=39 // pred_check_branch
        %2222 = sbr.rel (%p2220) target = $region44
      $region43: #{forward.7} parent=39 // pred_region
        %s2223 = smul.u32 128, %s21
        %p2224 = scmp.lt.s32.totalorder %s2223, 255
        %s2225 = scalar_select %p2224, %s2223, 255
        %p2226 = scmp.lt.s32.totalorder %s20, 0
        %s2227 = scalar_select %p2226, %s20, 0
        %s2228 = sadd.s32 %s2227, %s2225
        %s2229 = smul.addr %s2228, 4
        %s2230 = scalar_lea.vmem %s3, %s2229
      $region44: #{forward.7} parent=39 // pred_fallthru
        _
    $region40: #{forward.7} parent=5 // pred_fallthru
      _
  $region6: #{forward.7} parent=0 // loop_footer
    %s13 = sadd.s32 1, %s9
  $region7: #{forward.7} parent=0 // loop_footer_branch
    %8 = sbr.rel target = $region3
  $region8: #{forward.7} parent=0 // loop_exit
    _

// kernel: forward.8
$region0: #{forward.8}
  #allocation0 [shape = 'u32[]', space=smem, size = 0x4, offset = 0x4, fixed_abs, tag = 'smem constant byte address 0x4 - core index']
  #allocation1 [shape = 'u32[144,128]{1,0:T(1,128)}', space=vmem, size = 0x12000, scoped, tag = 'internal scratch']
  %s0 = inlined_call_operand.vmem [shape: bf16[512,288], index: 0, kind: input, shape index: {}]
  %s1 = inlined_call_operand.vmem [shape: bf16[288,128], index: 1, kind: input, shape index: {}]
  %s2 = inlined_call_operand.vmem [shape: f32[1,128], index: 2, kind: input, shape index: {}]
  %s3 = inlined_call_operand.vmem [shape: bf16[512,128], index: 3, kind: output, shape index: {}]
  %s4 = sld [smem:[#allocation0]]
  $region45: #{forward.8} parent=0
    _
  %s6 = ssub.s32 1, %s4
  %s7 = scalar_select 0, %s6, %s4
  loop: start=0, step=1, limit=4
  $region2: #{forward.8} parent=0 // loop_pre_header
    _
  $region3: #{forward.8} parent=0 // loop_header
    %s9 = sphi 0, %s13
    %p10 = scmp.ge.s32.totalorder %s9, 4
    %s16 = sphi 0, %s28
    %s17 = sphi 0, %s24
    %s18 = sphi 0, %s16
    %s19 = sphi 0, %s17
    %s20 = sphi 0, %s18
    %s21 = sphi 0, %s19
    %s31 = sphi 0, %s33
    %s34 = sphi 0, %s31
    %s35 = sphi 0, %s34
    %s51 = sphi 0, %s35
    %s57 = sphi 0, %s59
    %s60 = sphi 0, %s57
    %s61 = sphi 0, %s60
    %s77 = sphi 0, %s61
    %s83 = sphi 0, %s85
    %s86 = sphi 0, %s83
    %s87 = sphi 0, %s86
    %s103 = sphi 0, %s87
    %s111 = sphi 0, %s113
    %s114 = sphi 0, %s111
    %s115 = sphi 0, %s114
    %s131 = sphi 0, %s115
  $region4: #{forward.8} parent=0 // loop_header_branch
    %12 = sbr.rel (%p10) target = $region8
  $region5: #{forward.8} parent=0 // loop_body
    %s14 = ssub.s32 %s9, 1
    %s15 = ssub.s32 %s9, 2
    %s22 = sadd.s32 1, %s17
    %p23 = scmp.ge.s32.totalorder %s22, 2
    %s24 = scalar_select %p23, 0, %s22
    %s25 = sadd.s32 1, %s16
    %s26 = scalar_select %p23, %s25, %s16
    %p27 = scmp.ge.s32.totalorder %s26, 1
    %s28 = scalar_select %p27, 0, %s26
    %s29 = ssub.s32 %s17, %s24
    %p30 = scmp.eq.s32.totalorder %s29, 0
    %s32 = sadd.s32 %s31, 1
    %s33 = scalar_select %p30, %s31, %s32
    %p36 = pneg %p30
    %p37 = scmp.eq.s32.totalorder %s9, 1
    %p38 = por %p36, %p37
    %p39 = scmp.ne.s32.totalorder %s31, %s34
    %p40 = scmp.eq.s32.totalorder %s9, 0
    %p41 = por %p39, %p40
    %p42 = scmp.ne.s32.totalorder %s31, %s34
    %p43 = scmp.eq.s32.totalorder %s14, 1
    %p44 = por %p42, %p43
    %p45 = scmp.ne.s32.totalorder %s34, %s35
    %p46 = scmp.eq.s32.totalorder %s14, 0
    %p47 = por %p45, %p46
    %p48 = scmp.ne.s32.totalorder %s34, %s35
    %p49 = scmp.eq.s32.totalorder %s15, 1
    %p50 = por %p48, %p49
    %p52 = scmp.ne.s32.totalorder %s35, %s51
    %p53 = scmp.eq.s32.totalorder %s15, 0
    %p54 = por %p52, %p53
    %s55 = ssub.s32 %s16, %s28
    %p56 = scmp.eq.s32.totalorder %s55, 0
    %s58 = sadd.s32 %s57, 1
    %s59 = scalar_select %p56, %s57, %s58
    %p62 = pneg %p56
    %p63 = scmp.eq.s32.totalorder %s9, 1
    %p64 = por %p62, %p63
    %p65 = scmp.ne.s32.totalorder %s57, %s60
    %p66 = scmp.eq.s32.totalorder %s9, 0
    %p67 = por %p65, %p66
    %p68 = scmp.ne.s32.totalorder %s57, %s60
    %p69 = scmp.eq.s32.totalorder %s14, 1
    %p70 = por %p68, %p69
    %p71 = scmp.ne.s32.totalorder %s60, %s61
    %p72 = scmp.eq.s32.totalorder %s14, 0
    %p73 = por %p71, %p72
    %p74 = scmp.ne.s32.totalorder %s60, %s61
    %p75 = scmp.eq.s32.totalorder %s15, 1
    %p76 = por %p74, %p75
    %p78 = scmp.ne.s32.totalorder %s61, %s77
    %p79 = scmp.eq.s32.totalorder %s15, 0
    %p80 = por %p78, %p79
    %s81 = ssub.s32 %s16, %s28
    %p82 = scmp.eq.s32.totalorder %s81, 0
    %s84 = sadd.s32 %s83, 1
    %s85 = scalar_select %p82, %s83, %s84
    %p88 = pneg %p82
    %p89 = scmp.eq.s32.totalorder %s9, 1
    %p90 = por %p88, %p89
    %p91 = scmp.ne.s32.totalorder %s83, %s86
    %p92 = scmp.eq.s32.totalorder %s9, 0
    %p93 = por %p91, %p92
    %p94 = scmp.ne.s32.totalorder %s83, %s86
    %p95 = scmp.eq.s32.totalorder %s14, 1
    %p96 = por %p94, %p95
    %p97 = scmp.ne.s32.totalorder %s86, %s87
    %p98 = scmp.eq.s32.totalorder %s14, 0
    %p99 = por %p97, %p98
    %p100 = scmp.ne.s32.totalorder %s86, %s87
    %p101 = scmp.eq.s32.totalorder %s15, 1
    %p102 = por %p100, %p101
    %p104 = scmp.ne.s32.totalorder %s87, %s103
    %p105 = scmp.eq.s32.totalorder %s15, 0
    %p106 = por %p104, %p105
    %s107 = ssub.s32 %s17, %s24
    %s108 = ssub.s32 %s16, %s28
    %s109 = sor.u32 %s107, %s108
    %p110 = scmp.eq.s32.totalorder %s109, 0
    %s112 = sadd.s32 %s111, 1
    %s113 = scalar_select %p110, %s111, %s112
    %p116 = pneg %p110
    %p117 = scmp.eq.s32.totalorder %s9, 1
    %p118 = por %p116, %p117
    %p119 = scmp.ne.s32.totalorder %s111, %s114
    %p120 = scmp.eq.s32.totalorder %s9, 0
    %p121 = por %p119, %p120
    %p122 = scmp.ne.s32.totalorder %s111, %s114
    %p123 = scmp.eq.s32.totalorder %s14, 1
    %p124 = por %p122, %p123
    %p125 = scmp.ne.s32.totalorder %s114, %s115
    %p126 = scmp.eq.s32.totalorder %s14, 0
    %p127 = por %p125, %p126
    %p128 = scmp.ne.s32.totalorder %s114, %s115
    %p129 = scmp.eq.s32.totalorder %s15, 1
    %p130 = por %p128, %p129
    %p132 = scmp.ne.s32.totalorder %s115, %s131
    %p133 = scmp.eq.s32.totalorder %s15, 0
    %p134 = por %p132, %p133
    %p135 = scmp.le.s32.totalorder 1, %s9
    %p136 = scmp.lt.s32.totalorder %s9, 3
    %p137 = pnand %p135, %p136
    %p138 = pneg %p137
    // Predicated region
    $region9: #{forward.8} parent=5 // pred_check
      _
    $region10: #{forward.8} parent=5 // pred_check_branch
      %140 = sbr.rel (%p137) target = $region12
    $region11: #{forward.8} parent=5 // pred_region
      %s141 = ssub.s32 %s9, 1
      // Predicated region
      $region13: #{forward.8} parent=11 // pred_check
        %p142 = pneg %p73
      $region14: #{forward.8} parent=11 // pred_check_branch
        %144 = sbr.rel (%p142) target = $region16
      $region15: #{forward.8} parent=11 // pred_region
        %p145 = scmp.lt.s32.totalorder %s18, 0
        %s146 = scalar_select %p145, %s18, 0
        %s147 = smul.addr %s146, 4
        %s148 = scalar_lea.vmem %s1, %s147
      $region16: #{forward.8} parent=11 // pred_fallthru
        _
      // Predicated region
      $region17: #{forward.8} parent=11 // pred_check
        %p149 = pneg %p99
      $region18: #{forward.8} parent=11 // pred_check_branch
        %151 = sbr.rel (%p149) target = $region20
      $region19: #{forward.8} parent=11 // pred_region
        %p152 = scmp.lt.s32.totalorder %s18, 0
        %s153 = scalar_select %p152, %s18, 0
        %s154 = scalar_lea.vmem %s2, %s153
      $region20: #{forward.8} parent=11 // pred_fallthru
        _
    $region12: #{forward.8} parent=5 // pred_fallthru
      _
    %p155 = scmp.lt.s32.totalorder %s9, 2
    // Predicated region
    $region21: #{forward.8} parent=5 // pred_check
      %p156 = pneg %p155
    $region22: #{forward.8} parent=5 // pred_check_branch
      %158 = sbr.rel (%p156) target = $region24
    $region23: #{forward.8} parent=5 // pred_region
      // Predicated region
      $region25: #{forward.8} parent=23 // pred_check
        %p159 = pneg %p41
      $region26: #{forward.8} parent=23 // pred_check_branch
        %161 = sbr.rel (%p159) target = $region28
      $region27: #{forward.8} parent=23 // pred_region
        %s162 = smul.u32 32, %s17
        %p163 = scmp.lt.s32.totalorder %s162, 63
        %s164 = scalar_select %p163, %s162, 63
        %s165 = smul.addr %s164, 3
        %s166 = smul.addr %s165, 4
        %s167 = scalar_lea.vmem %s0, %s166
        %s168 = smul.u32 32, %s17
      $region28: #{forward.8} parent=23 // pred_fallthru
        _
    $region24: #{forward.8} parent=5 // pred_fallthru
      _
    %p169 = scmp.le.s32.totalorder 1, %s9
    %p170 = scmp.lt.s32.totalorder %s9, 3
    %p171 = pnand %p169, %p170
    %p172 = pneg %p171
    // Predicated region
    $region29: #{forward.8} parent=5 // pred_check
      _
    $region30: #{forward.8} parent=5 // pred_check_branch
      %174 = sbr.rel (%p171) target = $region32
    $region31: #{forward.8} parent=5 // pred_region
      %s175 = ssub.s32 %s9, 1
      %s176 = smul.u32 32, %s19
      %p177 = scmp.lt.s32.totalorder %s176, 63
      %s178 = scalar_select %p177, %s176, 63
      %s179 = smul.addr %s178, 3
      %s180 = smul.addr %s179, 4
      %s181 = scalar_lea.vmem %s0, %s180
      %p182 = pneg %p47
      %p183 = pneg %p44
      %p184 = scmp.lt.s32.totalorder %s18, 0
      %s185 = scalar_select %p184, %s18, 0
      %s186 = smul.addr %s185, 4
      %s187 = scalar_lea.vmem %s1, %s186
      %p188 = pneg %p73
      %p189 = pneg %p70
      %p190 = scmp.lt.s32.totalorder %s18, 0
      %s191 = scalar_select %p190, %s18, 0
      %s192 = scalar_lea.vmem %s2, %s191
      %p193 = pneg %p99
      %p194 = pneg %p96
      %p195 = pneg %p127
      %p196 = pneg %p124
      %s197 = smul.u32 32, %s19
      %p198 = scmp.lt.s32.totalorder %s197, 63
      %s199 = scalar_select %p198, %s197, 63
      %p200 = scmp.lt.s32.totalorder %s18, 0
      %s201 = scalar_select %p200, %s18, 0
      %s202 = sadd.s32 %s201, %s199
      %s203 = smul.addr %s202, 4
      %s204 = scalar_lea.vmem %s3, %s203
      %s205 = smul.u32 32, %s19
      %p206 = scmp.lt.s32.totalorder %s205, 63
      %s207 = scalar_select %p206, %s205, 63
      %s208 = smul.addr %s207, 3
      %s209 = smul.addr %s208, 4
      %s210 = scalar_lea.vmem %s0, %s209
      %s211 = smul.u32 32, %s19
      %p212 = scmp.lt.s32.totalorder %s18, 0
      %s213 = scalar_select %p212, %s18, 0
      %s214 = smul.addr %s213, 4
      %s215 = scalar_lea.vmem %s1, %s214
      %p216 = scmp.lt.s32.totalorder %s18, 0
      %s217 = scalar_select %p216, %s18, 0
      %s218 = scalar_lea.vmem %s2, %s217
      %s219 = smul.u32 32, %s19
      %p220 = scmp.lt.s32.totalorder %s219, 63
      %s221 = scalar_select %p220, %s219, 63
      %p222 = scmp.lt.s32.totalorder %s18, 0
      %s223 = scalar_select %p222, %s18, 0
      %s224 = sadd.s32 %s223, %s221
      %s225 = smul.addr %s224, 4
      %s226 = scalar_lea.vmem %s3, %s225
      %s227 = smul.u32 32, %s19
      %v229 = vld [vmem:[%s210] sm:$0xff]
      %v230 = vld [vmem:[%s210 + $0x8] sm:$0xf]
      %v231 = vld [vmem:[%s210 + $0xc] sm:$0xff]
      %v232 = vld [vmem:[%s210 + $0x14] sm:$0xf]
      %v233 = vld [vmem:[%s210 + $0x18] sm:$0xff]
      %v234 = vld [vmem:[%s210 + $0x20] sm:$0xf]
      %v235 = vld [vmem:[%s210 + $0x24] sm:$0xff]
      %v236 = vld [vmem:[%s210 + $0x2c] sm:$0xf]
      %v237 = vld [vmem:[%s210 + $0x30] sm:$0xff]
      %v238 = vld [vmem:[%s210 + $0x38] sm:$0xf]
      %v239 = vld [vmem:[%s210 + $0x3c] sm:$0xff]
      %v240 = vld [vmem:[%s210 + $0x44] sm:$0xf]
      %v241 = vld [vmem:[%s210 + $0x48] sm:$0xff]
      %v242 = vld [vmem:[%s210 + $0x50] sm:$0xf]
      %v243 = vld [vmem:[%s210 + $0x54] sm:$0xff]
      %v244 = vld [vmem:[%s210 + $0x5c] sm:$0xf]
      %v245 = vld [vmem:[%s210 + $0x60] sm:$0xff]
      %v246 = vld [vmem:[%s210 + $0x68] sm:$0xf]
      %v247 = vld [vmem:[%s210 + $0x6c] sm:$0xff]
      %v248 = vld [vmem:[%s210 + $0x74] sm:$0xf]
      %v249 = vld [vmem:[%s210 + $0x78] sm:$0xff]
      %v250 = vld [vmem:[%s210 + $0x80] sm:$0xf]
      %v251 = vld [vmem:[%s210 + $0x84] sm:$0xff]
      %v252 = vld [vmem:[%s210 + $0x8c] sm:$0xf]
      %v253 = vld [vmem:[%s210 + $0x90] sm:$0xff]
      %v254 = vld [vmem:[%s210 + $0x98] sm:$0xf]
      %v255 = vld [vmem:[%s210 + $0x9c] sm:$0xff]
      %v256 = vld [vmem:[%s210 + $0xa4] sm:$0xf]
      %v257 = vld [vmem:[%s210 + $0xa8] sm:$0xff]
      %v258 = vld [vmem:[%s210 + $0xb0] sm:$0xf]
      %v259 = vld [vmem:[%s210 + $0xb4] sm:$0xff]
      %v260 = vld [vmem:[%s210 + $0xbc] sm:$0xf]
      %v261 = vld [vmem:[%s210 + $0xc0] sm:$0xff]
      %v262 = vld [vmem:[%s210 + $0xc8] sm:$0xf]
      %v263 = vld [vmem:[%s210 + $0xcc] sm:$0xff]
      %v264 = vld [vmem:[%s210 + $0xd4] sm:$0xf]
      %v265 = vld [vmem:[%s210 + $0xd8] sm:$0xff]
      %v266 = vld [vmem:[%s210 + $0xe0] sm:$0xf]
      %v267 = vld [vmem:[%s210 + $0xe4] sm:$0xff]
      %v268 = vld [vmem:[%s210 + $0xec] sm:$0xf]
      %v269 = vld [vmem:[%s210 + $0xf0] sm:$0xff]
      %v270 = vld [vmem:[%s210 + $0xf8] sm:$0xf]
      %v271 = vld [vmem:[%s210 + $0xfc] sm:$0xff]
      %v272 = vld [vmem:[%s210 + $0x104] sm:$0xf]
      %v273 = vld [vmem:[%s210 + $0x108] sm:$0xff]
      %v274 = vld [vmem:[%s210 + $0x110] sm:$0xf]
      %v275 = vld [vmem:[%s210 + $0x114] sm:$0xff]
      %v276 = vld [vmem:[%s210 + $0x11c] sm:$0xf]
      %v277 = vld [vmem:[%s210 + $0x120] sm:$0xff]
      %v278 = vld [vmem:[%s210 + $0x128] sm:$0xf]
      %v279 = vld [vmem:[%s210 + $0x12c] sm:$0xff]
      %v280 = vld [vmem:[%s210 + $0x134] sm:$0xf]
      %v281 = vld [vmem:[%s210 + $0x138] sm:$0xff]
      %v282 = vld [vmem:[%s210 + $0x140] sm:$0xf]
      %v283 = vld [vmem:[%s210 + $0x144] sm:$0xff]
      %v284 = vld [vmem:[%s210 + $0x14c] sm:$0xf]
      %v285 = vld [vmem:[%s210 + $0x150] sm:$0xff]
      %v286 = vld [vmem:[%s210 + $0x158] sm:$0xf]
      %v287 = vld [vmem:[%s210 + $0x15c] sm:$0xff]
      %v288 = vld [vmem:[%s210 + $0x164] sm:$0xf]
      %v289 = vld [vmem:[%s210 + $0x168] sm:$0xff]
      %v290 = vld [vmem:[%s210 + $0x170] sm:$0xf]
      %v291 = vld [vmem:[%s210 + $0x174] sm:$0xff]
      %v292 = vld [vmem:[%s210 + $0x17c] sm:$0xf]
      %v293 = vld [vmem:[%s215] sm:$0xf]
      %v294 = vld [vmem:[%s215 + $0x4] sm:$0xf]
      %v295 = vld [vmem:[%s215 + $0x8] sm:$0xf]
      %v296 = vld [vmem:[%s215 + $0xc] sm:$0xf]
      %v297 = vld [vmem:[%s215 + $0x10] sm:$0xf]
      %v298 = vld [vmem:[%s215 + $0x14] sm:$0xf]
      %v299 = vld [vmem:[%s215 + $0x18] sm:$0xf]
      %v300 = vld [vmem:[%s215 + $0x1c] sm:$0xf]
      %v301 = vld [vmem:[%s215 + $0x20] sm:$0xf]
      %v302 = vld [vmem:[%s215 + $0x24] sm:$0xf]
      %v303 = vld [vmem:[%s215 + $0x28] sm:$0xf]
      %v304 = vld [vmem:[%s215 + $0x2c] sm:$0xf]
      %v305 = vld [vmem:[%s215 + $0x30] sm:$0xf]
      %v306 = vld [vmem:[%s215 + $0x34] sm:$0xf]
      %v307 = vld [vmem:[%s215 + $0x38] sm:$0xf]
      %v308 = vld [vmem:[%s215 + $0x3c] sm:$0xf]
      %v309 = vld [vmem:[%s215 + $0x40] sm:$0xf]
      %v310 = vld [vmem:[%s215 + $0x44] sm:$0xf]
      %v311 = vld [vmem:[%s215 + $0x48] sm:$0xf]
      %v312 = vld [vmem:[%s215 + $0x4c] sm:$0xf]
      %v313 = vld [vmem:[%s215 + $0x50] sm:$0xf]
      %v314 = vld [vmem:[%s215 + $0x54] sm:$0xf]
      %v315 = vld [vmem:[%s215 + $0x58] sm:$0xf]
      %v316 = vld [vmem:[%s215 + $0x5c] sm:$0xf]
      %v317 = vld [vmem:[%s215 + $0x60] sm:$0xf]
      %v318 = vld [vmem:[%s215 + $0x64] sm:$0xf]
      %v319 = vld [vmem:[%s215 + $0x68] sm:$0xf]
      %v320 = vld [vmem:[%s215 + $0x6c] sm:$0xf]
      %v321 = vld [vmem:[%s215 + $0x70] sm:$0xf]
      %v322 = vld [vmem:[%s215 + $0x74] sm:$0xf]
      %v323 = vld [vmem:[%s215 + $0x78] sm:$0xf]
      %v324 = vld [vmem:[%s215 + $0x7c] sm:$0xf]
      %v325 = vld [vmem:[%s215 + $0x80] sm:$0xf]
      %v326 = vld [vmem:[%s215 + $0x84] sm:$0xf]
      %v327 = vld [vmem:[%s215 + $0x88] sm:$0xf]
      %v328 = vld [vmem:[%s215 + $0x8c] sm:$0xf]
      %v329 = vld [vmem:[%s218] sm:$0x1]
      %v331 = vlaneseq
      %v332 = vshrl.u32 %v331, 7
      %v333 = vsub.s32 0, %v332
      %v334 = vrot.slane %v329, %v333
      %v400 = vunpack.c.l.b16 %v229
      %v401 = vunpack.c.h.b16 %v229
      %v402 = vunpack.c.l.b16 %v230
      %v403 = vunpack.c.l.b16 %v231
      %v404 = vunpack.c.h.b16 %v231
      %v405 = vunpack.c.l.b16 %v232
      %v406 = vunpack.c.l.b16 %v233
      %v407 = vunpack.c.h.b16 %v233
      %v408 = vunpack.c.l.b16 %v234
      %v409 = vunpack.c.l.b16 %v235
      %v410 = vunpack.c.h.b16 %v235
      %v411 = vunpack.c.l.b16 %v236
      %v412 = vunpack.c.l.b16 %v237
      %v413 = vunpack.c.h.b16 %v237
      %v414 = vunpack.c.l.b16 %v238
      %v415 = vunpack.c.l.b16 %v239
      %v416 = vunpack.c.h.b16 %v239
      %v417 = vunpack.c.l.b16 %v240
      %v418 = vunpack.c.l.b16 %v241
      %v419 = vunpack.c.h.b16 %v241
      %v420 = vunpack.c.l.b16 %v242
      %v421 = vunpack.c.l.b16 %v243
      %v422 = vunpack.c.h.b16 %v243
      %v423 = vunpack.c.l.b16 %v244
      %v424 = vunpack.c.l.b16 %v245
      %v425 = vunpack.c.h.b16 %v245
      %v426 = vunpack.c.l.b16 %v246
      %v427 = vunpack.c.l.b16 %v247
      %v428 = vunpack.c.h.b16 %v247
      %v429 = vunpack.c.l.b16 %v248
      %v430 = vunpack.c.l.b16 %v249
      %v431 = vunpack.c.h.b16 %v249
      %v432 = vunpack.c.l.b16 %v250
      %v433 = vunpack.c.l.b16 %v251
      %v434 = vunpack.c.h.b16 %v251
      %v435 = vunpack.c.l.b16 %v252
      %v436 = vunpack.c.l.b16 %v253
      %v437 = vunpack.c.h.b16 %v253
      %v438 = vunpack.c.l.b16 %v254
      %v439 = vunpack.c.l.b16 %v255
      %v440 = vunpack.c.h.b16 %v255
      %v441 = vunpack.c.l.b16 %v256
      %v442 = vunpack.c.l.b16 %v257
      %v443 = vunpack.c.h.b16 %v257
      %v444 = vunpack.c.l.b16 %v258
      %v445 = vunpack.c.l.b16 %v259
      %v446 = vunpack.c.h.b16 %v259
      %v447 = vunpack.c.l.b16 %v260
      %v448 = vunpack.c.l.b16 %v261
      %v449 = vunpack.c.h.b16 %v261
      %v450 = vunpack.c.l.b16 %v262
      %v451 = vunpack.c.l.b16 %v263
      %v452 = vunpack.c.h.b16 %v263
      %v453 = vunpack.c.l.b16 %v264
      %v454 = vunpack.c.l.b16 %v265
      %v455 = vunpack.c.h.b16 %v265
      %v456 = vunpack.c.l.b16 %v266
      %v457 = vunpack.c.l.b16 %v267
      %v458 = vunpack.c.h.b16 %v267
      %v459 = vunpack.c.l.b16 %v268
      %v460 = vunpack.c.l.b16 %v269
      %v461 = vunpack.c.h.b16 %v269
      %v462 = vunpack.c.l.b16 %v270
      %v463 = vunpack.c.l.b16 %v271
      %v464 = vunpack.c.h.b16 %v271
      %v465 = vunpack.c.l.b16 %v272
      %v466 = vunpack.c.l.b16 %v273
      %v467 = vunpack.c.h.b16 %v273
      %v468 = vunpack.c.l.b16 %v274
      %v469 = vunpack.c.l.b16 %v275
      %v470 = vunpack.c.h.b16 %v275
      %v471 = vunpack.c.l.b16 %v276
      %v472 = vunpack.c.l.b16 %v277
      %v473 = vunpack.c.h.b16 %v277
      %v474 = vunpack.c.l.b16 %v278
      %v475 = vunpack.c.l.b16 %v279
      %v476 = vunpack.c.h.b16 %v279
      %v477 = vunpack.c.l.b16 %v280
      %v478 = vunpack.c.l.b16 %v281
      %v479 = vunpack.c.h.b16 %v281
      %v480 = vunpack.c.l.b16 %v282
      %v481 = vunpack.c.l.b16 %v283
      %v482 = vunpack.c.h.b16 %v283
      %v483 = vunpack.c.l.b16 %v284
      %v484 = vunpack.c.l.b16 %v285
      %v485 = vunpack.c.h.b16 %v285
      %v486 = vunpack.c.l.b16 %v286
      %v487 = vunpack.c.l.b16 %v287
      %v488 = vunpack.c.h.b16 %v287
      %v489 = vunpack.c.l.b16 %v288
      %v490 = vunpack.c.l.b16 %v289
      %v491 = vunpack.c.h.b16 %v289
      %v492 = vunpack.c.l.b16 %v290
      %v493 = vunpack.c.l.b16 %v291
      %v494 = vunpack.c.h.b16 %v291
      %v495 = vunpack.c.l.b16 %v292
      %v496 = vpack.c.b16 %v403, %v400
      %v497 = vpack.c.b16 %v404, %v401
      %v498 = vpack.c.b16 %v405, %v402
      %v499 = vpack.c.b16 %v409, %v406
      %v500 = vpack.c.b16 %v410, %v407
      %v501 = vpack.c.b16 %v411, %v408
      %v502 = vpack.c.b16 %v415, %v412
      %v503 = vpack.c.b16 %v416, %v413
      %v504 = vpack.c.b16 %v417, %v414
      %v505 = vpack.c.b16 %v421, %v418
      %v506 = vpack.c.b16 %v422, %v419
      %v507 = vpack.c.b16 %v423, %v420
      %v508 = vpack.c.b16 %v427, %v424
      %v509 = vpack.c.b16 %v428, %v425
      %v510 = vpack.c.b16 %v429, %v426
      %v511 = vpack.c.b16 %v433, %v430
      %v512 = vpack.c.b16 %v434, %v431
      %v513 = vpack.c.b16 %v435, %v432
      %v514 = vpack.c.b16 %v439, %v436
      %v515 = vpack.c.b16 %v440, %v437
      %v516 = vpack.c.b16 %v441, %v438
      %v517 = vpack.c.b16 %v445, %v442
      %v518 = vpack.c.b16 %v446, %v443
      %v519 = vpack.c.b16 %v447, %v444
      %v520 = vpack.c.b16 %v451, %v448
      %v521 = vpack.c.b16 %v452, %v449
      %v522 = vpack.c.b16 %v453, %v450
      %v523 = vpack.c.b16 %v457, %v454
      %v524 = vpack.c.b16 %v458, %v455
      %v525 = vpack.c.b16 %v459, %v456
      %v526 = vpack.c.b16 %v463, %v460
      %v527 = vpack.c.b16 %v464, %v461
      %v528 = vpack.c.b16 %v465, %v462
      %v529 = vpack.c.b16 %v469, %v466
      %v530 = vpack.c.b16 %v470, %v467
      %v531 = vpack.c.b16 %v471, %v468
      %v532 = vpack.c.b16 %v475, %v472
      %v533 = vpack.c.b16 %v476, %v473
      %v534 = vpack.c.b16 %v477, %v474
      %v535 = vpack.c.b16 %v481, %v478
      %v536 = vpack.c.b16 %v482, %v479
      %v537 = vpack.c.b16 %v483, %v480
      %v538 = vpack.c.b16 %v487, %v484
      %v539 = vpack.c.b16 %v488, %v485
      %v540 = vpack.c.b16 %v489, %v486
      %v541 = vpack.c.b16 %v493, %v490
      %v542 = vpack.c.b16 %v494, %v491
      %v543 = vpack.c.b16 %v495, %v492
      %v612 = vunpack.c.l.b16 %v293
      %v613 = vunpack.c.l.b16 %v294
      %v614 = vunpack.c.l.b16 %v295
      %v615 = vunpack.c.l.b16 %v296
      %v616 = vunpack.c.l.b16 %v297
      %v617 = vunpack.c.l.b16 %v298
      %v618 = vunpack.c.l.b16 %v299
      %v619 = vunpack.c.l.b16 %v300
      %v620 = vunpack.c.l.b16 %v301
      %v621 = vunpack.c.l.b16 %v302
      %v622 = vunpack.c.l.b16 %v303
      %v623 = vunpack.c.l.b16 %v304
      %v624 = vunpack.c.l.b16 %v305
      %v625 = vunpack.c.l.b16 %v306
      %v626 = vunpack.c.l.b16 %v307
      %v627 = vunpack.c.l.b16 %v308
      %v628 = vunpack.c.l.b16 %v309
      %v629 = vunpack.c.l.b16 %v310
      %v630 = vunpack.c.l.b16 %v311
      %v631 = vunpack.c.l.b16 %v312
      %v632 = vunpack.c.l.b16 %v313
      %v633 = vunpack.c.l.b16 %v314
      %v634 = vunpack.c.l.b16 %v315
      %v635 = vunpack.c.l.b16 %v316
      %v636 = vunpack.c.l.b16 %v317
      %v637 = vunpack.c.l.b16 %v318
      %v638 = vunpack.c.l.b16 %v319
      %v639 = vunpack.c.l.b16 %v320
      %v640 = vunpack.c.l.b16 %v321
      %v641 = vunpack.c.l.b16 %v322
      %v642 = vunpack.c.l.b16 %v323
      %v643 = vunpack.c.l.b16 %v324
      %v644 = vunpack.c.l.b16 %v325
      %v645 = vunpack.c.l.b16 %v326
      %v646 = vunpack.c.l.b16 %v327
      %v647 = vunpack.c.l.b16 %v328
      %v648 = vpack.c.b16 %v613, %v612
      %v649 = vpack.c.b16 %v615, %v614
      %v650 = vpack.c.b16 %v617, %v616
      %v651 = vpack.c.b16 %v619, %v618
      %v652 = vpack.c.b16 %v621, %v620
      %v653 = vpack.c.b16 %v623, %v622
      %v654 = vpack.c.b16 %v625, %v624
      %v655 = vpack.c.b16 %v627, %v626
      %v656 = vpack.c.b16 %v629, %v628
      %v657 = vpack.c.b16 %v631, %v630
      %v658 = vpack.c.b16 %v633, %v632
      %v659 = vpack.c.b16 %v635, %v634
      %v660 = vpack.c.b16 %v637, %v636
      %v661 = vpack.c.b16 %v639, %v638
      %v662 = vpack.c.b16 %v641, %v640
      %v663 = vpack.c.b16 %v643, %v642
      %v664 = vpack.c.b16 %v645, %v644
      %v665 = vpack.c.b16 %v647, %v646
      %vm684 = vcmask 261120
      %v686 = vsel %vm684, %v498, 0
      %v689 = vsel %vm684, %v501, 0
      %v692 = vsel %vm684, %v504, 0
      %v695 = vsel %vm684, %v507, 0
      %v698 = vsel %vm684, %v510, 0
      %v701 = vsel %vm684, %v513, 0
      %v704 = vsel %vm684, %v516, 0
      %v707 = vsel %vm684, %v519, 0
      %v710 = vsel %vm684, %v522, 0
      %v713 = vsel %vm684, %v525, 0
      %v716 = vsel %vm684, %v528, 0
      %v719 = vsel %vm684, %v531, 0
      %v722 = vsel %vm684, %v534, 0
      %v725 = vsel %vm684, %v537, 0
      %v728 = vsel %vm684, %v540, 0
      %v731 = vsel %vm684, %v543, 0
      %733 = vmatprep.subr.bf16.mxu0 0
      %734 = vmatpush1.bf16.msra.mxu0 %v655
      %735 = vmatprep.subr.bf16.mxu0 0
      %736 = vmatpush1.bf16.msra.mxu0 %v654
      %737 = vmatprep.subr.bf16.mxu0 0
      %738 = vmatpush1.bf16.msra.mxu0 %v653
      %739 = vmatprep.subr.bf16.mxu0 0
      %740 = vmatpush1.bf16.msra.mxu0 %v652
      %741 = vmatprep.subr.bf16.mxu0 0
      %742 = vmatpush1.bf16.msra.mxu0 %v651
      %743 = vmatprep.subr.bf16.mxu0 0
      %744 = vmatpush1.bf16.msra.mxu0 %v650
      %745 = vmatprep.subr.bf16.mxu0 0
      %746 = vmatpush1.bf16.msra.mxu0 %v649
      %747 = vmatprep.subr.bf16.mxu0 0
      %748 = vmatpush1.bf16.msra.mxu0 %v648
      %749 = vmatprep.subr.bf16.mxu0 0
      %750 = vmatpush2.bf16.msra.mxu0 %v663
      %751 = vmatprep.subr.bf16.mxu0 0
      %752 = vmatpush2.bf16.msra.mxu0 %v662
      %753 = vmatprep.subr.bf16.mxu0 0
      %754 = vmatpush2.bf16.msra.mxu0 %v661
      %755 = vmatprep.subr.bf16.mxu0 0
      %756 = vmatpush2.bf16.msra.mxu0 %v660
      %757 = vmatprep.subr.bf16.mxu0 0
      %758 = vmatpush2.bf16.msra.mxu0 %v659
      %759 = vmatprep.subr.bf16.mxu0 0
      %760 = vmatpush2.bf16.msra.mxu0 %v658
      %761 = vmatprep.subr.bf16.mxu0 0
      %762 = vmatpush2.bf16.msra.mxu0 %v657
      %763 = vmatprep.subr.bf16.mxu0 0
      %764 = vmatpush2.bf16.msra.mxu0 %v656
      %765 = vmatprep.mubr.bf16.mxu0 %v497
      %766 = vmatmul.mubr.bf16.gmra.mxu0 %v496
      %v767 = vpop.f32.mrf.mxu0
      %v768 = vadd.f32 %v334, %v767
      %v769 = vpop.f32.mrf.mxu0
      %v770 = vpop.f32.mrf.mxu0
      %v771 = vadd.f32 %v334, %v770
      %v772 = vpop.f32.mrf.mxu0
      %773 = vmatprep.mubr.bf16.mxu0 %v500
      %774 = vmatmul.mubr.bf16.gmra.mxu0 %v499
      %v775 = vpop.f32.mrf.mxu0
      %v776 = vadd.f32 %v334, %v775
      %v777 = vpop.f32.mrf.mxu0
      %v778 = vpop.f32.mrf.mxu0
      %v779 = vadd.f32 %v334, %v778
      %v780 = vpop.f32.mrf.mxu0
      %781 = vmatprep.mubr.bf16.mxu0 %v503
      %782 = vmatmul.mubr.bf16.gmra.mxu0 %v502
      %v783 = vpop.f32.mrf.mxu0
      %v784 = vadd.f32 %v334, %v783
      %v785 = vpop.f32.mrf.mxu0
      %v786 = vpop.f32.mrf.mxu0
      %v787 = vadd.f32 %v334, %v786
      %v788 = vpop.f32.mrf.mxu0
      %789 = vmatprep.mubr.bf16.mxu0 %v506
      %790 = vmatmul.mubr.bf16.gmra.mxu0 %v505
      %v791 = vpop.f32.mrf.mxu0
      %v792 = vadd.f32 %v334, %v791
      %v793 = vpop.f32.mrf.mxu0
      %v794 = vpop.f32.mrf.mxu0
      %v795 = vadd.f32 %v334, %v794
      %v796 = vpop.f32.mrf.mxu0
      %797 = vmatprep.mubr.bf16.mxu0 %v509
      %798 = vmatmul.mubr.bf16.gmra.mxu0 %v508
      %v799 = vpop.f32.mrf.mxu0
      %v800 = vadd.f32 %v334, %v799
      %v801 = vpop.f32.mrf.mxu0
      %v802 = vpop.f32.mrf.mxu0
      %v803 = vadd.f32 %v334, %v802
      %v804 = vpop.f32.mrf.mxu0
      %805 = vmatprep.mubr.bf16.mxu0 %v512
      %806 = vmatmul.mubr.bf16.gmra.mxu0 %v511
      %v807 = vpop.f32.mrf.mxu0
      %v808 = vadd.f32 %v334, %v807
      %v809 = vpop.f32.mrf.mxu0
      %v810 = vpop.f32.mrf.mxu0
      %v811 = vadd.f32 %v334, %v810
      %v812 = vpop.f32.mrf.mxu0
      %813 = vmatprep.mubr.bf16.mxu0 %v515
      %814 = vmatmul.mubr.bf16.gmra.mxu0 %v514
      %v815 = vpop.f32.mrf.mxu0
      %v816 = vadd.f32 %v334, %v815
      %v817 = vpop.f32.mrf.mxu0
      %v818 = vpop.f32.mrf.mxu0
      %v819 = vadd.f32 %v334, %v818
      %v820 = vpop.f32.mrf.mxu0
      %821 = vmatprep.mubr.bf16.mxu0 %v518
      %822 = vmatmul.mubr.bf16.gmra.mxu0 %v517
      %v823 = vpop.f32.mrf.mxu0
      %v824 = vadd.f32 %v334, %v823
      %v825 = vpop.f32.mrf.mxu0
      %v826 = vpop.f32.mrf.mxu0
      %v827 = vadd.f32 %v334, %v826
      %v828 = vpop.f32.mrf.mxu0
      %829 = vmatprep.mubr.bf16.mxu0 %v521
      %830 = vmatmul.mubr.bf16.gmra.mxu0 %v520
      %v831 = vpop.f32.mrf.mxu0
      %v832 = vadd.f32 %v334, %v831
      %v833 = vpop.f32.mrf.mxu0
      %v834 = vpop.f32.mrf.mxu0
      %v835 = vadd.f32 %v334, %v834
      %v836 = vpop.f32.mrf.mxu0
      %837 = vmatprep.mubr.bf16.mxu0 %v524
      %838 = vmatmul.mubr.bf16.gmra.mxu0 %v523
      %v839 = vpop.f32.mrf.mxu0
      %v840 = vadd.f32 %v334, %v839
      %v841 = vpop.f32.mrf.mxu0
      %v842 = vpop.f32.mrf.mxu0
      %v843 = vadd.f32 %v334, %v842
      %v844 = vpop.f32.mrf.mxu0
      %845 = vmatprep.mubr.bf16.mxu0 %v527
      %846 = vmatmul.mubr.bf16.gmra.mxu0 %v526
      %v847 = vpop.f32.mrf.mxu0
      %v848 = vadd.f32 %v334, %v847
      %v849 = vpop.f32.mrf.mxu0
      %v850 = vpop.f32.mrf.mxu0
      %v851 = vadd.f32 %v334, %v850
      %v852 = vpop.f32.mrf.mxu0
      %853 = vmatprep.mubr.bf16.mxu0 %v530
      %854 = vmatmul.mubr.bf16.gmra.mxu0 %v529
      %v855 = vpop.f32.mrf.mxu0
      %v856 = vadd.f32 %v334, %v855
      %v857 = vpop.f32.mrf.mxu0
      %v858 = vpop.f32.mrf.mxu0
      %v859 = vadd.f32 %v334, %v858
      %v860 = vpop.f32.mrf.mxu0
      %861 = vmatprep.mubr.bf16.mxu0 %v533
      %862 = vmatmul.mubr.bf16.gmra.mxu0 %v532
      %v863 = vpop.f32.mrf.mxu0
      %v864 = vadd.f32 %v334, %v863
      %v865 = vpop.f32.mrf.mxu0
      %v866 = vpop.f32.mrf.mxu0
      %v867 = vadd.f32 %v334, %v866
      %v868 = vpop.f32.mrf.mxu0
      %869 = vmatprep.mubr.bf16.mxu0 %v536
      %870 = vmatmul.mubr.bf16.gmra.mxu0 %v535
      %v871 = vpop.f32.mrf.mxu0
      %v872 = vadd.f32 %v334, %v871
      %v873 = vpop.f32.mrf.mxu0
      %v874 = vpop.f32.mrf.mxu0
      %v875 = vadd.f32 %v334, %v874
      %v876 = vpop.f32.mrf.mxu0
      %877 = vmatprep.mubr.bf16.mxu0 %v539
      %878 = vmatmul.mubr.bf16.gmra.mxu0 %v538
      %v879 = vpop.f32.mrf.mxu0
      %v880 = vadd.f32 %v334, %v879
      %v881 = vpop.f32.mrf.mxu0
      %v882 = vpop.f32.mrf.mxu0
      %v883 = vadd.f32 %v334, %v882
      %v884 = vpop.f32.mrf.mxu0
      %885 = vmatprep.mubr.bf16.mxu0 %v542
      %886 = vmatmul.mubr.bf16.gmra.mxu0 %v541
      %v887 = vpop.f32.mrf.mxu0
      %v888 = vadd.f32 %v334, %v887
      %v889 = vpop.f32.mrf.mxu0
      %v890 = vpop.f32.mrf.mxu0
      %v891 = vadd.f32 %v334, %v890
      %v892 = vpop.f32.mrf.mxu0
      %893 = vdwg.mxu0
      %894 = vmatprep.subr.bf16.mxu0 0
      %895 = vmatpush1.bf16.msra.mxu0 0
      %896 = vmatprep.subr.bf16.mxu0 0
      %897 = vmatpush1.bf16.msra.mxu0 0
      %898 = vmatprep.subr.bf16.mxu0 0
      %899 = vmatpush1.bf16.msra.mxu0 0
      %900 = vmatprep.subr.bf16.mxu0 0
      %901 = vmatpush1.bf16.msra.mxu0 0
      %902 = vmatprep.subr.bf16.mxu0 0
      %903 = vmatpush1.bf16.msra.mxu0 0
      %904 = vmatprep.subr.bf16.mxu0 0
      %905 = vmatpush1.bf16.msra.mxu0 0
      %906 = vmatprep.subr.bf16.mxu0 0
      %907 = vmatpush1.bf16.msra.mxu0 %v665
      %908 = vmatprep.subr.bf16.mxu0 0
      %909 = vmatpush1.bf16.msra.mxu0 %v664
      %910 = vmatprep.subr.bf16.mxu0 0
      %911 = vmatpush2.bf16.msra.mxu0 0
      %912 = vmatprep.subr.bf16.mxu0 0
      %913 = vmatpush2.bf16.msra.mxu0 0
      %914 = vmatprep.subr.bf16.mxu0 0
      %915 = vmatpush2.bf16.msra.mxu0 0
      %916 = vmatprep.subr.bf16.mxu0 0
      %917 = vmatpush2.bf16.msra.mxu0 0
      %918 = vmatprep.subr.bf16.mxu0 0
      %919 = vmatpush2.bf16.msra.mxu0 0
      %920 = vmatprep.subr.bf16.mxu0 0
      %921 = vmatpush2.bf16.msra.mxu0 0
      %922 = vmatprep.subr.bf16.mxu0 0
      %923 = vmatpush2.bf16.msra.mxu0 0
      %924 = vmatprep.subr.bf16.mxu0 0
      %925 = vmatpush2.bf16.msra.mxu0 0
      %926 = vmatprep.mubr.bf16.mxu0 0
      %927 = vmatmul.mubr.bf16.gmra.mxu0 %v686
      %v928 = vpop.f32.mrf.mxu0
      %v929 = vadd.f32 %v768, %v928
      %v930 = vpop.f32.mrf.mxu0
      %v931 = vpop.f32.mrf.mxu0
      %v932 = vadd.f32 %v771, %v931
      %v933 = vpop.f32.mrf.mxu0
      %934 = vmatprep.mubr.bf16.mxu0 0
      %935 = vmatmul.mubr.bf16.gmra.mxu0 %v689
      %v936 = vpop.f32.mrf.mxu0
      %v937 = vadd.f32 %v776, %v936
      %v938 = vpop.f32.mrf.mxu0
      %v939 = vpop.f32.mrf.mxu0
      %v940 = vadd.f32 %v779, %v939
      %v941 = vpop.f32.mrf.mxu0
      %942 = vmatprep.mubr.bf16.mxu0 0
      %943 = vmatmul.mubr.bf16.gmra.mxu0 %v692
      %v944 = vpop.f32.mrf.mxu0
      %v945 = vadd.f32 %v784, %v944
      %v946 = vpop.f32.mrf.mxu0
      %v947 = vpop.f32.mrf.mxu0
      %v948 = vadd.f32 %v787, %v947
      %v949 = vpop.f32.mrf.mxu0
      %950 = vmatprep.mubr.bf16.mxu0 0
      %951 = vmatmul.mubr.bf16.gmra.mxu0 %v695
      %v952 = vpop.f32.mrf.mxu0
      %v953 = vadd.f32 %v792, %v952
      %v954 = vpop.f32.mrf.mxu0
      %v955 = vpop.f32.mrf.mxu0
      %v956 = vadd.f32 %v795, %v955
      %v957 = vpop.f32.mrf.mxu0
      %958 = vmatprep.mubr.bf16.mxu0 0
      %959 = vmatmul.mubr.bf16.gmra.mxu0 %v698
      %v960 = vpop.f32.mrf.mxu0
      %v961 = vadd.f32 %v800, %v960
      %v962 = vpop.f32.mrf.mxu0
      %v963 = vpop.f32.mrf.mxu0
      %v964 = vadd.f32 %v803, %v963
      %v965 = vpop.f32.mrf.mxu0
      %966 = vmatprep.mubr.bf16.mxu0 0
      %967 = vmatmul.mubr.bf16.gmra.mxu0 %v701
      %v968 = vpop.f32.mrf.mxu0
      %v969 = vadd.f32 %v808, %v968
      %v970 = vpop.f32.mrf.mxu0
      %v971 = vpop.f32.mrf.mxu0
      %v972 = vadd.f32 %v811, %v971
      %v973 = vpop.f32.mrf.mxu0
      %974 = vmatprep.mubr.bf16.mxu0 0
      %975 = vmatmul.mubr.bf16.gmra.mxu0 %v704
      %v976 = vpop.f32.mrf.mxu0
      %v977 = vadd.f32 %v816, %v976
      %v978 = vpop.f32.mrf.mxu0
      %v979 = vpop.f32.mrf.mxu0
      %v980 = vadd.f32 %v819, %v979
      %v981 = vpop.f32.mrf.mxu0
      %982 = vmatprep.mubr.bf16.mxu0 0
      %983 = vmatmul.mubr.bf16.gmra.mxu0 %v707
      %v984 = vpop.f32.mrf.mxu0
      %v985 = vadd.f32 %v824, %v984
      %v986 = vpop.f32.mrf.mxu0
      %v987 = vpop.f32.mrf.mxu0
      %v988 = vadd.f32 %v827, %v987
      %v989 = vpop.f32.mrf.mxu0
      %990 = vmatprep.mubr.bf16.mxu0 0
      %991 = vmatmul.mubr.bf16.gmra.mxu0 %v710
      %v992 = vpop.f32.mrf.mxu0
      %v993 = vadd.f32 %v832, %v992
      %v994 = vpop.f32.mrf.mxu0
      %v995 = vpop.f32.mrf.mxu0
      %v996 = vadd.f32 %v835, %v995
      %v997 = vpop.f32.mrf.mxu0
      %998 = vmatprep.mubr.bf16.mxu0 0
      %999 = vmatmul.mubr.bf16.gmra.mxu0 %v713
      %v1000 = vpop.f32.mrf.mxu0
      %v1001 = vadd.f32 %v840, %v1000
      %v1002 = vpop.f32.mrf.mxu0
      %v1003 = vpop.f32.mrf.mxu0
      %v1004 = vadd.f32 %v843, %v1003
      %v1005 = vpop.f32.mrf.mxu0
      %1006 = vmatprep.mubr.bf16.mxu0 0
      %1007 = vmatmul.mubr.bf16.gmra.mxu0 %v716
      %v1008 = vpop.f32.mrf.mxu0
      %v1009 = vadd.f32 %v848, %v1008
      %v1010 = vpop.f32.mrf.mxu0
      %v1011 = vpop.f32.mrf.mxu0
      %v1012 = vadd.f32 %v851, %v1011
      %v1013 = vpop.f32.mrf.mxu0
      %1014 = vmatprep.mubr.bf16.mxu0 0
      %1015 = vmatmul.mubr.bf16.gmra.mxu0 %v719
      %v1016 = vpop.f32.mrf.mxu0
      %v1017 = vadd.f32 %v856, %v1016
      %v1018 = vpop.f32.mrf.mxu0
      %v1019 = vpop.f32.mrf.mxu0
      %v1020 = vadd.f32 %v859, %v1019
      %v1021 = vpop.f32.mrf.mxu0
      %1022 = vmatprep.mubr.bf16.mxu0 0
      %1023 = vmatmul.mubr.bf16.gmra.mxu0 %v722
      %v1024 = vpop.f32.mrf.mxu0
      %v1025 = vadd.f32 %v864, %v1024
      %v1026 = vpop.f32.mrf.mxu0
      %v1027 = vpop.f32.mrf.mxu0
      %v1028 = vadd.f32 %v867, %v1027
      %v1029 = vpop.f32.mrf.mxu0
      %1030 = vmatprep.mubr.bf16.mxu0 0
      %1031 = vmatmul.mubr.bf16.gmra.mxu0 %v725
      %v1032 = vpop.f32.mrf.mxu0
      %v1033 = vadd.f32 %v872, %v1032
      %v1034 = vpop.f32.mrf.mxu0
      %v1035 = vpop.f32.mrf.mxu0
      %v1036 = vadd.f32 %v875, %v1035
      %v1037 = vpop.f32.mrf.mxu0
      %1038 = vmatprep.mubr.bf16.mxu0 0
      %1039 = vmatmul.mubr.bf16.gmra.mxu0 %v728
      %v1040 = vpop.f32.mrf.mxu0
      %v1041 = vadd.f32 %v880, %v1040
      %v1042 = vpop.f32.mrf.mxu0
      %v1043 = vpop.f32.mrf.mxu0
      %v1044 = vadd.f32 %v883, %v1043
      %v1045 = vpop.f32.mrf.mxu0
      %1046 = vmatprep.mubr.bf16.mxu0 0
      %1047 = vmatmul.mubr.bf16.gmra.mxu0 %v731
      %v1048 = vpop.f32.mrf.mxu0
      %v1049 = vadd.f32 %v888, %v1048
      %v1050 = vpop.f32.mrf.mxu0
      %v1051 = vpop.f32.mrf.mxu0
      %v1052 = vadd.f32 %v891, %v1051
      %v1053 = vpop.f32.mrf.mxu0
      %1054 = vdwg.mxu0
      %v1055 = vmax.f32 %v929, 0.0
      %v1056 = vmax.f32 %v932, 0.0
      %v1057 = vmax.f32 %v937, 0.0
      %v1058 = vmax.f32 %v940, 0.0
      %v1059 = vmax.f32 %v945, 0.0
      %v1060 = vmax.f32 %v948, 0.0
      %v1061 = vmax.f32 %v953, 0.0
      %v1062 = vmax.f32 %v956, 0.0
      %v1063 = vmax.f32 %v961, 0.0
      %v1064 = vmax.f32 %v964, 0.0
      %v1065 = vmax.f32 %v969, 0.0
      %v1066 = vmax.f32 %v972, 0.0
      %v1067 = vmax.f32 %v977, 0.0
      %v1068 = vmax.f32 %v980, 0.0
      %v1069 = vmax.f32 %v985, 0.0
      %v1070 = vmax.f32 %v988, 0.0
      %v1071 = vmax.f32 %v993, 0.0
      %v1072 = vmax.f32 %v996, 0.0
      %v1073 = vmax.f32 %v1001, 0.0
      %v1074 = vmax.f32 %v1004, 0.0
      %v1075 = vmax.f32 %v1009, 0.0
      %v1076 = vmax.f32 %v1012, 0.0
      %v1077 = vmax.f32 %v1017, 0.0
      %v1078 = vmax.f32 %v1020, 0.0
      %v1079 = vmax.f32 %v1025, 0.0
      %v1080 = vmax.f32 %v1028, 0.0
      %v1081 = vmax.f32 %v1033, 0.0
      %v1082 = vmax.f32 %v1036, 0.0
      %v1083 = vmax.f32 %v1041, 0.0
      %v1084 = vmax.f32 %v1044, 0.0
      %v1085 = vmax.f32 %v1049, 0.0
      %v1086 = vmax.f32 %v1052, 0.0
      %v1087 = vpack.c.bf16 %v1056, %v1055
      %v1088 = vpack.c.bf16 %v1058, %v1057
      %v1089 = vpack.c.bf16 %v1060, %v1059
      %v1090 = vpack.c.bf16 %v1062, %v1061
      %v1091 = vpack.c.bf16 %v1064, %v1063
      %v1092 = vpack.c.bf16 %v1066, %v1065
      %v1093 = vpack.c.bf16 %v1068, %v1067
      %v1094 = vpack.c.bf16 %v1070, %v1069
      %v1095 = vpack.c.bf16 %v1072, %v1071
      %v1096 = vpack.c.bf16 %v1074, %v1073
      %v1097 = vpack.c.bf16 %v1076, %v1075
      %v1098 = vpack.c.bf16 %v1078, %v1077
      %v1099 = vpack.c.bf16 %v1080, %v1079
      %v1100 = vpack.c.bf16 %v1082, %v1081
      %v1101 = vpack.c.bf16 %v1084, %v1083
      %v1102 = vpack.c.bf16 %v1086, %v1085
      %v1119 = vunpack.c.l.b16 %v1087
      %v1120 = vunpack.c.h.b16 %v1087
      %v1121 = vunpack.c.l.b16 %v1088
      %v1122 = vunpack.c.h.b16 %v1088
      %v1123 = vunpack.c.l.b16 %v1089
      %v1124 = vunpack.c.h.b16 %v1089
      %v1125 = vunpack.c.l.b16 %v1090
      %v1126 = vunpack.c.h.b16 %v1090
      %v1127 = vunpack.c.l.b16 %v1091
      %v1128 = vunpack.c.h.b16 %v1091
      %v1129 = vunpack.c.l.b16 %v1092
      %v1130 = vunpack.c.h.b16 %v1092
      %v1131 = vunpack.c.l.b16 %v1093
      %v1132 = vunpack.c.h.b16 %v1093
      %v1133 = vunpack.c.l.b16 %v1094
      %v1134 = vunpack.c.h.b16 %v1094
      %v1135 = vunpack.c.l.b16 %v1095
      %v1136 = vunpack.c.h.b16 %v1095
      %v1137 = vunpack.c.l.b16 %v1096
      %v1138 = vunpack.c.h.b16 %v1096
      %v1139 = vunpack.c.l.b16 %v1097
      %v1140 = vunpack.c.h.b16 %v1097
      %v1141 = vunpack.c.l.b16 %v1098
      %v1142 = vunpack.c.h.b16 %v1098
      %v1143 = vunpack.c.l.b16 %v1099
      %v1144 = vunpack.c.h.b16 %v1099
      %v1145 = vunpack.c.l.b16 %v1100
      %v1146 = vunpack.c.h.b16 %v1100
      %v1147 = vunpack.c.l.b16 %v1101
      %v1148 = vunpack.c.h.b16 %v1101
      %v1149 = vunpack.c.l.b16 %v1102
      %v1150 = vunpack.c.h.b16 %v1102
      %v1151 = vpack.c.b16 %v1119, %v1119
      %v1152 = vpack.c.b16 %v1120, %v1120
      %v1153 = vpack.c.b16 %v1121, %v1121
      %v1154 = vpack.c.b16 %v1122, %v1122
      %v1155 = vpack.c.b16 %v1123, %v1123
      %v1156 = vpack.c.b16 %v1124, %v1124
      %v1157 = vpack.c.b16 %v1125, %v1125
      %v1158 = vpack.c.b16 %v1126, %v1126
      %v1159 = vpack.c.b16 %v1127, %v1127
      %v1160 = vpack.c.b16 %v1128, %v1128
      %v1161 = vpack.c.b16 %v1129, %v1129
      %v1162 = vpack.c.b16 %v1130, %v1130
      %v1163 = vpack.c.b16 %v1131, %v1131
      %v1164 = vpack.c.b16 %v1132, %v1132
      %v1165 = vpack.c.b16 %v1133, %v1133
      %v1166 = vpack.c.b16 %v1134, %v1134
      %v1167 = vpack.c.b16 %v1135, %v1135
      %v1168 = vpack.c.b16 %v1136, %v1136
      %v1169 = vpack.c.b16 %v1137, %v1137
      %v1170 = vpack.c.b16 %v1138, %v1138
      %v1171 = vpack.c.b16 %v1139, %v1139
      %v1172 = vpack.c.b16 %v1140, %v1140
      %v1173 = vpack.c.b16 %v1141, %v1141
      %v1174 = vpack.c.b16 %v1142, %v1142
      %v1175 = vpack.c.b16 %v1143, %v1143
      %v1176 = vpack.c.b16 %v1144, %v1144
      %v1177 = vpack.c.b16 %v1145, %v1145
      %v1178 = vpack.c.b16 %v1146, %v1146
      %v1179 = vpack.c.b16 %v1147, %v1147
      %v1180 = vpack.c.b16 %v1148, %v1148
      %v1181 = vpack.c.b16 %v1149, %v1149
      %v1182 = vpack.c.b16 %v1150, %v1150
      %1215 = vst [vmem:[%s226] sm:$0xf] %v1151
      %1216 = vst [vmem:[%s226 + $0x4] sm:$0xf] %v1152
      %1217 = vst [vmem:[%s226 + $0x8] sm:$0xf] %v1153
      %1218 = vst [vmem:[%s226 + $0xc] sm:$0xf] %v1154
      %1219 = vst [vmem:[%s226 + $0x10] sm:$0xf] %v1155
      %1220 = vst [vmem:[%s226 + $0x14] sm:$0xf] %v1156
      %1221 = vst [vmem:[%s226 + $0x18] sm:$0xf] %v1157
      %1222 = vst [vmem:[%s226 + $0x1c] sm:$0xf] %v1158
      %1223 = vst [vmem:[%s226 + $0x20] sm:$0xf] %v1159
      %1224 = vst [vmem:[%s226 + $0x24] sm:$0xf] %v1160
      %1225 = vst [vmem:[%s226 + $0x28] sm:$0xf] %v1161
      %1226 = vst [vmem:[%s226 + $0x2c] sm:$0xf] %v1162
      %1227 = vst [vmem:[%s226 + $0x30] sm:$0xf] %v1163
      %1228 = vst [vmem:[%s226 + $0x34] sm:$0xf] %v1164
      %1229 = vst [vmem:[%s226 + $0x38] sm:$0xf] %v1165
      %1230 = vst [vmem:[%s226 + $0x3c] sm:$0xf] %v1166
      %1231 = vst [vmem:[%s226 + $0x40] sm:$0xf] %v1167
      %1232 = vst [vmem:[%s226 + $0x44] sm:$0xf] %v1168
      %1233 = vst [vmem:[%s226 + $0x48] sm:$0xf] %v1169
      %1234 = vst [vmem:[%s226 + $0x4c] sm:$0xf] %v1170
      %1235 = vst [vmem:[%s226 + $0x50] sm:$0xf] %v1171
      %1236 = vst [vmem:[%s226 + $0x54] sm:$0xf] %v1172
      %1237 = vst [vmem:[%s226 + $0x58] sm:$0xf] %v1173
      %1238 = vst [vmem:[%s226 + $0x5c] sm:$0xf] %v1174
      %1239 = vst [vmem:[%s226 + $0x60] sm:$0xf] %v1175
      %1240 = vst [vmem:[%s226 + $0x64] sm:$0xf] %v1176
      %1241 = vst [vmem:[%s226 + $0x68] sm:$0xf] %v1177
      %1242 = vst [vmem:[%s226 + $0x6c] sm:$0xf] %v1178
      %1243 = vst [vmem:[%s226 + $0x70] sm:$0xf] %v1179
      %1244 = vst [vmem:[%s226 + $0x74] sm:$0xf] %v1180
      %1245 = vst [vmem:[%s226 + $0x78] sm:$0xf] %v1181
      %1246 = vst [vmem:[%s226 + $0x7c] sm:$0xf] %v1182
      %s1247 = smul.u32 32, %s19
      %p1248 = scmp.lt.s32.totalorder %s1247, 63
      %s1249 = scalar_select %p1248, %s1247, 63
      %p1250 = scmp.lt.s32.totalorder %s18, 0
      %s1251 = scalar_select %p1250, %s18, 0
      %s1252 = sadd.s32 %s1251, %s1249
      %s1253 = smul.addr %s1252, 4
      %s1254 = scalar_lea.vmem %s3, %s1253
      // Predicated region
      $region33: #{forward.8} parent=31 // pred_check
        %p1255 = pneg %p124
      $region34: #{forward.8} parent=31 // pred_check_branch
        %1257 = sbr.rel (%p1255) target = $region36
      $region35: #{forward.8} parent=31 // pred_region
        %s1258 = smul.u32 32, %s19
      $region36: #{forward.8} parent=31 // pred_fallthru
        _
    $region32: #{forward.8} parent=5 // pred_fallthru
      _
    %p1259 = scmp.le.s32.totalorder 2, %s9
    // Predicated region
    $region37: #{forward.8} parent=5 // pred_check
      %p1260 = pneg %p1259
    $region38: #{forward.8} parent=5 // pred_check_branch
      %1262 = sbr.rel (%p1260) target = $region40
    $region39: #{forward.8} parent=5 // pred_region
      %s1263 = ssub.s32 %s9, 2
      // Predicated region
      $region41: #{forward.8} parent=39 // pred_check
        %p1264 = pneg %p130
      $region42: #{forward.8} parent=39 // pred_check_branch
        %1266 = sbr.rel (%p1264) target = $region44
      $region43: #{forward.8} parent=39 // pred_region
        %s1267 = smul.u32 32, %s21
        %p1268 = scmp.lt.s32.totalorder %s1267, 63
        %s1269 = scalar_select %p1268, %s1267, 63
        %p1270 = scmp.lt.s32.totalorder %s20, 0
        %s1271 = scalar_select %p1270, %s20, 0
        %s1272 = sadd.s32 %s1271, %s1269
        %s1273 = smul.addr %s1272, 4
        %s1274 = scalar_lea.vmem %s3, %s1273
      $region44: #{forward.8} parent=39 // pred_fallthru
        _
    $region40: #{forward.8} parent=5 // pred_fallthru
      _
  $region6: #{forward.8} parent=0 // loop_footer
    %s13 = sadd.s32 1, %s9
  $region7: #{forward.8} parent=0 // loop_footer_branch
    %8 = sbr.rel target = $region3
  $region8: #{forward.8} parent=0 // loop_exit
    _

// kernel: forward.9
$region0: #{forward.9}
  #allocation0 [shape = 'u32[]', space=smem, size = 0x4, offset = 0x4, fixed_abs, tag = 'smem constant byte address 0x4 - core index']
  #allocation1 [shape = 'u32[144,128]{1,0:T(1,128)}', space=vmem, size = 0x12000, scoped, tag = 'internal scratch']
  %s0 = inlined_call_operand.vmem [shape: bf16[512,576], index: 0, kind: input, shape index: {}]
  %s1 = inlined_call_operand.vmem [shape: bf16[576,128], index: 1, kind: input, shape index: {}]
  %s2 = inlined_call_operand.vmem [shape: f32[1,128], index: 2, kind: input, shape index: {}]
  %s3 = inlined_call_operand.vmem [shape: bf16[512,128], index: 3, kind: output, shape index: {}]
  %s4 = sld [smem:[#allocation0]]
  $region45: #{forward.9} parent=0
    _
  %s6 = ssub.s32 1, %s4
  %s7 = scalar_select 0, %s6, %s4
  loop: start=0, step=1, limit=4
  $region2: #{forward.9} parent=0 // loop_pre_header
    _
  $region3: #{forward.9} parent=0 // loop_header
    %s9 = sphi 0, %s13
    %p10 = scmp.ge.s32.totalorder %s9, 4
    %s16 = sphi 0, %s28
    %s17 = sphi 0, %s24
    %s18 = sphi 0, %s16
    %s19 = sphi 0, %s17
    %s20 = sphi 0, %s18
    %s21 = sphi 0, %s19
    %s31 = sphi 0, %s33
    %s34 = sphi 0, %s31
    %s35 = sphi 0, %s34
    %s51 = sphi 0, %s35
    %s57 = sphi 0, %s59
    %s60 = sphi 0, %s57
    %s61 = sphi 0, %s60
    %s77 = sphi 0, %s61
    %s83 = sphi 0, %s85
    %s86 = sphi 0, %s83
    %s87 = sphi 0, %s86
    %s103 = sphi 0, %s87
    %s111 = sphi 0, %s113
    %s114 = sphi 0, %s111
    %s115 = sphi 0, %s114
    %s131 = sphi 0, %s115
  $region4: #{forward.9} parent=0 // loop_header_branch
    %12 = sbr.rel (%p10) target = $region8
  $region5: #{forward.9} parent=0 // loop_body
    %s14 = ssub.s32 %s9, 1
    %s15 = ssub.s32 %s9, 2
    %s22 = sadd.s32 1, %s17
    %p23 = scmp.ge.s32.totalorder %s22, 2
    %s24 = scalar_select %p23, 0, %s22
    %s25 = sadd.s32 1, %s16
    %s26 = scalar_select %p23, %s25, %s16
    %p27 = scmp.ge.s32.totalorder %s26, 1
    %s28 = scalar_select %p27, 0, %s26
    %s29 = ssub.s32 %s17, %s24
    %p30 = scmp.eq.s32.totalorder %s29, 0
    %s32 = sadd.s32 %s31, 1
    %s33 = scalar_select %p30, %s31, %s32
    %p36 = pneg %p30
    %p37 = scmp.eq.s32.totalorder %s9, 1
    %p38 = por %p36, %p37
    %p39 = scmp.ne.s32.totalorder %s31, %s34
    %p40 = scmp.eq.s32.totalorder %s9, 0
    %p41 = por %p39, %p40
    %p42 = scmp.ne.s32.totalorder %s31, %s34
    %p43 = scmp.eq.s32.totalorder %s14, 1
    %p44 = por %p42, %p43
    %p45 = scmp.ne.s32.totalorder %s34, %s35
    %p46 = scmp.eq.s32.totalorder %s14, 0
    %p47 = por %p45, %p46
    %p48 = scmp.ne.s32.totalorder %s34, %s35
    %p49 = scmp.eq.s32.totalorder %s15, 1
    %p50 = por %p48, %p49
    %p52 = scmp.ne.s32.totalorder %s35, %s51
    %p53 = scmp.eq.s32.totalorder %s15, 0
    %p54 = por %p52, %p53
    %s55 = ssub.s32 %s16, %s28
    %p56 = scmp.eq.s32.totalorder %s55, 0
    %s58 = sadd.s32 %s57, 1
    %s59 = scalar_select %p56, %s57, %s58
    %p62 = pneg %p56
    %p63 = scmp.eq.s32.totalorder %s9, 1
    %p64 = por %p62, %p63
    %p65 = scmp.ne.s32.totalorder %s57, %s60
    %p66 = scmp.eq.s32.totalorder %s9, 0
    %p67 = por %p65, %p66
    %p68 = scmp.ne.s32.totalorder %s57, %s60
    %p69 = scmp.eq.s32.totalorder %s14, 1
    %p70 = por %p68, %p69
    %p71 = scmp.ne.s32.totalorder %s60, %s61
    %p72 = scmp.eq.s32.totalorder %s14, 0
    %p73 = por %p71, %p72
    %p74 = scmp.ne.s32.totalorder %s60, %s61
    %p75 = scmp.eq.s32.totalorder %s15, 1
    %p76 = por %p74, %p75
    %p78 = scmp.ne.s32.totalorder %s61, %s77
    %p79 = scmp.eq.s32.totalorder %s15, 0
    %p80 = por %p78, %p79
    %s81 = ssub.s32 %s16, %s28
    %p82 = scmp.eq.s32.totalorder %s81, 0
    %s84 = sadd.s32 %s83, 1
    %s85 = scalar_select %p82, %s83, %s84
    %p88 = pneg %p82
    %p89 = scmp.eq.s32.totalorder %s9, 1
    %p90 = por %p88, %p89
    %p91 = scmp.ne.s32.totalorder %s83, %s86
    %p92 = scmp.eq.s32.totalorder %s9, 0
    %p93 = por %p91, %p92
    %p94 = scmp.ne.s32.totalorder %s83, %s86
    %p95 = scmp.eq.s32.totalorder %s14, 1
    %p96 = por %p94, %p95
    %p97 = scmp.ne.s32.totalorder %s86, %s87
    %p98 = scmp.eq.s32.totalorder %s14, 0
    %p99 = por %p97, %p98
    %p100 = scmp.ne.s32.totalorder %s86, %s87
    %p101 = scmp.eq.s32.totalorder %s15, 1
    %p102 = por %p100, %p101
    %p104 = scmp.ne.s32.totalorder %s87, %s103
    %p105 = scmp.eq.s32.totalorder %s15, 0
    %p106 = por %p104, %p105
    %s107 = ssub.s32 %s17, %s24
    %s108 = ssub.s32 %s16, %s28
    %s109 = sor.u32 %s107, %s108
    %p110 = scmp.eq.s32.totalorder %s109, 0
    %s112 = sadd.s32 %s111, 1
    %s113 = scalar_select %p110, %s111, %s112
    %p116 = pneg %p110
    %p117 = scmp.eq.s32.totalorder %s9, 1
    %p118 = por %p116, %p117
    %p119 = scmp.ne.s32.totalorder %s111, %s114
    %p120 = scmp.eq.s32.totalorder %s9, 0
    %p121 = por %p119, %p120
    %p122 = scmp.ne.s32.totalorder %s111, %s114
    %p123 = scmp.eq.s32.totalorder %s14, 1
    %p124 = por %p122, %p123
    %p125 = scmp.ne.s32.totalorder %s114, %s115
    %p126 = scmp.eq.s32.totalorder %s14, 0
    %p127 = por %p125, %p126
    %p128 = scmp.ne.s32.totalorder %s114, %s115
    %p129 = scmp.eq.s32.totalorder %s15, 1
    %p130 = por %p128, %p129
    %p132 = scmp.ne.s32.totalorder %s115, %s131
    %p133 = scmp.eq.s32.totalorder %s15, 0
    %p134 = por %p132, %p133
    %p135 = scmp.le.s32.totalorder 1, %s9
    %p136 = scmp.lt.s32.totalorder %s9, 3
    %p137 = pnand %p135, %p136
    %p138 = pneg %p137
    // Predicated region
    $region9: #{forward.9} parent=5 // pred_check
      _
    $region10: #{forward.9} parent=5 // pred_check_branch
      %140 = sbr.rel (%p137) target = $region12
    $region11: #{forward.9} parent=5 // pred_region
      %s141 = ssub.s32 %s9, 1
      // Predicated region
      $region13: #{forward.9} parent=11 // pred_check
        %p142 = pneg %p73
      $region14: #{forward.9} parent=11 // pred_check_branch
        %144 = sbr.rel (%p142) target = $region16
      $region15: #{forward.9} parent=11 // pred_region
        %p145 = scmp.lt.s32.totalorder %s18, 0
        %s146 = scalar_select %p145, %s18, 0
        %s147 = smul.addr %s146, 4
        %s148 = scalar_lea.vmem %s1, %s147
      $region16: #{forward.9} parent=11 // pred_fallthru
        _
      // Predicated region
      $region17: #{forward.9} parent=11 // pred_check
        %p149 = pneg %p99
      $region18: #{forward.9} parent=11 // pred_check_branch
        %151 = sbr.rel (%p149) target = $region20
      $region19: #{forward.9} parent=11 // pred_region
        %p152 = scmp.lt.s32.totalorder %s18, 0
        %s153 = scalar_select %p152, %s18, 0
        %s154 = scalar_lea.vmem %s2, %s153
      $region20: #{forward.9} parent=11 // pred_fallthru
        _
    $region12: #{forward.9} parent=5 // pred_fallthru
      _
    %p155 = scmp.lt.s32.totalorder %s9, 2
    // Predicated region
    $region21: #{forward.9} parent=5 // pred_check
      %p156 = pneg %p155
    $region22: #{forward.9} parent=5 // pred_check_branch
      %158 = sbr.rel (%p156) target = $region24
    $region23: #{forward.9} parent=5 // pred_region
      // Predicated region
      $region25: #{forward.9} parent=23 // pred_check
        %p159 = pneg %p41
      $region26: #{forward.9} parent=23 // pred_check_branch
        %161 = sbr.rel (%p159) target = $region28
      $region27: #{forward.9} parent=23 // pred_region
        %s162 = smul.u32 32, %s17
        %p163 = scmp.lt.s32.totalorder %s162, 63
        %s164 = scalar_select %p163, %s162, 63
        %s165 = smul.addr %s164, 5
        %s166 = smul.addr %s165, 4
        %s167 = scalar_lea.vmem %s0, %s166
        %s168 = smul.u32 32, %s17
      $region28: #{forward.9} parent=23 // pred_fallthru
        _
    $region24: #{forward.9} parent=5 // pred_fallthru
      _
    %p169 = scmp.le.s32.totalorder 1, %s9
    %p170 = scmp.lt.s32.totalorder %s9, 3
    %p171 = pnand %p169, %p170
    %p172 = pneg %p171
    // Predicated region
    $region29: #{forward.9} parent=5 // pred_check
      _
    $region30: #{forward.9} parent=5 // pred_check_branch
      %174 = sbr.rel (%p171) target = $region32
    $region31: #{forward.9} parent=5 // pred_region
      %s175 = ssub.s32 %s9, 1
      %s176 = smul.u32 32, %s19
      %p177 = scmp.lt.s32.totalorder %s176, 63
      %s178 = scalar_select %p177, %s176, 63
      %s179 = smul.addr %s178, 5
      %s180 = smul.addr %s179, 4
      %s181 = scalar_lea.vmem %s0, %s180
      %p182 = pneg %p47
      %p183 = pneg %p44
      %p184 = scmp.lt.s32.totalorder %s18, 0
      %s185 = scalar_select %p184, %s18, 0
      %s186 = smul.addr %s185, 4
      %s187 = scalar_lea.vmem %s1, %s186
      %p188 = pneg %p73
      %p189 = pneg %p70
      %p190 = scmp.lt.s32.totalorder %s18, 0
      %s191 = scalar_select %p190, %s18, 0
      %s192 = scalar_lea.vmem %s2, %s191
      %p193 = pneg %p99
      %p194 = pneg %p96
      %p195 = pneg %p127
      %p196 = pneg %p124
      %s197 = smul.u32 32, %s19
      %p198 = scmp.lt.s32.totalorder %s197, 63
      %s199 = scalar_select %p198, %s197, 63
      %p200 = scmp.lt.s32.totalorder %s18, 0
      %s201 = scalar_select %p200, %s18, 0
      %s202 = sadd.s32 %s201, %s199
      %s203 = smul.addr %s202, 4
      %s204 = scalar_lea.vmem %s3, %s203
      %s205 = smul.u32 32, %s19
      %p206 = scmp.lt.s32.totalorder %s205, 63
      %s207 = scalar_select %p206, %s205, 63
      %s208 = smul.addr %s207, 5
      %s209 = smul.addr %s208, 4
      %s210 = scalar_lea.vmem %s0, %s209
      %s211 = smul.u32 32, %s19
      %p212 = scmp.lt.s32.totalorder %s18, 0
      %s213 = scalar_select %p212, %s18, 0
      %s214 = smul.addr %s213, 4
      %s215 = scalar_lea.vmem %s1, %s214
      %p216 = scmp.lt.s32.totalorder %s18, 0
      %s217 = scalar_select %p216, %s18, 0
      %s218 = scalar_lea.vmem %s2, %s217
      %s219 = smul.u32 32, %s19
      %p220 = scmp.lt.s32.totalorder %s219, 63
      %s221 = scalar_select %p220, %s219, 63
      %p222 = scmp.lt.s32.totalorder %s18, 0
      %s223 = scalar_select %p222, %s18, 0
      %s224 = sadd.s32 %s223, %s221
      %s225 = smul.addr %s224, 4
      %s226 = scalar_lea.vmem %s3, %s225
      %s227 = smul.u32 32, %s19
      %v229 = vld [vmem:[%s210] sm:$0xff]
      %v230 = vld [vmem:[%s210 + $0x8] sm:$0xff]
      %v231 = vld [vmem:[%s210 + $0x10] sm:$0xf]
      %v232 = vld [vmem:[%s210 + $0x14] sm:$0xff]
      %v233 = vld [vmem:[%s210 + $0x1c] sm:$0xff]
      %v234 = vld [vmem:[%s210 + $0x24] sm:$0xf]
      %v235 = vld [vmem:[%s210 + $0x28] sm:$0xff]
      %v236 = vld [vmem:[%s210 + $0x30] sm:$0xff]
      %v237 = vld [vmem:[%s210 + $0x38] sm:$0xf]
      %v238 = vld [vmem:[%s210 + $0x3c] sm:$0xff]
      %v239 = vld [vmem:[%s210 + $0x44] sm:$0xff]
      %v240 = vld [vmem:[%s210 + $0x4c] sm:$0xf]
      %v241 = vld [vmem:[%s210 + $0x50] sm:$0xff]
      %v242 = vld [vmem:[%s210 + $0x58] sm:$0xff]
      %v243 = vld [vmem:[%s210 + $0x60] sm:$0xf]
      %v244 = vld [vmem:[%s210 + $0x64] sm:$0xff]
      %v245 = vld [vmem:[%s210 + $0x6c] sm:$0xff]
      %v246 = vld [vmem:[%s210 + $0x74] sm:$0xf]
      %v247 = vld [vmem:[%s210 + $0x78] sm:$0xff]
      %v248 = vld [vmem:[%s210 + $0x80] sm:$0xff]
      %v249 = vld [vmem:[%s210 + $0x88] sm:$0xf]
      %v250 = vld [vmem:[%s210 + $0x8c] sm:$0xff]
      %v251 = vld [vmem:[%s210 + $0x94] sm:$0xff]
      %v252 = vld [vmem:[%s210 + $0x9c] sm:$0xf]
      %v253 = vld [vmem:[%s210 + $0xa0] sm:$0xff]
      %v254 = vld [vmem:[%s210 + $0xa8] sm:$0xff]
      %v255 = vld [vmem:[%s210 + $0xb0] sm:$0xf]
      %v256 = vld [vmem:[%s210 + $0xb4] sm:$0xff]
      %v257 = vld [vmem:[%s210 + $0xbc] sm:$0xff]
      %v258 = vld [vmem:[%s210 + $0xc4] sm:$0xf]
      %v259 = vld [vmem:[%s210 + $0xc8] sm:$0xff]
      %v260 = vld [vmem:[%s210 + $0xd0] sm:$0xff]
      %v261 = vld [vmem:[%s210 + $0xd8] sm:$0xf]
      %v262 = vld [vmem:[%s210 + $0xdc] sm:$0xff]
      %v263 = vld [vmem:[%s210 + $0xe4] sm:$0xff]
      %v264 = vld [vmem:[%s210 + $0xec] sm:$0xf]
      %v265 = vld [vmem:[%s210 + $0xf0] sm:$0xff]
      %v266 = vld [vmem:[%s210 + $0xf8] sm:$0xff]
      %v267 = vld [vmem:[%s210 + $0x100] sm:$0xf]
      %v268 = vld [vmem:[%s210 + $0x104] sm:$0xff]
      %v269 = vld [vmem:[%s210 + $0x10c] sm:$0xff]
      %v270 = vld [vmem:[%s210 + $0x114] sm:$0xf]
      %v271 = vld [vmem:[%s210 + $0x118] sm:$0xff]
      %v272 = vld [vmem:[%s210 + $0x120] sm:$0xff]
      %v273 = vld [vmem:[%s210 + $0x128] sm:$0xf]
      %v274 = vld [vmem:[%s210 + $0x12c] sm:$0xff]
      %v275 = vld [vmem:[%s210 + $0x134] sm:$0xff]
      %v276 = vld [vmem:[%s210 + $0x13c] sm:$0xf]
      %v277 = vld [vmem:[%s210 + $0x140] sm:$0xff]
      %v278 = vld [vmem:[%s210 + $0x148] sm:$0xff]
      %v279 = vld [vmem:[%s210 + $0x150] sm:$0xf]
      %v280 = vld [vmem:[%s210 + $0x154] sm:$0xff]
      %v281 = vld [vmem:[%s210 + $0x15c] sm:$0xff]
      %v282 = vld [vmem:[%s210 + $0x164] sm:$0xf]
      %v283 = vld [vmem:[%s210 + $0x168] sm:$0xff]
      %v284 = vld [vmem:[%s210 + $0x170] sm:$0xff]
      %v285 = vld [vmem:[%s210 + $0x178] sm:$0xf]
      %v286 = vld [vmem:[%s210 + $0x17c] sm:$0xff]
      %v287 = vld [vmem:[%s210 + $0x184] sm:$0xff]
      %v288 = vld [vmem:[%s210 + $0x18c] sm:$0xf]
      %v289 = vld [vmem:[%s210 + $0x190] sm:$0xff]
      %v290 = vld [vmem:[%s210 + $0x198] sm:$0xff]
      %v291 = vld [vmem:[%s210 + $0x1a0] sm:$0xf]
      %v292 = vld [vmem:[%s210 + $0x1a4] sm:$0xff]
      %v293 = vld [vmem:[%s210 + $0x1ac] sm:$0xff]
      %v294 = vld [vmem:[%s210 + $0x1b4] sm:$0xf]
      %v295 = vld [vmem:[%s210 + $0x1b8] sm:$0xff]
      %v296 = vld [vmem:[%s210 + $0x1c0] sm:$0xff]
      %v297 = vld [vmem:[%s210 + $0x1c8] sm:$0xf]
      %v298 = vld [vmem:[%s210 + $0x1cc] sm:$0xff]
      %v299 = vld [vmem:[%s210 + $0x1d4] sm:$0xff]
      %v300 = vld [vmem:[%s210 + $0x1dc] sm:$0xf]
      %v301 = vld [vmem:[%s210 + $0x1e0] sm:$0xff]
      %v302 = vld [vmem:[%s210 + $0x1e8] sm:$0xff]
      %v303 = vld [vmem:[%s210 + $0x1f0] sm:$0xf]
      %v304 = vld [vmem:[%s210 + $0x1f4] sm:$0xff]
      %v305 = vld [vmem:[%s210 + $0x1fc] sm:$0xff]
      %v306 = vld [vmem:[%s210 + $0x204] sm:$0xf]
      %v307 = vld [vmem:[%s210 + $0x208] sm:$0xff]
      %v308 = vld [vmem:[%s210 + $0x210] sm:$0xff]
      %v309 = vld [vmem:[%s210 + $0x218] sm:$0xf]
      %v310 = vld [vmem:[%s210 + $0x21c] sm:$0xff]
      %v311 = vld [vmem:[%s210 + $0x224] sm:$0xff]
      %v312 = vld [vmem:[%s210 + $0x22c] sm:$0xf]
      %v313 = vld [vmem:[%s210 + $0x230] sm:$0xff]
      %v314 = vld [vmem:[%s210 + $0x238] sm:$0xff]
      %v315 = vld [vmem:[%s210 + $0x240] sm:$0xf]
      %v316 = vld [vmem:[%s210 + $0x244] sm:$0xff]
      %v317 = vld [vmem:[%s210 + $0x24c] sm:$0xff]
      %v318 = vld [vmem:[%s210 + $0x254] sm:$0xf]
      %v319 = vld [vmem:[%s210 + $0x258] sm:$0xff]
      %v320 = vld [vmem:[%s210 + $0x260] sm:$0xff]
      %v321 = vld [vmem:[%s210 + $0x268] sm:$0xf]
      %v322 = vld [vmem:[%s210 + $0x26c] sm:$0xff]
      %v323 = vld [vmem:[%s210 + $0x274] sm:$0xff]
      %v324 = vld [vmem:[%s210 + $0x27c] sm:$0xf]
      %v325 = vld [vmem:[%s215] sm:$0xf]
      %v326 = vld [vmem:[%s215 + $0x4] sm:$0xf]
      %v327 = vld [vmem:[%s215 + $0x8] sm:$0xf]
      %v328 = vld [vmem:[%s215 + $0xc] sm:$0xf]
      %v329 = vld [vmem:[%s215 + $0x10] sm:$0xf]
      %v330 = vld [vmem:[%s215 + $0x14] sm:$0xf]
      %v331 = vld [vmem:[%s215 + $0x18] sm:$0xf]
      %v332 = vld [vmem:[%s215 + $0x1c] sm:$0xf]
      %v333 = vld [vmem:[%s215 + $0x20] sm:$0xf]
      %v334 = vld [vmem:[%s215 + $0x24] sm:$0xf]
      %v335 = vld [vmem:[%s215 + $0x28] sm:$0xf]
      %v336 = vld [vmem:[%s215 + $0x2c] sm:$0xf]
      %v337 = vld [vmem:[%s215 + $0x30] sm:$0xf]
      %v338 = vld [vmem:[%s215 + $0x34] sm:$0xf]
      %v339 = vld [vmem:[%s215 + $0x38] sm:$0xf]
      %v340 = vld [vmem:[%s215 + $0x3c] sm:$0xf]
      %v341 = vld [vmem:[%s215 + $0x40] sm:$0xf]
      %v342 = vld [vmem:[%s215 + $0x44] sm:$0xf]
      %v343 = vld [vmem:[%s215 + $0x48] sm:$0xf]
      %v344 = vld [vmem:[%s215 + $0x4c] sm:$0xf]
      %v345 = vld [vmem:[%s215 + $0x50] sm:$0xf]
      %v346 = vld [vmem:[%s215 + $0x54] sm:$0xf]
      %v347 = vld [vmem:[%s215 + $0x58] sm:$0xf]
      %v348 = vld [vmem:[%s215 + $0x5c] sm:$0xf]
      %v349 = vld [vmem:[%s215 + $0x60] sm:$0xf]
      %v350 = vld [vmem:[%s215 + $0x64] sm:$0xf]
      %v351 = vld [vmem:[%s215 + $0x68] sm:$0xf]
      %v352 = vld [vmem:[%s215 + $0x6c] sm:$0xf]
      %v353 = vld [vmem:[%s215 + $0x70] sm:$0xf]
      %v354 = vld [vmem:[%s215 + $0x74] sm:$0xf]
      %v355 = vld [vmem:[%s215 + $0x78] sm:$0xf]
      %v356 = vld [vmem:[%s215 + $0x7c] sm:$0xf]
      %v357 = vld [vmem:[%s215 + $0x80] sm:$0xf]
      %v358 = vld [vmem:[%s215 + $0x84] sm:$0xf]
      %v359 = vld [vmem:[%s215 + $0x88] sm:$0xf]
      %v360 = vld [vmem:[%s215 + $0x8c] sm:$0xf]
      %v361 = vld [vmem:[%s215 + $0x90] sm:$0xf]
      %v362 = vld [vmem:[%s215 + $0x94] sm:$0xf]
      %v363 = vld [vmem:[%s215 + $0x98] sm:$0xf]
      %v364 = vld [vmem:[%s215 + $0x9c] sm:$0xf]
      %v365 = vld [vmem:[%s215 + $0xa0] sm:$0xf]
      %v366 = vld [vmem:[%s215 + $0xa4] sm:$0xf]
      %v367 = vld [vmem:[%s215 + $0xa8] sm:$0xf]
      %v368 = vld [vmem:[%s215 + $0xac] sm:$0xf]
      %v369 = vld [vmem:[%s215 + $0xb0] sm:$0xf]
      %v370 = vld [vmem:[%s215 + $0xb4] sm:$0xf]
      %v371 = vld [vmem:[%s215 + $0xb8] sm:$0xf]
      %v372 = vld [vmem:[%s215 + $0xbc] sm:$0xf]
      %v373 = vld [vmem:[%s215 + $0xc0] sm:$0xf]
      %v374 = vld [vmem:[%s215 + $0xc4] sm:$0xf]
      %v375 = vld [vmem:[%s215 + $0xc8] sm:$0xf]
      %v376 = vld [vmem:[%s215 + $0xcc] sm:$0xf]
      %v377 = vld [vmem:[%s215 + $0xd0] sm:$0xf]
      %v378 = vld [vmem:[%s215 + $0xd4] sm:$0xf]
      %v379 = vld [vmem:[%s215 + $0xd8] sm:$0xf]
      %v380 = vld [vmem:[%s215 + $0xdc] sm:$0xf]
      %v381 = vld [vmem:[%s215 + $0xe0] sm:$0xf]
      %v382 = vld [vmem:[%s215 + $0xe4] sm:$0xf]
      %v383 = vld [vmem:[%s215 + $0xe8] sm:$0xf]
      %v384 = vld [vmem:[%s215 + $0xec] sm:$0xf]
      %v385 = vld [vmem:[%s215 + $0xf0] sm:$0xf]
      %v386 = vld [vmem:[%s215 + $0xf4] sm:$0xf]
      %v387 = vld [vmem:[%s215 + $0xf8] sm:$0xf]
      %v388 = vld [vmem:[%s215 + $0xfc] sm:$0xf]
      %v389 = vld [vmem:[%s215 + $0x100] sm:$0xf]
      %v390 = vld [vmem:[%s215 + $0x104] sm:$0xf]
      %v391 = vld [vmem:[%s215 + $0x108] sm:$0xf]
      %v392 = vld [vmem:[%s215 + $0x10c] sm:$0xf]
      %v393 = vld [vmem:[%s215 + $0x110] sm:$0xf]
      %v394 = vld [vmem:[%s215 + $0x114] sm:$0xf]
      %v395 = vld [vmem:[%s215 + $0x118] sm:$0xf]
      %v396 = vld [vmem:[%s215 + $0x11c] sm:$0xf]
      %v397 = vld [vmem:[%s218] sm:$0x1]
      %v399 = vlaneseq
      %v400 = vshrl.u32 %v399, 7
      %v401 = vsub.s32 0, %v400
      %v402 = vrot.slane %v397, %v401
      %v500 = vunpack.c.l.b16 %v229
      %v501 = vunpack.c.h.b16 %v229
      %v502 = vunpack.c.l.b16 %v230
      %v503 = vunpack.c.h.b16 %v230
      %v504 = vunpack.c.l.b16 %v231
      %v505 = vunpack.c.l.b16 %v232
      %v506 = vunpack.c.h.b16 %v232
      %v507 = vunpack.c.l.b16 %v233
      %v508 = vunpack.c.h.b16 %v233
      %v509 = vunpack.c.l.b16 %v234
      %v510 = vunpack.c.l.b16 %v235
      %v511 = vunpack.c.h.b16 %v235
      %v512 = vunpack.c.l.b16 %v236
      %v513 = vunpack.c.h.b16 %v236
      %v514 = vunpack.c.l.b16 %v237
      %v515 = vunpack.c.l.b16 %v238
      %v516 = vunpack.c.h.b16 %v238
      %v517 = vunpack.c.l.b16 %v239
      %v518 = vunpack.c.h.b16 %v239
      %v519 = vunpack.c.l.b16 %v240
      %v520 = vunpack.c.l.b16 %v241
      %v521 = vunpack.c.h.b16 %v241
      %v522 = vunpack.c.l.b16 %v242
      %v523 = vunpack.c.h.b16 %v242
      %v524 = vunpack.c.l.b16 %v243
      %v525 = vunpack.c.l.b16 %v244
      %v526 = vunpack.c.h.b16 %v244
      %v527 = vunpack.c.l.b16 %v245
      %v528 = vunpack.c.h.b16 %v245
      %v529 = vunpack.c.l.b16 %v246
      %v530 = vunpack.c.l.b16 %v247
      %v531 = vunpack.c.h.b16 %v247
      %v532 = vunpack.c.l.b16 %v248
      %v533 = vunpack.c.h.b16 %v248
      %v534 = vunpack.c.l.b16 %v249
      %v535 = vunpack.c.l.b16 %v250
      %v536 = vunpack.c.h.b16 %v250
      %v537 = vunpack.c.l.b16 %v251
      %v538 = vunpack.c.h.b16 %v251
      %v539 = vunpack.c.l.b16 %v252
      %v540 = vunpack.c.l.b16 %v253
      %v541 = vunpack.c.h.b16 %v253
      %v542 = vunpack.c.l.b16 %v254
      %v543 = vunpack.c.h.b16 %v254
      %v544 = vunpack.c.l.b16 %v255
      %v545 = vunpack.c.l.b16 %v256
      %v546 = vunpack.c.h.b16 %v256
      %v547 = vunpack.c.l.b16 %v257
      %v548 = vunpack.c.h.b16 %v257
      %v549 = vunpack.c.l.b16 %v258
      %v550 = vunpack.c.l.b16 %v259
      %v551 = vunpack.c.h.b16 %v259
      %v552 = vunpack.c.l.b16 %v260
      %v553 = vunpack.c.h.b16 %v260
      %v554 = vunpack.c.l.b16 %v261
      %v555 = vunpack.c.l.b16 %v262
      %v556 = vunpack.c.h.b16 %v262
      %v557 = vunpack.c.l.b16 %v263
      %v558 = vunpack.c.h.b16 %v263
      %v559 = vunpack.c.l.b16 %v264
      %v560 = vunpack.c.l.b16 %v265
      %v561 = vunpack.c.h.b16 %v265
      %v562 = vunpack.c.l.b16 %v266
      %v563 = vunpack.c.h.b16 %v266
      %v564 = vunpack.c.l.b16 %v267
      %v565 = vunpack.c.l.b16 %v268
      %v566 = vunpack.c.h.b16 %v268
      %v567 = vunpack.c.l.b16 %v269
      %v568 = vunpack.c.h.b16 %v269
      %v569 = vunpack.c.l.b16 %v270
      %v570 = vunpack.c.l.b16 %v271
      %v571 = vunpack.c.h.b16 %v271
      %v572 = vunpack.c.l.b16 %v272
      %v573 = vunpack.c.h.b16 %v272
      %v574 = vunpack.c.l.b16 %v273
      %v575 = vunpack.c.l.b16 %v274
      %v576 = vunpack.c.h.b16 %v274
      %v577 = vunpack.c.l.b16 %v275
      %v578 = vunpack.c.h.b16 %v275
      %v579 = vunpack.c.l.b16 %v276
      %v580 = vunpack.c.l.b16 %v277
      %v581 = vunpack.c.h.b16 %v277
      %v582 = vunpack.c.l.b16 %v278
      %v583 = vunpack.c.h.b16 %v278
      %v584 = vunpack.c.l.b16 %v279
      %v585 = vunpack.c.l.b16 %v280
      %v586 = vunpack.c.h.b16 %v280
      %v587 = vunpack.c.l.b16 %v281
      %v588 = vunpack.c.h.b16 %v281
      %v589 = vunpack.c.l.b16 %v282
      %v590 = vunpack.c.l.b16 %v283
      %v591 = vunpack.c.h.b16 %v283
      %v592 = vunpack.c.l.b16 %v284
      %v593 = vunpack.c.h.b16 %v284
      %v594 = vunpack.c.l.b16 %v285
      %v595 = vunpack.c.l.b16 %v286
      %v596 = vunpack.c.h.b16 %v286
      %v597 = vunpack.c.l.b16 %v287
      %v598 = vunpack.c.h.b16 %v287
      %v599 = vunpack.c.l.b16 %v288
      %v600 = vunpack.c.l.b16 %v289
      %v601 = vunpack.c.h.b16 %v289
      %v602 = vunpack.c.l.b16 %v290
      %v603 = vunpack.c.h.b16 %v290
      %v604 = vunpack.c.l.b16 %v291
      %v605 = vunpack.c.l.b16 %v292
      %v606 = vunpack.c.h.b16 %v292
      %v607 = vunpack.c.l.b16 %v293
      %v608 = vunpack.c.h.b16 %v293
      %v609 = vunpack.c.l.b16 %v294
      %v610 = vunpack.c.l.b16 %v295
      %v611 = vunpack.c.h.b16 %v295
      %v612 = vunpack.c.l.b16 %v296
      %v613 = vunpack.c.h.b16 %v296
      %v614 = vunpack.c.l.b16 %v297
      %v615 = vunpack.c.l.b16 %v298
      %v616 = vunpack.c.h.b16 %v298
      %v617 = vunpack.c.l.b16 %v299
      %v618 = vunpack.c.h.b16 %v299
      %v619 = vunpack.c.l.b16 %v300
      %v620 = vunpack.c.l.b16 %v301
      %v621 = vunpack.c.h.b16 %v301
      %v622 = vunpack.c.l.b16 %v302
      %v623 = vunpack.c.h.b16 %v302
      %v624 = vunpack.c.l.b16 %v303
      %v625 = vunpack.c.l.b16 %v304
      %v626 = vunpack.c.h.b16 %v304
      %v627 = vunpack.c.l.b16 %v305
      %v628 = vunpack.c.h.b16 %v305
      %v629 = vunpack.c.l.b16 %v306
      %v630 = vunpack.c.l.b16 %v307
      %v631 = vunpack.c.h.b16 %v307
      %v632 = vunpack.c.l.b16 %v308
      %v633 = vunpack.c.h.b16 %v308
      %v634 = vunpack.c.l.b16 %v309
      %v635 = vunpack.c.l.b16 %v310
      %v636 = vunpack.c.h.b16 %v310
      %v637 = vunpack.c.l.b16 %v311
      %v638 = vunpack.c.h.b16 %v311
      %v639 = vunpack.c.l.b16 %v312
      %v640 = vunpack.c.l.b16 %v313
      %v641 = vunpack.c.h.b16 %v313
      %v642 = vunpack.c.l.b16 %v314
      %v643 = vunpack.c.h.b16 %v314
      %v644 = vunpack.c.l.b16 %v315
      %v645 = vunpack.c.l.b16 %v316
      %v646 = vunpack.c.h.b16 %v316
      %v647 = vunpack.c.l.b16 %v317
      %v648 = vunpack.c.h.b16 %v317
      %v649 = vunpack.c.l.b16 %v318
      %v650 = vunpack.c.l.b16 %v319
      %v651 = vunpack.c.h.b16 %v319
      %v652 = vunpack.c.l.b16 %v320
      %v653 = vunpack.c.h.b16 %v320
      %v654 = vunpack.c.l.b16 %v321
      %v655 = vunpack.c.l.b16 %v322
      %v656 = vunpack.c.h.b16 %v322
      %v657 = vunpack.c.l.b16 %v323
      %v658 = vunpack.c.h.b16 %v323
      %v659 = vunpack.c.l.b16 %v324
      %v660 = vpack.c.b16 %v505, %v500
      %v661 = vpack.c.b16 %v506, %v501
      %v662 = vpack.c.b16 %v507, %v502
      %v663 = vpack.c.b16 %v508, %v503
      %v664 = vpack.c.b16 %v509, %v504
      %v665 = vpack.c.b16 %v515, %v510
      %v666 = vpack.c.b16 %v516, %v511
      %v667 = vpack.c.b16 %v517, %v512
      %v668 = vpack.c.b16 %v518, %v513
      %v669 = vpack.c.b16 %v519, %v514
      %v670 = vpack.c.b16 %v525, %v520
      %v671 = vpack.c.b16 %v526, %v521
      %v672 = vpack.c.b16 %v527, %v522
      %v673 = vpack.c.b16 %v528, %v523
      %v674 = vpack.c.b16 %v529, %v524
      %v675 = vpack.c.b16 %v535, %v530
      %v676 = vpack.c.b16 %v536, %v531
      %v677 = vpack.c.b16 %v537, %v532
      %v678 = vpack.c.b16 %v538, %v533
      %v679 = vpack.c.b16 %v539, %v534
      %v680 = vpack.c.b16 %v545, %v540
      %v681 = vpack.c.b16 %v546, %v541
      %v682 = vpack.c.b16 %v547, %v542
      %v683 = vpack.c.b16 %v548, %v543
      %v684 = vpack.c.b16 %v549, %v544
      %v685 = vpack.c.b16 %v555, %v550
      %v686 = vpack.c.b16 %v556, %v551
      %v687 = vpack.c.b16 %v557, %v552
      %v688 = vpack.c.b16 %v558, %v553
      %v689 = vpack.c.b16 %v559, %v554
      %v690 = vpack.c.b16 %v565, %v560
      %v691 = vpack.c.b16 %v566, %v561
      %v692 = vpack.c.b16 %v567, %v562
      %v693 = vpack.c.b16 %v568, %v563
      %v694 = vpack.c.b16 %v569, %v564
      %v695 = vpack.c.b16 %v575, %v570
      %v696 = vpack.c.b16 %v576, %v571
      %v697 = vpack.c.b16 %v577, %v572
      %v698 = vpack.c.b16 %v578, %v573
      %v699 = vpack.c.b16 %v579, %v574
      %v700 = vpack.c.b16 %v585, %v580
      %v701 = vpack.c.b16 %v586, %v581
      %v702 = vpack.c.b16 %v587, %v582
      %v703 = vpack.c.b16 %v588, %v583
      %v704 = vpack.c.b16 %v589, %v584
      %v705 = vpack.c.b16 %v595, %v590
      %v706 = vpack.c.b16 %v596, %v591
      %v707 = vpack.c.b16 %v597, %v592
      %v708 = vpack.c.b16 %v598, %v593
      %v709 = vpack.c.b16 %v599, %v594
      %v710 = vpack.c.b16 %v605, %v600
      %v711 = vpack.c.b16 %v606, %v601
      %v712 = vpack.c.b16 %v607, %v602
      %v713 = vpack.c.b16 %v608, %v603
      %v714 = vpack.c.b16 %v609, %v604
      %v715 = vpack.c.b16 %v615, %v610
      %v716 = vpack.c.b16 %v616, %v611
      %v717 = vpack.c.b16 %v617, %v612
      %v718 = vpack.c.b16 %v618, %v613
      %v719 = vpack.c.b16 %v619, %v614
      %v720 = vpack.c.b16 %v625, %v620
      %v721 = vpack.c.b16 %v626, %v621
      %v722 = vpack.c.b16 %v627, %v622
      %v723 = vpack.c.b16 %v628, %v623
      %v724 = vpack.c.b16 %v629, %v624
      %v725 = vpack.c.b16 %v635, %v630
      %v726 = vpack.c.b16 %v636, %v631
      %v727 = vpack.c.b16 %v637, %v632
      %v728 = vpack.c.b16 %v638, %v633
      %v729 = vpack.c.b16 %v639, %v634
      %v730 = vpack.c.b16 %v645, %v640
      %v731 = vpack.c.b16 %v646, %v641
      %v732 = vpack.c.b16 %v647, %v642
      %v733 = vpack.c.b16 %v648, %v643
      %v734 = vpack.c.b16 %v649, %v644
      %v735 = vpack.c.b16 %v655, %v650
      %v736 = vpack.c.b16 %v656, %v651
      %v737 = vpack.c.b16 %v657, %v652
      %v738 = vpack.c.b16 %v658, %v653
      %v739 = vpack.c.b16 %v659, %v654
      %v876 = vunpack.c.l.b16 %v325
      %v877 = vunpack.c.l.b16 %v326
      %v878 = vunpack.c.l.b16 %v327
      %v879 = vunpack.c.l.b16 %v328
      %v880 = vunpack.c.l.b16 %v329
      %v881 = vunpack.c.l.b16 %v330
      %v882 = vunpack.c.l.b16 %v331
      %v883 = vunpack.c.l.b16 %v332
      %v884 = vunpack.c.l.b16 %v333
      %v885 = vunpack.c.l.b16 %v334
      %v886 = vunpack.c.l.b16 %v335
      %v887 = vunpack.c.l.b16 %v336
      %v888 = vunpack.c.l.b16 %v337
      %v889 = vunpack.c.l.b16 %v338
      %v890 = vunpack.c.l.b16 %v339
      %v891 = vunpack.c.l.b16 %v340
      %v892 = vunpack.c.l.b16 %v341
      %v893 = vunpack.c.l.b16 %v342
      %v894 = vunpack.c.l.b16 %v343
      %v895 = vunpack.c.l.b16 %v344
      %v896 = vunpack.c.l.b16 %v345
      %v897 = vunpack.c.l.b16 %v346
      %v898 = vunpack.c.l.b16 %v347
      %v899 = vunpack.c.l.b16 %v348
      %v900 = vunpack.c.l.b16 %v349
      %v901 = vunpack.c.l.b16 %v350
      %v902 = vunpack.c.l.b16 %v351
      %v903 = vunpack.c.l.b16 %v352
      %v904 = vunpack.c.l.b16 %v353
      %v905 = vunpack.c.l.b16 %v354
      %v906 = vunpack.c.l.b16 %v355
      %v907 = vunpack.c.l.b16 %v356
      %v908 = vunpack.c.l.b16 %v357
      %v909 = vunpack.c.l.b16 %v358
      %v910 = vunpack.c.l.b16 %v359
      %v911 = vunpack.c.l.b16 %v360
      %v912 = vunpack.c.l.b16 %v361
      %v913 = vunpack.c.l.b16 %v362
      %v914 = vunpack.c.l.b16 %v363
      %v915 = vunpack.c.l.b16 %v364
      %v916 = vunpack.c.l.b16 %v365
      %v917 = vunpack.c.l.b16 %v366
      %v918 = vunpack.c.l.b16 %v367
      %v919 = vunpack.c.l.b16 %v368
      %v920 = vunpack.c.l.b16 %v369
      %v921 = vunpack.c.l.b16 %v370
      %v922 = vunpack.c.l.b16 %v371
      %v923 = vunpack.c.l.b16 %v372
      %v924 = vunpack.c.l.b16 %v373
      %v925 = vunpack.c.l.b16 %v374
      %v926 = vunpack.c.l.b16 %v375
      %v927 = vunpack.c.l.b16 %v376
      %v928 = vunpack.c.l.b16 %v377
      %v929 = vunpack.c.l.b16 %v378
      %v930 = vunpack.c.l.b16 %v379
      %v931 = vunpack.c.l.b16 %v380
      %v932 = vunpack.c.l.b16 %v381
      %v933 = vunpack.c.l.b16 %v382
      %v934 = vunpack.c.l.b16 %v383
      %v935 = vunpack.c.l.b16 %v384
      %v936 = vunpack.c.l.b16 %v385
      %v937 = vunpack.c.l.b16 %v386
      %v938 = vunpack.c.l.b16 %v387
      %v939 = vunpack.c.l.b16 %v388
      %v940 = vunpack.c.l.b16 %v389
      %v941 = vunpack.c.l.b16 %v390
      %v942 = vunpack.c.l.b16 %v391
      %v943 = vunpack.c.l.b16 %v392
      %v944 = vunpack.c.l.b16 %v393
      %v945 = vunpack.c.l.b16 %v394
      %v946 = vunpack.c.l.b16 %v395
      %v947 = vunpack.c.l.b16 %v396
      %v948 = vpack.c.b16 %v877, %v876
      %v949 = vpack.c.b16 %v879, %v878
      %v950 = vpack.c.b16 %v881, %v880
      %v951 = vpack.c.b16 %v883, %v882
      %v952 = vpack.c.b16 %v885, %v884
      %v953 = vpack.c.b16 %v887, %v886
      %v954 = vpack.c.b16 %v889, %v888
      %v955 = vpack.c.b16 %v891, %v890
      %v956 = vpack.c.b16 %v893, %v892
      %v957 = vpack.c.b16 %v895, %v894
      %v958 = vpack.c.b16 %v897, %v896
      %v959 = vpack.c.b16 %v899, %v898
      %v960 = vpack.c.b16 %v901, %v900
      %v961 = vpack.c.b16 %v903, %v902
      %v962 = vpack.c.b16 %v905, %v904
      %v963 = vpack.c.b16 %v907, %v906
      %v964 = vpack.c.b16 %v909, %v908
      %v965 = vpack.c.b16 %v911, %v910
      %v966 = vpack.c.b16 %v913, %v912
      %v967 = vpack.c.b16 %v915, %v914
      %v968 = vpack.c.b16 %v917, %v916
      %v969 = vpack.c.b16 %v919, %v918
      %v970 = vpack.c.b16 %v921, %v920
      %v971 = vpack.c.b16 %v923, %v922
      %v972 = vpack.c.b16 %v925, %v924
      %v973 = vpack.c.b16 %v927, %v926
      %v974 = vpack.c.b16 %v929, %v928
      %v975 = vpack.c.b16 %v931, %v930
      %v976 = vpack.c.b16 %v933, %v932
      %v977 = vpack.c.b16 %v935, %v934
      %v978 = vpack.c.b16 %v937, %v936
      %v979 = vpack.c.b16 %v939, %v938
      %v980 = vpack.c.b16 %v941, %v940
      %v981 = vpack.c.b16 %v943, %v942
      %v982 = vpack.c.b16 %v945, %v944
      %v983 = vpack.c.b16 %v947, %v946
      %vm1020 = vcmask 523264
      %v1022 = vsel %vm1020, %v664, 0
      %v1025 = vsel %vm1020, %v669, 0
      %v1028 = vsel %vm1020, %v674, 0
      %v1031 = vsel %vm1020, %v679, 0
      %v1034 = vsel %vm1020, %v684, 0
      %v1037 = vsel %vm1020, %v689, 0
      %v1040 = vsel %vm1020, %v694, 0
      %v1043 = vsel %vm1020, %v699, 0
      %v1046 = vsel %vm1020, %v704, 0
      %v1049 = vsel %vm1020, %v709, 0
      %v1052 = vsel %vm1020, %v714, 0
      %v1055 = vsel %vm1020, %v719, 0
      %v1058 = vsel %vm1020, %v724, 0
      %v1061 = vsel %vm1020, %v729, 0
      %v1064 = vsel %vm1020, %v734, 0
      %v1067 = vsel %vm1020, %v739, 0
      %1069 = vmatprep.subr.bf16.mxu0 0
      %1070 = vmatpush1.bf16.msra.mxu0 %v955
      %1071 = vmatprep.subr.bf16.mxu0 0
      %1072 = vmatpush1.bf16.msra.mxu0 %v954
      %1073 = vmatprep.subr.bf16.mxu0 0
      %1074 = vmatpush1.bf16.msra.mxu0 %v953
      %1075 = vmatprep.subr.bf16.mxu0 0
      %1076 = vmatpush1.bf16.msra.mxu0 %v952
      %1077 = vmatprep.subr.bf16.mxu0 0
      %1078 = vmatpush1.bf16.msra.mxu0 %v951
      %1079 = vmatprep.subr.bf16.mxu0 0
      %1080 = vmatpush1.bf16.msra.mxu0 %v950
      %1081 = vmatprep.subr.bf16.mxu0 0
      %1082 = vmatpush1.bf16.msra.mxu0 %v949
      %1083 = vmatprep.subr.bf16.mxu0 0
      %1084 = vmatpush1.bf16.msra.mxu0 %v948
      %1085 = vmatprep.subr.bf16.mxu0 0
      %1086 = vmatpush2.bf16.msra.mxu0 %v963
      %1087 = vmatprep.subr.bf16.mxu0 0
      %1088 = vmatpush2.bf16.msra.mxu0 %v962
      %1089 = vmatprep.subr.bf16.mxu0 0
      %1090 = vmatpush2.bf16.msra.mxu0 %v961
      %1091 = vmatprep.subr.bf16.mxu0 0
      %1092 = vmatpush2.bf16.msra.mxu0 %v960
      %1093 = vmatprep.subr.bf16.mxu0 0
      %1094 = vmatpush2.bf16.msra.mxu0 %v959
      %1095 = vmatprep.subr.bf16.mxu0 0
      %1096 = vmatpush2.bf16.msra.mxu0 %v958
      %1097 = vmatprep.subr.bf16.mxu0 0
      %1098 = vmatpush2.bf16.msra.mxu0 %v957
      %1099 = vmatprep.subr.bf16.mxu0 0
      %1100 = vmatpush2.bf16.msra.mxu0 %v956
      %1101 = vmatprep.mubr.bf16.mxu0 %v661
      %1102 = vmatmul.mubr.bf16.gmra.mxu0 %v660
      %v1103 = vpop.f32.mrf.mxu0
      %v1104 = vadd.f32 %v402, %v1103
      %v1105 = vpop.f32.mrf.mxu0
      %v1106 = vpop.f32.mrf.mxu0
      %v1107 = vadd.f32 %v402, %v1106
      %v1108 = vpop.f32.mrf.mxu0
      %1109 = vmatprep.mubr.bf16.mxu0 %v666
      %1110 = vmatmul.mubr.bf16.gmra.mxu0 %v665
      %v1111 = vpop.f32.mrf.mxu0
      %v1112 = vadd.f32 %v402, %v1111
      %v1113 = vpop.f32.mrf.mxu0
      %v1114 = vpop.f32.mrf.mxu0
      %v1115 = vadd.f32 %v402, %v1114
      %v1116 = vpop.f32.mrf.mxu0
      %1117 = vmatprep.mubr.bf16.mxu0 %v671
      %1118 = vmatmul.mubr.bf16.gmra.mxu0 %v670
      %v1119 = vpop.f32.mrf.mxu0
      %v1120 = vadd.f32 %v402, %v1119
      %v1121 = vpop.f32.mrf.mxu0
      %v1122 = vpop.f32.mrf.mxu0
      %v1123 = vadd.f32 %v402, %v1122
      %v1124 = vpop.f32.mrf.mxu0
      %1125 = vmatprep.mubr.bf16.mxu0 %v676
      %1126 = vmatmul.mubr.bf16.gmra.mxu0 %v675
      %v1127 = vpop.f32.mrf.mxu0
      %v1128 = vadd.f32 %v402, %v1127
      %v1129 = vpop.f32.mrf.mxu0
      %v1130 = vpop.f32.mrf.mxu0
      %v1131 = vadd.f32 %v402, %v1130
      %v1132 = vpop.f32.mrf.mxu0
      %1133 = vmatprep.mubr.bf16.mxu0 %v681
      %1134 = vmatmul.mubr.bf16.gmra.mxu0 %v680
      %v1135 = vpop.f32.mrf.mxu0
      %v1136 = vadd.f32 %v402, %v1135
      %v1137 = vpop.f32.mrf.mxu0
      %v1138 = vpop.f32.mrf.mxu0
      %v1139 = vadd.f32 %v402, %v1138
      %v1140 = vpop.f32.mrf.mxu0
      %1141 = vmatprep.mubr.bf16.mxu0 %v686
      %1142 = vmatmul.mubr.bf16.gmra.mxu0 %v685
      %v1143 = vpop.f32.mrf.mxu0
      %v1144 = vadd.f32 %v402, %v1143
      %v1145 = vpop.f32.mrf.mxu0
      %v1146 = vpop.f32.mrf.mxu0
      %v1147 = vadd.f32 %v402, %v1146
      %v1148 = vpop.f32.mrf.mxu0
      %1149 = vmatprep.mubr.bf16.mxu0 %v691
      %1150 = vmatmul.mubr.bf16.gmra.mxu0 %v690
      %v1151 = vpop.f32.mrf.mxu0
      %v1152 = vadd.f32 %v402, %v1151
      %v1153 = vpop.f32.mrf.mxu0
      %v1154 = vpop.f32.mrf.mxu0
      %v1155 = vadd.f32 %v402, %v1154
      %v1156 = vpop.f32.mrf.mxu0
      %1157 = vmatprep.mubr.bf16.mxu0 %v696
      %1158 = vmatmul.mubr.bf16.gmra.mxu0 %v695
      %v1159 = vpop.f32.mrf.mxu0
      %v1160 = vadd.f32 %v402, %v1159
      %v1161 = vpop.f32.mrf.mxu0
      %v1162 = vpop.f32.mrf.mxu0
      %v1163 = vadd.f32 %v402, %v1162
      %v1164 = vpop.f32.mrf.mxu0
      %1165 = vmatprep.mubr.bf16.mxu0 %v701
      %1166 = vmatmul.mubr.bf16.gmra.mxu0 %v700
      %v1167 = vpop.f32.mrf.mxu0
      %v1168 = vadd.f32 %v402, %v1167
      %v1169 = vpop.f32.mrf.mxu0
      %v1170 = vpop.f32.mrf.mxu0
      %v1171 = vadd.f32 %v402, %v1170
      %v1172 = vpop.f32.mrf.mxu0
      %1173 = vmatprep.mubr.bf16.mxu0 %v706
      %1174 = vmatmul.mubr.bf16.gmra.mxu0 %v705
      %v1175 = vpop.f32.mrf.mxu0
      %v1176 = vadd.f32 %v402, %v1175
      %v1177 = vpop.f32.mrf.mxu0
      %v1178 = vpop.f32.mrf.mxu0
      %v1179 = vadd.f32 %v402, %v1178
      %v1180 = vpop.f32.mrf.mxu0
      %1181 = vmatprep.mubr.bf16.mxu0 %v711
      %1182 = vmatmul.mubr.bf16.gmra.mxu0 %v710
      %v1183 = vpop.f32.mrf.mxu0
      %v1184 = vadd.f32 %v402, %v1183
      %v1185 = vpop.f32.mrf.mxu0
      %v1186 = vpop.f32.mrf.mxu0
      %v1187 = vadd.f32 %v402, %v1186
      %v1188 = vpop.f32.mrf.mxu0
      %1189 = vmatprep.mubr.bf16.mxu0 %v716
      %1190 = vmatmul.mubr.bf16.gmra.mxu0 %v715
      %v1191 = vpop.f32.mrf.mxu0
      %v1192 = vadd.f32 %v402, %v1191
      %v1193 = vpop.f32.mrf.mxu0
      %v1194 = vpop.f32.mrf.mxu0
      %v1195 = vadd.f32 %v402, %v1194
      %v1196 = vpop.f32.mrf.mxu0
      %1197 = vmatprep.mubr.bf16.mxu0 %v721
      %1198 = vmatmul.mubr.bf16.gmra.mxu0 %v720
      %v1199 = vpop.f32.mrf.mxu0
      %v1200 = vadd.f32 %v402, %v1199
      %v1201 = vpop.f32.mrf.mxu0
      %v1202 = vpop.f32.mrf.mxu0
      %v1203 = vadd.f32 %v402, %v1202
      %v1204 = vpop.f32.mrf.mxu0
      %1205 = vmatprep.mubr.bf16.mxu0 %v726
      %1206 = vmatmul.mubr.bf16.gmra.mxu0 %v725
      %v1207 = vpop.f32.mrf.mxu0
      %v1208 = vadd.f32 %v402, %v1207
      %v1209 = vpop.f32.mrf.mxu0
      %v1210 = vpop.f32.mrf.mxu0
      %v1211 = vadd.f32 %v402, %v1210
      %v1212 = vpop.f32.mrf.mxu0
      %1213 = vmatprep.mubr.bf16.mxu0 %v731
      %1214 = vmatmul.mubr.bf16.gmra.mxu0 %v730
      %v1215 = vpop.f32.mrf.mxu0
      %v1216 = vadd.f32 %v402, %v1215
      %v1217 = vpop.f32.mrf.mxu0
      %v1218 = vpop.f32.mrf.mxu0
      %v1219 = vadd.f32 %v402, %v1218
      %v1220 = vpop.f32.mrf.mxu0
      %1221 = vmatprep.mubr.bf16.mxu0 %v736
      %1222 = vmatmul.mubr.bf16.gmra.mxu0 %v735
      %v1223 = vpop.f32.mrf.mxu0
      %v1224 = vadd.f32 %v402, %v1223
      %v1225 = vpop.f32.mrf.mxu0
      %v1226 = vpop.f32.mrf.mxu0
      %v1227 = vadd.f32 %v402, %v1226
      %v1228 = vpop.f32.mrf.mxu0
      %1229 = vdwg.mxu0
      %1230 = vmatprep.subr.bf16.mxu0 0
      %1231 = vmatpush1.bf16.msra.mxu0 %v971
      %1232 = vmatprep.subr.bf16.mxu0 0
      %1233 = vmatpush1.bf16.msra.mxu0 %v970
      %1234 = vmatprep.subr.bf16.mxu0 0
      %1235 = vmatpush1.bf16.msra.mxu0 %v969
      %1236 = vmatprep.subr.bf16.mxu0 0
      %1237 = vmatpush1.bf16.msra.mxu0 %v968
      %1238 = vmatprep.subr.bf16.mxu0 0
      %1239 = vmatpush1.bf16.msra.mxu0 %v967
      %1240 = vmatprep.subr.bf16.mxu0 0
      %1241 = vmatpush1.bf16.msra.mxu0 %v966
      %1242 = vmatprep.subr.bf16.mxu0 0
      %1243 = vmatpush1.bf16.msra.mxu0 %v965
      %1244 = vmatprep.subr.bf16.mxu0 0
      %1245 = vmatpush1.bf16.msra.mxu0 %v964
      %1246 = vmatprep.subr.bf16.mxu0 0
      %1247 = vmatpush2.bf16.msra.mxu0 %v979
      %1248 = vmatprep.subr.bf16.mxu0 0
      %1249 = vmatpush2.bf16.msra.mxu0 %v978
      %1250 = vmatprep.subr.bf16.mxu0 0
      %1251 = vmatpush2.bf16.msra.mxu0 %v977
      %1252 = vmatprep.subr.bf16.mxu0 0
      %1253 = vmatpush2.bf16.msra.mxu0 %v976
      %1254 = vmatprep.subr.bf16.mxu0 0
      %1255 = vmatpush2.bf16.msra.mxu0 %v975
      %1256 = vmatprep.subr.bf16.mxu0 0
      %1257 = vmatpush2.bf16.msra.mxu0 %v974
      %1258 = vmatprep.subr.bf16.mxu0 0
      %1259 = vmatpush2.bf16.msra.mxu0 %v973
      %1260 = vmatprep.subr.bf16.mxu0 0
      %1261 = vmatpush2.bf16.msra.mxu0 %v972
      %1262 = vmatprep.mubr.bf16.mxu0 %v663
      %1263 = vmatmul.mubr.bf16.gmra.mxu0 %v662
      %v1264 = vpop.f32.mrf.mxu0
      %v1265 = vadd.f32 %v1104, %v1264
      %v1266 = vpop.f32.mrf.mxu0
      %v1267 = vpop.f32.mrf.mxu0
      %v1268 = vadd.f32 %v1107, %v1267
      %v1269 = vpop.f32.mrf.mxu0
      %1270 = vmatprep.mubr.bf16.mxu0 %v668
      %1271 = vmatmul.mubr.bf16.gmra.mxu0 %v667
      %v1272 = vpop.f32.mrf.mxu0
      %v1273 = vadd.f32 %v1112, %v1272
      %v1274 = vpop.f32.mrf.mxu0
      %v1275 = vpop.f32.mrf.mxu0
      %v1276 = vadd.f32 %v1115, %v1275
      %v1277 = vpop.f32.mrf.mxu0
      %1278 = vmatprep.mubr.bf16.mxu0 %v673
      %1279 = vmatmul.mubr.bf16.gmra.mxu0 %v672
      %v1280 = vpop.f32.mrf.mxu0
      %v1281 = vadd.f32 %v1120, %v1280
      %v1282 = vpop.f32.mrf.mxu0
      %v1283 = vpop.f32.mrf.mxu0
      %v1284 = vadd.f32 %v1123, %v1283
      %v1285 = vpop.f32.mrf.mxu0
      %1286 = vmatprep.mubr.bf16.mxu0 %v678
      %1287 = vmatmul.mubr.bf16.gmra.mxu0 %v677
      %v1288 = vpop.f32.mrf.mxu0
      %v1289 = vadd.f32 %v1128, %v1288
      %v1290 = vpop.f32.mrf.mxu0
      %v1291 = vpop.f32.mrf.mxu0
      %v1292 = vadd.f32 %v1131, %v1291
      %v1293 = vpop.f32.mrf.mxu0
      %1294 = vmatprep.mubr.bf16.mxu0 %v683
      %1295 = vmatmul.mubr.bf16.gmra.mxu0 %v682
      %v1296 = vpop.f32.mrf.mxu0
      %v1297 = vadd.f32 %v1136, %v1296
      %v1298 = vpop.f32.mrf.mxu0
      %v1299 = vpop.f32.mrf.mxu0
      %v1300 = vadd.f32 %v1139, %v1299
      %v1301 = vpop.f32.mrf.mxu0
      %1302 = vmatprep.mubr.bf16.mxu0 %v688
      %1303 = vmatmul.mubr.bf16.gmra.mxu0 %v687
      %v1304 = vpop.f32.mrf.mxu0
      %v1305 = vadd.f32 %v1144, %v1304
      %v1306 = vpop.f32.mrf.mxu0
      %v1307 = vpop.f32.mrf.mxu0
      %v1308 = vadd.f32 %v1147, %v1307
      %v1309 = vpop.f32.mrf.mxu0
      %1310 = vmatprep.mubr.bf16.mxu0 %v693
      %1311 = vmatmul.mubr.bf16.gmra.mxu0 %v692
      %v1312 = vpop.f32.mrf.mxu0
      %v1313 = vadd.f32 %v1152, %v1312
      %v1314 = vpop.f32.mrf.mxu0
      %v1315 = vpop.f32.mrf.mxu0
      %v1316 = vadd.f32 %v1155, %v1315
      %v1317 = vpop.f32.mrf.mxu0
      %1318 = vmatprep.mubr.bf16.mxu0 %v698
      %1319 = vmatmul.mubr.bf16.gmra.mxu0 %v697
      %v1320 = vpop.f32.mrf.mxu0
      %v1321 = vadd.f32 %v1160, %v1320
      %v1322 = vpop.f32.mrf.mxu0
      %v1323 = vpop.f32.mrf.mxu0
      %v1324 = vadd.f32 %v1163, %v1323
      %v1325 = vpop.f32.mrf.mxu0
      %1326 = vmatprep.mubr.bf16.mxu0 %v703
      %1327 = vmatmul.mubr.bf16.gmra.mxu0 %v702
      %v1328 = vpop.f32.mrf.mxu0
      %v1329 = vadd.f32 %v1168, %v1328
      %v1330 = vpop.f32.mrf.mxu0
      %v1331 = vpop.f32.mrf.mxu0
      %v1332 = vadd.f32 %v1171, %v1331
      %v1333 = vpop.f32.mrf.mxu0
      %1334 = vmatprep.mubr.bf16.mxu0 %v708
      %1335 = vmatmul.mubr.bf16.gmra.mxu0 %v707
      %v1336 = vpop.f32.mrf.mxu0
      %v1337 = vadd.f32 %v1176, %v1336
      %v1338 = vpop.f32.mrf.mxu0
      %v1339 = vpop.f32.mrf.mxu0
      %v1340 = vadd.f32 %v1179, %v1339
      %v1341 = vpop.f32.mrf.mxu0
      %1342 = vmatprep.mubr.bf16.mxu0 %v713
      %1343 = vmatmul.mubr.bf16.gmra.mxu0 %v712
      %v1344 = vpop.f32.mrf.mxu0
      %v1345 = vadd.f32 %v1184, %v1344
      %v1346 = vpop.f32.mrf.mxu0
      %v1347 = vpop.f32.mrf.mxu0
      %v1348 = vadd.f32 %v1187, %v1347
      %v1349 = vpop.f32.mrf.mxu0
      %1350 = vmatprep.mubr.bf16.mxu0 %v718
      %1351 = vmatmul.mubr.bf16.gmra.mxu0 %v717
      %v1352 = vpop.f32.mrf.mxu0
      %v1353 = vadd.f32 %v1192, %v1352
      %v1354 = vpop.f32.mrf.mxu0
      %v1355 = vpop.f32.mrf.mxu0
      %v1356 = vadd.f32 %v1195, %v1355
      %v1357 = vpop.f32.mrf.mxu0
      %1358 = vmatprep.mubr.bf16.mxu0 %v723
      %1359 = vmatmul.mubr.bf16.gmra.mxu0 %v722
      %v1360 = vpop.f32.mrf.mxu0
      %v1361 = vadd.f32 %v1200, %v1360
      %v1362 = vpop.f32.mrf.mxu0
      %v1363 = vpop.f32.mrf.mxu0
      %v1364 = vadd.f32 %v1203, %v1363
      %v1365 = vpop.f32.mrf.mxu0
      %1366 = vmatprep.mubr.bf16.mxu0 %v728
      %1367 = vmatmul.mubr.bf16.gmra.mxu0 %v727
      %v1368 = vpop.f32.mrf.mxu0
      %v1369 = vadd.f32 %v1208, %v1368
      %v1370 = vpop.f32.mrf.mxu0
      %v1371 = vpop.f32.mrf.mxu0
      %v1372 = vadd.f32 %v1211, %v1371
      %v1373 = vpop.f32.mrf.mxu0
      %1374 = vmatprep.mubr.bf16.mxu0 %v733
      %1375 = vmatmul.mubr.bf16.gmra.mxu0 %v732
      %v1376 = vpop.f32.mrf.mxu0
      %v1377 = vadd.f32 %v1216, %v1376
      %v1378 = vpop.f32.mrf.mxu0
      %v1379 = vpop.f32.mrf.mxu0
      %v1380 = vadd.f32 %v1219, %v1379
      %v1381 = vpop.f32.mrf.mxu0
      %1382 = vmatprep.mubr.bf16.mxu0 %v738
      %1383 = vmatmul.mubr.bf16.gmra.mxu0 %v737
      %v1384 = vpop.f32.mrf.mxu0
      %v1385 = vadd.f32 %v1224, %v1384
      %v1386 = vpop.f32.mrf.mxu0
      %v1387 = vpop.f32.mrf.mxu0
      %v1388 = vadd.f32 %v1227, %v1387
      %v1389 = vpop.f32.mrf.mxu0
      %1390 = vdwg.mxu0
      %1391 = vmatprep.subr.bf16.mxu0 0
      %1392 = vmatpush1.bf16.msra.mxu0 0
      %1393 = vmatprep.subr.bf16.mxu0 0
      %1394 = vmatpush1.bf16.msra.mxu0 0
      %1395 = vmatprep.subr.bf16.mxu0 0
      %1396 = vmatpush1.bf16.msra.mxu0 0
      %1397 = vmatprep.subr.bf16.mxu0 0
      %1398 = vmatpush1.bf16.msra.mxu0 0
      %1399 = vmatprep.subr.bf16.mxu0 0
      %1400 = vmatpush1.bf16.msra.mxu0 %v983
      %1401 = vmatprep.subr.bf16.mxu0 0
      %1402 = vmatpush1.bf16.msra.mxu0 %v982
      %1403 = vmatprep.subr.bf16.mxu0 0
      %1404 = vmatpush1.bf16.msra.mxu0 %v981
      %1405 = vmatprep.subr.bf16.mxu0 0
      %1406 = vmatpush1.bf16.msra.mxu0 %v980
      %1407 = vmatprep.subr.bf16.mxu0 0
      %1408 = vmatpush2.bf16.msra.mxu0 0
      %1409 = vmatprep.subr.bf16.mxu0 0
      %1410 = vmatpush2.bf16.msra.mxu0 0
      %1411 = vmatprep.subr.bf16.mxu0 0
      %1412 = vmatpush2.bf16.msra.mxu0 0
      %1413 = vmatprep.subr.bf16.mxu0 0
      %1414 = vmatpush2.bf16.msra.mxu0 0
      %1415 = vmatprep.subr.bf16.mxu0 0
      %1416 = vmatpush2.bf16.msra.mxu0 0
      %1417 = vmatprep.subr.bf16.mxu0 0
      %1418 = vmatpush2.bf16.msra.mxu0 0
      %1419 = vmatprep.subr.bf16.mxu0 0
      %1420 = vmatpush2.bf16.msra.mxu0 0
      %1421 = vmatprep.subr.bf16.mxu0 0
      %1422 = vmatpush2.bf16.msra.mxu0 0
      %1423 = vmatprep.mubr.bf16.mxu0 0
      %1424 = vmatmul.mubr.bf16.gmra.mxu0 %v1022
      %v1425 = vpop.f32.mrf.mxu0
      %v1426 = vadd.f32 %v1265, %v1425
      %v1427 = vpop.f32.mrf.mxu0
      %v1428 = vpop.f32.mrf.mxu0
      %v1429 = vadd.f32 %v1268, %v1428
      %v1430 = vpop.f32.mrf.mxu0
      %1431 = vmatprep.mubr.bf16.mxu0 0
      %1432 = vmatmul.mubr.bf16.gmra.mxu0 %v1025
      %v1433 = vpop.f32.mrf.mxu0
      %v1434 = vadd.f32 %v1273, %v1433
      %v1435 = vpop.f32.mrf.mxu0
      %v1436 = vpop.f32.mrf.mxu0
      %v1437 = vadd.f32 %v1276, %v1436
      %v1438 = vpop.f32.mrf.mxu0
      %1439 = vmatprep.mubr.bf16.mxu0 0
      %1440 = vmatmul.mubr.bf16.gmra.mxu0 %v1028
      %v1441 = vpop.f32.mrf.mxu0
      %v1442 = vadd.f32 %v1281, %v1441
      %v1443 = vpop.f32.mrf.mxu0
      %v1444 = vpop.f32.mrf.mxu0
      %v1445 = vadd.f32 %v1284, %v1444
      %v1446 = vpop.f32.mrf.mxu0
      %1447 = vmatprep.mubr.bf16.mxu0 0
      %1448 = vmatmul.mubr.bf16.gmra.mxu0 %v1031
      %v1449 = vpop.f32.mrf.mxu0
      %v1450 = vadd.f32 %v1289, %v1449
      %v1451 = vpop.f32.mrf.mxu0
      %v1452 = vpop.f32.mrf.mxu0
      %v1453 = vadd.f32 %v1292, %v1452
      %v1454 = vpop.f32.mrf.mxu0
      %1455 = vmatprep.mubr.bf16.mxu0 0
      %1456 = vmatmul.mubr.bf16.gmra.mxu0 %v1034
      %v1457 = vpop.f32.mrf.mxu0
      %v1458 = vadd.f32 %v1297, %v1457
      %v1459 = vpop.f32.mrf.mxu0
      %v1460 = vpop.f32.mrf.mxu0
      %v1461 = vadd.f32 %v1300, %v1460
      %v1462 = vpop.f32.mrf.mxu0
      %1463 = vmatprep.mubr.bf16.mxu0 0
      %1464 = vmatmul.mubr.bf16.gmra.mxu0 %v1037
      %v1465 = vpop.f32.mrf.mxu0
      %v1466 = vadd.f32 %v1305, %v1465
      %v1467 = vpop.f32.mrf.mxu0
      %v1468 = vpop.f32.mrf.mxu0
      %v1469 = vadd.f32 %v1308, %v1468
      %v1470 = vpop.f32.mrf.mxu0
      %1471 = vmatprep.mubr.bf16.mxu0 0
      %1472 = vmatmul.mubr.bf16.gmra.mxu0 %v1040
      %v1473 = vpop.f32.mrf.mxu0
      %v1474 = vadd.f32 %v1313, %v1473
      %v1475 = vpop.f32.mrf.mxu0
      %v1476 = vpop.f32.mrf.mxu0
      %v1477 = vadd.f32 %v1316, %v1476
      %v1478 = vpop.f32.mrf.mxu0
      %1479 = vmatprep.mubr.bf16.mxu0 0
      %1480 = vmatmul.mubr.bf16.gmra.mxu0 %v1043
      %v1481 = vpop.f32.mrf.mxu0
      %v1482 = vadd.f32 %v1321, %v1481
      %v1483 = vpop.f32.mrf.mxu0
      %v1484 = vpop.f32.mrf.mxu0
      %v1485 = vadd.f32 %v1324, %v1484
      %v1486 = vpop.f32.mrf.mxu0
      %1487 = vmatprep.mubr.bf16.mxu0 0
      %1488 = vmatmul.mubr.bf16.gmra.mxu0 %v1046
      %v1489 = vpop.f32.mrf.mxu0
      %v1490 = vadd.f32 %v1329, %v1489
      %v1491 = vpop.f32.mrf.mxu0
      %v1492 = vpop.f32.mrf.mxu0
      %v1493 = vadd.f32 %v1332, %v1492
      %v1494 = vpop.f32.mrf.mxu0
      %1495 = vmatprep.mubr.bf16.mxu0 0
      %1496 = vmatmul.mubr.bf16.gmra.mxu0 %v1049
      %v1497 = vpop.f32.mrf.mxu0
      %v1498 = vadd.f32 %v1337, %v1497
      %v1499 = vpop.f32.mrf.mxu0
      %v1500 = vpop.f32.mrf.mxu0
      %v1501 = vadd.f32 %v1340, %v1500
      %v1502 = vpop.f32.mrf.mxu0
      %1503 = vmatprep.mubr.bf16.mxu0 0
      %1504 = vmatmul.mubr.bf16.gmra.mxu0 %v1052
      %v1505 = vpop.f32.mrf.mxu0
      %v1506 = vadd.f32 %v1345, %v1505
      %v1507 = vpop.f32.mrf.mxu0
      %v1508 = vpop.f32.mrf.mxu0
      %v1509 = vadd.f32 %v1348, %v1508
      %v1510 = vpop.f32.mrf.mxu0
      %1511 = vmatprep.mubr.bf16.mxu0 0
      %1512 = vmatmul.mubr.bf16.gmra.mxu0 %v1055
      %v1513 = vpop.f32.mrf.mxu0
      %v1514 = vadd.f32 %v1353, %v1513
      %v1515 = vpop.f32.mrf.mxu0
      %v1516 = vpop.f32.mrf.mxu0
      %v1517 = vadd.f32 %v1356, %v1516
      %v1518 = vpop.f32.mrf.mxu0
      %1519 = vmatprep.mubr.bf16.mxu0 0
      %1520 = vmatmul.mubr.bf16.gmra.mxu0 %v1058
      %v1521 = vpop.f32.mrf.mxu0
      %v1522 = vadd.f32 %v1361, %v1521
      %v1523 = vpop.f32.mrf.mxu0
      %v1524 = vpop.f32.mrf.mxu0
      %v1525 = vadd.f32 %v1364, %v1524
      %v1526 = vpop.f32.mrf.mxu0
      %1527 = vmatprep.mubr.bf16.mxu0 0
      %1528 = vmatmul.mubr.bf16.gmra.mxu0 %v1061
      %v1529 = vpop.f32.mrf.mxu0
      %v1530 = vadd.f32 %v1369, %v1529
      %v1531 = vpop.f32.mrf.mxu0
      %v1532 = vpop.f32.mrf.mxu0
      %v1533 = vadd.f32 %v1372, %v1532
      %v1534 = vpop.f32.mrf.mxu0
      %1535 = vmatprep.mubr.bf16.mxu0 0
      %1536 = vmatmul.mubr.bf16.gmra.mxu0 %v1064
      %v1537 = vpop.f32.mrf.mxu0
      %v1538 = vadd.f32 %v1377, %v1537
      %v1539 = vpop.f32.mrf.mxu0
      %v1540 = vpop.f32.mrf.mxu0
      %v1541 = vadd.f32 %v1380, %v1540
      %v1542 = vpop.f32.mrf.mxu0
      %1543 = vmatprep.mubr.bf16.mxu0 0
      %1544 = vmatmul.mubr.bf16.gmra.mxu0 %v1067
      %v1545 = vpop.f32.mrf.mxu0
      %v1546 = vadd.f32 %v1385, %v1545
      %v1547 = vpop.f32.mrf.mxu0
      %v1548 = vpop.f32.mrf.mxu0
      %v1549 = vadd.f32 %v1388, %v1548
      %v1550 = vpop.f32.mrf.mxu0
      %1551 = vdwg.mxu0
      %v1552 = vmax.f32 %v1426, 0.0
      %v1553 = vmax.f32 %v1429, 0.0
      %v1554 = vmax.f32 %v1434, 0.0
      %v1555 = vmax.f32 %v1437, 0.0
      %v1556 = vmax.f32 %v1442, 0.0
      %v1557 = vmax.f32 %v1445, 0.0
      %v1558 = vmax.f32 %v1450, 0.0
      %v1559 = vmax.f32 %v1453, 0.0
      %v1560 = vmax.f32 %v1458, 0.0
      %v1561 = vmax.f32 %v1461, 0.0
      %v1562 = vmax.f32 %v1466, 0.0
      %v1563 = vmax.f32 %v1469, 0.0
      %v1564 = vmax.f32 %v1474, 0.0
      %v1565 = vmax.f32 %v1477, 0.0
      %v1566 = vmax.f32 %v1482, 0.0
      %v1567 = vmax.f32 %v1485, 0.0
      %v1568 = vmax.f32 %v1490, 0.0
      %v1569 = vmax.f32 %v1493, 0.0
      %v1570 = vmax.f32 %v1498, 0.0
      %v1571 = vmax.f32 %v1501, 0.0
      %v1572 = vmax.f32 %v1506, 0.0
      %v1573 = vmax.f32 %v1509, 0.0
      %v1574 = vmax.f32 %v1514, 0.0
      %v1575 = vmax.f32 %v1517, 0.0
      %v1576 = vmax.f32 %v1522, 0.0
      %v1577 = vmax.f32 %v1525, 0.0
      %v1578 = vmax.f32 %v1530, 0.0
      %v1579 = vmax.f32 %v1533, 0.0
      %v1580 = vmax.f32 %v1538, 0.0
      %v1581 = vmax.f32 %v1541, 0.0
      %v1582 = vmax.f32 %v1546, 0.0
      %v1583 = vmax.f32 %v1549, 0.0
      %v1584 = vpack.c.bf16 %v1553, %v1552
      %v1585 = vpack.c.bf16 %v1555, %v1554
      %v1586 = vpack.c.bf16 %v1557, %v1556
      %v1587 = vpack.c.bf16 %v1559, %v1558
      %v1588 = vpack.c.bf16 %v1561, %v1560
      %v1589 = vpack.c.bf16 %v1563, %v1562
      %v1590 = vpack.c.bf16 %v1565, %v1564
      %v1591 = vpack.c.bf16 %v1567, %v1566
      %v1592 = vpack.c.bf16 %v1569, %v1568
      %v1593 = vpack.c.bf16 %v1571, %v1570
      %v1594 = vpack.c.bf16 %v1573, %v1572
      %v1595 = vpack.c.bf16 %v1575, %v1574
      %v1596 = vpack.c.bf16 %v1577, %v1576
      %v1597 = vpack.c.bf16 %v1579, %v1578
      %v1598 = vpack.c.bf16 %v1581, %v1580
      %v1599 = vpack.c.bf16 %v1583, %v1582
      %v1616 = vunpack.c.l.b16 %v1584
      %v1617 = vunpack.c.h.b16 %v1584
      %v1618 = vunpack.c.l.b16 %v1585
      %v1619 = vunpack.c.h.b16 %v1585
      %v1620 = vunpack.c.l.b16 %v1586
      %v1621 = vunpack.c.h.b16 %v1586
      %v1622 = vunpack.c.l.b16 %v1587
      %v1623 = vunpack.c.h.b16 %v1587
      %v1624 = vunpack.c.l.b16 %v1588
      %v1625 = vunpack.c.h.b16 %v1588
      %v1626 = vunpack.c.l.b16 %v1589
      %v1627 = vunpack.c.h.b16 %v1589
      %v1628 = vunpack.c.l.b16 %v1590
      %v1629 = vunpack.c.h.b16 %v1590
      %v1630 = vunpack.c.l.b16 %v1591
      %v1631 = vunpack.c.h.b16 %v1591
      %v1632 = vunpack.c.l.b16 %v1592
      %v1633 = vunpack.c.h.b16 %v1592
      %v1634 = vunpack.c.l.b16 %v1593
      %v1635 = vunpack.c.h.b16 %v1593
      %v1636 = vunpack.c.l.b16 %v1594
      %v1637 = vunpack.c.h.b16 %v1594
      %v1638 = vunpack.c.l.b16 %v1595
      %v1639 = vunpack.c.h.b16 %v1595
      %v1640 = vunpack.c.l.b16 %v1596
      %v1641 = vunpack.c.h.b16 %v1596
      %v1642 = vunpack.c.l.b16 %v1597
      %v1643 = vunpack.c.h.b16 %v1597
      %v1644 = vunpack.c.l.b16 %v1598
      %v1645 = vunpack.c.h.b16 %v1598
      %v1646 = vunpack.c.l.b16 %v1599
      %v1647 = vunpack.c.h.b16 %v1599
      %v1648 = vpack.c.b16 %v1616, %v1616
      %v1649 = vpack.c.b16 %v1617, %v1617
      %v1650 = vpack.c.b16 %v1618, %v1618
      %v1651 = vpack.c.b16 %v1619, %v1619
      %v1652 = vpack.c.b16 %v1620, %v1620
      %v1653 = vpack.c.b16 %v1621, %v1621
      %v1654 = vpack.c.b16 %v1622, %v1622
      %v1655 = vpack.c.b16 %v1623, %v1623
      %v1656 = vpack.c.b16 %v1624, %v1624
      %v1657 = vpack.c.b16 %v1625, %v1625
      %v1658 = vpack.c.b16 %v1626, %v1626
      %v1659 = vpack.c.b16 %v1627, %v1627
      %v1660 = vpack.c.b16 %v1628, %v1628
      %v1661 = vpack.c.b16 %v1629, %v1629
      %v1662 = vpack.c.b16 %v1630, %v1630
      %v1663 = vpack.c.b16 %v1631, %v1631
      %v1664 = vpack.c.b16 %v1632, %v1632
      %v1665 = vpack.c.b16 %v1633, %v1633
      %v1666 = vpack.c.b16 %v1634, %v1634
      %v1667 = vpack.c.b16 %v1635, %v1635
      %v1668 = vpack.c.b16 %v1636, %v1636
      %v1669 = vpack.c.b16 %v1637, %v1637
      %v1670 = vpack.c.b16 %v1638, %v1638
      %v1671 = vpack.c.b16 %v1639, %v1639
      %v1672 = vpack.c.b16 %v1640, %v1640
      %v1673 = vpack.c.b16 %v1641, %v1641
      %v1674 = vpack.c.b16 %v1642, %v1642
      %v1675 = vpack.c.b16 %v1643, %v1643
      %v1676 = vpack.c.b16 %v1644, %v1644
      %v1677 = vpack.c.b16 %v1645, %v1645
      %v1678 = vpack.c.b16 %v1646, %v1646
      %v1679 = vpack.c.b16 %v1647, %v1647
      %1712 = vst [vmem:[%s226] sm:$0xf] %v1648
      %1713 = vst [vmem:[%s226 + $0x4] sm:$0xf] %v1649
      %1714 = vst [vmem:[%s226 + $0x8] sm:$0xf] %v1650
      %1715 = vst [vmem:[%s226 + $0xc] sm:$0xf] %v1651
      %1716 = vst [vmem:[%s226 + $0x10] sm:$0xf] %v1652
      %1717 = vst [vmem:[%s226 + $0x14] sm:$0xf] %v1653
      %1718 = vst [vmem:[%s226 + $0x18] sm:$0xf] %v1654
      %1719 = vst [vmem:[%s226 + $0x1c] sm:$0xf] %v1655
      %1720 = vst [vmem:[%s226 + $0x20] sm:$0xf] %v1656
      %1721 = vst [vmem:[%s226 + $0x24] sm:$0xf] %v1657
      %1722 = vst [vmem:[%s226 + $0x28] sm:$0xf] %v1658
      %1723 = vst [vmem:[%s226 + $0x2c] sm:$0xf] %v1659
      %1724 = vst [vmem:[%s226 + $0x30] sm:$0xf] %v1660
      %1725 = vst [vmem:[%s226 + $0x34] sm:$0xf] %v1661
      %1726 = vst [vmem:[%s226 + $0x38] sm:$0xf] %v1662
      %1727 = vst [vmem:[%s226 + $0x3c] sm:$0xf] %v1663
      %1728 = vst [vmem:[%s226 + $0x40] sm:$0xf] %v1664
      %1729 = vst [vmem:[%s226 + $0x44] sm:$0xf] %v1665
      %1730 = vst [vmem:[%s226 + $0x48] sm:$0xf] %v1666
      %1731 = vst [vmem:[%s226 + $0x4c] sm:$0xf] %v1667
      %1732 = vst [vmem:[%s226 + $0x50] sm:$0xf] %v1668
      %1733 = vst [vmem:[%s226 + $0x54] sm:$0xf] %v1669
      %1734 = vst [vmem:[%s226 + $0x58] sm:$0xf] %v1670
      %1735 = vst [vmem:[%s226 + $0x5c] sm:$0xf] %v1671
      %1736 = vst [vmem:[%s226 + $0x60] sm:$0xf] %v1672
      %1737 = vst [vmem:[%s226 + $0x64] sm:$0xf] %v1673
      %1738 = vst [vmem:[%s226 + $0x68] sm:$0xf] %v1674
      %1739 = vst [vmem:[%s226 + $0x6c] sm:$0xf] %v1675
      %1740 = vst [vmem:[%s226 + $0x70] sm:$0xf] %v1676
      %1741 = vst [vmem:[%s226 + $0x74] sm:$0xf] %v1677
      %1742 = vst [vmem:[%s226 + $0x78] sm:$0xf] %v1678
      %1743 = vst [vmem:[%s226 + $0x7c] sm:$0xf] %v1679
      %s1744 = smul.u32 32, %s19
      %p1745 = scmp.lt.s32.totalorder %s1744, 63
      %s1746 = scalar_select %p1745, %s1744, 63
      %p1747 = scmp.lt.s32.totalorder %s18, 0
      %s1748 = scalar_select %p1747, %s18, 0
      %s1749 = sadd.s32 %s1748, %s1746
      %s1750 = smul.addr %s1749, 4
      %s1751 = scalar_lea.vmem %s3, %s1750
      // Predicated region
      $region33: #{forward.9} parent=31 // pred_check
        %p1752 = pneg %p124
      $region34: #{forward.9} parent=31 // pred_check_branch
        %1754 = sbr.rel (%p1752) target = $region36
      $region35: #{forward.9} parent=31 // pred_region
        %s1755 = smul.u32 32, %s19
      $region36: #{forward.9} parent=31 // pred_fallthru
        _
    $region32: #{forward.9} parent=5 // pred_fallthru
      _
    %p1756 = scmp.le.s32.totalorder 2, %s9
    // Predicated region
    $region37: #{forward.9} parent=5 // pred_check
      %p1757 = pneg %p1756
    $region38: #{forward.9} parent=5 // pred_check_branch
      %1759 = sbr.rel (%p1757) target = $region40
    $region39: #{forward.9} parent=5 // pred_region
      %s1760 = ssub.s32 %s9, 2
      // Predicated region
      $region41: #{forward.9} parent=39 // pred_check
        %p1761 = pneg %p130
      $region42: #{forward.9} parent=39 // pred_check_branch
        %1763 = sbr.rel (%p1761) target = $region44
      $region43: #{forward.9} parent=39 // pred_region
        %s1764 = smul.u32 32, %s21
        %p1765 = scmp.lt.s32.totalorder %s1764, 63
        %s1766 = scalar_select %p1765, %s1764, 63
        %p1767 = scmp.lt.s32.totalorder %s20, 0
        %s1768 = scalar_select %p1767, %s20, 0
        %s1769 = sadd.s32 %s1768, %s1766
        %s1770 = smul.addr %s1769, 4
        %s1771 = scalar_lea.vmem %s3, %s1770
      $region44: #{forward.9} parent=39 // pred_fallthru
        _
    $region40: #{forward.9} parent=5 // pred_fallthru
      _
  $region6: #{forward.9} parent=0 // loop_footer
    %s13 = sadd.s32 1, %s9
  $region7: #{forward.9} parent=0 // loop_footer_branch
    %8 = sbr.rel target = $region3
  $region8: #{forward.9} parent=0 // loop_exit
    _

// kernel: forward.10
$region0: #{forward.10}
  #allocation0 [shape = 'u32[]', space=smem, size = 0x4, offset = 0x4, fixed_abs, tag = 'smem constant byte address 0x4 - core index']
  #allocation1 [shape = 'u32[144,128]{1,0:T(1,128)}', space=vmem, size = 0x12000, scoped, tag = 'internal scratch']
  %s0 = inlined_call_operand.vmem [shape: bf16[128,576], index: 0, kind: input, shape index: {}]
  %s1 = inlined_call_operand.vmem [shape: bf16[576,128], index: 1, kind: input, shape index: {}]
  %s2 = inlined_call_operand.vmem [shape: f32[1,128], index: 2, kind: input, shape index: {}]
  %s3 = inlined_call_operand.vmem [shape: bf16[128,128], index: 3, kind: output, shape index: {}]
  %s4 = sld [smem:[#allocation0]]
  $region22: #{forward.10} parent=0
    _
  %s6 = ssub.s32 1, %s4
  %s7 = scalar_select 0, %s6, %s4
  // Predicated region
  $region2: #{forward.10} parent=0 // pred_check
    _
  $region3: #{forward.10} parent=0 // pred_check_branch
    %9 = sbr.rel (0) target = $region5
  $region4: #{forward.10} parent=0 // pred_region
    _
  $region5: #{forward.10} parent=0 // pred_fallthru
    _
  // Predicated region
  $region6: #{forward.10} parent=0 // pred_check
    _
  $region7: #{forward.10} parent=0 // pred_check_branch
    %11 = sbr.rel (0) target = $region9
  $region8: #{forward.10} parent=0 // pred_region
    _
  $region9: #{forward.10} parent=0 // pred_fallthru
    _
  // Predicated region
  $region10: #{forward.10} parent=0 // pred_check
    _
  $region11: #{forward.10} parent=0 // pred_check_branch
    %13 = sbr.rel (0) target = $region13
  $region12: #{forward.10} parent=0 // pred_region
    _
  $region13: #{forward.10} parent=0 // pred_fallthru
    _
  %v15 = vld [vmem:[%s0] sm:$0xff]
  %v16 = vld [vmem:[%s0 + $0x8] sm:$0xff]
  %v17 = vld [vmem:[%s0 + $0x10] sm:$0xf]
  %v18 = vld [vmem:[%s0 + $0x14] sm:$0xff]
  %v19 = vld [vmem:[%s0 + $0x1c] sm:$0xff]
  %v20 = vld [vmem:[%s0 + $0x24] sm:$0xf]
  %v21 = vld [vmem:[%s0 + $0x28] sm:$0xff]
  %v22 = vld [vmem:[%s0 + $0x30] sm:$0xff]
  %v23 = vld [vmem:[%s0 + $0x38] sm:$0xf]
  %v24 = vld [vmem:[%s0 + $0x3c] sm:$0xff]
  %v25 = vld [vmem:[%s0 + $0x44] sm:$0xff]
  %v26 = vld [vmem:[%s0 + $0x4c] sm:$0xf]
  %v27 = vld [vmem:[%s0 + $0x50] sm:$0xff]
  %v28 = vld [vmem:[%s0 + $0x58] sm:$0xff]
  %v29 = vld [vmem:[%s0 + $0x60] sm:$0xf]
  %v30 = vld [vmem:[%s0 + $0x64] sm:$0xff]
  %v31 = vld [vmem:[%s0 + $0x6c] sm:$0xff]
  %v32 = vld [vmem:[%s0 + $0x74] sm:$0xf]
  %v33 = vld [vmem:[%s0 + $0x78] sm:$0xff]
  %v34 = vld [vmem:[%s0 + $0x80] sm:$0xff]
  %v35 = vld [vmem:[%s0 + $0x88] sm:$0xf]
  %v36 = vld [vmem:[%s0 + $0x8c] sm:$0xff]
  %v37 = vld [vmem:[%s0 + $0x94] sm:$0xff]
  %v38 = vld [vmem:[%s0 + $0x9c] sm:$0xf]
  %v39 = vld [vmem:[%s0 + $0xa0] sm:$0xff]
  %v40 = vld [vmem:[%s0 + $0xa8] sm:$0xff]
  %v41 = vld [vmem:[%s0 + $0xb0] sm:$0xf]
  %v42 = vld [vmem:[%s0 + $0xb4] sm:$0xff]
  %v43 = vld [vmem:[%s0 + $0xbc] sm:$0xff]
  %v44 = vld [vmem:[%s0 + $0xc4] sm:$0xf]
  %v45 = vld [vmem:[%s0 + $0xc8] sm:$0xff]
  %v46 = vld [vmem:[%s0 + $0xd0] sm:$0xff]
  %v47 = vld [vmem:[%s0 + $0xd8] sm:$0xf]
  %v48 = vld [vmem:[%s0 + $0xdc] sm:$0xff]
  %v49 = vld [vmem:[%s0 + $0xe4] sm:$0xff]
  %v50 = vld [vmem:[%s0 + $0xec] sm:$0xf]
  %v51 = vld [vmem:[%s0 + $0xf0] sm:$0xff]
  %v52 = vld [vmem:[%s0 + $0xf8] sm:$0xff]
  %v53 = vld [vmem:[%s0 + $0x100] sm:$0xf]
  %v54 = vld [vmem:[%s0 + $0x104] sm:$0xff]
  %v55 = vld [vmem:[%s0 + $0x10c] sm:$0xff]
  %v56 = vld [vmem:[%s0 + $0x114] sm:$0xf]
  %v57 = vld [vmem:[%s0 + $0x118] sm:$0xff]
  %v58 = vld [vmem:[%s0 + $0x120] sm:$0xff]
  %v59 = vld [vmem:[%s0 + $0x128] sm:$0xf]
  %v60 = vld [vmem:[%s0 + $0x12c] sm:$0xff]
  %v61 = vld [vmem:[%s0 + $0x134] sm:$0xff]
  %v62 = vld [vmem:[%s0 + $0x13c] sm:$0xf]
  %v63 = vld [vmem:[%s1] sm:$0xf]
  %v64 = vld [vmem:[%s1 + $0x4] sm:$0xf]
  %v65 = vld [vmem:[%s1 + $0x8] sm:$0xf]
  %v66 = vld [vmem:[%s1 + $0xc] sm:$0xf]
  %v67 = vld [vmem:[%s1 + $0x10] sm:$0xf]
  %v68 = vld [vmem:[%s1 + $0x14] sm:$0xf]
  %v69 = vld [vmem:[%s1 + $0x18] sm:$0xf]
  %v70 = vld [vmem:[%s1 + $0x1c] sm:$0xf]
  %v71 = vld [vmem:[%s1 + $0x20] sm:$0xf]
  %v72 = vld [vmem:[%s1 + $0x24] sm:$0xf]
  %v73 = vld [vmem:[%s1 + $0x28] sm:$0xf]
  %v74 = vld [vmem:[%s1 + $0x2c] sm:$0xf]
  %v75 = vld [vmem:[%s1 + $0x30] sm:$0xf]
  %v76 = vld [vmem:[%s1 + $0x34] sm:$0xf]
  %v77 = vld [vmem:[%s1 + $0x38] sm:$0xf]
  %v78 = vld [vmem:[%s1 + $0x3c] sm:$0xf]
  %v79 = vld [vmem:[%s1 + $0x40] sm:$0xf]
  %v80 = vld [vmem:[%s1 + $0x44] sm:$0xf]
  %v81 = vld [vmem:[%s1 + $0x48] sm:$0xf]
  %v82 = vld [vmem:[%s1 + $0x4c] sm:$0xf]
  %v83 = vld [vmem:[%s1 + $0x50] sm:$0xf]
  %v84 = vld [vmem:[%s1 + $0x54] sm:$0xf]
  %v85 = vld [vmem:[%s1 + $0x58] sm:$0xf]
  %v86 = vld [vmem:[%s1 + $0x5c] sm:$0xf]
  %v87 = vld [vmem:[%s1 + $0x60] sm:$0xf]
  %v88 = vld [vmem:[%s1 + $0x64] sm:$0xf]
  %v89 = vld [vmem:[%s1 + $0x68] sm:$0xf]
  %v90 = vld [vmem:[%s1 + $0x6c] sm:$0xf]
  %v91 = vld [vmem:[%s1 + $0x70] sm:$0xf]
  %v92 = vld [vmem:[%s1 + $0x74] sm:$0xf]
  %v93 = vld [vmem:[%s1 + $0x78] sm:$0xf]
  %v94 = vld [vmem:[%s1 + $0x7c] sm:$0xf]
  %v95 = vld [vmem:[%s1 + $0x80] sm:$0xf]
  %v96 = vld [vmem:[%s1 + $0x84] sm:$0xf]
  %v97 = vld [vmem:[%s1 + $0x88] sm:$0xf]
  %v98 = vld [vmem:[%s1 + $0x8c] sm:$0xf]
  %v99 = vld [vmem:[%s1 + $0x90] sm:$0xf]
  %v100 = vld [vmem:[%s1 + $0x94] sm:$0xf]
  %v101 = vld [vmem:[%s1 + $0x98] sm:$0xf]
  %v102 = vld [vmem:[%s1 + $0x9c] sm:$0xf]
  %v103 = vld [vmem:[%s1 + $0xa0] sm:$0xf]
  %v104 = vld [vmem:[%s1 + $0xa4] sm:$0xf]
  %v105 = vld [vmem:[%s1 + $0xa8] sm:$0xf]
  %v106 = vld [vmem:[%s1 + $0xac] sm:$0xf]
  %v107 = vld [vmem:[%s1 + $0xb0] sm:$0xf]
  %v108 = vld [vmem:[%s1 + $0xb4] sm:$0xf]
  %v109 = vld [vmem:[%s1 + $0xb8] sm:$0xf]
  %v110 = vld [vmem:[%s1 + $0xbc] sm:$0xf]
  %v111 = vld [vmem:[%s1 + $0xc0] sm:$0xf]
  %v112 = vld [vmem:[%s1 + $0xc4] sm:$0xf]
  %v113 = vld [vmem:[%s1 + $0xc8] sm:$0xf]
  %v114 = vld [vmem:[%s1 + $0xcc] sm:$0xf]
  %v115 = vld [vmem:[%s1 + $0xd0] sm:$0xf]
  %v116 = vld [vmem:[%s1 + $0xd4] sm:$0xf]
  %v117 = vld [vmem:[%s1 + $0xd8] sm:$0xf]
  %v118 = vld [vmem:[%s1 + $0xdc] sm:$0xf]
  %v119 = vld [vmem:[%s1 + $0xe0] sm:$0xf]
  %v120 = vld [vmem:[%s1 + $0xe4] sm:$0xf]
  %v121 = vld [vmem:[%s1 + $0xe8] sm:$0xf]
  %v122 = vld [vmem:[%s1 + $0xec] sm:$0xf]
  %v123 = vld [vmem:[%s1 + $0xf0] sm:$0xf]
  %v124 = vld [vmem:[%s1 + $0xf4] sm:$0xf]
  %v125 = vld [vmem:[%s1 + $0xf8] sm:$0xf]
  %v126 = vld [vmem:[%s1 + $0xfc] sm:$0xf]
  %v127 = vld [vmem:[%s1 + $0x100] sm:$0xf]
  %v128 = vld [vmem:[%s1 + $0x104] sm:$0xf]
  %v129 = vld [vmem:[%s1 + $0x108] sm:$0xf]
  %v130 = vld [vmem:[%s1 + $0x10c] sm:$0xf]
  %v131 = vld [vmem:[%s1 + $0x110] sm:$0xf]
  %v132 = vld [vmem:[%s1 + $0x114] sm:$0xf]
  %v133 = vld [vmem:[%s1 + $0x118] sm:$0xf]
  %v134 = vld [vmem:[%s1 + $0x11c] sm:$0xf]
  %v135 = vld [vmem:[%s2] sm:$0x1]
  %v137 = vlaneseq
  %v138 = vshrl.u32 %v137, 7
  %v139 = vsub.s32 0, %v138
  %v140 = vrot.slane %v135, %v139
  %v190 = vunpack.c.l.b16 %v15
  %v191 = vunpack.c.h.b16 %v15
  %v192 = vunpack.c.l.b16 %v16
  %v193 = vunpack.c.h.b16 %v16
  %v194 = vunpack.c.l.b16 %v17
  %v195 = vunpack.c.l.b16 %v18
  %v196 = vunpack.c.h.b16 %v18
  %v197 = vunpack.c.l.b16 %v19
  %v198 = vunpack.c.h.b16 %v19
  %v199 = vunpack.c.l.b16 %v20
  %v200 = vunpack.c.l.b16 %v21
  %v201 = vunpack.c.h.b16 %v21
  %v202 = vunpack.c.l.b16 %v22
  %v203 = vunpack.c.h.b16 %v22
  %v204 = vunpack.c.l.b16 %v23
  %v205 = vunpack.c.l.b16 %v24
  %v206 = vunpack.c.h.b16 %v24
  %v207 = vunpack.c.l.b16 %v25
  %v208 = vunpack.c.h.b16 %v25
  %v209 = vunpack.c.l.b16 %v26
  %v210 = vunpack.c.l.b16 %v27
  %v211 = vunpack.c.h.b16 %v27
  %v212 = vunpack.c.l.b16 %v28
  %v213 = vunpack.c.h.b16 %v28
  %v214 = vunpack.c.l.b16 %v29
  %v215 = vunpack.c.l.b16 %v30
  %v216 = vunpack.c.h.b16 %v30
  %v217 = vunpack.c.l.b16 %v31
  %v218 = vunpack.c.h.b16 %v31
  %v219 = vunpack.c.l.b16 %v32
  %v220 = vunpack.c.l.b16 %v33
  %v221 = vunpack.c.h.b16 %v33
  %v222 = vunpack.c.l.b16 %v34
  %v223 = vunpack.c.h.b16 %v34
  %v224 = vunpack.c.l.b16 %v35
  %v225 = vunpack.c.l.b16 %v36
  %v226 = vunpack.c.h.b16 %v36
  %v227 = vunpack.c.l.b16 %v37
  %v228 = vunpack.c.h.b16 %v37
  %v229 = vunpack.c.l.b16 %v38
  %v230 = vunpack.c.l.b16 %v39
  %v231 = vunpack.c.h.b16 %v39
  %v232 = vunpack.c.l.b16 %v40
  %v233 = vunpack.c.h.b16 %v40
  %v234 = vunpack.c.l.b16 %v41
  %v235 = vunpack.c.l.b16 %v42
  %v236 = vunpack.c.h.b16 %v42
  %v237 = vunpack.c.l.b16 %v43
  %v238 = vunpack.c.h.b16 %v43
  %v239 = vunpack.c.l.b16 %v44
  %v240 = vunpack.c.l.b16 %v45
  %v241 = vunpack.c.h.b16 %v45
  %v242 = vunpack.c.l.b16 %v46
  %v243 = vunpack.c.h.b16 %v46
  %v244 = vunpack.c.l.b16 %v47
  %v245 = vunpack.c.l.b16 %v48
  %v246 = vunpack.c.h.b16 %v48
  %v247 = vunpack.c.l.b16 %v49
  %v248 = vunpack.c.h.b16 %v49
  %v249 = vunpack.c.l.b16 %v50
  %v250 = vunpack.c.l.b16 %v51
  %v251 = vunpack.c.h.b16 %v51
  %v252 = vunpack.c.l.b16 %v52
  %v253 = vunpack.c.h.b16 %v52
  %v254 = vunpack.c.l.b16 %v53
  %v255 = vunpack.c.l.b16 %v54
  %v256 = vunpack.c.h.b16 %v54
  %v257 = vunpack.c.l.b16 %v55
  %v258 = vunpack.c.h.b16 %v55
  %v259 = vunpack.c.l.b16 %v56
  %v260 = vunpack.c.l.b16 %v57
  %v261 = vunpack.c.h.b16 %v57
  %v262 = vunpack.c.l.b16 %v58
  %v263 = vunpack.c.h.b16 %v58
  %v264 = vunpack.c.l.b16 %v59
  %v265 = vunpack.c.l.b16 %v60
  %v266 = vunpack.c.h.b16 %v60
  %v267 = vunpack.c.l.b16 %v61
  %v268 = vunpack.c.h.b16 %v61
  %v269 = vunpack.c.l.b16 %v62
  %v270 = vpack.c.b16 %v195, %v190
  %v271 = vpack.c.b16 %v196, %v191
  %v272 = vpack.c.b16 %v197, %v192
  %v273 = vpack.c.b16 %v198, %v193
  %v274 = vpack.c.b16 %v199, %v194
  %v275 = vpack.c.b16 %v205, %v200
  %v276 = vpack.c.b16 %v206, %v201
  %v277 = vpack.c.b16 %v207, %v202
  %v278 = vpack.c.b16 %v208, %v203
  %v279 = vpack.c.b16 %v209, %v204
  %v280 = vpack.c.b16 %v215, %v210
  %v281 = vpack.c.b16 %v216, %v211
  %v282 = vpack.c.b16 %v217, %v212
  %v283 = vpack.c.b16 %v218, %v213
  %v284 = vpack.c.b16 %v219, %v214
  %v285 = vpack.c.b16 %v225, %v220
  %v286 = vpack.c.b16 %v226, %v221
  %v287 = vpack.c.b16 %v227, %v222
  %v288 = vpack.c.b16 %v228, %v223
  %v289 = vpack.c.b16 %v229, %v224
  %v290 = vpack.c.b16 %v235, %v230
  %v291 = vpack.c.b16 %v236, %v231
  %v292 = vpack.c.b16 %v237, %v232
  %v293 = vpack.c.b16 %v238, %v233
  %v294 = vpack.c.b16 %v239, %v234
  %v295 = vpack.c.b16 %v245, %v240
  %v296 = vpack.c.b16 %v246, %v241
  %v297 = vpack.c.b16 %v247, %v242
  %v298 = vpack.c.b16 %v248, %v243
  %v299 = vpack.c.b16 %v249, %v244
  %v300 = vpack.c.b16 %v255, %v250
  %v301 = vpack.c.b16 %v256, %v251
  %v302 = vpack.c.b16 %v257, %v252
  %v303 = vpack.c.b16 %v258, %v253
  %v304 = vpack.c.b16 %v259, %v254
  %v305 = vpack.c.b16 %v265, %v260
  %v306 = vpack.c.b16 %v266, %v261
  %v307 = vpack.c.b16 %v267, %v262
  %v308 = vpack.c.b16 %v268, %v263
  %v309 = vpack.c.b16 %v269, %v264
  %v414 = vunpack.c.l.b16 %v63
  %v415 = vunpack.c.l.b16 %v64
  %v416 = vunpack.c.l.b16 %v65
  %v417 = vunpack.c.l.b16 %v66
  %v418 = vunpack.c.l.b16 %v67
  %v419 = vunpack.c.l.b16 %v68
  %v420 = vunpack.c.l.b16 %v69
  %v421 = vunpack.c.l.b16 %v70
  %v422 = vunpack.c.l.b16 %v71
  %v423 = vunpack.c.l.b16 %v72
  %v424 = vunpack.c.l.b16 %v73
  %v425 = vunpack.c.l.b16 %v74
  %v426 = vunpack.c.l.b16 %v75
  %v427 = vunpack.c.l.b16 %v76
  %v428 = vunpack.c.l.b16 %v77
  %v429 = vunpack.c.l.b16 %v78
  %v430 = vunpack.c.l.b16 %v79
  %v431 = vunpack.c.l.b16 %v80
  %v432 = vunpack.c.l.b16 %v81
  %v433 = vunpack.c.l.b16 %v82
  %v434 = vunpack.c.l.b16 %v83
  %v435 = vunpack.c.l.b16 %v84
  %v436 = vunpack.c.l.b16 %v85
  %v437 = vunpack.c.l.b16 %v86
  %v438 = vunpack.c.l.b16 %v87
  %v439 = vunpack.c.l.b16 %v88
  %v440 = vunpack.c.l.b16 %v89
  %v441 = vunpack.c.l.b16 %v90
  %v442 = vunpack.c.l.b16 %v91
  %v443 = vunpack.c.l.b16 %v92
  %v444 = vunpack.c.l.b16 %v93
  %v445 = vunpack.c.l.b16 %v94
  %v446 = vunpack.c.l.b16 %v95
  %v447 = vunpack.c.l.b16 %v96
  %v448 = vunpack.c.l.b16 %v97
  %v449 = vunpack.c.l.b16 %v98
  %v450 = vunpack.c.l.b16 %v99
  %v451 = vunpack.c.l.b16 %v100
  %v452 = vunpack.c.l.b16 %v101
  %v453 = vunpack.c.l.b16 %v102
  %v454 = vunpack.c.l.b16 %v103
  %v455 = vunpack.c.l.b16 %v104
  %v456 = vunpack.c.l.b16 %v105
  %v457 = vunpack.c.l.b16 %v106
  %v458 = vunpack.c.l.b16 %v107
  %v459 = vunpack.c.l.b16 %v108
  %v460 = vunpack.c.l.b16 %v109
  %v461 = vunpack.c.l.b16 %v110
  %v462 = vunpack.c.l.b16 %v111
  %v463 = vunpack.c.l.b16 %v112
  %v464 = vunpack.c.l.b16 %v113
  %v465 = vunpack.c.l.b16 %v114
  %v466 = vunpack.c.l.b16 %v115
  %v467 = vunpack.c.l.b16 %v116
  %v468 = vunpack.c.l.b16 %v117
  %v469 = vunpack.c.l.b16 %v118
  %v470 = vunpack.c.l.b16 %v119
  %v471 = vunpack.c.l.b16 %v120
  %v472 = vunpack.c.l.b16 %v121
  %v473 = vunpack.c.l.b16 %v122
  %v474 = vunpack.c.l.b16 %v123
  %v475 = vunpack.c.l.b16 %v124
  %v476 = vunpack.c.l.b16 %v125
  %v477 = vunpack.c.l.b16 %v126
  %v478 = vunpack.c.l.b16 %v127
  %v479 = vunpack.c.l.b16 %v128
  %v480 = vunpack.c.l.b16 %v129
  %v481 = vunpack.c.l.b16 %v130
  %v482 = vunpack.c.l.b16 %v131
  %v483 = vunpack.c.l.b16 %v132
  %v484 = vunpack.c.l.b16 %v133
  %v485 = vunpack.c.l.b16 %v134
  %v486 = vpack.c.b16 %v415, %v414
  %v487 = vpack.c.b16 %v417, %v416
  %v488 = vpack.c.b16 %v419, %v418
  %v489 = vpack.c.b16 %v421, %v420
  %v490 = vpack.c.b16 %v423, %v422
  %v491 = vpack.c.b16 %v425, %v424
  %v492 = vpack.c.b16 %v427, %v426
  %v493 = vpack.c.b16 %v429, %v428
  %v494 = vpack.c.b16 %v431, %v430
  %v495 = vpack.c.b16 %v433, %v432
  %v496 = vpack.c.b16 %v435, %v434
  %v497 = vpack.c.b16 %v437, %v436
  %v498 = vpack.c.b16 %v439, %v438
  %v499 = vpack.c.b16 %v441, %v440
  %v500 = vpack.c.b16 %v443, %v442
  %v501 = vpack.c.b16 %v445, %v444
  %v502 = vpack.c.b16 %v447, %v446
  %v503 = vpack.c.b16 %v449, %v448
  %v504 = vpack.c.b16 %v451, %v450
  %v505 = vpack.c.b16 %v453, %v452
  %v506 = vpack.c.b16 %v455, %v454
  %v507 = vpack.c.b16 %v457, %v456
  %v508 = vpack.c.b16 %v459, %v458
  %v509 = vpack.c.b16 %v461, %v460
  %v510 = vpack.c.b16 %v463, %v462
  %v511 = vpack.c.b16 %v465, %v464
  %v512 = vpack.c.b16 %v467, %v466
  %v513 = vpack.c.b16 %v469, %v468
  %v514 = vpack.c.b16 %v471, %v470
  %v515 = vpack.c.b16 %v473, %v472
  %v516 = vpack.c.b16 %v475, %v474
  %v517 = vpack.c.b16 %v477, %v476
  %v518 = vpack.c.b16 %v479, %v478
  %v519 = vpack.c.b16 %v481, %v480
  %v520 = vpack.c.b16 %v483, %v482
  %v521 = vpack.c.b16 %v485, %v484
  %vm558 = vcmask 523264
  %v560 = vsel %vm558, %v274, 0
  %v563 = vsel %vm558, %v279, 0
  %v566 = vsel %vm558, %v284, 0
  %v569 = vsel %vm558, %v289, 0
  %v572 = vsel %vm558, %v294, 0
  %v575 = vsel %vm558, %v299, 0
  %v578 = vsel %vm558, %v304, 0
  %v581 = vsel %vm558, %v309, 0
  %583 = vmatprep.subr.bf16.mxu0 0
  %584 = vmatpush1.bf16.msra.mxu0 %v493
  %585 = vmatprep.subr.bf16.mxu0 0
  %586 = vmatpush1.bf16.msra.mxu0 %v492
  %587 = vmatprep.subr.bf16.mxu0 0
  %588 = vmatpush1.bf16.msra.mxu0 %v491
  %589 = vmatprep.subr.bf16.mxu0 0
  %590 = vmatpush1.bf16.msra.mxu0 %v490
  %591 = vmatprep.subr.bf16.mxu0 0
  %592 = vmatpush1.bf16.msra.mxu0 %v489
  %593 = vmatprep.subr.bf16.mxu0 0
  %594 = vmatpush1.bf16.msra.mxu0 %v488
  %595 = vmatprep.subr.bf16.mxu0 0
  %596 = vmatpush1.bf16.msra.mxu0 %v487
  %597 = vmatprep.subr.bf16.mxu0 0
  %598 = vmatpush1.bf16.msra.mxu0 %v486
  %599 = vmatprep.subr.bf16.mxu0 0
  %600 = vmatpush2.bf16.msra.mxu0 %v501
  %601 = vmatprep.subr.bf16.mxu0 0
  %602 = vmatpush2.bf16.msra.mxu0 %v500
  %603 = vmatprep.subr.bf16.mxu0 0
  %604 = vmatpush2.bf16.msra.mxu0 %v499
  %605 = vmatprep.subr.bf16.mxu0 0
  %606 = vmatpush2.bf16.msra.mxu0 %v498
  %607 = vmatprep.subr.bf16.mxu0 0
  %608 = vmatpush2.bf16.msra.mxu0 %v497
  %609 = vmatprep.subr.bf16.mxu0 0
  %610 = vmatpush2.bf16.msra.mxu0 %v496
  %611 = vmatprep.subr.bf16.mxu0 0
  %612 = vmatpush2.bf16.msra.mxu0 %v495
  %613 = vmatprep.subr.bf16.mxu0 0
  %614 = vmatpush2.bf16.msra.mxu0 %v494
  %615 = vmatprep.mubr.bf16.mxu0 %v271
  %616 = vmatmul.mubr.bf16.gmra.mxu0 %v270
  %v617 = vpop.f32.mrf.mxu0
  %v618 = vadd.f32 %v140, %v617
  %v619 = vpop.f32.mrf.mxu0
  %v620 = vpop.f32.mrf.mxu0
  %v621 = vadd.f32 %v140, %v620
  %v622 = vpop.f32.mrf.mxu0
  %623 = vmatprep.mubr.bf16.mxu0 %v276
  %624 = vmatmul.mubr.bf16.gmra.mxu0 %v275
  %v625 = vpop.f32.mrf.mxu0
  %v626 = vadd.f32 %v140, %v625
  %v627 = vpop.f32.mrf.mxu0
  %v628 = vpop.f32.mrf.mxu0
  %v629 = vadd.f32 %v140, %v628
  %v630 = vpop.f32.mrf.mxu0
  %631 = vmatprep.mubr.bf16.mxu0 %v281
  %632 = vmatmul.mubr.bf16.gmra.mxu0 %v280
  %v633 = vpop.f32.mrf.mxu0
  %v634 = vadd.f32 %v140, %v633
  %v635 = vpop.f32.mrf.mxu0
  %v636 = vpop.f32.mrf.mxu0
  %v637 = vadd.f32 %v140, %v636
  %v638 = vpop.f32.mrf.mxu0
  %639 = vmatprep.mubr.bf16.mxu0 %v286
  %640 = vmatmul.mubr.bf16.gmra.mxu0 %v285
  %v641 = vpop.f32.mrf.mxu0
  %v642 = vadd.f32 %v140, %v641
  %v643 = vpop.f32.mrf.mxu0
  %v644 = vpop.f32.mrf.mxu0
  %v645 = vadd.f32 %v140, %v644
  %v646 = vpop.f32.mrf.mxu0
  %647 = vmatprep.mubr.bf16.mxu0 %v291
  %648 = vmatmul.mubr.bf16.gmra.mxu0 %v290
  %v649 = vpop.f32.mrf.mxu0
  %v650 = vadd.f32 %v140, %v649
  %v651 = vpop.f32.mrf.mxu0
  %v652 = vpop.f32.mrf.mxu0
  %v653 = vadd.f32 %v140, %v652
  %v654 = vpop.f32.mrf.mxu0
  %655 = vmatprep.mubr.bf16.mxu0 %v296
  %656 = vmatmul.mubr.bf16.gmra.mxu0 %v295
  %v657 = vpop.f32.mrf.mxu0
  %v658 = vadd.f32 %v140, %v657
  %v659 = vpop.f32.mrf.mxu0
  %v660 = vpop.f32.mrf.mxu0
  %v661 = vadd.f32 %v140, %v660
  %v662 = vpop.f32.mrf.mxu0
  %663 = vmatprep.mubr.bf16.mxu0 %v301
  %664 = vmatmul.mubr.bf16.gmra.mxu0 %v300
  %v665 = vpop.f32.mrf.mxu0
  %v666 = vadd.f32 %v140, %v665
  %v667 = vpop.f32.mrf.mxu0
  %v668 = vpop.f32.mrf.mxu0
  %v669 = vadd.f32 %v140, %v668
  %v670 = vpop.f32.mrf.mxu0
  %671 = vmatprep.mubr.bf16.mxu0 %v306
  %672 = vmatmul.mubr.bf16.gmra.mxu0 %v305
  %v673 = vpop.f32.mrf.mxu0
  %v674 = vadd.f32 %v140, %v673
  %v675 = vpop.f32.mrf.mxu0
  %v676 = vpop.f32.mrf.mxu0
  %v677 = vadd.f32 %v140, %v676
  %v678 = vpop.f32.mrf.mxu0
  %679 = vdwg.mxu0
  %680 = vmatprep.subr.bf16.mxu0 0
  %681 = vmatpush1.bf16.msra.mxu0 %v509
  %682 = vmatprep.subr.bf16.mxu0 0
  %683 = vmatpush1.bf16.msra.mxu0 %v508
  %684 = vmatprep.subr.bf16.mxu0 0
  %685 = vmatpush1.bf16.msra.mxu0 %v507
  %686 = vmatprep.subr.bf16.mxu0 0
  %687 = vmatpush1.bf16.msra.mxu0 %v506
  %688 = vmatprep.subr.bf16.mxu0 0
  %689 = vmatpush1.bf16.msra.mxu0 %v505
  %690 = vmatprep.subr.bf16.mxu0 0
  %691 = vmatpush1.bf16.msra.mxu0 %v504
  %692 = vmatprep.subr.bf16.mxu0 0
  %693 = vmatpush1.bf16.msra.mxu0 %v503
  %694 = vmatprep.subr.bf16.mxu0 0
  %695 = vmatpush1.bf16.msra.mxu0 %v502
  %696 = vmatprep.subr.bf16.mxu0 0
  %697 = vmatpush2.bf16.msra.mxu0 %v517
  %698 = vmatprep.subr.bf16.mxu0 0
  %699 = vmatpush2.bf16.msra.mxu0 %v516
  %700 = vmatprep.subr.bf16.mxu0 0
  %701 = vmatpush2.bf16.msra.mxu0 %v515
  %702 = vmatprep.subr.bf16.mxu0 0
  %703 = vmatpush2.bf16.msra.mxu0 %v514
  %704 = vmatprep.subr.bf16.mxu0 0
  %705 = vmatpush2.bf16.msra.mxu0 %v513
  %706 = vmatprep.subr.bf16.mxu0 0
  %707 = vmatpush2.bf16.msra.mxu0 %v512
  %708 = vmatprep.subr.bf16.mxu0 0
  %709 = vmatpush2.bf16.msra.mxu0 %v511
  %710 = vmatprep.subr.bf16.mxu0 0
  %711 = vmatpush2.bf16.msra.mxu0 %v510
  %712 = vmatprep.mubr.bf16.mxu0 %v273
  %713 = vmatmul.mubr.bf16.gmra.mxu0 %v272
  %v714 = vpop.f32.mrf.mxu0
  %v715 = vadd.f32 %v618, %v714
  %v716 = vpop.f32.mrf.mxu0
  %v717 = vpop.f32.mrf.mxu0
  %v718 = vadd.f32 %v621, %v717
  %v719 = vpop.f32.mrf.mxu0
  %720 = vmatprep.mubr.bf16.mxu0 %v278
  %721 = vmatmul.mubr.bf16.gmra.mxu0 %v277
  %v722 = vpop.f32.mrf.mxu0
  %v723 = vadd.f32 %v626, %v722
  %v724 = vpop.f32.mrf.mxu0
  %v725 = vpop.f32.mrf.mxu0
  %v726 = vadd.f32 %v629, %v725
  %v727 = vpop.f32.mrf.mxu0
  %728 = vmatprep.mubr.bf16.mxu0 %v283
  %729 = vmatmul.mubr.bf16.gmra.mxu0 %v282
  %v730 = vpop.f32.mrf.mxu0
  %v731 = vadd.f32 %v634, %v730
  %v732 = vpop.f32.mrf.mxu0
  %v733 = vpop.f32.mrf.mxu0
  %v734 = vadd.f32 %v637, %v733
  %v735 = vpop.f32.mrf.mxu0
  %736 = vmatprep.mubr.bf16.mxu0 %v288
  %737 = vmatmul.mubr.bf16.gmra.mxu0 %v287
  %v738 = vpop.f32.mrf.mxu0
  %v739 = vadd.f32 %v642, %v738
  %v740 = vpop.f32.mrf.mxu0
  %v741 = vpop.f32.mrf.mxu0
  %v742 = vadd.f32 %v645, %v741
  %v743 = vpop.f32.mrf.mxu0
  %744 = vmatprep.mubr.bf16.mxu0 %v293
  %745 = vmatmul.mubr.bf16.gmra.mxu0 %v292
  %v746 = vpop.f32.mrf.mxu0
  %v747 = vadd.f32 %v650, %v746
  %v748 = vpop.f32.mrf.mxu0
  %v749 = vpop.f32.mrf.mxu0
  %v750 = vadd.f32 %v653, %v749
  %v751 = vpop.f32.mrf.mxu0
  %752 = vmatprep.mubr.bf16.mxu0 %v298
  %753 = vmatmul.mubr.bf16.gmra.mxu0 %v297
  %v754 = vpop.f32.mrf.mxu0
  %v755 = vadd.f32 %v658, %v754
  %v756 = vpop.f32.mrf.mxu0
  %v757 = vpop.f32.mrf.mxu0
  %v758 = vadd.f32 %v661, %v757
  %v759 = vpop.f32.mrf.mxu0
  %760 = vmatprep.mubr.bf16.mxu0 %v303
  %761 = vmatmul.mubr.bf16.gmra.mxu0 %v302
  %v762 = vpop.f32.mrf.mxu0
  %v763 = vadd.f32 %v666, %v762
  %v764 = vpop.f32.mrf.mxu0
  %v765 = vpop.f32.mrf.mxu0
  %v766 = vadd.f32 %v669, %v765
  %v767 = vpop.f32.mrf.mxu0
  %768 = vmatprep.mubr.bf16.mxu0 %v308
  %769 = vmatmul.mubr.bf16.gmra.mxu0 %v307
  %v770 = vpop.f32.mrf.mxu0
  %v771 = vadd.f32 %v674, %v770
  %v772 = vpop.f32.mrf.mxu0
  %v773 = vpop.f32.mrf.mxu0
  %v774 = vadd.f32 %v677, %v773
  %v775 = vpop.f32.mrf.mxu0
  %776 = vdwg.mxu0
  %777 = vmatprep.subr.bf16.mxu0 0
  %778 = vmatpush1.bf16.msra.mxu0 0
  %779 = vmatprep.subr.bf16.mxu0 0
  %780 = vmatpush1.bf16.msra.mxu0 0
  %781 = vmatprep.subr.bf16.mxu0 0
  %782 = vmatpush1.bf16.msra.mxu0 0
  %783 = vmatprep.subr.bf16.mxu0 0
  %784 = vmatpush1.bf16.msra.mxu0 0
  %785 = vmatprep.subr.bf16.mxu0 0
  %786 = vmatpush1.bf16.msra.mxu0 %v521
  %787 = vmatprep.subr.bf16.mxu0 0
  %788 = vmatpush1.bf16.msra.mxu0 %v520
  %789 = vmatprep.subr.bf16.mxu0 0
  %790 = vmatpush1.bf16.msra.mxu0 %v519
  %791 = vmatprep.subr.bf16.mxu0 0
  %792 = vmatpush1.bf16.msra.mxu0 %v518
  %793 = vmatprep.subr.bf16.mxu0 0
  %794 = vmatpush2.bf16.msra.mxu0 0
  %795 = vmatprep.subr.bf16.mxu0 0
  %796 = vmatpush2.bf16.msra.mxu0 0
  %797 = vmatprep.subr.bf16.mxu0 0
  %798 = vmatpush2.bf16.msra.mxu0 0
  %799 = vmatprep.subr.bf16.mxu0 0
  %800 = vmatpush2.bf16.msra.mxu0 0
  %801 = vmatprep.subr.bf16.mxu0 0
  %802 = vmatpush2.bf16.msra.mxu0 0
  %803 = vmatprep.subr.bf16.mxu0 0
  %804 = vmatpush2.bf16.msra.mxu0 0
  %805 = vmatprep.subr.bf16.mxu0 0
  %806 = vmatpush2.bf16.msra.mxu0 0
  %807 = vmatprep.subr.bf16.mxu0 0
  %808 = vmatpush2.bf16.msra.mxu0 0
  %809 = vmatprep.mubr.bf16.mxu0 0
  %810 = vmatmul.mubr.bf16.gmra.mxu0 %v560
  %v811 = vpop.f32.mrf.mxu0
  %v812 = vadd.f32 %v715, %v811
  %v813 = vpop.f32.mrf.mxu0
  %v814 = vpop.f32.mrf.mxu0
  %v815 = vadd.f32 %v718, %v814
  %v816 = vpop.f32.mrf.mxu0
  %817 = vmatprep.mubr.bf16.mxu0 0
  %818 = vmatmul.mubr.bf16.gmra.mxu0 %v563
  %v819 = vpop.f32.mrf.mxu0
  %v820 = vadd.f32 %v723, %v819
  %v821 = vpop.f32.mrf.mxu0
  %v822 = vpop.f32.mrf.mxu0
  %v823 = vadd.f32 %v726, %v822
  %v824 = vpop.f32.mrf.mxu0
  %825 = vmatprep.mubr.bf16.mxu0 0
  %826 = vmatmul.mubr.bf16.gmra.mxu0 %v566
  %v827 = vpop.f32.mrf.mxu0
  %v828 = vadd.f32 %v731, %v827
  %v829 = vpop.f32.mrf.mxu0
  %v830 = vpop.f32.mrf.mxu0
  %v831 = vadd.f32 %v734, %v830
  %v832 = vpop.f32.mrf.mxu0
  %833 = vmatprep.mubr.bf16.mxu0 0
  %834 = vmatmul.mubr.bf16.gmra.mxu0 %v569
  %v835 = vpop.f32.mrf.mxu0
  %v836 = vadd.f32 %v739, %v835
  %v837 = vpop.f32.mrf.mxu0
  %v838 = vpop.f32.mrf.mxu0
  %v839 = vadd.f32 %v742, %v838
  %v840 = vpop.f32.mrf.mxu0
  %841 = vmatprep.mubr.bf16.mxu0 0
  %842 = vmatmul.mubr.bf16.gmra.mxu0 %v572
  %v843 = vpop.f32.mrf.mxu0
  %v844 = vadd.f32 %v747, %v843
  %v845 = vpop.f32.mrf.mxu0
  %v846 = vpop.f32.mrf.mxu0
  %v847 = vadd.f32 %v750, %v846
  %v848 = vpop.f32.mrf.mxu0
  %849 = vmatprep.mubr.bf16.mxu0 0
  %850 = vmatmul.mubr.bf16.gmra.mxu0 %v575
  %v851 = vpop.f32.mrf.mxu0
  %v852 = vadd.f32 %v755, %v851
  %v853 = vpop.f32.mrf.mxu0
  %v854 = vpop.f32.mrf.mxu0
  %v855 = vadd.f32 %v758, %v854
  %v856 = vpop.f32.mrf.mxu0
  %857 = vmatprep.mubr.bf16.mxu0 0
  %858 = vmatmul.mubr.bf16.gmra.mxu0 %v578
  %v859 = vpop.f32.mrf.mxu0
  %v860 = vadd.f32 %v763, %v859
  %v861 = vpop.f32.mrf.mxu0
  %v862 = vpop.f32.mrf.mxu0
  %v863 = vadd.f32 %v766, %v862
  %v864 = vpop.f32.mrf.mxu0
  %865 = vmatprep.mubr.bf16.mxu0 0
  %866 = vmatmul.mubr.bf16.gmra.mxu0 %v581
  %v867 = vpop.f32.mrf.mxu0
  %v868 = vadd.f32 %v771, %v867
  %v869 = vpop.f32.mrf.mxu0
  %v870 = vpop.f32.mrf.mxu0
  %v871 = vadd.f32 %v774, %v870
  %v872 = vpop.f32.mrf.mxu0
  %873 = vdwg.mxu0
  %v874 = vmax.f32 %v812, 0.0
  %v875 = vmax.f32 %v815, 0.0
  %v876 = vmax.f32 %v820, 0.0
  %v877 = vmax.f32 %v823, 0.0
  %v878 = vmax.f32 %v828, 0.0
  %v879 = vmax.f32 %v831, 0.0
  %v880 = vmax.f32 %v836, 0.0
  %v881 = vmax.f32 %v839, 0.0
  %v882 = vmax.f32 %v844, 0.0
  %v883 = vmax.f32 %v847, 0.0
  %v884 = vmax.f32 %v852, 0.0
  %v885 = vmax.f32 %v855, 0.0
  %v886 = vmax.f32 %v860, 0.0
  %v887 = vmax.f32 %v863, 0.0
  %v888 = vmax.f32 %v868, 0.0
  %v889 = vmax.f32 %v871, 0.0
  %v890 = vpack.c.bf16 %v875, %v874
  %v891 = vpack.c.bf16 %v877, %v876
  %v892 = vpack.c.bf16 %v879, %v878
  %v893 = vpack.c.bf16 %v881, %v880
  %v894 = vpack.c.bf16 %v883, %v882
  %v895 = vpack.c.bf16 %v885, %v884
  %v896 = vpack.c.bf16 %v887, %v886
  %v897 = vpack.c.bf16 %v889, %v888
  %v906 = vunpack.c.l.b16 %v890
  %v907 = vunpack.c.h.b16 %v890
  %v908 = vunpack.c.l.b16 %v891
  %v909 = vunpack.c.h.b16 %v891
  %v910 = vunpack.c.l.b16 %v892
  %v911 = vunpack.c.h.b16 %v892
  %v912 = vunpack.c.l.b16 %v893
  %v913 = vunpack.c.h.b16 %v893
  %v914 = vunpack.c.l.b16 %v894
  %v915 = vunpack.c.h.b16 %v894
  %v916 = vunpack.c.l.b16 %v895
  %v917 = vunpack.c.h.b16 %v895
  %v918 = vunpack.c.l.b16 %v896
  %v919 = vunpack.c.h.b16 %v896
  %v920 = vunpack.c.l.b16 %v897
  %v921 = vunpack.c.h.b16 %v897
  %v922 = vpack.c.b16 %v906, %v906
  %v923 = vpack.c.b16 %v907, %v907
  %v924 = vpack.c.b16 %v908, %v908
  %v925 = vpack.c.b16 %v909, %v909
  %v926 = vpack.c.b16 %v910, %v910
  %v927 = vpack.c.b16 %v911, %v911
  %v928 = vpack.c.b16 %v912, %v912
  %v929 = vpack.c.b16 %v913, %v913
  %v930 = vpack.c.b16 %v914, %v914
  %v931 = vpack.c.b16 %v915, %v915
  %v932 = vpack.c.b16 %v916, %v916
  %v933 = vpack.c.b16 %v917, %v917
  %v934 = vpack.c.b16 %v918, %v918
  %v935 = vpack.c.b16 %v919, %v919
  %v936 = vpack.c.b16 %v920, %v920
  %v937 = vpack.c.b16 %v921, %v921
  %954 = vst [vmem:[%s3] sm:$0xf] %v922
  %955 = vst [vmem:[%s3 + $0x4] sm:$0xf] %v923
  %956 = vst [vmem:[%s3 + $0x8] sm:$0xf] %v924
  %957 = vst [vmem:[%s3 + $0xc] sm:$0xf] %v925
  %958 = vst [vmem:[%s3 + $0x10] sm:$0xf] %v926
  %959 = vst [vmem:[%s3 + $0x14] sm:$0xf] %v927
  %960 = vst [vmem:[%s3 + $0x18] sm:$0xf] %v928
  %961 = vst [vmem:[%s3 + $0x1c] sm:$0xf] %v929
  %962 = vst [vmem:[%s3 + $0x20] sm:$0xf] %v930
  %963 = vst [vmem:[%s3 + $0x24] sm:$0xf] %v931
  %964 = vst [vmem:[%s3 + $0x28] sm:$0xf] %v932
  %965 = vst [vmem:[%s3 + $0x2c] sm:$0xf] %v933
  %966 = vst [vmem:[%s3 + $0x30] sm:$0xf] %v934
  %967 = vst [vmem:[%s3 + $0x34] sm:$0xf] %v935
  %968 = vst [vmem:[%s3 + $0x38] sm:$0xf] %v936
  %969 = vst [vmem:[%s3 + $0x3c] sm:$0xf] %v937
  // Predicated region
  $region14: #{forward.10} parent=0 // pred_check
    _
  $region15: #{forward.10} parent=0 // pred_check_branch
    %971 = sbr.rel (0) target = $region17
  $region16: #{forward.10} parent=0 // pred_region
    _
  $region17: #{forward.10} parent=0 // pred_fallthru
    _
  // Predicated region
  $region18: #{forward.10} parent=0 // pred_check
    _
  $region19: #{forward.10} parent=0 // pred_check_branch
    %973 = sbr.rel (0) target = $region21
  $region20: #{forward.10} parent=0 // pred_region
    _
  $region21: #{forward.10} parent=0 // pred_fallthru
    _

// kernel: forward.11
$region0: #{forward.11}
  #allocation0 [shape = 'u32[]', space=smem, size = 0x4, offset = 0x4, fixed_abs, tag = 'smem constant byte address 0x4 - core index']
  #allocation1 [shape = 'u32[144,128]{1,0:T(1,128)}', space=vmem, size = 0x12000, scoped, tag = 'internal scratch']
  %s0 = inlined_call_operand.vmem [shape: bf16[128,128], index: 0, kind: input, shape index: {}]
  %s1 = inlined_call_operand.vmem [shape: bf16[128,256], index: 1, kind: input, shape index: {}]
  %s2 = inlined_call_operand.vmem [shape: f32[1,256], index: 2, kind: input, shape index: {}]
  %s3 = inlined_call_operand.vmem [shape: bf16[128,256], index: 3, kind: output, shape index: {}]
  %s4 = sld [smem:[#allocation0]]
  $region22: #{forward.11} parent=0
    _
  %s6 = ssub.s32 1, %s4
  %s7 = scalar_select 0, %s6, %s4
  // Predicated region
  $region2: #{forward.11} parent=0 // pred_check
    _
  $region3: #{forward.11} parent=0 // pred_check_branch
    %9 = sbr.rel (0) target = $region5
  $region4: #{forward.11} parent=0 // pred_region
    _
  $region5: #{forward.11} parent=0 // pred_fallthru
    _
  // Predicated region
  $region6: #{forward.11} parent=0 // pred_check
    _
  $region7: #{forward.11} parent=0 // pred_check_branch
    %11 = sbr.rel (0) target = $region9
  $region8: #{forward.11} parent=0 // pred_region
    _
  $region9: #{forward.11} parent=0 // pred_fallthru
    _
  // Predicated region
  $region10: #{forward.11} parent=0 // pred_check
    _
  $region11: #{forward.11} parent=0 // pred_check_branch
    %13 = sbr.rel (0) target = $region13
  $region12: #{forward.11} parent=0 // pred_region
    _
  $region13: #{forward.11} parent=0 // pred_fallthru
    _
  %v15 = vld [vmem:[%s0] sm:$0xf]
  %v16 = vld [vmem:[%s0 + $0x4] sm:$0xf]
  %v17 = vld [vmem:[%s0 + $0x8] sm:$0xf]
  %v18 = vld [vmem:[%s0 + $0xc] sm:$0xf]
  %v19 = vld [vmem:[%s0 + $0x10] sm:$0xf]
  %v20 = vld [vmem:[%s0 + $0x14] sm:$0xf]
  %v21 = vld [vmem:[%s0 + $0x18] sm:$0xf]
  %v22 = vld [vmem:[%s0 + $0x1c] sm:$0xf]
  %v23 = vld [vmem:[%s0 + $0x20] sm:$0xf]
  %v24 = vld [vmem:[%s0 + $0x24] sm:$0xf]
  %v25 = vld [vmem:[%s0 + $0x28] sm:$0xf]
  %v26 = vld [vmem:[%s0 + $0x2c] sm:$0xf]
  %v27 = vld [vmem:[%s0 + $0x30] sm:$0xf]
  %v28 = vld [vmem:[%s0 + $0x34] sm:$0xf]
  %v29 = vld [vmem:[%s0 + $0x38] sm:$0xf]
  %v30 = vld [vmem:[%s0 + $0x3c] sm:$0xf]
  %v31 = vld [vmem:[%s1] sm:$0xff]
  %v32 = vld [vmem:[%s1 + $0x8] sm:$0xff]
  %v33 = vld [vmem:[%s1 + $0x10] sm:$0xff]
  %v34 = vld [vmem:[%s1 + $0x18] sm:$0xff]
  %v35 = vld [vmem:[%s1 + $0x20] sm:$0xff]
  %v36 = vld [vmem:[%s1 + $0x28] sm:$0xff]
  %v37 = vld [vmem:[%s1 + $0x30] sm:$0xff]
  %v38 = vld [vmem:[%s1 + $0x38] sm:$0xff]
  %v39 = vld [vmem:[%s1 + $0x40] sm:$0xff]
  %v40 = vld [vmem:[%s1 + $0x48] sm:$0xff]
  %v41 = vld [vmem:[%s1 + $0x50] sm:$0xff]
  %v42 = vld [vmem:[%s1 + $0x58] sm:$0xff]
  %v43 = vld [vmem:[%s1 + $0x60] sm:$0xff]
  %v44 = vld [vmem:[%s1 + $0x68] sm:$0xff]
  %v45 = vld [vmem:[%s1 + $0x70] sm:$0xff]
  %v46 = vld [vmem:[%s1 + $0x78] sm:$0xff]
  %v47 = vld [vmem:[%s2] sm:$0x3]
  %v49 = vlaneseq
  %v50 = vshrl.u32 %v49, 7
  %v51 = vsub.s32 0, %v50
  %v52 = vrot.slane %v47, %v51
  %v53 = vlaneseq
  %v54 = vshrl.u32 %v53, 7
  %v55 = vsub.s32 1, %v54
  %v56 = vrot.slane %v47, %v55
  %v75 = vunpack.c.l.b16 %v15
  %v76 = vunpack.c.l.b16 %v16
  %v77 = vunpack.c.l.b16 %v17
  %v78 = vunpack.c.l.b16 %v18
  %v79 = vunpack.c.l.b16 %v19
  %v80 = vunpack.c.l.b16 %v20
  %v81 = vunpack.c.l.b16 %v21
  %v82 = vunpack.c.l.b16 %v22
  %v83 = vunpack.c.l.b16 %v23
  %v84 = vunpack.c.l.b16 %v24
  %v85 = vunpack.c.l.b16 %v25
  %v86 = vunpack.c.l.b16 %v26
  %v87 = vunpack.c.l.b16 %v27
  %v88 = vunpack.c.l.b16 %v28
  %v89 = vunpack.c.l.b16 %v29
  %v90 = vunpack.c.l.b16 %v30
  %v91 = vpack.c.b16 %v76, %v75
  %v92 = vpack.c.b16 %v78, %v77
  %v93 = vpack.c.b16 %v80, %v79
  %v94 = vpack.c.b16 %v82, %v81
  %v95 = vpack.c.b16 %v84, %v83
  %v96 = vpack.c.b16 %v86, %v85
  %v97 = vpack.c.b16 %v88, %v87
  %v98 = vpack.c.b16 %v90, %v89
  %v123 = vunpack.c.l.b16 %v31
  %v124 = vunpack.c.h.b16 %v31
  %v125 = vunpack.c.l.b16 %v32
  %v126 = vunpack.c.h.b16 %v32
  %v127 = vunpack.c.l.b16 %v33
  %v128 = vunpack.c.h.b16 %v33
  %v129 = vunpack.c.l.b16 %v34
  %v130 = vunpack.c.h.b16 %v34
  %v131 = vunpack.c.l.b16 %v35
  %v132 = vunpack.c.h.b16 %v35
  %v133 = vunpack.c.l.b16 %v36
  %v134 = vunpack.c.h.b16 %v36
  %v135 = vunpack.c.l.b16 %v37
  %v136 = vunpack.c.h.b16 %v37
  %v137 = vunpack.c.l.b16 %v38
  %v138 = vunpack.c.h.b16 %v38
  %v139 = vunpack.c.l.b16 %v39
  %v140 = vunpack.c.h.b16 %v39
  %v141 = vunpack.c.l.b16 %v40
  %v142 = vunpack.c.h.b16 %v40
  %v143 = vunpack.c.l.b16 %v41
  %v144 = vunpack.c.h.b16 %v41
  %v145 = vunpack.c.l.b16 %v42
  %v146 = vunpack.c.h.b16 %v42
  %v147 = vunpack.c.l.b16 %v43
  %v148 = vunpack.c.h.b16 %v43
  %v149 = vunpack.c.l.b16 %v44
  %v150 = vunpack.c.h.b16 %v44
  %v151 = vunpack.c.l.b16 %v45
  %v152 = vunpack.c.h.b16 %v45
  %v153 = vunpack.c.l.b16 %v46
  %v154 = vunpack.c.h.b16 %v46
  %v155 = vpack.c.b16 %v125, %v123
  %v156 = vpack.c.b16 %v126, %v124
  %v157 = vpack.c.b16 %v129, %v127
  %v158 = vpack.c.b16 %v130, %v128
  %v159 = vpack.c.b16 %v133, %v131
  %v160 = vpack.c.b16 %v134, %v132
  %v161 = vpack.c.b16 %v137, %v135
  %v162 = vpack.c.b16 %v138, %v136
  %v163 = vpack.c.b16 %v141, %v139
  %v164 = vpack.c.b16 %v142, %v140
  %v165 = vpack.c.b16 %v145, %v143
  %v166 = vpack.c.b16 %v146, %v144
  %v167 = vpack.c.b16 %v149, %v147
  %v168 = vpack.c.b16 %v150, %v148
  %v169 = vpack.c.b16 %v153, %v151
  %v170 = vpack.c.b16 %v154, %v152
  %187 = vmatprep.subr.bf16.mxu0 %v170
  %188 = vmatpush1.bf16.msra.mxu0 %v169
  %189 = vmatprep.subr.bf16.mxu0 %v168
  %190 = vmatpush1.bf16.msra.mxu0 %v167
  %191 = vmatprep.subr.bf16.mxu0 %v166
  %192 = vmatpush1.bf16.msra.mxu0 %v165
  %193 = vmatprep.subr.bf16.mxu0 %v164
  %194 = vmatpush1.bf16.msra.mxu0 %v163
  %195 = vmatprep.subr.bf16.mxu0 %v162
  %196 = vmatpush1.bf16.msra.mxu0 %v161
  %197 = vmatprep.subr.bf16.mxu0 %v160
  %198 = vmatpush1.bf16.msra.mxu0 %v159
  %199 = vmatprep.subr.bf16.mxu0 %v158
  %200 = vmatpush1.bf16.msra.mxu0 %v157
  %201 = vmatprep.subr.bf16.mxu0 %v156
  %202 = vmatpush1.bf16.msra.mxu0 %v155
  %203 = vmatprep.subr.bf16.mxu0 0
  %204 = vmatpush2.bf16.msra.mxu0 0
  %205 = vmatprep.subr.bf16.mxu0 0
  %206 = vmatpush2.bf16.msra.mxu0 0
  %207 = vmatprep.subr.bf16.mxu0 0
  %208 = vmatpush2.bf16.msra.mxu0 0
  %209 = vmatprep.subr.bf16.mxu0 0
  %210 = vmatpush2.bf16.msra.mxu0 0
  %211 = vmatprep.subr.bf16.mxu0 0
  %212 = vmatpush2.bf16.msra.mxu0 0
  %213 = vmatprep.subr.bf16.mxu0 0
  %214 = vmatpush2.bf16.msra.mxu0 0
  %215 = vmatprep.subr.bf16.mxu0 0
  %216 = vmatpush2.bf16.msra.mxu0 0
  %217 = vmatprep.subr.bf16.mxu0 0
  %218 = vmatpush2.bf16.msra.mxu0 0
  %219 = vmatprep.mubr.bf16.mxu0 0
  %220 = vmatmul.mubr.bf16.gmra.mxu0 %v91
  %v221 = vpop.f32.mrf.mxu0
  %v222 = vadd.f32 %v52, %v221
  %v223 = vpop.f32.mrf.mxu0
  %v224 = vadd.f32 %v56, %v223
  %v225 = vpop.f32.mrf.mxu0
  %v226 = vadd.f32 %v52, %v225
  %v227 = vpop.f32.mrf.mxu0
  %v228 = vadd.f32 %v56, %v227
  %229 = vmatprep.mubr.bf16.mxu0 0
  %230 = vmatmul.mubr.bf16.gmra.mxu0 %v92
  %v231 = vpop.f32.mrf.mxu0
  %v232 = vadd.f32 %v52, %v231
  %v233 = vpop.f32.mrf.mxu0
  %v234 = vadd.f32 %v56, %v233
  %v235 = vpop.f32.mrf.mxu0
  %v236 = vadd.f32 %v52, %v235
  %v237 = vpop.f32.mrf.mxu0
  %v238 = vadd.f32 %v56, %v237
  %239 = vmatprep.mubr.bf16.mxu0 0
  %240 = vmatmul.mubr.bf16.gmra.mxu0 %v93
  %v241 = vpop.f32.mrf.mxu0
  %v242 = vadd.f32 %v52, %v241
  %v243 = vpop.f32.mrf.mxu0
  %v244 = vadd.f32 %v56, %v243
  %v245 = vpop.f32.mrf.mxu0
  %v246 = vadd.f32 %v52, %v245
  %v247 = vpop.f32.mrf.mxu0
  %v248 = vadd.f32 %v56, %v247
  %249 = vmatprep.mubr.bf16.mxu0 0
  %250 = vmatmul.mubr.bf16.gmra.mxu0 %v94
  %v251 = vpop.f32.mrf.mxu0
  %v252 = vadd.f32 %v52, %v251
  %v253 = vpop.f32.mrf.mxu0
  %v254 = vadd.f32 %v56, %v253
  %v255 = vpop.f32.mrf.mxu0
  %v256 = vadd.f32 %v52, %v255
  %v257 = vpop.f32.mrf.mxu0
  %v258 = vadd.f32 %v56, %v257
  %259 = vmatprep.mubr.bf16.mxu0 0
  %260 = vmatmul.mubr.bf16.gmra.mxu0 %v95
  %v261 = vpop.f32.mrf.mxu0
  %v262 = vadd.f32 %v52, %v261
  %v263 = vpop.f32.mrf.mxu0
  %v264 = vadd.f32 %v56, %v263
  %v265 = vpop.f32.mrf.mxu0
  %v266 = vadd.f32 %v52, %v265
  %v267 = vpop.f32.mrf.mxu0
  %v268 = vadd.f32 %v56, %v267
  %269 = vmatprep.mubr.bf16.mxu0 0
  %270 = vmatmul.mubr.bf16.gmra.mxu0 %v96
  %v271 = vpop.f32.mrf.mxu0
  %v272 = vadd.f32 %v52, %v271
  %v273 = vpop.f32.mrf.mxu0
  %v274 = vadd.f32 %v56, %v273
  %v275 = vpop.f32.mrf.mxu0
  %v276 = vadd.f32 %v52, %v275
  %v277 = vpop.f32.mrf.mxu0
  %v278 = vadd.f32 %v56, %v277
  %279 = vmatprep.mubr.bf16.mxu0 0
  %280 = vmatmul.mubr.bf16.gmra.mxu0 %v97
  %v281 = vpop.f32.mrf.mxu0
  %v282 = vadd.f32 %v52, %v281
  %v283 = vpop.f32.mrf.mxu0
  %v284 = vadd.f32 %v56, %v283
  %v285 = vpop.f32.mrf.mxu0
  %v286 = vadd.f32 %v52, %v285
  %v287 = vpop.f32.mrf.mxu0
  %v288 = vadd.f32 %v56, %v287
  %289 = vmatprep.mubr.bf16.mxu0 0
  %290 = vmatmul.mubr.bf16.gmra.mxu0 %v98
  %v291 = vpop.f32.mrf.mxu0
  %v292 = vadd.f32 %v52, %v291
  %v293 = vpop.f32.mrf.mxu0
  %v294 = vadd.f32 %v56, %v293
  %v295 = vpop.f32.mrf.mxu0
  %v296 = vadd.f32 %v52, %v295
  %v297 = vpop.f32.mrf.mxu0
  %v298 = vadd.f32 %v56, %v297
  %299 = vdwg.mxu0
  %v300 = vmax.f32 %v222, 0.0
  %v301 = vmax.f32 %v224, 0.0
  %v302 = vmax.f32 %v226, 0.0
  %v303 = vmax.f32 %v228, 0.0
  %v304 = vmax.f32 %v232, 0.0
  %v305 = vmax.f32 %v234, 0.0
  %v306 = vmax.f32 %v236, 0.0
  %v307 = vmax.f32 %v238, 0.0
  %v308 = vmax.f32 %v242, 0.0
  %v309 = vmax.f32 %v244, 0.0
  %v310 = vmax.f32 %v246, 0.0
  %v311 = vmax.f32 %v248, 0.0
  %v312 = vmax.f32 %v252, 0.0
  %v313 = vmax.f32 %v254, 0.0
  %v314 = vmax.f32 %v256, 0.0
  %v315 = vmax.f32 %v258, 0.0
  %v316 = vmax.f32 %v262, 0.0
  %v317 = vmax.f32 %v264, 0.0
  %v318 = vmax.f32 %v266, 0.0
  %v319 = vmax.f32 %v268, 0.0
  %v320 = vmax.f32 %v272, 0.0
  %v321 = vmax.f32 %v274, 0.0
  %v322 = vmax.f32 %v276, 0.0
  %v323 = vmax.f32 %v278, 0.0
  %v324 = vmax.f32 %v282, 0.0
  %v325 = vmax.f32 %v284, 0.0
  %v326 = vmax.f32 %v286, 0.0
  %v327 = vmax.f32 %v288, 0.0
  %v328 = vmax.f32 %v292, 0.0
  %v329 = vmax.f32 %v294, 0.0
  %v330 = vmax.f32 %v296, 0.0
  %v331 = vmax.f32 %v298, 0.0
  %v332 = vpack.c.bf16 %v302, %v300
  %v333 = vpack.c.bf16 %v303, %v301
  %v334 = vpack.c.bf16 %v306, %v304
  %v335 = vpack.c.bf16 %v307, %v305
  %v336 = vpack.c.bf16 %v310, %v308
  %v337 = vpack.c.bf16 %v311, %v309
  %v338 = vpack.c.bf16 %v314, %v312
  %v339 = vpack.c.bf16 %v315, %v313
  %v340 = vpack.c.bf16 %v318, %v316
  %v341 = vpack.c.bf16 %v319, %v317
  %v342 = vpack.c.bf16 %v322, %v320
  %v343 = vpack.c.bf16 %v323, %v321
  %v344 = vpack.c.bf16 %v326, %v324
  %v345 = vpack.c.bf16 %v327, %v325
  %v346 = vpack.c.bf16 %v330, %v328
  %v347 = vpack.c.bf16 %v331, %v329
  %v364 = vunpack.c.l.b16 %v332
  %v365 = vunpack.c.l.b16 %v333
  %v366 = vunpack.c.h.b16 %v332
  %v367 = vunpack.c.h.b16 %v333
  %v368 = vunpack.c.l.b16 %v334
  %v369 = vunpack.c.l.b16 %v335
  %v370 = vunpack.c.h.b16 %v334
  %v371 = vunpack.c.h.b16 %v335
  %v372 = vunpack.c.l.b16 %v336
  %v373 = vunpack.c.l.b16 %v337
  %v374 = vunpack.c.h.b16 %v336
  %v375 = vunpack.c.h.b16 %v337
  %v376 = vunpack.c.l.b16 %v338
  %v377 = vunpack.c.l.b16 %v339
  %v378 = vunpack.c.h.b16 %v338
  %v379 = vunpack.c.h.b16 %v339
  %v380 = vunpack.c.l.b16 %v340
  %v381 = vunpack.c.l.b16 %v341
  %v382 = vunpack.c.h.b16 %v340
  %v383 = vunpack.c.h.b16 %v341
  %v384 = vunpack.c.l.b16 %v342
  %v385 = vunpack.c.l.b16 %v343
  %v386 = vunpack.c.h.b16 %v342
  %v387 = vunpack.c.h.b16 %v343
  %v388 = vunpack.c.l.b16 %v344
  %v389 = vunpack.c.l.b16 %v345
  %v390 = vunpack.c.h.b16 %v344
  %v391 = vunpack.c.h.b16 %v345
  %v392 = vunpack.c.l.b16 %v346
  %v393 = vunpack.c.l.b16 %v347
  %v394 = vunpack.c.h.b16 %v346
  %v395 = vunpack.c.h.b16 %v347
  %v396 = vpack.c.b16 %v365, %v364
  %v397 = vpack.c.b16 %v367, %v366
  %v398 = vpack.c.b16 %v369, %v368
  %v399 = vpack.c.b16 %v371, %v370
  %v400 = vpack.c.b16 %v373, %v372
  %v401 = vpack.c.b16 %v375, %v374
  %v402 = vpack.c.b16 %v377, %v376
  %v403 = vpack.c.b16 %v379, %v378
  %v404 = vpack.c.b16 %v381, %v380
  %v405 = vpack.c.b16 %v383, %v382
  %v406 = vpack.c.b16 %v385, %v384
  %v407 = vpack.c.b16 %v387, %v386
  %v408 = vpack.c.b16 %v389, %v388
  %v409 = vpack.c.b16 %v391, %v390
  %v410 = vpack.c.b16 %v393, %v392
  %v411 = vpack.c.b16 %v395, %v394
  %428 = vst [vmem:[%s3] sm:$0xff] %v396
  %429 = vst [vmem:[%s3 + $0x8] sm:$0xff] %v397
  %430 = vst [vmem:[%s3 + $0x10] sm:$0xff] %v398
  %431 = vst [vmem:[%s3 + $0x18] sm:$0xff] %v399
  %432 = vst [vmem:[%s3 + $0x20] sm:$0xff] %v400
  %433 = vst [vmem:[%s3 + $0x28] sm:$0xff] %v401
  %434 = vst [vmem:[%s3 + $0x30] sm:$0xff] %v402
  %435 = vst [vmem:[%s3 + $0x38] sm:$0xff] %v403
  %436 = vst [vmem:[%s3 + $0x40] sm:$0xff] %v404
  %437 = vst [vmem:[%s3 + $0x48] sm:$0xff] %v405
  %438 = vst [vmem:[%s3 + $0x50] sm:$0xff] %v406
  %439 = vst [vmem:[%s3 + $0x58] sm:$0xff] %v407
  %440 = vst [vmem:[%s3 + $0x60] sm:$0xff] %v408
  %441 = vst [vmem:[%s3 + $0x68] sm:$0xff] %v409
  %442 = vst [vmem:[%s3 + $0x70] sm:$0xff] %v410
  %443 = vst [vmem:[%s3 + $0x78] sm:$0xff] %v411
  // Predicated region
  $region14: #{forward.11} parent=0 // pred_check
    _
  $region15: #{forward.11} parent=0 // pred_check_branch
    %445 = sbr.rel (0) target = $region17
  $region16: #{forward.11} parent=0 // pred_region
    _
  $region17: #{forward.11} parent=0 // pred_fallthru
    _
  // Predicated region
  $region18: #{forward.11} parent=0 // pred_check
    _
  $region19: #{forward.11} parent=0 // pred_check_branch
    %447 = sbr.rel (0) target = $region21
  $region20: #{forward.11} parent=0 // pred_region
    _
  $region21: #{forward.11} parent=0 // pred_fallthru
    _

// kernel: forward.13
$region0: #{forward.13}
  #allocation0 [shape = 'u32[]', space=smem, size = 0x4, offset = 0x4, fixed_abs, tag = 'smem constant byte address 0x4 - core index']
  #allocation1 [shape = 'u32[144,128]{1,0:T(1,128)}', space=vmem, size = 0x12000, scoped, tag = 'internal scratch']
  %s0 = inlined_call_operand.vmem [shape: bf16[2,256,64], index: 0, kind: input, shape index: {}]
  %s1 = inlined_call_operand.vmem [shape: bf16[64,192], index: 1, kind: input, shape index: {}]
  %s2 = inlined_call_operand.vmem [shape: f32[1,192], index: 2, kind: input, shape index: {}]
  %s3 = inlined_call_operand.vmem [shape: bf16[64,64], index: 3, kind: input, shape index: {}]
  %s4 = inlined_call_operand.vmem [shape: f32[1,64], index: 4, kind: input, shape index: {}]
  %s5 = inlined_call_operand.vmem [shape: f32[2,1,64], index: 5, kind: output, shape index: {}]
  %s6 = sld [smem:[#allocation0]]
  $region53: #{forward.13} parent=0
    _
  %s8 = ssub.s32 1, %s6
  %s9 = scalar_select 0, %s8, %s6
  loop: start=0, step=1, limit=4
  $region2: #{forward.13} parent=0 // loop_pre_header
    _
  $region3: #{forward.13} parent=0 // loop_header
    %s11 = sphi 0, %s15
    %p12 = scmp.ge.s32.totalorder %s11, 4
    %s21 = sphi 0, %s23
    %s24 = sphi 0, %s21
    %s25 = sphi 0, %s24
    %s41 = sphi 0, %s25
    %s45 = sphi 0, %s45
    %s47 = sphi 0, %s45
    %s48 = sphi 0, %s47
    %s62 = sphi 0, %s48
    %s66 = sphi 0, %s66
    %s68 = sphi 0, %s66
    %s69 = sphi 0, %s68
    %s83 = sphi 0, %s69
    %s87 = sphi 0, %s87
    %s89 = sphi 0, %s87
    %s90 = sphi 0, %s89
    %s104 = sphi 0, %s90
    %s108 = sphi 0, %s108
    %s110 = sphi 0, %s108
    %s111 = sphi 0, %s110
    %s125 = sphi 0, %s111
    %s131 = sphi 0, %s133
    %s134 = sphi 0, %s131
    %s135 = sphi 0, %s134
    %s151 = sphi 0, %s135
  $region4: #{forward.13} parent=0 // loop_header_branch
    %14 = sbr.rel (%p12) target = $region8
  $region5: #{forward.13} parent=0 // loop_body
    %s16 = ssub.s32 %s11, 1
    %s17 = ssub.s32 %s11, 2
    %s18 = sadd.s32 %s11, 1
    %s19 = ssub.s32 %s11, %s18
    %p20 = scmp.eq.s32.totalorder %s19, 0
    %s22 = sadd.s32 %s21, 1
    %s23 = scalar_select %p20, %s21, %s22
    %p26 = pneg %p20
    %p27 = scmp.eq.s32.totalorder %s11, 1
    %p28 = por %p26, %p27
    %p29 = scmp.ne.s32.totalorder %s21, %s24
    %p30 = scmp.eq.s32.totalorder %s11, 0
    %p31 = por %p29, %p30
    %p32 = scmp.ne.s32.totalorder %s21, %s24
    %p33 = scmp.eq.s32.totalorder %s16, 1
    %p34 = por %p32, %p33
    %p35 = scmp.ne.s32.totalorder %s24, %s25
    %p36 = scmp.eq.s32.totalorder %s16, 0
    %p37 = por %p35, %p36
    %p38 = scmp.ne.s32.totalorder %s24, %s25
    %p39 = scmp.eq.s32.totalorder %s17, 1
    %p40 = por %p38, %p39
    %p42 = scmp.ne.s32.totalorder %s25, %s41
    %p43 = scmp.eq.s32.totalorder %s17, 0
    %p44 = por %p42, %p43
    %s46 = sadd.s32 %s45, 1
    %p49 = scmp.eq.s32.totalorder %s11, 1
    %p50 = scmp.ne.s32.totalorder %s45, %s47
    %p51 = scmp.eq.s32.totalorder %s11, 0
    %p52 = por %p50, %p51
    %p53 = scmp.ne.s32.totalorder %s45, %s47
    %p54 = scmp.eq.s32.totalorder %s16, 1
    %p55 = por %p53, %p54
    %p56 = scmp.ne.s32.totalorder %s47, %s48
    %p57 = scmp.eq.s32.totalorder %s16, 0
    %p58 = por %p56, %p57
    %p59 = scmp.ne.s32.totalorder %s47, %s48
    %p60 = scmp.eq.s32.totalorder %s17, 1
    %p61 = por %p59, %p60
    %p63 = scmp.ne.s32.totalorder %s48, %s62
    %p64 = scmp.eq.s32.totalorder %s17, 0
    %p65 = por %p63, %p64
    %s67 = sadd.s32 %s66, 1
    %p70 = scmp.eq.s32.totalorder %s11, 1
    %p71 = scmp.ne.s32.totalorder %s66, %s68
    %p72 = scmp.eq.s32.totalorder %s11, 0
    %p73 = por %p71, %p72
    %p74 = scmp.ne.s32.totalorder %s66, %s68
    %p75 = scmp.eq.s32.totalorder %s16, 1
    %p76 = por %p74, %p75
    %p77 = scmp.ne.s32.totalorder %s68, %s69
    %p78 = scmp.eq.s32.totalorder %s16, 0
    %p79 = por %p77, %p78
    %p80 = scmp.ne.s32.totalorder %s68, %s69
    %p81 = scmp.eq.s32.totalorder %s17, 1
    %p82 = por %p80, %p81
    %p84 = scmp.ne.s32.totalorder %s69, %s83
    %p85 = scmp.eq.s32.totalorder %s17, 0
    %p86 = por %p84, %p85
    %s88 = sadd.s32 %s87, 1
    %p91 = scmp.eq.s32.totalorder %s11, 1
    %p92 = scmp.ne.s32.totalorder %s87, %s89
    %p93 = scmp.eq.s32.totalorder %s11, 0
    %p94 = por %p92, %p93
    %p95 = scmp.ne.s32.totalorder %s87, %s89
    %p96 = scmp.eq.s32.totalorder %s16, 1
    %p97 = por %p95, %p96
    %p98 = scmp.ne.s32.totalorder %s89, %s90
    %p99 = scmp.eq.s32.totalorder %s16, 0
    %p100 = por %p98, %p99
    %p101 = scmp.ne.s32.totalorder %s89, %s90
    %p102 = scmp.eq.s32.totalorder %s17, 1
    %p103 = por %p101, %p102
    %p105 = scmp.ne.s32.totalorder %s90, %s104
    %p106 = scmp.eq.s32.totalorder %s17, 0
    %p107 = por %p105, %p106
    %s109 = sadd.s32 %s108, 1
    %p112 = scmp.eq.s32.totalorder %s11, 1
    %p113 = scmp.ne.s32.totalorder %s108, %s110
    %p114 = scmp.eq.s32.totalorder %s11, 0
    %p115 = por %p113, %p114
    %p116 = scmp.ne.s32.totalorder %s108, %s110
    %p117 = scmp.eq.s32.totalorder %s16, 1
    %p118 = por %p116, %p117
    %p119 = scmp.ne.s32.totalorder %s110, %s111
    %p120 = scmp.eq.s32.totalorder %s16, 0
    %p121 = por %p119, %p120
    %p122 = scmp.ne.s32.totalorder %s110, %s111
    %p123 = scmp.eq.s32.totalorder %s17, 1
    %p124 = por %p122, %p123
    %p126 = scmp.ne.s32.totalorder %s111, %s125
    %p127 = scmp.eq.s32.totalorder %s17, 0
    %p128 = por %p126, %p127
    %s129 = ssub.s32 %s11, %s18
    %p130 = scmp.eq.s32.totalorder %s129, 0
    %s132 = sadd.s32 %s131, 1
    %s133 = scalar_select %p130, %s131, %s132
    %p136 = pneg %p130
    %p137 = scmp.eq.s32.totalorder %s11, 1
    %p138 = por %p136, %p137
    %p139 = scmp.ne.s32.totalorder %s131, %s134
    %p140 = scmp.eq.s32.totalorder %s11, 0
    %p141 = por %p139, %p140
    %p142 = scmp.ne.s32.totalorder %s131, %s134
    %p143 = scmp.eq.s32.totalorder %s16, 1
    %p144 = por %p142, %p143
    %p145 = scmp.ne.s32.totalorder %s134, %s135
    %p146 = scmp.eq.s32.totalorder %s16, 0
    %p147 = por %p145, %p146
    %p148 = scmp.ne.s32.totalorder %s134, %s135
    %p149 = scmp.eq.s32.totalorder %s17, 1
    %p150 = por %p148, %p149
    %p152 = scmp.ne.s32.totalorder %s135, %s151
    %p153 = scmp.eq.s32.totalorder %s17, 0
    %p154 = por %p152, %p153
    %p155 = scmp.le.s32.totalorder 1, %s11
    %p156 = scmp.lt.s32.totalorder %s11, 3
    %p157 = pnand %p155, %p156
    %p158 = pneg %p157
    // Predicated region
    $region9: #{forward.13} parent=5 // pred_check
      _
    $region10: #{forward.13} parent=5 // pred_check_branch
      %160 = sbr.rel (%p157) target = $region12
    $region11: #{forward.13} parent=5 // pred_region
      %s161 = ssub.s32 %s11, 1
      // Predicated region
      $region13: #{forward.13} parent=11 // pred_check
        %p162 = pneg %p58
      $region14: #{forward.13} parent=11 // pred_check_branch
        %164 = sbr.rel (%p162) target = $region16
      $region15: #{forward.13} parent=11 // pred_region
        _
      $region16: #{forward.13} parent=11 // pred_fallthru
        _
      // Predicated region
      $region17: #{forward.13} parent=11 // pred_check
        %p165 = pneg %p79
      $region18: #{forward.13} parent=11 // pred_check_branch
        %167 = sbr.rel (%p165) target = $region20
      $region19: #{forward.13} parent=11 // pred_region
        _
      $region20: #{forward.13} parent=11 // pred_fallthru
        _
      // Predicated region
      $region21: #{forward.13} parent=11 // pred_check
        %p168 = pneg %p100
      $region22: #{forward.13} parent=11 // pred_check_branch
        %170 = sbr.rel (%p168) target = $region24
      $region23: #{forward.13} parent=11 // pred_region
        _
      $region24: #{forward.13} parent=11 // pred_fallthru
        _
      // Predicated region
      $region25: #{forward.13} parent=11 // pred_check
        %p171 = pneg %p121
      $region26: #{forward.13} parent=11 // pred_check_branch
        %173 = sbr.rel (%p171) target = $region28
      $region27: #{forward.13} parent=11 // pred_region
        _
      $region28: #{forward.13} parent=11 // pred_fallthru
        _
    $region12: #{forward.13} parent=5 // pred_fallthru
      _
    %p174 = scmp.lt.s32.totalorder %s11, 2
    // Predicated region
    $region29: #{forward.13} parent=5 // pred_check
      %p175 = pneg %p174
    $region30: #{forward.13} parent=5 // pred_check_branch
      %177 = sbr.rel (%p175) target = $region32
    $region31: #{forward.13} parent=5 // pred_region
      // Predicated region
      $region33: #{forward.13} parent=31 // pred_check
        %p178 = pneg %p31
      $region34: #{forward.13} parent=31 // pred_check_branch
        %180 = sbr.rel (%p178) target = $region36
      $region35: #{forward.13} parent=31 // pred_region
        %p181 = scmp.lt.s32.totalorder %s11, 1
        %s182 = scalar_select %p181, %s11, 1
        %s183 = smul.addr %s182, 32
        %s184 = smul.addr %s183, 4
        %s185 = scalar_lea.vmem %s0, %s184
      $region36: #{forward.13} parent=31 // pred_fallthru
        _
    $region32: #{forward.13} parent=5 // pred_fallthru
      _
    %p186 = scmp.le.s32.totalorder 1, %s11
    %p187 = scmp.lt.s32.totalorder %s11, 3
    %p188 = pnand %p186, %p187
    %p189 = pneg %p188
    // Predicated region
    $region37: #{forward.13} parent=5 // pred_check
      _
    $region38: #{forward.13} parent=5 // pred_check_branch
      %191 = sbr.rel (%p188) target = $region40
    $region39: #{forward.13} parent=5 // pred_region
      %s192 = ssub.s32 %s11, 1
      %p193 = scmp.lt.s32.totalorder %s16, 1
      %s194 = scalar_select %p193, %s16, 1
      %s195 = smul.addr %s194, 32
      %s196 = smul.addr %s195, 4
      %s197 = scalar_lea.vmem %s0, %s196
      %p198 = pneg %p37
      %p199 = pneg %p34
      %p200 = pneg %p58
      %p201 = pneg %p55
      %p202 = pneg %p79
      %p203 = pneg %p76
      %p204 = pneg %p100
      %p205 = pneg %p97
      %p206 = pneg %p121
      %p207 = pneg %p118
      %p208 = pneg %p147
      %p209 = pneg %p144
      %p210 = scmp.lt.s32.totalorder %s16, 1
      %s211 = scalar_select %p210, %s16, 1
      %s212 = scalar_lea.vmem %s5, %s211
      %p213 = scmp.lt.s32.totalorder %s16, 1
      %s214 = scalar_select %p213, %s16, 1
      %s215 = smul.addr %s214, 32
      %s216 = smul.addr %s215, 4
      %s217 = scalar_lea.vmem %s0, %s216
      %p218 = scmp.lt.s32.totalorder %s16, 1
      %s219 = scalar_select %p218, %s16, 1
      %s220 = scalar_lea.vmem %s5, %s219
      %v222 = vld [vmem:[%s217] sm:$0xf]
      %v223 = vld [vmem:[%s217 + $0x4] sm:$0xf]
      %v224 = vld [vmem:[%s217 + $0x8] sm:$0xf]
      %v225 = vld [vmem:[%s217 + $0xc] sm:$0xf]
      %v226 = vld [vmem:[%s217 + $0x10] sm:$0xf]
      %v227 = vld [vmem:[%s217 + $0x14] sm:$0xf]
      %v228 = vld [vmem:[%s217 + $0x18] sm:$0xf]
      %v229 = vld [vmem:[%s217 + $0x1c] sm:$0xf]
      %v230 = vld [vmem:[%s217 + $0x20] sm:$0xf]
      %v231 = vld [vmem:[%s217 + $0x24] sm:$0xf]
      %v232 = vld [vmem:[%s217 + $0x28] sm:$0xf]
      %v233 = vld [vmem:[%s217 + $0x2c] sm:$0xf]
      %v234 = vld [vmem:[%s217 + $0x30] sm:$0xf]
      %v235 = vld [vmem:[%s217 + $0x34] sm:$0xf]
      %v236 = vld [vmem:[%s217 + $0x38] sm:$0xf]
      %v237 = vld [vmem:[%s217 + $0x3c] sm:$0xf]
      %v238 = vld [vmem:[%s217 + $0x40] sm:$0xf]
      %v239 = vld [vmem:[%s217 + $0x44] sm:$0xf]
      %v240 = vld [vmem:[%s217 + $0x48] sm:$0xf]
      %v241 = vld [vmem:[%s217 + $0x4c] sm:$0xf]
      %v242 = vld [vmem:[%s217 + $0x50] sm:$0xf]
      %v243 = vld [vmem:[%s217 + $0x54] sm:$0xf]
      %v244 = vld [vmem:[%s217 + $0x58] sm:$0xf]
      %v245 = vld [vmem:[%s217 + $0x5c] sm:$0xf]
      %v246 = vld [vmem:[%s217 + $0x60] sm:$0xf]
      %v247 = vld [vmem:[%s217 + $0x64] sm:$0xf]
      %v248 = vld [vmem:[%s217 + $0x68] sm:$0xf]
      %v249 = vld [vmem:[%s217 + $0x6c] sm:$0xf]
      %v250 = vld [vmem:[%s217 + $0x70] sm:$0xf]
      %v251 = vld [vmem:[%s217 + $0x74] sm:$0xf]
      %v252 = vld [vmem:[%s217 + $0x78] sm:$0xf]
      %v253 = vld [vmem:[%s217 + $0x7c] sm:$0xf]
      %v254 = vld [vmem:[%s1] sm:$0xff]
      %v255 = vld [vmem:[%s1 + $0x8] sm:$0xff]
      %v256 = vld [vmem:[%s1 + $0x10] sm:$0xff]
      %v257 = vld [vmem:[%s1 + $0x18] sm:$0xff]
      %v258 = vld [vmem:[%s1 + $0x20] sm:$0xff]
      %v259 = vld [vmem:[%s1 + $0x28] sm:$0xff]
      %v260 = vld [vmem:[%s1 + $0x30] sm:$0xff]
      %v261 = vld [vmem:[%s1 + $0x38] sm:$0xff]
      %v262 = vld [vmem:[%s2] sm:$0x3]
      %v264 = vlaneseq
      %v265 = vshrl.u32 %v264, 7
      %v266 = vsub.s32 0, %v265
      %v267 = vrot.slane %v262, %v266
      %v268 = vlaneseq
      %v269 = vshrl.u32 %v268, 7
      %v270 = vsub.s32 1, %v269
      %v271 = vrot.slane %v262, %v270
      %v306 = vunpack.c.l.b16 %v222
      %v307 = vunpack.c.l.b16 %v223
      %v308 = vunpack.c.l.b16 %v224
      %v309 = vunpack.c.l.b16 %v225
      %v310 = vunpack.c.l.b16 %v226
      %v311 = vunpack.c.l.b16 %v227
      %v312 = vunpack.c.l.b16 %v228
      %v313 = vunpack.c.l.b16 %v229
      %v314 = vunpack.c.l.b16 %v230
      %v315 = vunpack.c.l.b16 %v231
      %v316 = vunpack.c.l.b16 %v232
      %v317 = vunpack.c.l.b16 %v233
      %v318 = vunpack.c.l.b16 %v234
      %v319 = vunpack.c.l.b16 %v235
      %v320 = vunpack.c.l.b16 %v236
      %v321 = vunpack.c.l.b16 %v237
      %v322 = vunpack.c.l.b16 %v238
      %v323 = vunpack.c.l.b16 %v239
      %v324 = vunpack.c.l.b16 %v240
      %v325 = vunpack.c.l.b16 %v241
      %v326 = vunpack.c.l.b16 %v242
      %v327 = vunpack.c.l.b16 %v243
      %v328 = vunpack.c.l.b16 %v244
      %v329 = vunpack.c.l.b16 %v245
      %v330 = vunpack.c.l.b16 %v246
      %v331 = vunpack.c.l.b16 %v247
      %v332 = vunpack.c.l.b16 %v248
      %v333 = vunpack.c.l.b16 %v249
      %v334 = vunpack.c.l.b16 %v250
      %v335 = vunpack.c.l.b16 %v251
      %v336 = vunpack.c.l.b16 %v252
      %v337 = vunpack.c.l.b16 %v253
      %v338 = vpack.c.b16 %v307, %v306
      %v339 = vpack.c.b16 %v309, %v308
      %v340 = vpack.c.b16 %v311, %v310
      %v341 = vpack.c.b16 %v313, %v312
      %v342 = vpack.c.b16 %v315, %v314
      %v343 = vpack.c.b16 %v317, %v316
      %v344 = vpack.c.b16 %v319, %v318
      %v345 = vpack.c.b16 %v321, %v320
      %v346 = vpack.c.b16 %v323, %v322
      %v347 = vpack.c.b16 %v325, %v324
      %v348 = vpack.c.b16 %v327, %v326
      %v349 = vpack.c.b16 %v329, %v328
      %v350 = vpack.c.b16 %v331, %v330
      %v351 = vpack.c.b16 %v333, %v332
      %v352 = vpack.c.b16 %v335, %v334
      %v353 = vpack.c.b16 %v337, %v336
      %v362 = vunpack.c.l.b16 %v254
      %v363 = vunpack.c.h.b16 %v254
      %v364 = vunpack.c.l.b16 %v255
      %v365 = vunpack.c.h.b16 %v255
      %v366 = vunpack.c.l.b16 %v256
      %v367 = vunpack.c.h.b16 %v256
      %v368 = vunpack.c.l.b16 %v257
      %v369 = vunpack.c.h.b16 %v257
      %v370 = vunpack.c.l.b16 %v258
      %v371 = vunpack.c.h.b16 %v258
      %v372 = vunpack.c.l.b16 %v259
      %v373 = vunpack.c.h.b16 %v259
      %v374 = vunpack.c.l.b16 %v260
      %v375 = vunpack.c.h.b16 %v260
      %v376 = vunpack.c.l.b16 %v261
      %v377 = vunpack.c.h.b16 %v261
      %v378 = vpack.c.b16 %v364, %v362
      %v379 = vpack.c.b16 %v365, %v363
      %v380 = vpack.c.b16 %v368, %v366
      %v381 = vpack.c.b16 %v369, %v367
      %v382 = vpack.c.b16 %v372, %v370
      %v383 = vpack.c.b16 %v373, %v371
      %v384 = vpack.c.b16 %v376, %v374
      %v385 = vpack.c.b16 %v377, %v375
      %vm394 = vcmask 523264
      %v396 = vsel %vm394, %v338, 0
      %v399 = vsel %vm394, %v339, 0
      %v402 = vsel %vm394, %v340, 0
      %v405 = vsel %vm394, %v341, 0
      %v408 = vsel %vm394, %v342, 0
      %v411 = vsel %vm394, %v343, 0
      %v414 = vsel %vm394, %v344, 0
      %v417 = vsel %vm394, %v345, 0
      %v420 = vsel %vm394, %v346, 0
      %v423 = vsel %vm394, %v347, 0
      %v426 = vsel %vm394, %v348, 0
      %v429 = vsel %vm394, %v349, 0
      %v432 = vsel %vm394, %v350, 0
      %v435 = vsel %vm394, %v351, 0
      %v438 = vsel %vm394, %v352, 0
      %v441 = vsel %vm394, %v353, 0
      %443 = vmatprep.subr.bf16.mxu0 0
      %444 = vmatpush1.bf16.msra.mxu0 0
      %445 = vmatprep.subr.bf16.mxu0 0
      %446 = vmatpush1.bf16.msra.mxu0 0
      %447 = vmatprep.subr.bf16.mxu0 0
      %448 = vmatpush1.bf16.msra.mxu0 0
      %449 = vmatprep.subr.bf16.mxu0 0
      %450 = vmatpush1.bf16.msra.mxu0 0
      %451 = vmatprep.subr.bf16.mxu0 %v385
      %452 = vmatpush1.bf16.msra.mxu0 %v384
      %453 = vmatprep.subr.bf16.mxu0 %v383
      %454 = vmatpush1.bf16.msra.mxu0 %v382
      %455 = vmatprep.subr.bf16.mxu0 %v381
      %456 = vmatpush1.bf16.msra.mxu0 %v380
      %457 = vmatprep.subr.bf16.mxu0 %v379
      %458 = vmatpush1.bf16.msra.mxu0 %v378
      %459 = vmatprep.subr.bf16.mxu0 0
      %460 = vmatpush2.bf16.msra.mxu0 0
      %461 = vmatprep.subr.bf16.mxu0 0
      %462 = vmatpush2.bf16.msra.mxu0 0
      %463 = vmatprep.subr.bf16.mxu0 0
      %464 = vmatpush2.bf16.msra.mxu0 0
      %465 = vmatprep.subr.bf16.mxu0 0
      %466 = vmatpush2.bf16.msra.mxu0 0
      %467 = vmatprep.subr.bf16.mxu0 0
      %468 = vmatpush2.bf16.msra.mxu0 0
      %469 = vmatprep.subr.bf16.mxu0 0
      %470 = vmatpush2.bf16.msra.mxu0 0
      %471 = vmatprep.subr.bf16.mxu0 0
      %472 = vmatpush2.bf16.msra.mxu0 0
      %473 = vmatprep.subr.bf16.mxu0 0
      %474 = vmatpush2.bf16.msra.mxu0 0
      %475 = vmatprep.mubr.bf16.mxu0 0
      %476 = vmatmul.mubr.bf16.gmra.mxu0 %v396
      %v477 = vpop.f32.mrf.mxu0
      %v478 = vadd.f32 %v267, %v477
      %v479 = vpop.f32.mrf.mxu0
      %v480 = vadd.f32 %v271, %v479
      %v481 = vpop.f32.mrf.mxu0
      %v482 = vadd.f32 %v267, %v481
      %v483 = vpop.f32.mrf.mxu0
      %v484 = vadd.f32 %v271, %v483
      %485 = vmatprep.mubr.bf16.mxu0 0
      %486 = vmatmul.mubr.bf16.gmra.mxu0 %v399
      %v487 = vpop.f32.mrf.mxu0
      %v488 = vadd.f32 %v267, %v487
      %v489 = vpop.f32.mrf.mxu0
      %v490 = vadd.f32 %v271, %v489
      %v491 = vpop.f32.mrf.mxu0
      %v492 = vadd.f32 %v267, %v491
      %v493 = vpop.f32.mrf.mxu0
      %v494 = vadd.f32 %v271, %v493
      %495 = vmatprep.mubr.bf16.mxu0 0
      %496 = vmatmul.mubr.bf16.gmra.mxu0 %v402
      %v497 = vpop.f32.mrf.mxu0
      %v498 = vadd.f32 %v267, %v497
      %v499 = vpop.f32.mrf.mxu0
      %v500 = vadd.f32 %v271, %v499
      %v501 = vpop.f32.mrf.mxu0
      %v502 = vadd.f32 %v267, %v501
      %v503 = vpop.f32.mrf.mxu0
      %v504 = vadd.f32 %v271, %v503
      %505 = vmatprep.mubr.bf16.mxu0 0
      %506 = vmatmul.mubr.bf16.gmra.mxu0 %v405
      %v507 = vpop.f32.mrf.mxu0
      %v508 = vadd.f32 %v267, %v507
      %v509 = vpop.f32.mrf.mxu0
      %v510 = vadd.f32 %v271, %v509
      %v511 = vpop.f32.mrf.mxu0
      %v512 = vadd.f32 %v267, %v511
      %v513 = vpop.f32.mrf.mxu0
      %v514 = vadd.f32 %v271, %v513
      %515 = vmatprep.mubr.bf16.mxu0 0
      %516 = vmatmul.mubr.bf16.gmra.mxu0 %v408
      %v517 = vpop.f32.mrf.mxu0
      %v518 = vadd.f32 %v267, %v517
      %v519 = vpop.f32.mrf.mxu0
      %v520 = vadd.f32 %v271, %v519
      %v521 = vpop.f32.mrf.mxu0
      %v522 = vadd.f32 %v267, %v521
      %v523 = vpop.f32.mrf.mxu0
      %v524 = vadd.f32 %v271, %v523
      %525 = vmatprep.mubr.bf16.mxu0 0
      %526 = vmatmul.mubr.bf16.gmra.mxu0 %v411
      %v527 = vpop.f32.mrf.mxu0
      %v528 = vadd.f32 %v267, %v527
      %v529 = vpop.f32.mrf.mxu0
      %v530 = vadd.f32 %v271, %v529
      %v531 = vpop.f32.mrf.mxu0
      %v532 = vadd.f32 %v267, %v531
      %v533 = vpop.f32.mrf.mxu0
      %v534 = vadd.f32 %v271, %v533
      %535 = vmatprep.mubr.bf16.mxu0 0
      %536 = vmatmul.mubr.bf16.gmra.mxu0 %v414
      %v537 = vpop.f32.mrf.mxu0
      %v538 = vadd.f32 %v267, %v537
      %v539 = vpop.f32.mrf.mxu0
      %v540 = vadd.f32 %v271, %v539
      %v541 = vpop.f32.mrf.mxu0
      %v542 = vadd.f32 %v267, %v541
      %v543 = vpop.f32.mrf.mxu0
      %v544 = vadd.f32 %v271, %v543
      %545 = vmatprep.mubr.bf16.mxu0 0
      %546 = vmatmul.mubr.bf16.gmra.mxu0 %v417
      %v547 = vpop.f32.mrf.mxu0
      %v548 = vadd.f32 %v267, %v547
      %v549 = vpop.f32.mrf.mxu0
      %v550 = vadd.f32 %v271, %v549
      %v551 = vpop.f32.mrf.mxu0
      %v552 = vadd.f32 %v267, %v551
      %v553 = vpop.f32.mrf.mxu0
      %v554 = vadd.f32 %v271, %v553
      %555 = vmatprep.mubr.bf16.mxu0 0
      %556 = vmatmul.mubr.bf16.gmra.mxu0 %v420
      %v557 = vpop.f32.mrf.mxu0
      %v558 = vadd.f32 %v267, %v557
      %v559 = vpop.f32.mrf.mxu0
      %v560 = vadd.f32 %v271, %v559
      %v561 = vpop.f32.mrf.mxu0
      %v562 = vadd.f32 %v267, %v561
      %v563 = vpop.f32.mrf.mxu0
      %v564 = vadd.f32 %v271, %v563
      %565 = vmatprep.mubr.bf16.mxu0 0
      %566 = vmatmul.mubr.bf16.gmra.mxu0 %v423
      %v567 = vpop.f32.mrf.mxu0
      %v568 = vadd.f32 %v267, %v567
      %v569 = vpop.f32.mrf.mxu0
      %v570 = vadd.f32 %v271, %v569
      %v571 = vpop.f32.mrf.mxu0
      %v572 = vadd.f32 %v267, %v571
      %v573 = vpop.f32.mrf.mxu0
      %v574 = vadd.f32 %v271, %v573
      %575 = vmatprep.mubr.bf16.mxu0 0
      %576 = vmatmul.mubr.bf16.gmra.mxu0 %v426
      %v577 = vpop.f32.mrf.mxu0
      %v578 = vadd.f32 %v267, %v577
      %v579 = vpop.f32.mrf.mxu0
      %v580 = vadd.f32 %v271, %v579
      %v581 = vpop.f32.mrf.mxu0
      %v582 = vadd.f32 %v267, %v581
      %v583 = vpop.f32.mrf.mxu0
      %v584 = vadd.f32 %v271, %v583
      %585 = vmatprep.mubr.bf16.mxu0 0
      %586 = vmatmul.mubr.bf16.gmra.mxu0 %v429
      %v587 = vpop.f32.mrf.mxu0
      %v588 = vadd.f32 %v267, %v587
      %v589 = vpop.f32.mrf.mxu0
      %v590 = vadd.f32 %v271, %v589
      %v591 = vpop.f32.mrf.mxu0
      %v592 = vadd.f32 %v267, %v591
      %v593 = vpop.f32.mrf.mxu0
      %v594 = vadd.f32 %v271, %v593
      %595 = vmatprep.mubr.bf16.mxu0 0
      %596 = vmatmul.mubr.bf16.gmra.mxu0 %v432
      %v597 = vpop.f32.mrf.mxu0
      %v598 = vadd.f32 %v267, %v597
      %v599 = vpop.f32.mrf.mxu0
      %v600 = vadd.f32 %v271, %v599
      %v601 = vpop.f32.mrf.mxu0
      %v602 = vadd.f32 %v267, %v601
      %v603 = vpop.f32.mrf.mxu0
      %v604 = vadd.f32 %v271, %v603
      %605 = vmatprep.mubr.bf16.mxu0 0
      %606 = vmatmul.mubr.bf16.gmra.mxu0 %v435
      %v607 = vpop.f32.mrf.mxu0
      %v608 = vadd.f32 %v267, %v607
      %v609 = vpop.f32.mrf.mxu0
      %v610 = vadd.f32 %v271, %v609
      %v611 = vpop.f32.mrf.mxu0
      %v612 = vadd.f32 %v267, %v611
      %v613 = vpop.f32.mrf.mxu0
      %v614 = vadd.f32 %v271, %v613
      %615 = vmatprep.mubr.bf16.mxu0 0
      %616 = vmatmul.mubr.bf16.gmra.mxu0 %v438
      %v617 = vpop.f32.mrf.mxu0
      %v618 = vadd.f32 %v267, %v617
      %v619 = vpop.f32.mrf.mxu0
      %v620 = vadd.f32 %v271, %v619
      %v621 = vpop.f32.mrf.mxu0
      %v622 = vadd.f32 %v267, %v621
      %v623 = vpop.f32.mrf.mxu0
      %v624 = vadd.f32 %v271, %v623
      %625 = vmatprep.mubr.bf16.mxu0 0
      %626 = vmatmul.mubr.bf16.gmra.mxu0 %v441
      %v627 = vpop.f32.mrf.mxu0
      %v628 = vadd.f32 %v267, %v627
      %v629 = vpop.f32.mrf.mxu0
      %v630 = vadd.f32 %v271, %v629
      %v631 = vpop.f32.mrf.mxu0
      %v632 = vadd.f32 %v267, %v631
      %v633 = vpop.f32.mrf.mxu0
      %v634 = vadd.f32 %v271, %v633
      %635 = vdwg.mxu0
      %v636 = vld [vmem:[%s3] sm:$0xf]
      %v637 = vld [vmem:[%s3 + $0x4] sm:$0xf]
      %v638 = vld [vmem:[%s3 + $0x8] sm:$0xf]
      %v639 = vld [vmem:[%s3 + $0xc] sm:$0xf]
      %v640 = vld [vmem:[%s3 + $0x10] sm:$0xf]
      %v641 = vld [vmem:[%s3 + $0x14] sm:$0xf]
      %v642 = vld [vmem:[%s3 + $0x18] sm:$0xf]
      %v643 = vld [vmem:[%s3 + $0x1c] sm:$0xf]
      %v644 = vmul.f32 %v478, 0.25
      %v645 = vmul.f32 %v482, 0.25
      %v646 = vmul.f32 %v488, 0.25
      %v647 = vmul.f32 %v492, 0.25
      %v648 = vmul.f32 %v498, 0.25
      %v649 = vmul.f32 %v502, 0.25
      %v650 = vmul.f32 %v508, 0.25
      %v651 = vmul.f32 %v512, 0.25
      %v652 = vmul.f32 %v518, 0.25
      %v653 = vmul.f32 %v522, 0.25
      %v654 = vmul.f32 %v528, 0.25
      %v655 = vmul.f32 %v532, 0.25
      %v656 = vmul.f32 %v538, 0.25
      %v657 = vmul.f32 %v542, 0.25
      %v658 = vmul.f32 %v548, 0.25
      %v659 = vmul.f32 %v552, 0.25
      %v660 = vmul.f32 %v558, 0.25
      %v661 = vmul.f32 %v562, 0.25
      %v662 = vmul.f32 %v568, 0.25
      %v663 = vmul.f32 %v572, 0.25
      %v664 = vmul.f32 %v578, 0.25
      %v665 = vmul.f32 %v582, 0.25
      %v666 = vmul.f32 %v588, 0.25
      %v667 = vmul.f32 %v592, 0.25
      %v668 = vmul.f32 %v598, 0.25
      %v669 = vmul.f32 %v602, 0.25
      %v670 = vmul.f32 %v608, 0.25
      %v671 = vmul.f32 %v612, 0.25
      %v672 = vmul.f32 %v618, 0.25
      %v673 = vmul.f32 %v622, 0.25
      %v674 = vmul.f32 %v628, 0.25
      %v675 = vmul.f32 %v632, 0.25
      %v676 = vpack.c.bf16 %v645, %v644
      %v677 = vpack.c.bf16 %v647, %v646
      %v678 = vpack.c.bf16 %v649, %v648
      %v679 = vpack.c.bf16 %v651, %v650
      %v680 = vpack.c.bf16 %v653, %v652
      %v681 = vpack.c.bf16 %v655, %v654
      %v682 = vpack.c.bf16 %v657, %v656
      %v683 = vpack.c.bf16 %v659, %v658
      %v684 = vpack.c.bf16 %v661, %v660
      %v685 = vpack.c.bf16 %v663, %v662
      %v686 = vpack.c.bf16 %v665, %v664
      %v687 = vpack.c.bf16 %v667, %v666
      %v688 = vpack.c.bf16 %v669, %v668
      %v689 = vpack.c.bf16 %v671, %v670
      %v690 = vpack.c.bf16 %v673, %v672
      %v691 = vpack.c.bf16 %v675, %v674
      %v692 = vpack.c.bf16 %v482, %v478
      %v693 = vpack.c.bf16 %v492, %v488
      %v694 = vpack.c.bf16 %v502, %v498
      %v695 = vpack.c.bf16 %v512, %v508
      %v696 = vpack.c.bf16 %v522, %v518
      %v697 = vpack.c.bf16 %v532, %v528
      %v698 = vpack.c.bf16 %v542, %v538
      %v699 = vpack.c.bf16 %v552, %v548
      %v700 = vpack.c.bf16 %v562, %v558
      %v701 = vpack.c.bf16 %v572, %v568
      %v702 = vpack.c.bf16 %v582, %v578
      %v703 = vpack.c.bf16 %v592, %v588
      %v704 = vpack.c.bf16 %v602, %v598
      %v705 = vpack.c.bf16 %v612, %v608
      %v706 = vpack.c.bf16 %v622, %v618
      %v707 = vpack.c.bf16 %v632, %v628
      %v708 = vpack.c.bf16 %v484, %v480
      %v709 = vpack.c.bf16 %v494, %v490
      %v710 = vpack.c.bf16 %v504, %v500
      %v711 = vpack.c.bf16 %v514, %v510
      %v712 = vpack.c.bf16 %v524, %v520
      %v713 = vpack.c.bf16 %v534, %v530
      %v714 = vpack.c.bf16 %v544, %v540
      %v715 = vpack.c.bf16 %v554, %v550
      %v716 = vpack.c.bf16 %v564, %v560
      %v717 = vpack.c.bf16 %v574, %v570
      %v718 = vpack.c.bf16 %v584, %v580
      %v719 = vpack.c.bf16 %v594, %v590
      %v720 = vpack.c.bf16 %v604, %v600
      %v721 = vpack.c.bf16 %v614, %v610
      %v722 = vpack.c.bf16 %v624, %v620
      %v723 = vpack.c.bf16 %v634, %v630
      %740 = vrot.lane.b32.xlu0 %v692, 64
      %v741 = vpop.permute.xlu0 %740
      %742 = vrot.lane.b32.xlu0 %v693, 64
      %v743 = vpop.permute.xlu0 %742
      %744 = vrot.lane.b32.xlu0 %v694, 64
      %v745 = vpop.permute.xlu0 %744
      %746 = vrot.lane.b32.xlu0 %v695, 64
      %v747 = vpop.permute.xlu0 %746
      %748 = vrot.lane.b32.xlu0 %v696, 64
      %v749 = vpop.permute.xlu0 %748
      %750 = vrot.lane.b32.xlu0 %v697, 64
      %v751 = vpop.permute.xlu0 %750
      %752 = vrot.lane.b32.xlu0 %v698, 64
      %v753 = vpop.permute.xlu0 %752
      %754 = vrot.lane.b32.xlu0 %v699, 64
      %v755 = vpop.permute.xlu0 %754
      %756 = vrot.lane.b32.xlu0 %v700, 64
      %v757 = vpop.permute.xlu0 %756
      %758 = vrot.lane.b32.xlu0 %v701, 64
      %v759 = vpop.permute.xlu0 %758
      %760 = vrot.lane.b32.xlu0 %v702, 64
      %v761 = vpop.permute.xlu0 %760
      %762 = vrot.lane.b32.xlu0 %v703, 64
      %v763 = vpop.permute.xlu0 %762
      %764 = vrot.lane.b32.xlu0 %v704, 64
      %v765 = vpop.permute.xlu0 %764
      %766 = vrot.lane.b32.xlu0 %v705, 64
      %v767 = vpop.permute.xlu0 %766
      %768 = vrot.lane.b32.xlu0 %v706, 64
      %v769 = vpop.permute.xlu0 %768
      %770 = vrot.lane.b32.xlu0 %v707, 64
      %v771 = vpop.permute.xlu0 %770
      %vm772 = vcmask 130048
      %v774 = vsel %vm772, %v676, 0
      %v777 = vsel %vm772, %v677, 0
      %v780 = vsel %vm772, %v678, 0
      %v783 = vsel %vm772, %v679, 0
      %v786 = vsel %vm772, %v680, 0
      %v789 = vsel %vm772, %v681, 0
      %v792 = vsel %vm772, %v682, 0
      %v795 = vsel %vm772, %v683, 0
      %v798 = vsel %vm772, %v684, 0
      %v801 = vsel %vm772, %v685, 0
      %v804 = vsel %vm772, %v686, 0
      %v807 = vsel %vm772, %v687, 0
      %v810 = vsel %vm772, %v688, 0
      %v813 = vsel %vm772, %v689, 0
      %v816 = vsel %vm772, %v690, 0
      %v819 = vsel %vm772, %v691, 0
      %v822 = vsel %vm772, %v741, 0
      %v825 = vsel %vm772, %v743, 0
      %v828 = vsel %vm772, %v745, 0
      %v831 = vsel %vm772, %v747, 0
      %v834 = vsel %vm772, %v749, 0
      %v837 = vsel %vm772, %v751, 0
      %v840 = vsel %vm772, %v753, 0
      %v843 = vsel %vm772, %v755, 0
      %v846 = vsel %vm772, %v757, 0
      %v849 = vsel %vm772, %v759, 0
      %v852 = vsel %vm772, %v761, 0
      %v855 = vsel %vm772, %v763, 0
      %v858 = vsel %vm772, %v765, 0
      %v861 = vsel %vm772, %v767, 0
      %v864 = vsel %vm772, %v769, 0
      %v867 = vsel %vm772, %v771, 0
      %869 = vmatprep.subr.bf16.mxu0 0
      %870 = vmatpush1.bf16.xpose.msra.mxu0 %v843
      %871 = vmatprep.subr.bf16.mxu0 0
      %872 = vmatpush1.bf16.xpose.msra.mxu0 %v840
      %873 = vmatprep.subr.bf16.mxu0 0
      %874 = vmatpush1.bf16.xpose.msra.mxu0 %v837
      %875 = vmatprep.subr.bf16.mxu0 0
      %876 = vmatpush1.bf16.xpose.msra.mxu0 %v834
      %877 = vmatprep.subr.bf16.mxu0 0
      %878 = vmatpush1.bf16.xpose.msra.mxu0 %v831
      %879 = vmatprep.subr.bf16.mxu0 0
      %880 = vmatpush1.bf16.xpose.msra.mxu0 %v828
      %881 = vmatprep.subr.bf16.mxu0 0
      %882 = vmatpush1.bf16.xpose.msra.mxu0 %v825
      %883 = vmatprep.subr.bf16.mxu0 0
      %884 = vmatpush1.bf16.xpose.msra.mxu0 %v822
      %885 = vmatprep.subr.bf16.mxu0 0
      %886 = vmatpush2.bf16.xpose.msra.mxu0 %v867
      %887 = vmatprep.subr.bf16.mxu0 0
      %888 = vmatpush2.bf16.xpose.msra.mxu0 %v864
      %889 = vmatprep.subr.bf16.mxu0 0
      %890 = vmatpush2.bf16.xpose.msra.mxu0 %v861
      %891 = vmatprep.subr.bf16.mxu0 0
      %892 = vmatpush2.bf16.xpose.msra.mxu0 %v858
      %893 = vmatprep.subr.bf16.mxu0 0
      %894 = vmatpush2.bf16.xpose.msra.mxu0 %v855
      %895 = vmatprep.subr.bf16.mxu0 0
      %896 = vmatpush2.bf16.xpose.msra.mxu0 %v852
      %897 = vmatprep.subr.bf16.mxu0 0
      %898 = vmatpush2.bf16.xpose.msra.mxu0 %v849
      %899 = vmatprep.subr.bf16.mxu0 0
      %900 = vmatpush2.bf16.xpose.msra.mxu0 %v846
      %901 = vmatprep.mubr.bf16.mxu0 0
      %902 = vmatmul.mubr.bf16.gmra.mxu0 %v774
      %v903 = vpop.f32.mrf.mxu0
      %v904 = vadd.f32 0.0, %v903
      %v905 = vpop.f32.mrf.mxu0
      %v906 = vadd.f32 0.0, %v905
      %v907 = vpop.f32.mrf.mxu0
      %v908 = vadd.f32 0.0, %v907
      %v909 = vpop.f32.mrf.mxu0
      %v910 = vadd.f32 0.0, %v909
      %911 = vmatprep.mubr.bf16.mxu0 0
      %912 = vmatmul.mubr.bf16.gmra.mxu0 %v777
      %v913 = vpop.f32.mrf.mxu0
      %v914 = vadd.f32 0.0, %v913
      %v915 = vpop.f32.mrf.mxu0
      %v916 = vadd.f32 0.0, %v915
      %v917 = vpop.f32.mrf.mxu0
      %v918 = vadd.f32 0.0, %v917
      %v919 = vpop.f32.mrf.mxu0
      %v920 = vadd.f32 0.0, %v919
      %921 = vmatprep.mubr.bf16.mxu0 0
      %922 = vmatmul.mubr.bf16.gmra.mxu0 %v780
      %v923 = vpop.f32.mrf.mxu0
      %v924 = vadd.f32 0.0, %v923
      %v925 = vpop.f32.mrf.mxu0
      %v926 = vadd.f32 0.0, %v925
      %v927 = vpop.f32.mrf.mxu0
      %v928 = vadd.f32 0.0, %v927
      %v929 = vpop.f32.mrf.mxu0
      %v930 = vadd.f32 0.0, %v929
      %931 = vmatprep.mubr.bf16.mxu0 0
      %932 = vmatmul.mubr.bf16.gmra.mxu0 %v783
      %v933 = vpop.f32.mrf.mxu0
      %v934 = vadd.f32 0.0, %v933
      %v935 = vpop.f32.mrf.mxu0
      %v936 = vadd.f32 0.0, %v935
      %v937 = vpop.f32.mrf.mxu0
      %v938 = vadd.f32 0.0, %v937
      %v939 = vpop.f32.mrf.mxu0
      %v940 = vadd.f32 0.0, %v939
      %941 = vmatprep.mubr.bf16.mxu0 0
      %942 = vmatmul.mubr.bf16.gmra.mxu0 %v786
      %v943 = vpop.f32.mrf.mxu0
      %v944 = vadd.f32 0.0, %v943
      %v945 = vpop.f32.mrf.mxu0
      %v946 = vadd.f32 0.0, %v945
      %v947 = vpop.f32.mrf.mxu0
      %v948 = vadd.f32 0.0, %v947
      %v949 = vpop.f32.mrf.mxu0
      %v950 = vadd.f32 0.0, %v949
      %951 = vmatprep.mubr.bf16.mxu0 0
      %952 = vmatmul.mubr.bf16.gmra.mxu0 %v789
      %v953 = vpop.f32.mrf.mxu0
      %v954 = vadd.f32 0.0, %v953
      %v955 = vpop.f32.mrf.mxu0
      %v956 = vadd.f32 0.0, %v955
      %v957 = vpop.f32.mrf.mxu0
      %v958 = vadd.f32 0.0, %v957
      %v959 = vpop.f32.mrf.mxu0
      %v960 = vadd.f32 0.0, %v959
      %961 = vmatprep.mubr.bf16.mxu0 0
      %962 = vmatmul.mubr.bf16.gmra.mxu0 %v792
      %v963 = vpop.f32.mrf.mxu0
      %v964 = vadd.f32 0.0, %v963
      %v965 = vpop.f32.mrf.mxu0
      %v966 = vadd.f32 0.0, %v965
      %v967 = vpop.f32.mrf.mxu0
      %v968 = vadd.f32 0.0, %v967
      %v969 = vpop.f32.mrf.mxu0
      %v970 = vadd.f32 0.0, %v969
      %971 = vmatprep.mubr.bf16.mxu0 0
      %972 = vmatmul.mubr.bf16.gmra.mxu0 %v795
      %v973 = vpop.f32.mrf.mxu0
      %v974 = vadd.f32 0.0, %v973
      %v975 = vpop.f32.mrf.mxu0
      %v976 = vadd.f32 0.0, %v975
      %v977 = vpop.f32.mrf.mxu0
      %v978 = vadd.f32 0.0, %v977
      %v979 = vpop.f32.mrf.mxu0
      %v980 = vadd.f32 0.0, %v979
      %981 = vmatprep.mubr.bf16.mxu0 0
      %982 = vmatmul.mubr.bf16.gmra.mxu0 %v798
      %v983 = vpop.f32.mrf.mxu0
      %v984 = vadd.f32 0.0, %v983
      %v985 = vpop.f32.mrf.mxu0
      %v986 = vadd.f32 0.0, %v985
      %v987 = vpop.f32.mrf.mxu0
      %v988 = vadd.f32 0.0, %v987
      %v989 = vpop.f32.mrf.mxu0
      %v990 = vadd.f32 0.0, %v989
      %991 = vmatprep.mubr.bf16.mxu0 0
      %992 = vmatmul.mubr.bf16.gmra.mxu0 %v801
      %v993 = vpop.f32.mrf.mxu0
      %v994 = vadd.f32 0.0, %v993
      %v995 = vpop.f32.mrf.mxu0
      %v996 = vadd.f32 0.0, %v995
      %v997 = vpop.f32.mrf.mxu0
      %v998 = vadd.f32 0.0, %v997
      %v999 = vpop.f32.mrf.mxu0
      %v1000 = vadd.f32 0.0, %v999
      %1001 = vmatprep.mubr.bf16.mxu0 0
      %1002 = vmatmul.mubr.bf16.gmra.mxu0 %v804
      %v1003 = vpop.f32.mrf.mxu0
      %v1004 = vadd.f32 0.0, %v1003
      %v1005 = vpop.f32.mrf.mxu0
      %v1006 = vadd.f32 0.0, %v1005
      %v1007 = vpop.f32.mrf.mxu0
      %v1008 = vadd.f32 0.0, %v1007
      %v1009 = vpop.f32.mrf.mxu0
      %v1010 = vadd.f32 0.0, %v1009
      %1011 = vmatprep.mubr.bf16.mxu0 0
      %1012 = vmatmul.mubr.bf16.gmra.mxu0 %v807
      %v1013 = vpop.f32.mrf.mxu0
      %v1014 = vadd.f32 0.0, %v1013
      %v1015 = vpop.f32.mrf.mxu0
      %v1016 = vadd.f32 0.0, %v1015
      %v1017 = vpop.f32.mrf.mxu0
      %v1018 = vadd.f32 0.0, %v1017
      %v1019 = vpop.f32.mrf.mxu0
      %v1020 = vadd.f32 0.0, %v1019
      %1021 = vmatprep.mubr.bf16.mxu0 0
      %1022 = vmatmul.mubr.bf16.gmra.mxu0 %v810
      %v1023 = vpop.f32.mrf.mxu0
      %v1024 = vadd.f32 0.0, %v1023
      %v1025 = vpop.f32.mrf.mxu0
      %v1026 = vadd.f32 0.0, %v1025
      %v1027 = vpop.f32.mrf.mxu0
      %v1028 = vadd.f32 0.0, %v1027
      %v1029 = vpop.f32.mrf.mxu0
      %v1030 = vadd.f32 0.0, %v1029
      %1031 = vmatprep.mubr.bf16.mxu0 0
      %1032 = vmatmul.mubr.bf16.gmra.mxu0 %v813
      %v1033 = vpop.f32.mrf.mxu0
      %v1034 = vadd.f32 0.0, %v1033
      %v1035 = vpop.f32.mrf.mxu0
      %v1036 = vadd.f32 0.0, %v1035
      %v1037 = vpop.f32.mrf.mxu0
      %v1038 = vadd.f32 0.0, %v1037
      %v1039 = vpop.f32.mrf.mxu0
      %v1040 = vadd.f32 0.0, %v1039
      %1041 = vmatprep.mubr.bf16.mxu0 0
      %1042 = vmatmul.mubr.bf16.gmra.mxu0 %v816
      %v1043 = vpop.f32.mrf.mxu0
      %v1044 = vadd.f32 0.0, %v1043
      %v1045 = vpop.f32.mrf.mxu0
      %v1046 = vadd.f32 0.0, %v1045
      %v1047 = vpop.f32.mrf.mxu0
      %v1048 = vadd.f32 0.0, %v1047
      %v1049 = vpop.f32.mrf.mxu0
      %v1050 = vadd.f32 0.0, %v1049
      %1051 = vmatprep.mubr.bf16.mxu0 0
      %1052 = vmatmul.mubr.bf16.gmra.mxu0 %v819
      %v1053 = vpop.f32.mrf.mxu0
      %v1054 = vadd.f32 0.0, %v1053
      %v1055 = vpop.f32.mrf.mxu0
      %v1056 = vadd.f32 0.0, %v1055
      %v1057 = vpop.f32.mrf.mxu0
      %v1058 = vadd.f32 0.0, %v1057
      %v1059 = vpop.f32.mrf.mxu0
      %v1060 = vadd.f32 0.0, %v1059
      %1061 = vdwg.mxu0
      %v1062 = vmax.f32 %v904, %v906
      %1063 = vmax.xlane.f32.xlu0 %v1062
      %v1064 = vpop.xlane.xlu0 %1063
      %v1065 = vmax.f32 %v908, %v910
      %1066 = vmax.xlane.f32.xlu0 %v1065
      %v1067 = vpop.xlane.xlu0 %1066
      %v1068 = vmax.f32 %v914, %v916
      %1069 = vmax.xlane.f32.xlu0 %v1068
      %v1070 = vpop.xlane.xlu0 %1069
      %v1071 = vmax.f32 %v918, %v920
      %1072 = vmax.xlane.f32.xlu0 %v1071
      %v1073 = vpop.xlane.xlu0 %1072
      %v1074 = vmax.f32 %v924, %v926
      %1075 = vmax.xlane.f32.xlu0 %v1074
      %v1076 = vpop.xlane.xlu0 %1075
      %v1077 = vmax.f32 %v928, %v930
      %1078 = vmax.xlane.f32.xlu0 %v1077
      %v1079 = vpop.xlane.xlu0 %1078
      %v1080 = vmax.f32 %v934, %v936
      %1081 = vmax.xlane.f32.xlu0 %v1080
      %v1082 = vpop.xlane.xlu0 %1081
      %v1083 = vmax.f32 %v938, %v940
      %1084 = vmax.xlane.f32.xlu0 %v1083
      %v1085 = vpop.xlane.xlu0 %1084
      %v1086 = vmax.f32 %v944, %v946
      %1087 = vmax.xlane.f32.xlu0 %v1086
      %v1088 = vpop.xlane.xlu0 %1087
      %v1089 = vmax.f32 %v948, %v950
      %1090 = vmax.xlane.f32.xlu0 %v1089
      %v1091 = vpop.xlane.xlu0 %1090
      %v1092 = vmax.f32 %v954, %v956
      %1093 = vmax.xlane.f32.xlu0 %v1092
      %v1094 = vpop.xlane.xlu0 %1093
      %v1095 = vmax.f32 %v958, %v960
      %1096 = vmax.xlane.f32.xlu0 %v1095
      %v1097 = vpop.xlane.xlu0 %1096
      %v1098 = vmax.f32 %v964, %v966
      %1099 = vmax.xlane.f32.xlu0 %v1098
      %v1100 = vpop.xlane.xlu0 %1099
      %v1101 = vmax.f32 %v968, %v970
      %1102 = vmax.xlane.f32.xlu0 %v1101
      %v1103 = vpop.xlane.xlu0 %1102
      %v1104 = vmax.f32 %v974, %v976
      %1105 = vmax.xlane.f32.xlu0 %v1104
      %v1106 = vpop.xlane.xlu0 %1105
      %v1107 = vmax.f32 %v978, %v980
      %1108 = vmax.xlane.f32.xlu0 %v1107
      %v1109 = vpop.xlane.xlu0 %1108
      %v1110 = vmax.f32 %v984, %v986
      %1111 = vmax.xlane.f32.xlu0 %v1110
      %v1112 = vpop.xlane.xlu0 %1111
      %v1113 = vmax.f32 %v988, %v990
      %1114 = vmax.xlane.f32.xlu0 %v1113
      %v1115 = vpop.xlane.xlu0 %1114
      %v1116 = vmax.f32 %v994, %v996
      %1117 = vmax.xlane.f32.xlu0 %v1116
      %v1118 = vpop.xlane.xlu0 %1117
      %v1119 = vmax.f32 %v998, %v1000
      %1120 = vmax.xlane.f32.xlu0 %v1119
      %v1121 = vpop.xlane.xlu0 %1120
      %v1122 = vmax.f32 %v1004, %v1006
      %1123 = vmax.xlane.f32.xlu0 %v1122
      %v1124 = vpop.xlane.xlu0 %1123
      %v1125 = vmax.f32 %v1008, %v1010
      %1126 = vmax.xlane.f32.xlu0 %v1125
      %v1127 = vpop.xlane.xlu0 %1126
      %v1128 = vmax.f32 %v1014, %v1016
      %1129 = vmax.xlane.f32.xlu0 %v1128
      %v1130 = vpop.xlane.xlu0 %1129
      %v1131 = vmax.f32 %v1018, %v1020
      %1132 = vmax.xlane.f32.xlu0 %v1131
      %v1133 = vpop.xlane.xlu0 %1132
      %v1134 = vmax.f32 %v1024, %v1026
      %1135 = vmax.xlane.f32.xlu0 %v1134
      %v1136 = vpop.xlane.xlu0 %1135
      %v1137 = vmax.f32 %v1028, %v1030
      %1138 = vmax.xlane.f32.xlu0 %v1137
      %v1139 = vpop.xlane.xlu0 %1138
      %v1140 = vmax.f32 %v1034, %v1036
      %1141 = vmax.xlane.f32.xlu0 %v1140
      %v1142 = vpop.xlane.xlu0 %1141
      %v1143 = vmax.f32 %v1038, %v1040
      %1144 = vmax.xlane.f32.xlu0 %v1143
      %v1145 = vpop.xlane.xlu0 %1144
      %v1146 = vmax.f32 %v1044, %v1046
      %1147 = vmax.xlane.f32.xlu0 %v1146
      %v1148 = vpop.xlane.xlu0 %1147
      %v1149 = vmax.f32 %v1048, %v1050
      %1150 = vmax.xlane.f32.xlu0 %v1149
      %v1151 = vpop.xlane.xlu0 %1150
      %v1152 = vmax.f32 %v1054, %v1056
      %1153 = vmax.xlane.f32.xlu0 %v1152
      %v1154 = vpop.xlane.xlu0 %1153
      %v1155 = vmax.f32 %v1058, %v1060
      %1156 = vmax.xlane.f32.xlu0 %v1155
      %v1157 = vpop.xlane.xlu0 %1156
      %v1158 = vsub.f32 %v904, %v1064
      %v1159 = vsub.f32 %v906, %v1064
      %v1160 = vsub.f32 %v908, %v1067
      %v1161 = vsub.f32 %v910, %v1067
      %v1162 = vsub.f32 %v914, %v1070
      %v1163 = vsub.f32 %v916, %v1070
      %v1164 = vsub.f32 %v918, %v1073
      %v1165 = vsub.f32 %v920, %v1073
      %v1166 = vsub.f32 %v924, %v1076
      %v1167 = vsub.f32 %v926, %v1076
      %v1168 = vsub.f32 %v928, %v1079
      %v1169 = vsub.f32 %v930, %v1079
      %v1170 = vsub.f32 %v934, %v1082
      %v1171 = vsub.f32 %v936, %v1082
      %v1172 = vsub.f32 %v938, %v1085
      %v1173 = vsub.f32 %v940, %v1085
      %v1174 = vsub.f32 %v944, %v1088
      %v1175 = vsub.f32 %v946, %v1088
      %v1176 = vsub.f32 %v948, %v1091
      %v1177 = vsub.f32 %v950, %v1091
      %v1178 = vsub.f32 %v954, %v1094
      %v1179 = vsub.f32 %v956, %v1094
      %v1180 = vsub.f32 %v958, %v1097
      %v1181 = vsub.f32 %v960, %v1097
      %v1182 = vsub.f32 %v964, %v1100
      %v1183 = vsub.f32 %v966, %v1100
      %v1184 = vsub.f32 %v968, %v1103
      %v1185 = vsub.f32 %v970, %v1103
      %v1186 = vsub.f32 %v974, %v1106
      %v1187 = vsub.f32 %v976, %v1106
      %v1188 = vsub.f32 %v978, %v1109
      %v1189 = vsub.f32 %v980, %v1109
      %v1190 = vsub.f32 %v984, %v1112
      %v1191 = vsub.f32 %v986, %v1112
      %v1192 = vsub.f32 %v988, %v1115
      %v1193 = vsub.f32 %v990, %v1115
      %v1194 = vsub.f32 %v994, %v1118
      %v1195 = vsub.f32 %v996, %v1118
      %v1196 = vsub.f32 %v998, %v1121
      %v1197 = vsub.f32 %v1000, %v1121
      %v1198 = vsub.f32 %v1004, %v1124
      %v1199 = vsub.f32 %v1006, %v1124
      %v1200 = vsub.f32 %v1008, %v1127
      %v1201 = vsub.f32 %v1010, %v1127
      %v1202 = vsub.f32 %v1014, %v1130
      %v1203 = vsub.f32 %v1016, %v1130
      %v1204 = vsub.f32 %v1018, %v1133
      %v1205 = vsub.f32 %v1020, %v1133
      %v1206 = vsub.f32 %v1024, %v1136
      %v1207 = vsub.f32 %v1026, %v1136
      %v1208 = vsub.f32 %v1028, %v1139
      %v1209 = vsub.f32 %v1030, %v1139
      %v1210 = vsub.f32 %v1034, %v1142
      %v1211 = vsub.f32 %v1036, %v1142
      %v1212 = vsub.f32 %v1038, %v1145
      %v1213 = vsub.f32 %v1040, %v1145
      %v1214 = vsub.f32 %v1044, %v1148
      %v1215 = vsub.f32 %v1046, %v1148
      %v1216 = vsub.f32 %v1048, %v1151
      %v1217 = vsub.f32 %v1050, %v1151
      %v1218 = vsub.f32 %v1054, %v1154
      %v1219 = vsub.f32 %v1056, %v1154
      %v1220 = vsub.f32 %v1058, %v1157
      %v1221 = vsub.f32 %v1060, %v1157
      %v1222 = vmul.f32 %v1158, 1.442695
      %v1223 = vpow.pop %v1222
      %v1224 = vmul.f32 %v1159, 1.442695
      %v1225 = vpow.pop %v1224
      %v1226 = vmul.f32 %v1160, 1.442695
      %v1227 = vpow.pop %v1226
      %v1228 = vmul.f32 %v1161, 1.442695
      %v1229 = vpow.pop %v1228
      %v1230 = vmul.f32 %v1162, 1.442695
      %v1231 = vpow.pop %v1230
      %v1232 = vmul.f32 %v1163, 1.442695
      %v1233 = vpow.pop %v1232
      %v1234 = vmul.f32 %v1164, 1.442695
      %v1235 = vpow.pop %v1234
      %v1236 = vmul.f32 %v1165, 1.442695
      %v1237 = vpow.pop %v1236
      %v1238 = vmul.f32 %v1166, 1.442695
      %v1239 = vpow.pop %v1238
      %v1240 = vmul.f32 %v1167, 1.442695
      %v1241 = vpow.pop %v1240
      %v1242 = vmul.f32 %v1168, 1.442695
      %v1243 = vpow.pop %v1242
      %v1244 = vmul.f32 %v1169, 1.442695
      %v1245 = vpow.pop %v1244
      %v1246 = vmul.f32 %v1170, 1.442695
      %v1247 = vpow.pop %v1246
      %v1248 = vmul.f32 %v1171, 1.442695
      %v1249 = vpow.pop %v1248
      %v1250 = vmul.f32 %v1172, 1.442695
      %v1251 = vpow.pop %v1250
      %v1252 = vmul.f32 %v1173, 1.442695
      %v1253 = vpow.pop %v1252
      %v1254 = vmul.f32 %v1174, 1.442695
      %v1255 = vpow.pop %v1254
      %v1256 = vmul.f32 %v1175, 1.442695
      %v1257 = vpow.pop %v1256
      %v1258 = vmul.f32 %v1176, 1.442695
      %v1259 = vpow.pop %v1258
      %v1260 = vmul.f32 %v1177, 1.442695
      %v1261 = vpow.pop %v1260
      %v1262 = vmul.f32 %v1178, 1.442695
      %v1263 = vpow.pop %v1262
      %v1264 = vmul.f32 %v1179, 1.442695
      %v1265 = vpow.pop %v1264
      %v1266 = vmul.f32 %v1180, 1.442695
      %v1267 = vpow.pop %v1266
      %v1268 = vmul.f32 %v1181, 1.442695
      %v1269 = vpow.pop %v1268
      %v1270 = vmul.f32 %v1182, 1.442695
      %v1271 = vpow.pop %v1270
      %v1272 = vmul.f32 %v1183, 1.442695
      %v1273 = vpow.pop %v1272
      %v1274 = vmul.f32 %v1184, 1.442695
      %v1275 = vpow.pop %v1274
      %v1276 = vmul.f32 %v1185, 1.442695
      %v1277 = vpow.pop %v1276
      %v1278 = vmul.f32 %v1186, 1.442695
      %v1279 = vpow.pop %v1278
      %v1280 = vmul.f32 %v1187, 1.442695
      %v1281 = vpow.pop %v1280
      %v1282 = vmul.f32 %v1188, 1.442695
      %v1283 = vpow.pop %v1282
      %v1284 = vmul.f32 %v1189, 1.442695
      %v1285 = vpow.pop %v1284
      %v1286 = vmul.f32 %v1190, 1.442695
      %v1287 = vpow.pop %v1286
      %v1288 = vmul.f32 %v1191, 1.442695
      %v1289 = vpow.pop %v1288
      %v1290 = vmul.f32 %v1192, 1.442695
      %v1291 = vpow.pop %v1290
      %v1292 = vmul.f32 %v1193, 1.442695
      %v1293 = vpow.pop %v1292
      %v1294 = vmul.f32 %v1194, 1.442695
      %v1295 = vpow.pop %v1294
      %v1296 = vmul.f32 %v1195, 1.442695
      %v1297 = vpow.pop %v1296
      %v1298 = vmul.f32 %v1196, 1.442695
      %v1299 = vpow.pop %v1298
      %v1300 = vmul.f32 %v1197, 1.442695
      %v1301 = vpow.pop %v1300
      %v1302 = vmul.f32 %v1198, 1.442695
      %v1303 = vpow.pop %v1302
      %v1304 = vmul.f32 %v1199, 1.442695
      %v1305 = vpow.pop %v1304
      %v1306 = vmul.f32 %v1200, 1.442695
      %v1307 = vpow.pop %v1306
      %v1308 = vmul.f32 %v1201, 1.442695
      %v1309 = vpow.pop %v1308
      %v1310 = vmul.f32 %v1202, 1.442695
      %v1311 = vpow.pop %v1310
      %v1312 = vmul.f32 %v1203, 1.442695
      %v1313 = vpow.pop %v1312
      %v1314 = vmul.f32 %v1204, 1.442695
      %v1315 = vpow.pop %v1314
      %v1316 = vmul.f32 %v1205, 1.442695
      %v1317 = vpow.pop %v1316
      %v1318 = vmul.f32 %v1206, 1.442695
      %v1319 = vpow.pop %v1318
      %v1320 = vmul.f32 %v1207, 1.442695
      %v1321 = vpow.pop %v1320
      %v1322 = vmul.f32 %v1208, 1.442695
      %v1323 = vpow.pop %v1322
      %v1324 = vmul.f32 %v1209, 1.442695
      %v1325 = vpow.pop %v1324
      %v1326 = vmul.f32 %v1210, 1.442695
      %v1327 = vpow.pop %v1326
      %v1328 = vmul.f32 %v1211, 1.442695
      %v1329 = vpow.pop %v1328
      %v1330 = vmul.f32 %v1212, 1.442695
      %v1331 = vpow.pop %v1330
      %v1332 = vmul.f32 %v1213, 1.442695
      %v1333 = vpow.pop %v1332
      %v1334 = vmul.f32 %v1214, 1.442695
      %v1335 = vpow.pop %v1334
      %v1336 = vmul.f32 %v1215, 1.442695
      %v1337 = vpow.pop %v1336
      %v1338 = vmul.f32 %v1216, 1.442695
      %v1339 = vpow.pop %v1338
      %v1340 = vmul.f32 %v1217, 1.442695
      %v1341 = vpow.pop %v1340
      %v1342 = vmul.f32 %v1218, 1.442695
      %v1343 = vpow.pop %v1342
      %v1344 = vmul.f32 %v1219, 1.442695
      %v1345 = vpow.pop %v1344
      %v1346 = vmul.f32 %v1220, 1.442695
      %v1347 = vpow.pop %v1346
      %v1348 = vmul.f32 %v1221, 1.442695
      %v1349 = vpow.pop %v1348
      %v1350 = vadd.f32 %v1223, %v1225
      %1351 = vadd.xlane.f32.xlu0 %v1350
      %v1352 = vpop.xlane.xlu0 %1351
      %v1353 = vadd.f32 %v1227, %v1229
      %1354 = vadd.xlane.f32.xlu0 %v1353
      %v1355 = vpop.xlane.xlu0 %1354
      %v1356 = vadd.f32 %v1231, %v1233
      %1357 = vadd.xlane.f32.xlu0 %v1356
      %v1358 = vpop.xlane.xlu0 %1357
      %v1359 = vadd.f32 %v1235, %v1237
      %1360 = vadd.xlane.f32.xlu0 %v1359
      %v1361 = vpop.xlane.xlu0 %1360
      %v1362 = vadd.f32 %v1239, %v1241
      %1363 = vadd.xlane.f32.xlu0 %v1362
      %v1364 = vpop.xlane.xlu0 %1363
      %v1365 = vadd.f32 %v1243, %v1245
      %1366 = vadd.xlane.f32.xlu0 %v1365
      %v1367 = vpop.xlane.xlu0 %1366
      %v1368 = vadd.f32 %v1247, %v1249
      %1369 = vadd.xlane.f32.xlu0 %v1368
      %v1370 = vpop.xlane.xlu0 %1369
      %v1371 = vadd.f32 %v1251, %v1253
      %1372 = vadd.xlane.f32.xlu0 %v1371
      %v1373 = vpop.xlane.xlu0 %1372
      %v1374 = vadd.f32 %v1255, %v1257
      %1375 = vadd.xlane.f32.xlu0 %v1374
      %v1376 = vpop.xlane.xlu0 %1375
      %v1377 = vadd.f32 %v1259, %v1261
      %1378 = vadd.xlane.f32.xlu0 %v1377
      %v1379 = vpop.xlane.xlu0 %1378
      %v1380 = vadd.f32 %v1263, %v1265
      %1381 = vadd.xlane.f32.xlu0 %v1380
      %v1382 = vpop.xlane.xlu0 %1381
      %v1383 = vadd.f32 %v1267, %v1269
      %1384 = vadd.xlane.f32.xlu0 %v1383
      %v1385 = vpop.xlane.xlu0 %1384
      %v1386 = vadd.f32 %v1271, %v1273
      %1387 = vadd.xlane.f32.xlu0 %v1386
      %v1388 = vpop.xlane.xlu0 %1387
      %v1389 = vadd.f32 %v1275, %v1277
      %1390 = vadd.xlane.f32.xlu0 %v1389
      %v1391 = vpop.xlane.xlu0 %1390
      %v1392 = vadd.f32 %v1279, %v1281
      %1393 = vadd.xlane.f32.xlu0 %v1392
      %v1394 = vpop.xlane.xlu0 %1393
      %v1395 = vadd.f32 %v1283, %v1285
      %1396 = vadd.xlane.f32.xlu0 %v1395
      %v1397 = vpop.xlane.xlu0 %1396
      %v1398 = vadd.f32 %v1287, %v1289
      %1399 = vadd.xlane.f32.xlu0 %v1398
      %v1400 = vpop.xlane.xlu0 %1399
      %v1401 = vadd.f32 %v1291, %v1293
      %1402 = vadd.xlane.f32.xlu0 %v1401
      %v1403 = vpop.xlane.xlu0 %1402
      %v1404 = vadd.f32 %v1295, %v1297
      %1405 = vadd.xlane.f32.xlu0 %v1404
      %v1406 = vpop.xlane.xlu0 %1405
      %v1407 = vadd.f32 %v1299, %v1301
      %1408 = vadd.xlane.f32.xlu0 %v1407
      %v1409 = vpop.xlane.xlu0 %1408
      %v1410 = vadd.f32 %v1303, %v1305
      %1411 = vadd.xlane.f32.xlu0 %v1410
      %v1412 = vpop.xlane.xlu0 %1411
      %v1413 = vadd.f32 %v1307, %v1309
      %1414 = vadd.xlane.f32.xlu0 %v1413
      %v1415 = vpop.xlane.xlu0 %1414
      %v1416 = vadd.f32 %v1311, %v1313
      %1417 = vadd.xlane.f32.xlu0 %v1416
      %v1418 = vpop.xlane.xlu0 %1417
      %v1419 = vadd.f32 %v1315, %v1317
      %1420 = vadd.xlane.f32.xlu0 %v1419
      %v1421 = vpop.xlane.xlu0 %1420
      %v1422 = vadd.f32 %v1319, %v1321
      %1423 = vadd.xlane.f32.xlu0 %v1422
      %v1424 = vpop.xlane.xlu0 %1423
      %v1425 = vadd.f32 %v1323, %v1325
      %1426 = vadd.xlane.f32.xlu0 %v1425
      %v1427 = vpop.xlane.xlu0 %1426
      %v1428 = vadd.f32 %v1327, %v1329
      %1429 = vadd.xlane.f32.xlu0 %v1428
      %v1430 = vpop.xlane.xlu0 %1429
      %v1431 = vadd.f32 %v1331, %v1333
      %1432 = vadd.xlane.f32.xlu0 %v1431
      %v1433 = vpop.xlane.xlu0 %1432
      %v1434 = vadd.f32 %v1335, %v1337
      %1435 = vadd.xlane.f32.xlu0 %v1434
      %v1436 = vpop.xlane.xlu0 %1435
      %v1437 = vadd.f32 %v1339, %v1341
      %1438 = vadd.xlane.f32.xlu0 %v1437
      %v1439 = vpop.xlane.xlu0 %1438
      %v1440 = vadd.f32 %v1343, %v1345
      %1441 = vadd.xlane.f32.xlu0 %v1440
      %v1442 = vpop.xlane.xlu0 %1441
      %v1443 = vadd.f32 %v1347, %v1349
      %1444 = vadd.xlane.f32.xlu0 %v1443
      %v1445 = vpop.xlane.xlu0 %1444
      %v1446 = vpack.c.bf16 %v1227, %v1223
      %v1447 = vpack.c.bf16 %v1229, %v1225
      %v1448 = vpack.c.bf16 %v1235, %v1231
      %v1449 = vpack.c.bf16 %v1237, %v1233
      %v1450 = vpack.c.bf16 %v1243, %v1239
      %v1451 = vpack.c.bf16 %v1245, %v1241
      %v1452 = vpack.c.bf16 %v1251, %v1247
      %v1453 = vpack.c.bf16 %v1253, %v1249
      %v1454 = vpack.c.bf16 %v1259, %v1255
      %v1455 = vpack.c.bf16 %v1261, %v1257
      %v1456 = vpack.c.bf16 %v1267, %v1263
      %v1457 = vpack.c.bf16 %v1269, %v1265
      %v1458 = vpack.c.bf16 %v1275, %v1271
      %v1459 = vpack.c.bf16 %v1277, %v1273
      %v1460 = vpack.c.bf16 %v1283, %v1279
      %v1461 = vpack.c.bf16 %v1285, %v1281
      %v1462 = vpack.c.bf16 %v1291, %v1287
      %v1463 = vpack.c.bf16 %v1293, %v1289
      %v1464 = vpack.c.bf16 %v1299, %v1295
      %v1465 = vpack.c.bf16 %v1301, %v1297
      %v1466 = vpack.c.bf16 %v1307, %v1303
      %v1467 = vpack.c.bf16 %v1309, %v1305
      %v1468 = vpack.c.bf16 %v1315, %v1311
      %v1469 = vpack.c.bf16 %v1317, %v1313
      %v1470 = vpack.c.bf16 %v1323, %v1319
      %v1471 = vpack.c.bf16 %v1325, %v1321
      %v1472 = vpack.c.bf16 %v1331, %v1327
      %v1473 = vpack.c.bf16 %v1333, %v1329
      %v1474 = vpack.c.bf16 %v1339, %v1335
      %v1475 = vpack.c.bf16 %v1341, %v1337
      %v1476 = vpack.c.bf16 %v1347, %v1343
      %v1477 = vpack.c.bf16 %v1349, %v1345
      %1478 = vmatprep.subr.bf16.mxu0 0
      %1479 = vmatpush1.bf16.msra.mxu0 %v715
      %1480 = vmatprep.subr.bf16.mxu0 0
      %1481 = vmatpush1.bf16.msra.mxu0 %v714
      %1482 = vmatprep.subr.bf16.mxu0 0
      %1483 = vmatpush1.bf16.msra.mxu0 %v713
      %1484 = vmatprep.subr.bf16.mxu0 0
      %1485 = vmatpush1.bf16.msra.mxu0 %v712
      %1486 = vmatprep.subr.bf16.mxu0 0
      %1487 = vmatpush1.bf16.msra.mxu0 %v711
      %1488 = vmatprep.subr.bf16.mxu0 0
      %1489 = vmatpush1.bf16.msra.mxu0 %v710
      %1490 = vmatprep.subr.bf16.mxu0 0
      %1491 = vmatpush1.bf16.msra.mxu0 %v709
      %1492 = vmatprep.subr.bf16.mxu0 0
      %1493 = vmatpush1.bf16.msra.mxu0 %v708
      %1494 = vmatprep.subr.bf16.mxu0 0
      %1495 = vmatpush2.bf16.msra.mxu0 %v723
      %1496 = vmatprep.subr.bf16.mxu0 0
      %1497 = vmatpush2.bf16.msra.mxu0 %v722
      %1498 = vmatprep.subr.bf16.mxu0 0
      %1499 = vmatpush2.bf16.msra.mxu0 %v721
      %1500 = vmatprep.subr.bf16.mxu0 0
      %1501 = vmatpush2.bf16.msra.mxu0 %v720
      %1502 = vmatprep.subr.bf16.mxu0 0
      %1503 = vmatpush2.bf16.msra.mxu0 %v719
      %1504 = vmatprep.subr.bf16.mxu0 0
      %1505 = vmatpush2.bf16.msra.mxu0 %v718
      %1506 = vmatprep.subr.bf16.mxu0 0
      %1507 = vmatpush2.bf16.msra.mxu0 %v717
      %1508 = vmatprep.subr.bf16.mxu0 0
      %1509 = vmatpush2.bf16.msra.mxu0 %v716
      %1510 = vmatprep.mubr.bf16.mxu0 %v1447
      %1511 = vmatmul.mubr.bf16.gmra.mxu0 %v1446
      %v1512 = vpop.f32.mrf.mxu0
      %v1513 = vadd.f32 0.0, %v1512
      %v1514 = vpop.f32.mrf.mxu0
      %v1515 = vpop.f32.mrf.mxu0
      %v1516 = vadd.f32 0.0, %v1515
      %v1517 = vpop.f32.mrf.mxu0
      %1518 = vmatprep.mubr.bf16.mxu0 %v1449
      %1519 = vmatmul.mubr.bf16.gmra.mxu0 %v1448
      %v1520 = vpop.f32.mrf.mxu0
      %v1521 = vadd.f32 0.0, %v1520
      %v1522 = vpop.f32.mrf.mxu0
      %v1523 = vpop.f32.mrf.mxu0
      %v1524 = vadd.f32 0.0, %v1523
      %v1525 = vpop.f32.mrf.mxu0
      %1526 = vmatprep.mubr.bf16.mxu0 %v1451
      %1527 = vmatmul.mubr.bf16.gmra.mxu0 %v1450
      %v1528 = vpop.f32.mrf.mxu0
      %v1529 = vadd.f32 0.0, %v1528
      %v1530 = vpop.f32.mrf.mxu0
      %v1531 = vpop.f32.mrf.mxu0
      %v1532 = vadd.f32 0.0, %v1531
      %v1533 = vpop.f32.mrf.mxu0
      %1534 = vmatprep.mubr.bf16.mxu0 %v1453
      %1535 = vmatmul.mubr.bf16.gmra.mxu0 %v1452
      %v1536 = vpop.f32.mrf.mxu0
      %v1537 = vadd.f32 0.0, %v1536
      %v1538 = vpop.f32.mrf.mxu0
      %v1539 = vpop.f32.mrf.mxu0
      %v1540 = vadd.f32 0.0, %v1539
      %v1541 = vpop.f32.mrf.mxu0
      %1542 = vmatprep.mubr.bf16.mxu0 %v1455
      %1543 = vmatmul.mubr.bf16.gmra.mxu0 %v1454
      %v1544 = vpop.f32.mrf.mxu0
      %v1545 = vadd.f32 0.0, %v1544
      %v1546 = vpop.f32.mrf.mxu0
      %v1547 = vpop.f32.mrf.mxu0
      %v1548 = vadd.f32 0.0, %v1547
      %v1549 = vpop.f32.mrf.mxu0
      %1550 = vmatprep.mubr.bf16.mxu0 %v1457
      %1551 = vmatmul.mubr.bf16.gmra.mxu0 %v1456
      %v1552 = vpop.f32.mrf.mxu0
      %v1553 = vadd.f32 0.0, %v1552
      %v1554 = vpop.f32.mrf.mxu0
      %v1555 = vpop.f32.mrf.mxu0
      %v1556 = vadd.f32 0.0, %v1555
      %v1557 = vpop.f32.mrf.mxu0
      %1558 = vmatprep.mubr.bf16.mxu0 %v1459
      %1559 = vmatmul.mubr.bf16.gmra.mxu0 %v1458
      %v1560 = vpop.f32.mrf.mxu0
      %v1561 = vadd.f32 0.0, %v1560
      %v1562 = vpop.f32.mrf.mxu0
      %v1563 = vpop.f32.mrf.mxu0
      %v1564 = vadd.f32 0.0, %v1563
      %v1565 = vpop.f32.mrf.mxu0
      %1566 = vmatprep.mubr.bf16.mxu0 %v1461
      %1567 = vmatmul.mubr.bf16.gmra.mxu0 %v1460
      %v1568 = vpop.f32.mrf.mxu0
      %v1569 = vadd.f32 0.0, %v1568
      %v1570 = vpop.f32.mrf.mxu0
      %v1571 = vpop.f32.mrf.mxu0
      %v1572 = vadd.f32 0.0, %v1571
      %v1573 = vpop.f32.mrf.mxu0
      %1574 = vmatprep.mubr.bf16.mxu0 %v1463
      %1575 = vmatmul.mubr.bf16.gmra.mxu0 %v1462
      %v1576 = vpop.f32.mrf.mxu0
      %v1577 = vadd.f32 0.0, %v1576
      %v1578 = vpop.f32.mrf.mxu0
      %v1579 = vpop.f32.mrf.mxu0
      %v1580 = vadd.f32 0.0, %v1579
      %v1581 = vpop.f32.mrf.mxu0
      %1582 = vmatprep.mubr.bf16.mxu0 %v1465
      %1583 = vmatmul.mubr.bf16.gmra.mxu0 %v1464
      %v1584 = vpop.f32.mrf.mxu0
      %v1585 = vadd.f32 0.0, %v1584
      %v1586 = vpop.f32.mrf.mxu0
      %v1587 = vpop.f32.mrf.mxu0
      %v1588 = vadd.f32 0.0, %v1587
      %v1589 = vpop.f32.mrf.mxu0
      %1590 = vmatprep.mubr.bf16.mxu0 %v1467
      %1591 = vmatmul.mubr.bf16.gmra.mxu0 %v1466
      %v1592 = vpop.f32.mrf.mxu0
      %v1593 = vadd.f32 0.0, %v1592
      %v1594 = vpop.f32.mrf.mxu0
      %v1595 = vpop.f32.mrf.mxu0
      %v1596 = vadd.f32 0.0, %v1595
      %v1597 = vpop.f32.mrf.mxu0
      %1598 = vmatprep.mubr.bf16.mxu0 %v1469
      %1599 = vmatmul.mubr.bf16.gmra.mxu0 %v1468
      %v1600 = vpop.f32.mrf.mxu0
      %v1601 = vadd.f32 0.0, %v1600
      %v1602 = vpop.f32.mrf.mxu0
      %v1603 = vpop.f32.mrf.mxu0
      %v1604 = vadd.f32 0.0, %v1603
      %v1605 = vpop.f32.mrf.mxu0
      %1606 = vmatprep.mubr.bf16.mxu0 %v1471
      %1607 = vmatmul.mubr.bf16.gmra.mxu0 %v1470
      %v1608 = vpop.f32.mrf.mxu0
      %v1609 = vadd.f32 0.0, %v1608
      %v1610 = vpop.f32.mrf.mxu0
      %v1611 = vpop.f32.mrf.mxu0
      %v1612 = vadd.f32 0.0, %v1611
      %v1613 = vpop.f32.mrf.mxu0
      %1614 = vmatprep.mubr.bf16.mxu0 %v1473
      %1615 = vmatmul.mubr.bf16.gmra.mxu0 %v1472
      %v1616 = vpop.f32.mrf.mxu0
      %v1617 = vadd.f32 0.0, %v1616
      %v1618 = vpop.f32.mrf.mxu0
      %v1619 = vpop.f32.mrf.mxu0
      %v1620 = vadd.f32 0.0, %v1619
      %v1621 = vpop.f32.mrf.mxu0
      %1622 = vmatprep.mubr.bf16.mxu0 %v1475
      %1623 = vmatmul.mubr.bf16.gmra.mxu0 %v1474
      %v1624 = vpop.f32.mrf.mxu0
      %v1625 = vadd.f32 0.0, %v1624
      %v1626 = vpop.f32.mrf.mxu0
      %v1627 = vpop.f32.mrf.mxu0
      %v1628 = vadd.f32 0.0, %v1627
      %v1629 = vpop.f32.mrf.mxu0
      %1630 = vmatprep.mubr.bf16.mxu0 %v1477
      %1631 = vmatmul.mubr.bf16.gmra.mxu0 %v1476
      %v1632 = vpop.f32.mrf.mxu0
      %v1633 = vadd.f32 0.0, %v1632
      %v1634 = vpop.f32.mrf.mxu0
      %v1635 = vpop.f32.mrf.mxu0
      %v1636 = vadd.f32 0.0, %v1635
      %v1637 = vpop.f32.mrf.mxu0
      %1638 = vdwg.mxu0
      %v1639 = vrcp.pop %v1352
      %v1640 = vmul.f32 %v1513, %v1639
      %v1641 = vrcp.pop %v1355
      %v1642 = vmul.f32 %v1516, %v1641
      %v1643 = vrcp.pop %v1358
      %v1644 = vmul.f32 %v1521, %v1643
      %v1645 = vrcp.pop %v1361
      %v1646 = vmul.f32 %v1524, %v1645
      %v1647 = vrcp.pop %v1364
      %v1648 = vmul.f32 %v1529, %v1647
      %v1649 = vrcp.pop %v1367
      %v1650 = vmul.f32 %v1532, %v1649
      %v1651 = vrcp.pop %v1370
      %v1652 = vmul.f32 %v1537, %v1651
      %v1653 = vrcp.pop %v1373
      %v1654 = vmul.f32 %v1540, %v1653
      %v1655 = vrcp.pop %v1376
      %v1656 = vmul.f32 %v1545, %v1655
      %v1657 = vrcp.pop %v1379
      %v1658 = vmul.f32 %v1548, %v1657
      %v1659 = vrcp.pop %v1382
      %v1660 = vmul.f32 %v1553, %v1659
      %v1661 = vrcp.pop %v1385
      %v1662 = vmul.f32 %v1556, %v1661
      %v1663 = vrcp.pop %v1388
      %v1664 = vmul.f32 %v1561, %v1663
      %v1665 = vrcp.pop %v1391
      %v1666 = vmul.f32 %v1564, %v1665
      %v1667 = vrcp.pop %v1394
      %v1668 = vmul.f32 %v1569, %v1667
      %v1669 = vrcp.pop %v1397
      %v1670 = vmul.f32 %v1572, %v1669
      %v1671 = vrcp.pop %v1400
      %v1672 = vmul.f32 %v1577, %v1671
      %v1673 = vrcp.pop %v1403
      %v1674 = vmul.f32 %v1580, %v1673
      %v1675 = vrcp.pop %v1406
      %v1676 = vmul.f32 %v1585, %v1675
      %v1677 = vrcp.pop %v1409
      %v1678 = vmul.f32 %v1588, %v1677
      %v1679 = vrcp.pop %v1412
      %v1680 = vmul.f32 %v1593, %v1679
      %v1681 = vrcp.pop %v1415
      %v1682 = vmul.f32 %v1596, %v1681
      %v1683 = vrcp.pop %v1418
      %v1684 = vmul.f32 %v1601, %v1683
      %v1685 = vrcp.pop %v1421
      %v1686 = vmul.f32 %v1604, %v1685
      %v1687 = vrcp.pop %v1424
      %v1688 = vmul.f32 %v1609, %v1687
      %v1689 = vrcp.pop %v1427
      %v1690 = vmul.f32 %v1612, %v1689
      %v1691 = vrcp.pop %v1430
      %v1692 = vmul.f32 %v1617, %v1691
      %v1693 = vrcp.pop %v1433
      %v1694 = vmul.f32 %v1620, %v1693
      %v1695 = vrcp.pop %v1436
      %v1696 = vmul.f32 %v1625, %v1695
      %v1697 = vrcp.pop %v1439
      %v1698 = vmul.f32 %v1628, %v1697
      %v1699 = vrcp.pop %v1442
      %v1700 = vmul.f32 %v1633, %v1699
      %v1701 = vrcp.pop %v1445
      %v1702 = vmul.f32 %v1636, %v1701
      %v1703 = vpack.c.bf16 %v1642, %v1640
      %v1704 = vpack.c.bf16 %v1646, %v1644
      %v1705 = vpack.c.bf16 %v1650, %v1648
      %v1706 = vpack.c.bf16 %v1654, %v1652
      %v1707 = vpack.c.bf16 %v1658, %v1656
      %v1708 = vpack.c.bf16 %v1662, %v1660
      %v1709 = vpack.c.bf16 %v1666, %v1664
      %v1710 = vpack.c.bf16 %v1670, %v1668
      %v1711 = vpack.c.bf16 %v1674, %v1672
      %v1712 = vpack.c.bf16 %v1678, %v1676
      %v1713 = vpack.c.bf16 %v1682, %v1680
      %v1714 = vpack.c.bf16 %v1686, %v1684
      %v1715 = vpack.c.bf16 %v1690, %v1688
      %v1716 = vpack.c.bf16 %v1694, %v1692
      %v1717 = vpack.c.bf16 %v1698, %v1696
      %v1718 = vpack.c.bf16 %v1702, %v1700
      %1735 = vrot.lane.b32.xlu0 %v676, 112
      %v1736 = vpop.permute.xlu0 %1735
      %1737 = vrot.lane.b32.xlu0 %v677, 112
      %v1738 = vpop.permute.xlu0 %1737
      %1739 = vrot.lane.b32.xlu0 %v678, 112
      %v1740 = vpop.permute.xlu0 %1739
      %1741 = vrot.lane.b32.xlu0 %v679, 112
      %v1742 = vpop.permute.xlu0 %1741
      %1743 = vrot.lane.b32.xlu0 %v680, 112
      %v1744 = vpop.permute.xlu0 %1743
      %1745 = vrot.lane.b32.xlu0 %v681, 112
      %v1746 = vpop.permute.xlu0 %1745
      %1747 = vrot.lane.b32.xlu0 %v682, 112
      %v1748 = vpop.permute.xlu0 %1747
      %1749 = vrot.lane.b32.xlu0 %v683, 112
      %v1750 = vpop.permute.xlu0 %1749
      %1751 = vrot.lane.b32.xlu0 %v684, 112
      %v1752 = vpop.permute.xlu0 %1751
      %1753 = vrot.lane.b32.xlu0 %v685, 112
      %v1754 = vpop.permute.xlu0 %1753
      %1755 = vrot.lane.b32.xlu0 %v686, 112
      %v1756 = vpop.permute.xlu0 %1755
      %1757 = vrot.lane.b32.xlu0 %v687, 112
      %v1758 = vpop.permute.xlu0 %1757
      %1759 = vrot.lane.b32.xlu0 %v688, 112
      %v1760 = vpop.permute.xlu0 %1759
      %1761 = vrot.lane.b32.xlu0 %v689, 112
      %v1762 = vpop.permute.xlu0 %1761
      %1763 = vrot.lane.b32.xlu0 %v690, 112
      %v1764 = vpop.permute.xlu0 %1763
      %1765 = vrot.lane.b32.xlu0 %v691, 112
      %v1766 = vpop.permute.xlu0 %1765
      %1767 = vrot.lane.b32.xlu0 %v692, 48
      %v1768 = vpop.permute.xlu0 %1767
      %1769 = vrot.lane.b32.xlu0 %v693, 48
      %v1770 = vpop.permute.xlu0 %1769
      %1771 = vrot.lane.b32.xlu0 %v694, 48
      %v1772 = vpop.permute.xlu0 %1771
      %1773 = vrot.lane.b32.xlu0 %v695, 48
      %v1774 = vpop.permute.xlu0 %1773
      %1775 = vrot.lane.b32.xlu0 %v696, 48
      %v1776 = vpop.permute.xlu0 %1775
      %1777 = vrot.lane.b32.xlu0 %v697, 48
      %v1778 = vpop.permute.xlu0 %1777
      %1779 = vrot.lane.b32.xlu0 %v698, 48
      %v1780 = vpop.permute.xlu0 %1779
      %1781 = vrot.lane.b32.xlu0 %v699, 48
      %v1782 = vpop.permute.xlu0 %1781
      %1783 = vrot.lane.b32.xlu0 %v700, 48
      %v1784 = vpop.permute.xlu0 %1783
      %1785 = vrot.lane.b32.xlu0 %v701, 48
      %v1786 = vpop.permute.xlu0 %1785
      %1787 = vrot.lane.b32.xlu0 %v702, 48
      %v1788 = vpop.permute.xlu0 %1787
      %1789 = vrot.lane.b32.xlu0 %v703, 48
      %v1790 = vpop.permute.xlu0 %1789
      %1791 = vrot.lane.b32.xlu0 %v704, 48
      %v1792 = vpop.permute.xlu0 %1791
      %1793 = vrot.lane.b32.xlu0 %v705, 48
      %v1794 = vpop.permute.xlu0 %1793
      %1795 = vrot.lane.b32.xlu0 %v706, 48
      %v1796 = vpop.permute.xlu0 %1795
      %1797 = vrot.lane.b32.xlu0 %v707, 48
      %v1798 = vpop.permute.xlu0 %1797
      %v1800 = vsel %vm772, %v1736, 0
      %v1803 = vsel %vm772, %v1738, 0
      %v1806 = vsel %vm772, %v1740, 0
      %v1809 = vsel %vm772, %v1742, 0
      %v1812 = vsel %vm772, %v1744, 0
      %v1815 = vsel %vm772, %v1746, 0
      %v1818 = vsel %vm772, %v1748, 0
      %v1821 = vsel %vm772, %v1750, 0
      %v1824 = vsel %vm772, %v1752, 0
      %v1827 = vsel %vm772, %v1754, 0
      %v1830 = vsel %vm772, %v1756, 0
      %v1833 = vsel %vm772, %v1758, 0
      %v1836 = vsel %vm772, %v1760, 0
      %v1839 = vsel %vm772, %v1762, 0
      %v1842 = vsel %vm772, %v1764, 0
      %v1845 = vsel %vm772, %v1766, 0
      %v1848 = vsel %vm772, %v1768, 0
      %v1851 = vsel %vm772, %v1770, 0
      %v1854 = vsel %vm772, %v1772, 0
      %v1857 = vsel %vm772, %v1774, 0
      %v1860 = vsel %vm772, %v1776, 0
      %v1863 = vsel %vm772, %v1778, 0
      %v1866 = vsel %vm772, %v1780, 0
      %v1869 = vsel %vm772, %v1782, 0
      %v1872 = vsel %vm772, %v1784, 0
      %v1875 = vsel %vm772, %v1786, 0
      %v1878 = vsel %vm772, %v1788, 0
      %v1881 = vsel %vm772, %v1790, 0
      %v1884 = vsel %vm772, %v1792, 0
      %v1887 = vsel %vm772, %v1794, 0
      %v1890 = vsel %vm772, %v1796, 0
      %v1893 = vsel %vm772, %v1798, 0
      %1895 = vmatprep.subr.bf16.mxu0 0
      %1896 = vmatpush1.bf16.xpose.msra.mxu0 %v1869
      %1897 = vmatprep.subr.bf16.mxu0 0
      %1898 = vmatpush1.bf16.xpose.msra.mxu0 %v1866
      %1899 = vmatprep.subr.bf16.mxu0 0
      %1900 = vmatpush1.bf16.xpose.msra.mxu0 %v1863
      %1901 = vmatprep.subr.bf16.mxu0 0
      %1902 = vmatpush1.bf16.xpose.msra.mxu0 %v1860
      %1903 = vmatprep.subr.bf16.mxu0 0
      %1904 = vmatpush1.bf16.xpose.msra.mxu0 %v1857
      %1905 = vmatprep.subr.bf16.mxu0 0
      %1906 = vmatpush1.bf16.xpose.msra.mxu0 %v1854
      %1907 = vmatprep.subr.bf16.mxu0 0
      %1908 = vmatpush1.bf16.xpose.msra.mxu0 %v1851
      %1909 = vmatprep.subr.bf16.mxu0 0
      %1910 = vmatpush1.bf16.xpose.msra.mxu0 %v1848
      %1911 = vmatprep.subr.bf16.mxu0 0
      %1912 = vmatpush2.bf16.xpose.msra.mxu0 %v1893
      %1913 = vmatprep.subr.bf16.mxu0 0
      %1914 = vmatpush2.bf16.xpose.msra.mxu0 %v1890
      %1915 = vmatprep.subr.bf16.mxu0 0
      %1916 = vmatpush2.bf16.xpose.msra.mxu0 %v1887
      %1917 = vmatprep.subr.bf16.mxu0 0
      %1918 = vmatpush2.bf16.xpose.msra.mxu0 %v1884
      %1919 = vmatprep.subr.bf16.mxu0 0
      %1920 = vmatpush2.bf16.xpose.msra.mxu0 %v1881
      %1921 = vmatprep.subr.bf16.mxu0 0
      %1922 = vmatpush2.bf16.xpose.msra.mxu0 %v1878
      %1923 = vmatprep.subr.bf16.mxu0 0
      %1924 = vmatpush2.bf16.xpose.msra.mxu0 %v1875
      %1925 = vmatprep.subr.bf16.mxu0 0
      %1926 = vmatpush2.bf16.xpose.msra.mxu0 %v1872
      %1927 = vmatprep.mubr.bf16.mxu0 0
      %1928 = vmatmul.mubr.bf16.gmra.mxu0 %v1800
      %v1929 = vpop.f32.mrf.mxu0
      %v1930 = vadd.f32 0.0, %v1929
      %v1931 = vpop.f32.mrf.mxu0
      %v1932 = vadd.f32 0.0, %v1931
      %v1933 = vpop.f32.mrf.mxu0
      %v1934 = vadd.f32 0.0, %v1933
      %v1935 = vpop.f32.mrf.mxu0
      %v1936 = vadd.f32 0.0, %v1935
      %1937 = vmatprep.mubr.bf16.mxu0 0
      %1938 = vmatmul.mubr.bf16.gmra.mxu0 %v1803
      %v1939 = vpop.f32.mrf.mxu0
      %v1940 = vadd.f32 0.0, %v1939
      %v1941 = vpop.f32.mrf.mxu0
      %v1942 = vadd.f32 0.0, %v1941
      %v1943 = vpop.f32.mrf.mxu0
      %v1944 = vadd.f32 0.0, %v1943
      %v1945 = vpop.f32.mrf.mxu0
      %v1946 = vadd.f32 0.0, %v1945
      %1947 = vmatprep.mubr.bf16.mxu0 0
      %1948 = vmatmul.mubr.bf16.gmra.mxu0 %v1806
      %v1949 = vpop.f32.mrf.mxu0
      %v1950 = vadd.f32 0.0, %v1949
      %v1951 = vpop.f32.mrf.mxu0
      %v1952 = vadd.f32 0.0, %v1951
      %v1953 = vpop.f32.mrf.mxu0
      %v1954 = vadd.f32 0.0, %v1953
      %v1955 = vpop.f32.mrf.mxu0
      %v1956 = vadd.f32 0.0, %v1955
      %1957 = vmatprep.mubr.bf16.mxu0 0
      %1958 = vmatmul.mubr.bf16.gmra.mxu0 %v1809
      %v1959 = vpop.f32.mrf.mxu0
      %v1960 = vadd.f32 0.0, %v1959
      %v1961 = vpop.f32.mrf.mxu0
      %v1962 = vadd.f32 0.0, %v1961
      %v1963 = vpop.f32.mrf.mxu0
      %v1964 = vadd.f32 0.0, %v1963
      %v1965 = vpop.f32.mrf.mxu0
      %v1966 = vadd.f32 0.0, %v1965
      %1967 = vmatprep.mubr.bf16.mxu0 0
      %1968 = vmatmul.mubr.bf16.gmra.mxu0 %v1812
      %v1969 = vpop.f32.mrf.mxu0
      %v1970 = vadd.f32 0.0, %v1969
      %v1971 = vpop.f32.mrf.mxu0
      %v1972 = vadd.f32 0.0, %v1971
      %v1973 = vpop.f32.mrf.mxu0
      %v1974 = vadd.f32 0.0, %v1973
      %v1975 = vpop.f32.mrf.mxu0
      %v1976 = vadd.f32 0.0, %v1975
      %1977 = vmatprep.mubr.bf16.mxu0 0
      %1978 = vmatmul.mubr.bf16.gmra.mxu0 %v1815
      %v1979 = vpop.f32.mrf.mxu0
      %v1980 = vadd.f32 0.0, %v1979
      %v1981 = vpop.f32.mrf.mxu0
      %v1982 = vadd.f32 0.0, %v1981
      %v1983 = vpop.f32.mrf.mxu0
      %v1984 = vadd.f32 0.0, %v1983
      %v1985 = vpop.f32.mrf.mxu0
      %v1986 = vadd.f32 0.0, %v1985
      %1987 = vmatprep.mubr.bf16.mxu0 0
      %1988 = vmatmul.mubr.bf16.gmra.mxu0 %v1818
      %v1989 = vpop.f32.mrf.mxu0
      %v1990 = vadd.f32 0.0, %v1989
      %v1991 = vpop.f32.mrf.mxu0
      %v1992 = vadd.f32 0.0, %v1991
      %v1993 = vpop.f32.mrf.mxu0
      %v1994 = vadd.f32 0.0, %v1993
      %v1995 = vpop.f32.mrf.mxu0
      %v1996 = vadd.f32 0.0, %v1995
      %1997 = vmatprep.mubr.bf16.mxu0 0
      %1998 = vmatmul.mubr.bf16.gmra.mxu0 %v1821
      %v1999 = vpop.f32.mrf.mxu0
      %v2000 = vadd.f32 0.0, %v1999
      %v2001 = vpop.f32.mrf.mxu0
      %v2002 = vadd.f32 0.0, %v2001
      %v2003 = vpop.f32.mrf.mxu0
      %v2004 = vadd.f32 0.0, %v2003
      %v2005 = vpop.f32.mrf.mxu0
      %v2006 = vadd.f32 0.0, %v2005
      %2007 = vmatprep.mubr.bf16.mxu0 0
      %2008 = vmatmul.mubr.bf16.gmra.mxu0 %v1824
      %v2009 = vpop.f32.mrf.mxu0
      %v2010 = vadd.f32 0.0, %v2009
      %v2011 = vpop.f32.mrf.mxu0
      %v2012 = vadd.f32 0.0, %v2011
      %v2013 = vpop.f32.mrf.mxu0
      %v2014 = vadd.f32 0.0, %v2013
      %v2015 = vpop.f32.mrf.mxu0
      %v2016 = vadd.f32 0.0, %v2015
      %2017 = vmatprep.mubr.bf16.mxu0 0
      %2018 = vmatmul.mubr.bf16.gmra.mxu0 %v1827
      %v2019 = vpop.f32.mrf.mxu0
      %v2020 = vadd.f32 0.0, %v2019
      %v2021 = vpop.f32.mrf.mxu0
      %v2022 = vadd.f32 0.0, %v2021
      %v2023 = vpop.f32.mrf.mxu0
      %v2024 = vadd.f32 0.0, %v2023
      %v2025 = vpop.f32.mrf.mxu0
      %v2026 = vadd.f32 0.0, %v2025
      %2027 = vmatprep.mubr.bf16.mxu0 0
      %2028 = vmatmul.mubr.bf16.gmra.mxu0 %v1830
      %v2029 = vpop.f32.mrf.mxu0
      %v2030 = vadd.f32 0.0, %v2029
      %v2031 = vpop.f32.mrf.mxu0
      %v2032 = vadd.f32 0.0, %v2031
      %v2033 = vpop.f32.mrf.mxu0
      %v2034 = vadd.f32 0.0, %v2033
      %v2035 = vpop.f32.mrf.mxu0
      %v2036 = vadd.f32 0.0, %v2035
      %2037 = vmatprep.mubr.bf16.mxu0 0
      %2038 = vmatmul.mubr.bf16.gmra.mxu0 %v1833
      %v2039 = vpop.f32.mrf.mxu0
      %v2040 = vadd.f32 0.0, %v2039
      %v2041 = vpop.f32.mrf.mxu0
      %v2042 = vadd.f32 0.0, %v2041
      %v2043 = vpop.f32.mrf.mxu0
      %v2044 = vadd.f32 0.0, %v2043
      %v2045 = vpop.f32.mrf.mxu0
      %v2046 = vadd.f32 0.0, %v2045
      %2047 = vmatprep.mubr.bf16.mxu0 0
      %2048 = vmatmul.mubr.bf16.gmra.mxu0 %v1836
      %v2049 = vpop.f32.mrf.mxu0
      %v2050 = vadd.f32 0.0, %v2049
      %v2051 = vpop.f32.mrf.mxu0
      %v2052 = vadd.f32 0.0, %v2051
      %v2053 = vpop.f32.mrf.mxu0
      %v2054 = vadd.f32 0.0, %v2053
      %v2055 = vpop.f32.mrf.mxu0
      %v2056 = vadd.f32 0.0, %v2055
      %2057 = vmatprep.mubr.bf16.mxu0 0
      %2058 = vmatmul.mubr.bf16.gmra.mxu0 %v1839
      %v2059 = vpop.f32.mrf.mxu0
      %v2060 = vadd.f32 0.0, %v2059
      %v2061 = vpop.f32.mrf.mxu0
      %v2062 = vadd.f32 0.0, %v2061
      %v2063 = vpop.f32.mrf.mxu0
      %v2064 = vadd.f32 0.0, %v2063
      %v2065 = vpop.f32.mrf.mxu0
      %v2066 = vadd.f32 0.0, %v2065
      %2067 = vmatprep.mubr.bf16.mxu0 0
      %2068 = vmatmul.mubr.bf16.gmra.mxu0 %v1842
      %v2069 = vpop.f32.mrf.mxu0
      %v2070 = vadd.f32 0.0, %v2069
      %v2071 = vpop.f32.mrf.mxu0
      %v2072 = vadd.f32 0.0, %v2071
      %v2073 = vpop.f32.mrf.mxu0
      %v2074 = vadd.f32 0.0, %v2073
      %v2075 = vpop.f32.mrf.mxu0
      %v2076 = vadd.f32 0.0, %v2075
      %2077 = vmatprep.mubr.bf16.mxu0 0
      %2078 = vmatmul.mubr.bf16.gmra.mxu0 %v1845
      %v2079 = vpop.f32.mrf.mxu0
      %v2080 = vadd.f32 0.0, %v2079
      %v2081 = vpop.f32.mrf.mxu0
      %v2082 = vadd.f32 0.0, %v2081
      %v2083 = vpop.f32.mrf.mxu0
      %v2084 = vadd.f32 0.0, %v2083
      %v2085 = vpop.f32.mrf.mxu0
      %v2086 = vadd.f32 0.0, %v2085
      %2087 = vdwg.mxu0
      %v2088 = vmax.f32 %v1930, %v1932
      %2089 = vmax.xlane.f32.xlu0 %v2088
      %v2090 = vpop.xlane.xlu0 %2089
      %v2091 = vmax.f32 %v1934, %v1936
      %2092 = vmax.xlane.f32.xlu0 %v2091
      %v2093 = vpop.xlane.xlu0 %2092
      %v2094 = vmax.f32 %v1940, %v1942
      %2095 = vmax.xlane.f32.xlu0 %v2094
      %v2096 = vpop.xlane.xlu0 %2095
      %v2097 = vmax.f32 %v1944, %v1946
      %2098 = vmax.xlane.f32.xlu0 %v2097
      %v2099 = vpop.xlane.xlu0 %2098
      %v2100 = vmax.f32 %v1950, %v1952
      %2101 = vmax.xlane.f32.xlu0 %v2100
      %v2102 = vpop.xlane.xlu0 %2101
      %v2103 = vmax.f32 %v1954, %v1956
      %2104 = vmax.xlane.f32.xlu0 %v2103
      %v2105 = vpop.xlane.xlu0 %2104
      %v2106 = vmax.f32 %v1960, %v1962
      %2107 = vmax.xlane.f32.xlu0 %v2106
      %v2108 = vpop.xlane.xlu0 %2107
      %v2109 = vmax.f32 %v1964, %v1966
      %2110 = vmax.xlane.f32.xlu0 %v2109
      %v2111 = vpop.xlane.xlu0 %2110
      %v2112 = vmax.f32 %v1970, %v1972
      %2113 = vmax.xlane.f32.xlu0 %v2112
      %v2114 = vpop.xlane.xlu0 %2113
      %v2115 = vmax.f32 %v1974, %v1976
      %2116 = vmax.xlane.f32.xlu0 %v2115
      %v2117 = vpop.xlane.xlu0 %2116
      %v2118 = vmax.f32 %v1980, %v1982
      %2119 = vmax.xlane.f32.xlu0 %v2118
      %v2120 = vpop.xlane.xlu0 %2119
      %v2121 = vmax.f32 %v1984, %v1986
      %2122 = vmax.xlane.f32.xlu0 %v2121
      %v2123 = vpop.xlane.xlu0 %2122
      %v2124 = vmax.f32 %v1990, %v1992
      %2125 = vmax.xlane.f32.xlu0 %v2124
      %v2126 = vpop.xlane.xlu0 %2125
      %v2127 = vmax.f32 %v1994, %v1996
      %2128 = vmax.xlane.f32.xlu0 %v2127
      %v2129 = vpop.xlane.xlu0 %2128
      %v2130 = vmax.f32 %v2000, %v2002
      %2131 = vmax.xlane.f32.xlu0 %v2130
      %v2132 = vpop.xlane.xlu0 %2131
      %v2133 = vmax.f32 %v2004, %v2006
      %2134 = vmax.xlane.f32.xlu0 %v2133
      %v2135 = vpop.xlane.xlu0 %2134
      %v2136 = vmax.f32 %v2010, %v2012
      %2137 = vmax.xlane.f32.xlu0 %v2136
      %v2138 = vpop.xlane.xlu0 %2137
      %v2139 = vmax.f32 %v2014, %v2016
      %2140 = vmax.xlane.f32.xlu0 %v2139
      %v2141 = vpop.xlane.xlu0 %2140
      %v2142 = vmax.f32 %v2020, %v2022
      %2143 = vmax.xlane.f32.xlu0 %v2142
      %v2144 = vpop.xlane.xlu0 %2143
      %v2145 = vmax.f32 %v2024, %v2026
      %2146 = vmax.xlane.f32.xlu0 %v2145
      %v2147 = vpop.xlane.xlu0 %2146
      %v2148 = vmax.f32 %v2030, %v2032
      %2149 = vmax.xlane.f32.xlu0 %v2148
      %v2150 = vpop.xlane.xlu0 %2149
      %v2151 = vmax.f32 %v2034, %v2036
      %2152 = vmax.xlane.f32.xlu0 %v2151
      %v2153 = vpop.xlane.xlu0 %2152
      %v2154 = vmax.f32 %v2040, %v2042
      %2155 = vmax.xlane.f32.xlu0 %v2154
      %v2156 = vpop.xlane.xlu0 %2155
      %v2157 = vmax.f32 %v2044, %v2046
      %2158 = vmax.xlane.f32.xlu0 %v2157
      %v2159 = vpop.xlane.xlu0 %2158
      %v2160 = vmax.f32 %v2050, %v2052
      %2161 = vmax.xlane.f32.xlu0 %v2160
      %v2162 = vpop.xlane.xlu0 %2161
      %v2163 = vmax.f32 %v2054, %v2056
      %2164 = vmax.xlane.f32.xlu0 %v2163
      %v2165 = vpop.xlane.xlu0 %2164
      %v2166 = vmax.f32 %v2060, %v2062
      %2167 = vmax.xlane.f32.xlu0 %v2166
      %v2168 = vpop.xlane.xlu0 %2167
      %v2169 = vmax.f32 %v2064, %v2066
      %2170 = vmax.xlane.f32.xlu0 %v2169
      %v2171 = vpop.xlane.xlu0 %2170
      %v2172 = vmax.f32 %v2070, %v2072
      %2173 = vmax.xlane.f32.xlu0 %v2172
      %v2174 = vpop.xlane.xlu0 %2173
      %v2175 = vmax.f32 %v2074, %v2076
      %2176 = vmax.xlane.f32.xlu0 %v2175
      %v2177 = vpop.xlane.xlu0 %2176
      %v2178 = vmax.f32 %v2080, %v2082
      %2179 = vmax.xlane.f32.xlu0 %v2178
      %v2180 = vpop.xlane.xlu0 %2179
      %v2181 = vmax.f32 %v2084, %v2086
      %2182 = vmax.xlane.f32.xlu0 %v2181
      %v2183 = vpop.xlane.xlu0 %2182
      %v2184 = vsub.f32 %v1930, %v2090
      %v2185 = vsub.f32 %v1932, %v2090
      %v2186 = vsub.f32 %v1934, %v2093
      %v2187 = vsub.f32 %v1936, %v2093
      %v2188 = vsub.f32 %v1940, %v2096
      %v2189 = vsub.f32 %v1942, %v2096
      %v2190 = vsub.f32 %v1944, %v2099
      %v2191 = vsub.f32 %v1946, %v2099
      %v2192 = vsub.f32 %v1950, %v2102
      %v2193 = vsub.f32 %v1952, %v2102
      %v2194 = vsub.f32 %v1954, %v2105
      %v2195 = vsub.f32 %v1956, %v2105
      %v2196 = vsub.f32 %v1960, %v2108
      %v2197 = vsub.f32 %v1962, %v2108
      %v2198 = vsub.f32 %v1964, %v2111
      %v2199 = vsub.f32 %v1966, %v2111
      %v2200 = vsub.f32 %v1970, %v2114
      %v2201 = vsub.f32 %v1972, %v2114
      %v2202 = vsub.f32 %v1974, %v2117
      %v2203 = vsub.f32 %v1976, %v2117
      %v2204 = vsub.f32 %v1980, %v2120
      %v2205 = vsub.f32 %v1982, %v2120
      %v2206 = vsub.f32 %v1984, %v2123
      %v2207 = vsub.f32 %v1986, %v2123
      %v2208 = vsub.f32 %v1990, %v2126
      %v2209 = vsub.f32 %v1992, %v2126
      %v2210 = vsub.f32 %v1994, %v2129
      %v2211 = vsub.f32 %v1996, %v2129
      %v2212 = vsub.f32 %v2000, %v2132
      %v2213 = vsub.f32 %v2002, %v2132
      %v2214 = vsub.f32 %v2004, %v2135
      %v2215 = vsub.f32 %v2006, %v2135
      %v2216 = vsub.f32 %v2010, %v2138
      %v2217 = vsub.f32 %v2012, %v2138
      %v2218 = vsub.f32 %v2014, %v2141
      %v2219 = vsub.f32 %v2016, %v2141
      %v2220 = vsub.f32 %v2020, %v2144
      %v2221 = vsub.f32 %v2022, %v2144
      %v2222 = vsub.f32 %v2024, %v2147
      %v2223 = vsub.f32 %v2026, %v2147
      %v2224 = vsub.f32 %v2030, %v2150
      %v2225 = vsub.f32 %v2032, %v2150
      %v2226 = vsub.f32 %v2034, %v2153
      %v2227 = vsub.f32 %v2036, %v2153
      %v2228 = vsub.f32 %v2040, %v2156
      %v2229 = vsub.f32 %v2042, %v2156
      %v2230 = vsub.f32 %v2044, %v2159
      %v2231 = vsub.f32 %v2046, %v2159
      %v2232 = vsub.f32 %v2050, %v2162
      %v2233 = vsub.f32 %v2052, %v2162
      %v2234 = vsub.f32 %v2054, %v2165
      %v2235 = vsub.f32 %v2056, %v2165
      %v2236 = vsub.f32 %v2060, %v2168
      %v2237 = vsub.f32 %v2062, %v2168
      %v2238 = vsub.f32 %v2064, %v2171
      %v2239 = vsub.f32 %v2066, %v2171
      %v2240 = vsub.f32 %v2070, %v2174
      %v2241 = vsub.f32 %v2072, %v2174
      %v2242 = vsub.f32 %v2074, %v2177
      %v2243 = vsub.f32 %v2076, %v2177
      %v2244 = vsub.f32 %v2080, %v2180
      %v2245 = vsub.f32 %v2082, %v2180
      %v2246 = vsub.f32 %v2084, %v2183
      %v2247 = vsub.f32 %v2086, %v2183
      %v2248 = vmul.f32 %v2184, 1.442695
      %v2249 = vpow.pop %v2248
      %v2250 = vmul.f32 %v2185, 1.442695
      %v2251 = vpow.pop %v2250
      %v2252 = vmul.f32 %v2186, 1.442695
      %v2253 = vpow.pop %v2252
      %v2254 = vmul.f32 %v2187, 1.442695
      %v2255 = vpow.pop %v2254
      %v2256 = vmul.f32 %v2188, 1.442695
      %v2257 = vpow.pop %v2256
      %v2258 = vmul.f32 %v2189, 1.442695
      %v2259 = vpow.pop %v2258
      %v2260 = vmul.f32 %v2190, 1.442695
      %v2261 = vpow.pop %v2260
      %v2262 = vmul.f32 %v2191, 1.442695
      %v2263 = vpow.pop %v2262
      %v2264 = vmul.f32 %v2192, 1.442695
      %v2265 = vpow.pop %v2264
      %v2266 = vmul.f32 %v2193, 1.442695
      %v2267 = vpow.pop %v2266
      %v2268 = vmul.f32 %v2194, 1.442695
      %v2269 = vpow.pop %v2268
      %v2270 = vmul.f32 %v2195, 1.442695
      %v2271 = vpow.pop %v2270
      %v2272 = vmul.f32 %v2196, 1.442695
      %v2273 = vpow.pop %v2272
      %v2274 = vmul.f32 %v2197, 1.442695
      %v2275 = vpow.pop %v2274
      %v2276 = vmul.f32 %v2198, 1.442695
      %v2277 = vpow.pop %v2276
      %v2278 = vmul.f32 %v2199, 1.442695
      %v2279 = vpow.pop %v2278
      %v2280 = vmul.f32 %v2200, 1.442695
      %v2281 = vpow.pop %v2280
      %v2282 = vmul.f32 %v2201, 1.442695
      %v2283 = vpow.pop %v2282
      %v2284 = vmul.f32 %v2202, 1.442695
      %v2285 = vpow.pop %v2284
      %v2286 = vmul.f32 %v2203, 1.442695
      %v2287 = vpow.pop %v2286
      %v2288 = vmul.f32 %v2204, 1.442695
      %v2289 = vpow.pop %v2288
      %v2290 = vmul.f32 %v2205, 1.442695
      %v2291 = vpow.pop %v2290
      %v2292 = vmul.f32 %v2206, 1.442695
      %v2293 = vpow.pop %v2292
      %v2294 = vmul.f32 %v2207, 1.442695
      %v2295 = vpow.pop %v2294
      %v2296 = vmul.f32 %v2208, 1.442695
      %v2297 = vpow.pop %v2296
      %v2298 = vmul.f32 %v2209, 1.442695
      %v2299 = vpow.pop %v2298
      %v2300 = vmul.f32 %v2210, 1.442695
      %v2301 = vpow.pop %v2300
      %v2302 = vmul.f32 %v2211, 1.442695
      %v2303 = vpow.pop %v2302
      %v2304 = vmul.f32 %v2212, 1.442695
      %v2305 = vpow.pop %v2304
      %v2306 = vmul.f32 %v2213, 1.442695
      %v2307 = vpow.pop %v2306
      %v2308 = vmul.f32 %v2214, 1.442695
      %v2309 = vpow.pop %v2308
      %v2310 = vmul.f32 %v2215, 1.442695
      %v2311 = vpow.pop %v2310
      %v2312 = vmul.f32 %v2216, 1.442695
      %v2313 = vpow.pop %v2312
      %v2314 = vmul.f32 %v2217, 1.442695
      %v2315 = vpow.pop %v2314
      %v2316 = vmul.f32 %v2218, 1.442695
      %v2317 = vpow.pop %v2316
      %v2318 = vmul.f32 %v2219, 1.442695
      %v2319 = vpow.pop %v2318
      %v2320 = vmul.f32 %v2220, 1.442695
      %v2321 = vpow.pop %v2320
      %v2322 = vmul.f32 %v2221, 1.442695
      %v2323 = vpow.pop %v2322
      %v2324 = vmul.f32 %v2222, 1.442695
      %v2325 = vpow.pop %v2324
      %v2326 = vmul.f32 %v2223, 1.442695
      %v2327 = vpow.pop %v2326
      %v2328 = vmul.f32 %v2224, 1.442695
      %v2329 = vpow.pop %v2328
      %v2330 = vmul.f32 %v2225, 1.442695
      %v2331 = vpow.pop %v2330
      %v2332 = vmul.f32 %v2226, 1.442695
      %v2333 = vpow.pop %v2332
      %v2334 = vmul.f32 %v2227, 1.442695
      %v2335 = vpow.pop %v2334
      %v2336 = vmul.f32 %v2228, 1.442695
      %v2337 = vpow.pop %v2336
      %v2338 = vmul.f32 %v2229, 1.442695
      %v2339 = vpow.pop %v2338
      %v2340 = vmul.f32 %v2230, 1.442695
      %v2341 = vpow.pop %v2340
      %v2342 = vmul.f32 %v2231, 1.442695
      %v2343 = vpow.pop %v2342
      %v2344 = vmul.f32 %v2232, 1.442695
      %v2345 = vpow.pop %v2344
      %v2346 = vmul.f32 %v2233, 1.442695
      %v2347 = vpow.pop %v2346
      %v2348 = vmul.f32 %v2234, 1.442695
      %v2349 = vpow.pop %v2348
      %v2350 = vmul.f32 %v2235, 1.442695
      %v2351 = vpow.pop %v2350
      %v2352 = vmul.f32 %v2236, 1.442695
      %v2353 = vpow.pop %v2352
      %v2354 = vmul.f32 %v2237, 1.442695
      %v2355 = vpow.pop %v2354
      %v2356 = vmul.f32 %v2238, 1.442695
      %v2357 = vpow.pop %v2356
      %v2358 = vmul.f32 %v2239, 1.442695
      %v2359 = vpow.pop %v2358
      %v2360 = vmul.f32 %v2240, 1.442695
      %v2361 = vpow.pop %v2360
      %v2362 = vmul.f32 %v2241, 1.442695
      %v2363 = vpow.pop %v2362
      %v2364 = vmul.f32 %v2242, 1.442695
      %v2365 = vpow.pop %v2364
      %v2366 = vmul.f32 %v2243, 1.442695
      %v2367 = vpow.pop %v2366
      %v2368 = vmul.f32 %v2244, 1.442695
      %v2369 = vpow.pop %v2368
      %v2370 = vmul.f32 %v2245, 1.442695
      %v2371 = vpow.pop %v2370
      %v2372 = vmul.f32 %v2246, 1.442695
      %v2373 = vpow.pop %v2372
      %v2374 = vmul.f32 %v2247, 1.442695
      %v2375 = vpow.pop %v2374
      %v2376 = vadd.f32 %v2249, %v2251
      %2377 = vadd.xlane.f32.xlu0 %v2376
      %v2378 = vpop.xlane.xlu0 %2377
      %v2379 = vadd.f32 %v2253, %v2255
      %2380 = vadd.xlane.f32.xlu0 %v2379
      %v2381 = vpop.xlane.xlu0 %2380
      %v2382 = vadd.f32 %v2257, %v2259
      %2383 = vadd.xlane.f32.xlu0 %v2382
      %v2384 = vpop.xlane.xlu0 %2383
      %v2385 = vadd.f32 %v2261, %v2263
      %2386 = vadd.xlane.f32.xlu0 %v2385
      %v2387 = vpop.xlane.xlu0 %2386
      %v2388 = vadd.f32 %v2265, %v2267
      %2389 = vadd.xlane.f32.xlu0 %v2388
      %v2390 = vpop.xlane.xlu0 %2389
      %v2391 = vadd.f32 %v2269, %v2271
      %2392 = vadd.xlane.f32.xlu0 %v2391
      %v2393 = vpop.xlane.xlu0 %2392
      %v2394 = vadd.f32 %v2273, %v2275
      %2395 = vadd.xlane.f32.xlu0 %v2394
      %v2396 = vpop.xlane.xlu0 %2395
      %v2397 = vadd.f32 %v2277, %v2279
      %2398 = vadd.xlane.f32.xlu0 %v2397
      %v2399 = vpop.xlane.xlu0 %2398
      %v2400 = vadd.f32 %v2281, %v2283
      %2401 = vadd.xlane.f32.xlu0 %v2400
      %v2402 = vpop.xlane.xlu0 %2401
      %v2403 = vadd.f32 %v2285, %v2287
      %2404 = vadd.xlane.f32.xlu0 %v2403
      %v2405 = vpop.xlane.xlu0 %2404
      %v2406 = vadd.f32 %v2289, %v2291
      %2407 = vadd.xlane.f32.xlu0 %v2406
      %v2408 = vpop.xlane.xlu0 %2407
      %v2409 = vadd.f32 %v2293, %v2295
      %2410 = vadd.xlane.f32.xlu0 %v2409
      %v2411 = vpop.xlane.xlu0 %2410
      %v2412 = vadd.f32 %v2297, %v2299
      %2413 = vadd.xlane.f32.xlu0 %v2412
      %v2414 = vpop.xlane.xlu0 %2413
      %v2415 = vadd.f32 %v2301, %v2303
      %2416 = vadd.xlane.f32.xlu0 %v2415
      %v2417 = vpop.xlane.xlu0 %2416
      %v2418 = vadd.f32 %v2305, %v2307
      %2419 = vadd.xlane.f32.xlu0 %v2418
      %v2420 = vpop.xlane.xlu0 %2419
      %v2421 = vadd.f32 %v2309, %v2311
      %2422 = vadd.xlane.f32.xlu0 %v2421
      %v2423 = vpop.xlane.xlu0 %2422
      %v2424 = vadd.f32 %v2313, %v2315
      %2425 = vadd.xlane.f32.xlu0 %v2424
      %v2426 = vpop.xlane.xlu0 %2425
      %v2427 = vadd.f32 %v2317, %v2319
      %2428 = vadd.xlane.f32.xlu0 %v2427
      %v2429 = vpop.xlane.xlu0 %2428
      %v2430 = vadd.f32 %v2321, %v2323
      %2431 = vadd.xlane.f32.xlu0 %v2430
      %v2432 = vpop.xlane.xlu0 %2431
      %v2433 = vadd.f32 %v2325, %v2327
      %2434 = vadd.xlane.f32.xlu0 %v2433
      %v2435 = vpop.xlane.xlu0 %2434
      %v2436 = vadd.f32 %v2329, %v2331
      %2437 = vadd.xlane.f32.xlu0 %v2436
      %v2438 = vpop.xlane.xlu0 %2437
      %v2439 = vadd.f32 %v2333, %v2335
      %2440 = vadd.xlane.f32.xlu0 %v2439
      %v2441 = vpop.xlane.xlu0 %2440
      %v2442 = vadd.f32 %v2337, %v2339
      %2443 = vadd.xlane.f32.xlu0 %v2442
      %v2444 = vpop.xlane.xlu0 %2443
      %v2445 = vadd.f32 %v2341, %v2343
      %2446 = vadd.xlane.f32.xlu0 %v2445
      %v2447 = vpop.xlane.xlu0 %2446
      %v2448 = vadd.f32 %v2345, %v2347
      %2449 = vadd.xlane.f32.xlu0 %v2448
      %v2450 = vpop.xlane.xlu0 %2449
      %v2451 = vadd.f32 %v2349, %v2351
      %2452 = vadd.xlane.f32.xlu0 %v2451
      %v2453 = vpop.xlane.xlu0 %2452
      %v2454 = vadd.f32 %v2353, %v2355
      %2455 = vadd.xlane.f32.xlu0 %v2454
      %v2456 = vpop.xlane.xlu0 %2455
      %v2457 = vadd.f32 %v2357, %v2359
      %2458 = vadd.xlane.f32.xlu0 %v2457
      %v2459 = vpop.xlane.xlu0 %2458
      %v2460 = vadd.f32 %v2361, %v2363
      %2461 = vadd.xlane.f32.xlu0 %v2460
      %v2462 = vpop.xlane.xlu0 %2461
      %v2463 = vadd.f32 %v2365, %v2367
      %2464 = vadd.xlane.f32.xlu0 %v2463
      %v2465 = vpop.xlane.xlu0 %2464
      %v2466 = vadd.f32 %v2369, %v2371
      %2467 = vadd.xlane.f32.xlu0 %v2466
      %v2468 = vpop.xlane.xlu0 %2467
      %v2469 = vadd.f32 %v2373, %v2375
      %2470 = vadd.xlane.f32.xlu0 %v2469
      %v2471 = vpop.xlane.xlu0 %2470
      %v2472 = vpack.c.bf16 %v2253, %v2249
      %v2473 = vpack.c.bf16 %v2255, %v2251
      %v2474 = vpack.c.bf16 %v2261, %v2257
      %v2475 = vpack.c.bf16 %v2263, %v2259
      %v2476 = vpack.c.bf16 %v2269, %v2265
      %v2477 = vpack.c.bf16 %v2271, %v2267
      %v2478 = vpack.c.bf16 %v2277, %v2273
      %v2479 = vpack.c.bf16 %v2279, %v2275
      %v2480 = vpack.c.bf16 %v2285, %v2281
      %v2481 = vpack.c.bf16 %v2287, %v2283
      %v2482 = vpack.c.bf16 %v2293, %v2289
      %v2483 = vpack.c.bf16 %v2295, %v2291
      %v2484 = vpack.c.bf16 %v2301, %v2297
      %v2485 = vpack.c.bf16 %v2303, %v2299
      %v2486 = vpack.c.bf16 %v2309, %v2305
      %v2487 = vpack.c.bf16 %v2311, %v2307
      %v2488 = vpack.c.bf16 %v2317, %v2313
      %v2489 = vpack.c.bf16 %v2319, %v2315
      %v2490 = vpack.c.bf16 %v2325, %v2321
      %v2491 = vpack.c.bf16 %v2327, %v2323
      %v2492 = vpack.c.bf16 %v2333, %v2329
      %v2493 = vpack.c.bf16 %v2335, %v2331
      %v2494 = vpack.c.bf16 %v2341, %v2337
      %v2495 = vpack.c.bf16 %v2343, %v2339
      %v2496 = vpack.c.bf16 %v2349, %v2345
      %v2497 = vpack.c.bf16 %v2351, %v2347
      %v2498 = vpack.c.bf16 %v2357, %v2353
      %v2499 = vpack.c.bf16 %v2359, %v2355
      %v2500 = vpack.c.bf16 %v2365, %v2361
      %v2501 = vpack.c.bf16 %v2367, %v2363
      %v2502 = vpack.c.bf16 %v2373, %v2369
      %v2503 = vpack.c.bf16 %v2375, %v2371
      %2520 = vrot.lane.b32.xlu0 %v708, 112
      %v2521 = vpop.permute.xlu0 %2520
      %2522 = vrot.lane.b32.xlu0 %v709, 112
      %v2523 = vpop.permute.xlu0 %2522
      %2524 = vrot.lane.b32.xlu0 %v710, 112
      %v2525 = vpop.permute.xlu0 %2524
      %2526 = vrot.lane.b32.xlu0 %v711, 112
      %v2527 = vpop.permute.xlu0 %2526
      %2528 = vrot.lane.b32.xlu0 %v712, 112
      %v2529 = vpop.permute.xlu0 %2528
      %2530 = vrot.lane.b32.xlu0 %v713, 112
      %v2531 = vpop.permute.xlu0 %2530
      %2532 = vrot.lane.b32.xlu0 %v714, 112
      %v2533 = vpop.permute.xlu0 %2532
      %2534 = vrot.lane.b32.xlu0 %v715, 112
      %v2535 = vpop.permute.xlu0 %2534
      %2536 = vrot.lane.b32.xlu0 %v716, 112
      %v2537 = vpop.permute.xlu0 %2536
      %2538 = vrot.lane.b32.xlu0 %v717, 112
      %v2539 = vpop.permute.xlu0 %2538
      %2540 = vrot.lane.b32.xlu0 %v718, 112
      %v2541 = vpop.permute.xlu0 %2540
      %2542 = vrot.lane.b32.xlu0 %v719, 112
      %v2543 = vpop.permute.xlu0 %2542
      %2544 = vrot.lane.b32.xlu0 %v720, 112
      %v2545 = vpop.permute.xlu0 %2544
      %2546 = vrot.lane.b32.xlu0 %v721, 112
      %v2547 = vpop.permute.xlu0 %2546
      %2548 = vrot.lane.b32.xlu0 %v722, 112
      %v2549 = vpop.permute.xlu0 %2548
      %2550 = vrot.lane.b32.xlu0 %v723, 112
      %v2551 = vpop.permute.xlu0 %2550
      %2568 = vmatprep.subr.bf16.mxu0 0
      %2569 = vmatpush1.bf16.msra.mxu0 %v2535
      %2570 = vmatprep.subr.bf16.mxu0 0
      %2571 = vmatpush1.bf16.msra.mxu0 %v2533
      %2572 = vmatprep.subr.bf16.mxu0 0
      %2573 = vmatpush1.bf16.msra.mxu0 %v2531
      %2574 = vmatprep.subr.bf16.mxu0 0
      %2575 = vmatpush1.bf16.msra.mxu0 %v2529
      %2576 = vmatprep.subr.bf16.mxu0 0
      %2577 = vmatpush1.bf16.msra.mxu0 %v2527
      %2578 = vmatprep.subr.bf16.mxu0 0
      %2579 = vmatpush1.bf16.msra.mxu0 %v2525
      %2580 = vmatprep.subr.bf16.mxu0 0
      %2581 = vmatpush1.bf16.msra.mxu0 %v2523
      %2582 = vmatprep.subr.bf16.mxu0 0
      %2583 = vmatpush1.bf16.msra.mxu0 %v2521
      %2584 = vmatprep.subr.bf16.mxu0 0
      %2585 = vmatpush2.bf16.msra.mxu0 %v2551
      %2586 = vmatprep.subr.bf16.mxu0 0
      %2587 = vmatpush2.bf16.msra.mxu0 %v2549
      %2588 = vmatprep.subr.bf16.mxu0 0
      %2589 = vmatpush2.bf16.msra.mxu0 %v2547
      %2590 = vmatprep.subr.bf16.mxu0 0
      %2591 = vmatpush2.bf16.msra.mxu0 %v2545
      %2592 = vmatprep.subr.bf16.mxu0 0
      %2593 = vmatpush2.bf16.msra.mxu0 %v2543
      %2594 = vmatprep.subr.bf16.mxu0 0
      %2595 = vmatpush2.bf16.msra.mxu0 %v2541
      %2596 = vmatprep.subr.bf16.mxu0 0
      %2597 = vmatpush2.bf16.msra.mxu0 %v2539
      %2598 = vmatprep.subr.bf16.mxu0 0
      %2599 = vmatpush2.bf16.msra.mxu0 %v2537
      %2600 = vmatprep.mubr.bf16.mxu0 %v2473
      %2601 = vmatmul.mubr.bf16.gmra.mxu0 %v2472
      %v2602 = vpop.f32.mrf.mxu0
      %v2603 = vadd.f32 0.0, %v2602
      %v2604 = vpop.f32.mrf.mxu0
      %v2605 = vpop.f32.mrf.mxu0
      %v2606 = vadd.f32 0.0, %v2605
      %v2607 = vpop.f32.mrf.mxu0
      %2608 = vmatprep.mubr.bf16.mxu0 %v2475
      %2609 = vmatmul.mubr.bf16.gmra.mxu0 %v2474
      %v2610 = vpop.f32.mrf.mxu0
      %v2611 = vadd.f32 0.0, %v2610
      %v2612 = vpop.f32.mrf.mxu0
      %v2613 = vpop.f32.mrf.mxu0
      %v2614 = vadd.f32 0.0, %v2613
      %v2615 = vpop.f32.mrf.mxu0
      %2616 = vmatprep.mubr.bf16.mxu0 %v2477
      %2617 = vmatmul.mubr.bf16.gmra.mxu0 %v2476
      %v2618 = vpop.f32.mrf.mxu0
      %v2619 = vadd.f32 0.0, %v2618
      %v2620 = vpop.f32.mrf.mxu0
      %v2621 = vpop.f32.mrf.mxu0
      %v2622 = vadd.f32 0.0, %v2621
      %v2623 = vpop.f32.mrf.mxu0
      %2624 = vmatprep.mubr.bf16.mxu0 %v2479
      %2625 = vmatmul.mubr.bf16.gmra.mxu0 %v2478
      %v2626 = vpop.f32.mrf.mxu0
      %v2627 = vadd.f32 0.0, %v2626
      %v2628 = vpop.f32.mrf.mxu0
      %v2629 = vpop.f32.mrf.mxu0
      %v2630 = vadd.f32 0.0, %v2629
      %v2631 = vpop.f32.mrf.mxu0
      %2632 = vmatprep.mubr.bf16.mxu0 %v2481
      %2633 = vmatmul.mubr.bf16.gmra.mxu0 %v2480
      %v2634 = vpop.f32.mrf.mxu0
      %v2635 = vadd.f32 0.0, %v2634
      %v2636 = vpop.f32.mrf.mxu0
      %v2637 = vpop.f32.mrf.mxu0
      %v2638 = vadd.f32 0.0, %v2637
      %v2639 = vpop.f32.mrf.mxu0
      %2640 = vmatprep.mubr.bf16.mxu0 %v2483
      %2641 = vmatmul.mubr.bf16.gmra.mxu0 %v2482
      %v2642 = vpop.f32.mrf.mxu0
      %v2643 = vadd.f32 0.0, %v2642
      %v2644 = vpop.f32.mrf.mxu0
      %v2645 = vpop.f32.mrf.mxu0
      %v2646 = vadd.f32 0.0, %v2645
      %v2647 = vpop.f32.mrf.mxu0
      %2648 = vmatprep.mubr.bf16.mxu0 %v2485
      %2649 = vmatmul.mubr.bf16.gmra.mxu0 %v2484
      %v2650 = vpop.f32.mrf.mxu0
      %v2651 = vadd.f32 0.0, %v2650
      %v2652 = vpop.f32.mrf.mxu0
      %v2653 = vpop.f32.mrf.mxu0
      %v2654 = vadd.f32 0.0, %v2653
      %v2655 = vpop.f32.mrf.mxu0
      %2656 = vmatprep.mubr.bf16.mxu0 %v2487
      %2657 = vmatmul.mubr.bf16.gmra.mxu0 %v2486
      %v2658 = vpop.f32.mrf.mxu0
      %v2659 = vadd.f32 0.0, %v2658
      %v2660 = vpop.f32.mrf.mxu0
      %v2661 = vpop.f32.mrf.mxu0
      %v2662 = vadd.f32 0.0, %v2661
      %v2663 = vpop.f32.mrf.mxu0
      %2664 = vmatprep.mubr.bf16.mxu0 %v2489
      %2665 = vmatmul.mubr.bf16.gmra.mxu0 %v2488
      %v2666 = vpop.f32.mrf.mxu0
      %v2667 = vadd.f32 0.0, %v2666
      %v2668 = vpop.f32.mrf.mxu0
      %v2669 = vpop.f32.mrf.mxu0
      %v2670 = vadd.f32 0.0, %v2669
      %v2671 = vpop.f32.mrf.mxu0
      %2672 = vmatprep.mubr.bf16.mxu0 %v2491
      %2673 = vmatmul.mubr.bf16.gmra.mxu0 %v2490
      %v2674 = vpop.f32.mrf.mxu0
      %v2675 = vadd.f32 0.0, %v2674
      %v2676 = vpop.f32.mrf.mxu0
      %v2677 = vpop.f32.mrf.mxu0
      %v2678 = vadd.f32 0.0, %v2677
      %v2679 = vpop.f32.mrf.mxu0
      %2680 = vmatprep.mubr.bf16.mxu0 %v2493
      %2681 = vmatmul.mubr.bf16.gmra.mxu0 %v2492
      %v2682 = vpop.f32.mrf.mxu0
      %v2683 = vadd.f32 0.0, %v2682
      %v2684 = vpop.f32.mrf.mxu0
      %v2685 = vpop.f32.mrf.mxu0
      %v2686 = vadd.f32 0.0, %v2685
      %v2687 = vpop.f32.mrf.mxu0
      %2688 = vmatprep.mubr.bf16.mxu0 %v2495
      %2689 = vmatmul.mubr.bf16.gmra.mxu0 %v2494
      %v2690 = vpop.f32.mrf.mxu0
      %v2691 = vadd.f32 0.0, %v2690
      %v2692 = vpop.f32.mrf.mxu0
      %v2693 = vpop.f32.mrf.mxu0
      %v2694 = vadd.f32 0.0, %v2693
      %v2695 = vpop.f32.mrf.mxu0
      %2696 = vmatprep.mubr.bf16.mxu0 %v2497
      %2697 = vmatmul.mubr.bf16.gmra.mxu0 %v2496
      %v2698 = vpop.f32.mrf.mxu0
      %v2699 = vadd.f32 0.0, %v2698
      %v2700 = vpop.f32.mrf.mxu0
      %v2701 = vpop.f32.mrf.mxu0
      %v2702 = vadd.f32 0.0, %v2701
      %v2703 = vpop.f32.mrf.mxu0
      %2704 = vmatprep.mubr.bf16.mxu0 %v2499
      %2705 = vmatmul.mubr.bf16.gmra.mxu0 %v2498
      %v2706 = vpop.f32.mrf.mxu0
      %v2707 = vadd.f32 0.0, %v2706
      %v2708 = vpop.f32.mrf.mxu0
      %v2709 = vpop.f32.mrf.mxu0
      %v2710 = vadd.f32 0.0, %v2709
      %v2711 = vpop.f32.mrf.mxu0
      %2712 = vmatprep.mubr.bf16.mxu0 %v2501
      %2713 = vmatmul.mubr.bf16.gmra.mxu0 %v2500
      %v2714 = vpop.f32.mrf.mxu0
      %v2715 = vadd.f32 0.0, %v2714
      %v2716 = vpop.f32.mrf.mxu0
      %v2717 = vpop.f32.mrf.mxu0
      %v2718 = vadd.f32 0.0, %v2717
      %v2719 = vpop.f32.mrf.mxu0
      %2720 = vmatprep.mubr.bf16.mxu0 %v2503
      %2721 = vmatmul.mubr.bf16.gmra.mxu0 %v2502
      %v2722 = vpop.f32.mrf.mxu0
      %v2723 = vadd.f32 0.0, %v2722
      %v2724 = vpop.f32.mrf.mxu0
      %v2725 = vpop.f32.mrf.mxu0
      %v2726 = vadd.f32 0.0, %v2725
      %v2727 = vpop.f32.mrf.mxu0
      %2728 = vdwg.mxu0
      %v2729 = vrcp.pop %v2378
      %v2730 = vmul.f32 %v2603, %v2729
      %v2731 = vrcp.pop %v2381
      %v2732 = vmul.f32 %v2606, %v2731
      %v2733 = vrcp.pop %v2384
      %v2734 = vmul.f32 %v2611, %v2733
      %v2735 = vrcp.pop %v2387
      %v2736 = vmul.f32 %v2614, %v2735
      %v2737 = vrcp.pop %v2390
      %v2738 = vmul.f32 %v2619, %v2737
      %v2739 = vrcp.pop %v2393
      %v2740 = vmul.f32 %v2622, %v2739
      %v2741 = vrcp.pop %v2396
      %v2742 = vmul.f32 %v2627, %v2741
      %v2743 = vrcp.pop %v2399
      %v2744 = vmul.f32 %v2630, %v2743
      %v2745 = vrcp.pop %v2402
      %v2746 = vmul.f32 %v2635, %v2745
      %v2747 = vrcp.pop %v2405
      %v2748 = vmul.f32 %v2638, %v2747
      %v2749 = vrcp.pop %v2408
      %v2750 = vmul.f32 %v2643, %v2749
      %v2751 = vrcp.pop %v2411
      %v2752 = vmul.f32 %v2646, %v2751
      %v2753 = vrcp.pop %v2414
      %v2754 = vmul.f32 %v2651, %v2753
      %v2755 = vrcp.pop %v2417
      %v2756 = vmul.f32 %v2654, %v2755
      %v2757 = vrcp.pop %v2420
      %v2758 = vmul.f32 %v2659, %v2757
      %v2759 = vrcp.pop %v2423
      %v2760 = vmul.f32 %v2662, %v2759
      %v2761 = vrcp.pop %v2426
      %v2762 = vmul.f32 %v2667, %v2761
      %v2763 = vrcp.pop %v2429
      %v2764 = vmul.f32 %v2670, %v2763
      %v2765 = vrcp.pop %v2432
      %v2766 = vmul.f32 %v2675, %v2765
      %v2767 = vrcp.pop %v2435
      %v2768 = vmul.f32 %v2678, %v2767
      %v2769 = vrcp.pop %v2438
      %v2770 = vmul.f32 %v2683, %v2769
      %v2771 = vrcp.pop %v2441
      %v2772 = vmul.f32 %v2686, %v2771
      %v2773 = vrcp.pop %v2444
      %v2774 = vmul.f32 %v2691, %v2773
      %v2775 = vrcp.pop %v2447
      %v2776 = vmul.f32 %v2694, %v2775
      %v2777 = vrcp.pop %v2450
      %v2778 = vmul.f32 %v2699, %v2777
      %v2779 = vrcp.pop %v2453
      %v2780 = vmul.f32 %v2702, %v2779
      %v2781 = vrcp.pop %v2456
      %v2782 = vmul.f32 %v2707, %v2781
      %v2783 = vrcp.pop %v2459
      %v2784 = vmul.f32 %v2710, %v2783
      %v2785 = vrcp.pop %v2462
      %v2786 = vmul.f32 %v2715, %v2785
      %v2787 = vrcp.pop %v2465
      %v2788 = vmul.f32 %v2718, %v2787
      %v2789 = vrcp.pop %v2468
      %v2790 = vmul.f32 %v2723, %v2789
      %v2791 = vrcp.pop %v2471
      %v2792 = vmul.f32 %v2726, %v2791
      %v2793 = vpack.c.bf16 %v2732, %v2730
      %v2794 = vpack.c.bf16 %v2736, %v2734
      %v2795 = vpack.c.bf16 %v2740, %v2738
      %v2796 = vpack.c.bf16 %v2744, %v2742
      %v2797 = vpack.c.bf16 %v2748, %v2746
      %v2798 = vpack.c.bf16 %v2752, %v2750
      %v2799 = vpack.c.bf16 %v2756, %v2754
      %v2800 = vpack.c.bf16 %v2760, %v2758
      %v2801 = vpack.c.bf16 %v2764, %v2762
      %v2802 = vpack.c.bf16 %v2768, %v2766
      %v2803 = vpack.c.bf16 %v2772, %v2770
      %v2804 = vpack.c.bf16 %v2776, %v2774
      %v2805 = vpack.c.bf16 %v2780, %v2778
      %v2806 = vpack.c.bf16 %v2784, %v2782
      %v2807 = vpack.c.bf16 %v2788, %v2786
      %v2808 = vpack.c.bf16 %v2792, %v2790
      %v2811 = vunpack.c.l.b16 %v638
      %v2812 = vunpack.c.l.b16 %v639
      %v2813 = vpack.c.b16 %v2812, %v2811
      %v2816 = vsel %vm772, %v2793, 0
      %v2819 = vsel %vm772, %v2794, 0
      %v2822 = vsel %vm772, %v2795, 0
      %v2825 = vsel %vm772, %v2796, 0
      %v2828 = vsel %vm772, %v2797, 0
      %v2831 = vsel %vm772, %v2798, 0
      %v2834 = vsel %vm772, %v2799, 0
      %v2837 = vsel %vm772, %v2800, 0
      %v2840 = vsel %vm772, %v2801, 0
      %v2843 = vsel %vm772, %v2802, 0
      %v2846 = vsel %vm772, %v2803, 0
      %v2849 = vsel %vm772, %v2804, 0
      %v2852 = vsel %vm772, %v2805, 0
      %v2855 = vsel %vm772, %v2806, 0
      %v2858 = vsel %vm772, %v2807, 0
      %v2861 = vsel %vm772, %v2808, 0
      %2863 = vmatprep.subr.bf16.mxu0 0
      %2864 = vmatpush1.bf16.msra.mxu0 0
      %2865 = vmatprep.subr.bf16.mxu0 0
      %2866 = vmatpush1.bf16.msra.mxu0 0
      %2867 = vmatprep.subr.bf16.mxu0 0
      %2868 = vmatpush1.bf16.msra.mxu0 0
      %2869 = vmatprep.subr.bf16.mxu0 0
      %2870 = vmatpush1.bf16.msra.mxu0 0
      %2871 = vmatprep.subr.bf16.mxu0 0
      %2872 = vmatpush1.bf16.msra.mxu0 0
      %2873 = vmatprep.subr.bf16.mxu0 0
      %2874 = vmatpush1.bf16.msra.mxu0 0
      %2875 = vmatprep.subr.bf16.mxu0 0
      %2876 = vmatpush1.bf16.msra.mxu0 0
      %2877 = vmatprep.subr.bf16.mxu0 0
      %2878 = vmatpush1.bf16.msra.mxu0 %v2813
      %2879 = vmatprep.subr.bf16.mxu0 0
      %2880 = vmatpush2.bf16.msra.mxu0 0
      %2881 = vmatprep.subr.bf16.mxu0 0
      %2882 = vmatpush2.bf16.msra.mxu0 0
      %2883 = vmatprep.subr.bf16.mxu0 0
      %2884 = vmatpush2.bf16.msra.mxu0 0
      %2885 = vmatprep.subr.bf16.mxu0 0
      %2886 = vmatpush2.bf16.msra.mxu0 0
      %2887 = vmatprep.subr.bf16.mxu0 0
      %2888 = vmatpush2.bf16.msra.mxu0 0
      %2889 = vmatprep.subr.bf16.mxu0 0
      %2890 = vmatpush2.bf16.msra.mxu0 0
      %2891 = vmatprep.subr.bf16.mxu0 0
      %2892 = vmatpush2.bf16.msra.mxu0 0
      %2893 = vmatprep.subr.bf16.mxu0 0
      %2894 = vmatpush2.bf16.msra.mxu0 0
      %2895 = vmatprep.mubr.bf16.mxu0 0
      %2896 = vmatmul.mubr.bf16.gmra.mxu0 %v2816
      %v2897 = vpop.f32.mrf.mxu0
      %v2898 = vadd.f32 0.0, %v2897
      %v2899 = vpop.f32.mrf.mxu0
      %v2900 = vpop.f32.mrf.mxu0
      %v2901 = vadd.f32 0.0, %v2900
      %v2902 = vpop.f32.mrf.mxu0
      %2903 = vmatprep.mubr.bf16.mxu0 0
      %2904 = vmatmul.mubr.bf16.gmra.mxu0 %v2819
      %v2905 = vpop.f32.mrf.mxu0
      %v2906 = vadd.f32 0.0, %v2905
      %v2907 = vpop.f32.mrf.mxu0
      %v2908 = vpop.f32.mrf.mxu0
      %v2909 = vadd.f32 0.0, %v2908
      %v2910 = vpop.f32.mrf.mxu0
      %2911 = vmatprep.mubr.bf16.mxu0 0
      %2912 = vmatmul.mubr.bf16.gmra.mxu0 %v2822
      %v2913 = vpop.f32.mrf.mxu0
      %v2914 = vadd.f32 0.0, %v2913
      %v2915 = vpop.f32.mrf.mxu0
      %v2916 = vpop.f32.mrf.mxu0
      %v2917 = vadd.f32 0.0, %v2916
      %v2918 = vpop.f32.mrf.mxu0
      %2919 = vmatprep.mubr.bf16.mxu0 0
      %2920 = vmatmul.mubr.bf16.gmra.mxu0 %v2825
      %v2921 = vpop.f32.mrf.mxu0
      %v2922 = vadd.f32 0.0, %v2921
      %v2923 = vpop.f32.mrf.mxu0
      %v2924 = vpop.f32.mrf.mxu0
      %v2925 = vadd.f32 0.0, %v2924
      %v2926 = vpop.f32.mrf.mxu0
      %2927 = vmatprep.mubr.bf16.mxu0 0
      %2928 = vmatmul.mubr.bf16.gmra.mxu0 %v2828
      %v2929 = vpop.f32.mrf.mxu0
      %v2930 = vadd.f32 0.0, %v2929
      %v2931 = vpop.f32.mrf.mxu0
      %v2932 = vpop.f32.mrf.mxu0
      %v2933 = vadd.f32 0.0, %v2932
      %v2934 = vpop.f32.mrf.mxu0
      %2935 = vmatprep.mubr.bf16.mxu0 0
      %2936 = vmatmul.mubr.bf16.gmra.mxu0 %v2831
      %v2937 = vpop.f32.mrf.mxu0
      %v2938 = vadd.f32 0.0, %v2937
      %v2939 = vpop.f32.mrf.mxu0
      %v2940 = vpop.f32.mrf.mxu0
      %v2941 = vadd.f32 0.0, %v2940
      %v2942 = vpop.f32.mrf.mxu0
      %2943 = vmatprep.mubr.bf16.mxu0 0
      %2944 = vmatmul.mubr.bf16.gmra.mxu0 %v2834
      %v2945 = vpop.f32.mrf.mxu0
      %v2946 = vadd.f32 0.0, %v2945
      %v2947 = vpop.f32.mrf.mxu0
      %v2948 = vpop.f32.mrf.mxu0
      %v2949 = vadd.f32 0.0, %v2948
      %v2950 = vpop.f32.mrf.mxu0
      %2951 = vmatprep.mubr.bf16.mxu0 0
      %2952 = vmatmul.mubr.bf16.gmra.mxu0 %v2837
      %v2953 = vpop.f32.mrf.mxu0
      %v2954 = vadd.f32 0.0, %v2953
      %v2955 = vpop.f32.mrf.mxu0
      %v2956 = vpop.f32.mrf.mxu0
      %v2957 = vadd.f32 0.0, %v2956
      %v2958 = vpop.f32.mrf.mxu0
      %2959 = vmatprep.mubr.bf16.mxu0 0
      %2960 = vmatmul.mubr.bf16.gmra.mxu0 %v2840
      %v2961 = vpop.f32.mrf.mxu0
      %v2962 = vadd.f32 0.0, %v2961
      %v2963 = vpop.f32.mrf.mxu0
      %v2964 = vpop.f32.mrf.mxu0
      %v2965 = vadd.f32 0.0, %v2964
      %v2966 = vpop.f32.mrf.mxu0
      %2967 = vmatprep.mubr.bf16.mxu0 0
      %2968 = vmatmul.mubr.bf16.gmra.mxu0 %v2843
      %v2969 = vpop.f32.mrf.mxu0
      %v2970 = vadd.f32 0.0, %v2969
      %v2971 = vpop.f32.mrf.mxu0
      %v2972 = vpop.f32.mrf.mxu0
      %v2973 = vadd.f32 0.0, %v2972
      %v2974 = vpop.f32.mrf.mxu0
      %2975 = vmatprep.mubr.bf16.mxu0 0
      %2976 = vmatmul.mubr.bf16.gmra.mxu0 %v2846
      %v2977 = vpop.f32.mrf.mxu0
      %v2978 = vadd.f32 0.0, %v2977
      %v2979 = vpop.f32.mrf.mxu0
      %v2980 = vpop.f32.mrf.mxu0
      %v2981 = vadd.f32 0.0, %v2980
      %v2982 = vpop.f32.mrf.mxu0
      %2983 = vmatprep.mubr.bf16.mxu0 0
      %2984 = vmatmul.mubr.bf16.gmra.mxu0 %v2849
      %v2985 = vpop.f32.mrf.mxu0
      %v2986 = vadd.f32 0.0, %v2985
      %v2987 = vpop.f32.mrf.mxu0
      %v2988 = vpop.f32.mrf.mxu0
      %v2989 = vadd.f32 0.0, %v2988
      %v2990 = vpop.f32.mrf.mxu0
      %2991 = vmatprep.mubr.bf16.mxu0 0
      %2992 = vmatmul.mubr.bf16.gmra.mxu0 %v2852
      %v2993 = vpop.f32.mrf.mxu0
      %v2994 = vadd.f32 0.0, %v2993
      %v2995 = vpop.f32.mrf.mxu0
      %v2996 = vpop.f32.mrf.mxu0
      %v2997 = vadd.f32 0.0, %v2996
      %v2998 = vpop.f32.mrf.mxu0
      %2999 = vmatprep.mubr.bf16.mxu0 0
      %3000 = vmatmul.mubr.bf16.gmra.mxu0 %v2855
      %v3001 = vpop.f32.mrf.mxu0
      %v3002 = vadd.f32 0.0, %v3001
      %v3003 = vpop.f32.mrf.mxu0
      %v3004 = vpop.f32.mrf.mxu0
      %v3005 = vadd.f32 0.0, %v3004
      %v3006 = vpop.f32.mrf.mxu0
      %3007 = vmatprep.mubr.bf16.mxu0 0
      %3008 = vmatmul.mubr.bf16.gmra.mxu0 %v2858
      %v3009 = vpop.f32.mrf.mxu0
      %v3010 = vadd.f32 0.0, %v3009
      %v3011 = vpop.f32.mrf.mxu0
      %v3012 = vpop.f32.mrf.mxu0
      %v3013 = vadd.f32 0.0, %v3012
      %v3014 = vpop.f32.mrf.mxu0
      %3015 = vmatprep.mubr.bf16.mxu0 0
      %3016 = vmatmul.mubr.bf16.gmra.mxu0 %v2861
      %v3017 = vpop.f32.mrf.mxu0
      %v3018 = vadd.f32 0.0, %v3017
      %v3019 = vpop.f32.mrf.mxu0
      %v3020 = vpop.f32.mrf.mxu0
      %v3021 = vadd.f32 0.0, %v3020
      %v3022 = vpop.f32.mrf.mxu0
      %3023 = vdwg.mxu0
      %v3026 = vunpack.c.l.b16 %v636
      %v3027 = vunpack.c.l.b16 %v637
      %v3028 = vpack.c.b16 %v3027, %v3026
      %v3031 = vsel %vm772, %v1703, 0
      %v3034 = vsel %vm772, %v1704, 0
      %v3037 = vsel %vm772, %v1705, 0
      %v3040 = vsel %vm772, %v1706, 0
      %v3043 = vsel %vm772, %v1707, 0
      %v3046 = vsel %vm772, %v1708, 0
      %v3049 = vsel %vm772, %v1709, 0
      %v3052 = vsel %vm772, %v1710, 0
      %v3055 = vsel %vm772, %v1711, 0
      %v3058 = vsel %vm772, %v1712, 0
      %v3061 = vsel %vm772, %v1713, 0
      %v3064 = vsel %vm772, %v1714, 0
      %v3067 = vsel %vm772, %v1715, 0
      %v3070 = vsel %vm772, %v1716, 0
      %v3073 = vsel %vm772, %v1717, 0
      %v3076 = vsel %vm772, %v1718, 0
      %3078 = vmatprep.subr.bf16.mxu0 0
      %3079 = vmatpush1.bf16.msra.mxu0 0
      %3080 = vmatprep.subr.bf16.mxu0 0
      %3081 = vmatpush1.bf16.msra.mxu0 0
      %3082 = vmatprep.subr.bf16.mxu0 0
      %3083 = vmatpush1.bf16.msra.mxu0 0
      %3084 = vmatprep.subr.bf16.mxu0 0
      %3085 = vmatpush1.bf16.msra.mxu0 0
      %3086 = vmatprep.subr.bf16.mxu0 0
      %3087 = vmatpush1.bf16.msra.mxu0 0
      %3088 = vmatprep.subr.bf16.mxu0 0
      %3089 = vmatpush1.bf16.msra.mxu0 0
      %3090 = vmatprep.subr.bf16.mxu0 0
      %3091 = vmatpush1.bf16.msra.mxu0 0
      %3092 = vmatprep.subr.bf16.mxu0 0
      %3093 = vmatpush1.bf16.msra.mxu0 %v3028
      %3094 = vmatprep.subr.bf16.mxu0 0
      %3095 = vmatpush2.bf16.msra.mxu0 0
      %3096 = vmatprep.subr.bf16.mxu0 0
      %3097 = vmatpush2.bf16.msra.mxu0 0
      %3098 = vmatprep.subr.bf16.mxu0 0
      %3099 = vmatpush2.bf16.msra.mxu0 0
      %3100 = vmatprep.subr.bf16.mxu0 0
      %3101 = vmatpush2.bf16.msra.mxu0 0
      %3102 = vmatprep.subr.bf16.mxu0 0
      %3103 = vmatpush2.bf16.msra.mxu0 0
      %3104 = vmatprep.subr.bf16.mxu0 0
      %3105 = vmatpush2.bf16.msra.mxu0 0
      %3106 = vmatprep.subr.bf16.mxu0 0
      %3107 = vmatpush2.bf16.msra.mxu0 0
      %3108 = vmatprep.subr.bf16.mxu0 0
      %3109 = vmatpush2.bf16.msra.mxu0 0
      %3110 = vmatprep.mubr.bf16.mxu0 0
      %3111 = vmatmul.mubr.bf16.gmra.mxu0 %v3031
      %v3112 = vpop.f32.mrf.mxu0
      %v3113 = vadd.f32 %v2898, %v3112
      %v3114 = vpop.f32.mrf.mxu0
      %v3115 = vpop.f32.mrf.mxu0
      %v3116 = vadd.f32 %v2901, %v3115
      %v3117 = vpop.f32.mrf.mxu0
      %3118 = vmatprep.mubr.bf16.mxu0 0
      %3119 = vmatmul.mubr.bf16.gmra.mxu0 %v3034
      %v3120 = vpop.f32.mrf.mxu0
      %v3121 = vadd.f32 %v2906, %v3120
      %v3122 = vpop.f32.mrf.mxu0
      %v3123 = vpop.f32.mrf.mxu0
      %v3124 = vadd.f32 %v2909, %v3123
      %v3125 = vpop.f32.mrf.mxu0
      %3126 = vmatprep.mubr.bf16.mxu0 0
      %3127 = vmatmul.mubr.bf16.gmra.mxu0 %v3037
      %v3128 = vpop.f32.mrf.mxu0
      %v3129 = vadd.f32 %v2914, %v3128
      %v3130 = vpop.f32.mrf.mxu0
      %v3131 = vpop.f32.mrf.mxu0
      %v3132 = vadd.f32 %v2917, %v3131
      %v3133 = vpop.f32.mrf.mxu0
      %3134 = vmatprep.mubr.bf16.mxu0 0
      %3135 = vmatmul.mubr.bf16.gmra.mxu0 %v3040
      %v3136 = vpop.f32.mrf.mxu0
      %v3137 = vadd.f32 %v2922, %v3136
      %v3138 = vpop.f32.mrf.mxu0
      %v3139 = vpop.f32.mrf.mxu0
      %v3140 = vadd.f32 %v2925, %v3139
      %v3141 = vpop.f32.mrf.mxu0
      %3142 = vmatprep.mubr.bf16.mxu0 0
      %3143 = vmatmul.mubr.bf16.gmra.mxu0 %v3043
      %v3144 = vpop.f32.mrf.mxu0
      %v3145 = vadd.f32 %v2930, %v3144
      %v3146 = vpop.f32.mrf.mxu0
      %v3147 = vpop.f32.mrf.mxu0
      %v3148 = vadd.f32 %v2933, %v3147
      %v3149 = vpop.f32.mrf.mxu0
      %3150 = vmatprep.mubr.bf16.mxu0 0
      %3151 = vmatmul.mubr.bf16.gmra.mxu0 %v3046
      %v3152 = vpop.f32.mrf.mxu0
      %v3153 = vadd.f32 %v2938, %v3152
      %v3154 = vpop.f32.mrf.mxu0
      %v3155 = vpop.f32.mrf.mxu0
      %v3156 = vadd.f32 %v2941, %v3155
      %v3157 = vpop.f32.mrf.mxu0
      %3158 = vmatprep.mubr.bf16.mxu0 0
      %3159 = vmatmul.mubr.bf16.gmra.mxu0 %v3049
      %v3160 = vpop.f32.mrf.mxu0
      %v3161 = vadd.f32 %v2946, %v3160
      %v3162 = vpop.f32.mrf.mxu0
      %v3163 = vpop.f32.mrf.mxu0
      %v3164 = vadd.f32 %v2949, %v3163
      %v3165 = vpop.f32.mrf.mxu0
      %3166 = vmatprep.mubr.bf16.mxu0 0
      %3167 = vmatmul.mubr.bf16.gmra.mxu0 %v3052
      %v3168 = vpop.f32.mrf.mxu0
      %v3169 = vadd.f32 %v2954, %v3168
      %v3170 = vpop.f32.mrf.mxu0
      %v3171 = vpop.f32.mrf.mxu0
      %v3172 = vadd.f32 %v2957, %v3171
      %v3173 = vpop.f32.mrf.mxu0
      %3174 = vmatprep.mubr.bf16.mxu0 0
      %3175 = vmatmul.mubr.bf16.gmra.mxu0 %v3055
      %v3176 = vpop.f32.mrf.mxu0
      %v3177 = vadd.f32 %v2962, %v3176
      %v3178 = vpop.f32.mrf.mxu0
      %v3179 = vpop.f32.mrf.mxu0
      %v3180 = vadd.f32 %v2965, %v3179
      %v3181 = vpop.f32.mrf.mxu0
      %3182 = vmatprep.mubr.bf16.mxu0 0
      %3183 = vmatmul.mubr.bf16.gmra.mxu0 %v3058
      %v3184 = vpop.f32.mrf.mxu0
      %v3185 = vadd.f32 %v2970, %v3184
      %v3186 = vpop.f32.mrf.mxu0
      %v3187 = vpop.f32.mrf.mxu0
      %v3188 = vadd.f32 %v2973, %v3187
      %v3189 = vpop.f32.mrf.mxu0
      %3190 = vmatprep.mubr.bf16.mxu0 0
      %3191 = vmatmul.mubr.bf16.gmra.mxu0 %v3061
      %v3192 = vpop.f32.mrf.mxu0
      %v3193 = vadd.f32 %v2978, %v3192
      %v3194 = vpop.f32.mrf.mxu0
      %v3195 = vpop.f32.mrf.mxu0
      %v3196 = vadd.f32 %v2981, %v3195
      %v3197 = vpop.f32.mrf.mxu0
      %3198 = vmatprep.mubr.bf16.mxu0 0
      %3199 = vmatmul.mubr.bf16.gmra.mxu0 %v3064
      %v3200 = vpop.f32.mrf.mxu0
      %v3201 = vadd.f32 %v2986, %v3200
      %v3202 = vpop.f32.mrf.mxu0
      %v3203 = vpop.f32.mrf.mxu0
      %v3204 = vadd.f32 %v2989, %v3203
      %v3205 = vpop.f32.mrf.mxu0
      %3206 = vmatprep.mubr.bf16.mxu0 0
      %3207 = vmatmul.mubr.bf16.gmra.mxu0 %v3067
      %v3208 = vpop.f32.mrf.mxu0
      %v3209 = vadd.f32 %v2994, %v3208
      %v3210 = vpop.f32.mrf.mxu0
      %v3211 = vpop.f32.mrf.mxu0
      %v3212 = vadd.f32 %v2997, %v3211
      %v3213 = vpop.f32.mrf.mxu0
      %3214 = vmatprep.mubr.bf16.mxu0 0
      %3215 = vmatmul.mubr.bf16.gmra.mxu0 %v3070
      %v3216 = vpop.f32.mrf.mxu0
      %v3217 = vadd.f32 %v3002, %v3216
      %v3218 = vpop.f32.mrf.mxu0
      %v3219 = vpop.f32.mrf.mxu0
      %v3220 = vadd.f32 %v3005, %v3219
      %v3221 = vpop.f32.mrf.mxu0
      %3222 = vmatprep.mubr.bf16.mxu0 0
      %3223 = vmatmul.mubr.bf16.gmra.mxu0 %v3073
      %v3224 = vpop.f32.mrf.mxu0
      %v3225 = vadd.f32 %v3010, %v3224
      %v3226 = vpop.f32.mrf.mxu0
      %v3227 = vpop.f32.mrf.mxu0
      %v3228 = vadd.f32 %v3013, %v3227
      %v3229 = vpop.f32.mrf.mxu0
      %3230 = vmatprep.mubr.bf16.mxu0 0
      %3231 = vmatmul.mubr.bf16.gmra.mxu0 %v3076
      %v3232 = vpop.f32.mrf.mxu0
      %v3233 = vadd.f32 %v3018, %v3232
      %v3234 = vpop.f32.mrf.mxu0
      %v3235 = vpop.f32.mrf.mxu0
      %v3236 = vadd.f32 %v3021, %v3235
      %v3237 = vpop.f32.mrf.mxu0
      %3238 = vdwg.mxu0
      %3239 = vrot.lane.b32.xlu0 %v676, 96
      %v3240 = vpop.permute.xlu0 %3239
      %3241 = vrot.lane.b32.xlu0 %v677, 96
      %v3242 = vpop.permute.xlu0 %3241
      %3243 = vrot.lane.b32.xlu0 %v678, 96
      %v3244 = vpop.permute.xlu0 %3243
      %3245 = vrot.lane.b32.xlu0 %v679, 96
      %v3246 = vpop.permute.xlu0 %3245
      %3247 = vrot.lane.b32.xlu0 %v680, 96
      %v3248 = vpop.permute.xlu0 %3247
      %3249 = vrot.lane.b32.xlu0 %v681, 96
      %v3250 = vpop.permute.xlu0 %3249
      %3251 = vrot.lane.b32.xlu0 %v682, 96
      %v3252 = vpop.permute.xlu0 %3251
      %3253 = vrot.lane.b32.xlu0 %v683, 96
      %v3254 = vpop.permute.xlu0 %3253
      %3255 = vrot.lane.b32.xlu0 %v684, 96
      %v3256 = vpop.permute.xlu0 %3255
      %3257 = vrot.lane.b32.xlu0 %v685, 96
      %v3258 = vpop.permute.xlu0 %3257
      %3259 = vrot.lane.b32.xlu0 %v686, 96
      %v3260 = vpop.permute.xlu0 %3259
      %3261 = vrot.lane.b32.xlu0 %v687, 96
      %v3262 = vpop.permute.xlu0 %3261
      %3263 = vrot.lane.b32.xlu0 %v688, 96
      %v3264 = vpop.permute.xlu0 %3263
      %3265 = vrot.lane.b32.xlu0 %v689, 96
      %v3266 = vpop.permute.xlu0 %3265
      %3267 = vrot.lane.b32.xlu0 %v690, 96
      %v3268 = vpop.permute.xlu0 %3267
      %3269 = vrot.lane.b32.xlu0 %v691, 96
      %v3270 = vpop.permute.xlu0 %3269
      %3271 = vrot.lane.b32.xlu0 %v692, 32
      %v3272 = vpop.permute.xlu0 %3271
      %3273 = vrot.lane.b32.xlu0 %v693, 32
      %v3274 = vpop.permute.xlu0 %3273
      %3275 = vrot.lane.b32.xlu0 %v694, 32
      %v3276 = vpop.permute.xlu0 %3275
      %3277 = vrot.lane.b32.xlu0 %v695, 32
      %v3278 = vpop.permute.xlu0 %3277
      %3279 = vrot.lane.b32.xlu0 %v696, 32
      %v3280 = vpop.permute.xlu0 %3279
      %3281 = vrot.lane.b32.xlu0 %v697, 32
      %v3282 = vpop.permute.xlu0 %3281
      %3283 = vrot.lane.b32.xlu0 %v698, 32
      %v3284 = vpop.permute.xlu0 %3283
      %3285 = vrot.lane.b32.xlu0 %v699, 32
      %v3286 = vpop.permute.xlu0 %3285
      %3287 = vrot.lane.b32.xlu0 %v700, 32
      %v3288 = vpop.permute.xlu0 %3287
      %3289 = vrot.lane.b32.xlu0 %v701, 32
      %v3290 = vpop.permute.xlu0 %3289
      %3291 = vrot.lane.b32.xlu0 %v702, 32
      %v3292 = vpop.permute.xlu0 %3291
      %3293 = vrot.lane.b32.xlu0 %v703, 32
      %v3294 = vpop.permute.xlu0 %3293
      %3295 = vrot.lane.b32.xlu0 %v704, 32
      %v3296 = vpop.permute.xlu0 %3295
      %3297 = vrot.lane.b32.xlu0 %v705, 32
      %v3298 = vpop.permute.xlu0 %3297
      %3299 = vrot.lane.b32.xlu0 %v706, 32
      %v3300 = vpop.permute.xlu0 %3299
      %3301 = vrot.lane.b32.xlu0 %v707, 32
      %v3302 = vpop.permute.xlu0 %3301
      %v3304 = vsel %vm772, %v3240, 0
      %v3307 = vsel %vm772, %v3242, 0
      %v3310 = vsel %vm772, %v3244, 0
      %v3313 = vsel %vm772, %v3246, 0
      %v3316 = vsel %vm772, %v3248, 0
      %v3319 = vsel %vm772, %v3250, 0
      %v3322 = vsel %vm772, %v3252, 0
      %v3325 = vsel %vm772, %v3254, 0
      %v3328 = vsel %vm772, %v3256, 0
      %v3331 = vsel %vm772, %v3258, 0
      %v3334 = vsel %vm772, %v3260, 0
      %v3337 = vsel %vm772, %v3262, 0
      %v3340 = vsel %vm772, %v3264, 0
      %v3343 = vsel %vm772, %v3266, 0
      %v3346 = vsel %vm772, %v3268, 0
      %v3349 = vsel %vm772, %v3270, 0
      %v3352 = vsel %vm772, %v3272, 0
      %v3355 = vsel %vm772, %v3274, 0
      %v3358 = vsel %vm772, %v3276, 0
      %v3361 = vsel %vm772, %v3278, 0
      %v3364 = vsel %vm772, %v3280, 0
      %v3367 = vsel %vm772, %v3282, 0
      %v3370 = vsel %vm772, %v3284, 0
      %v3373 = vsel %vm772, %v3286, 0
      %v3376 = vsel %vm772, %v3288, 0
      %v3379 = vsel %vm772, %v3290, 0
      %v3382 = vsel %vm772, %v3292, 0
      %v3385 = vsel %vm772, %v3294, 0
      %v3388 = vsel %vm772, %v3296, 0
      %v3391 = vsel %vm772, %v3298, 0
      %v3394 = vsel %vm772, %v3300, 0
      %v3397 = vsel %vm772, %v3302, 0
      %3399 = vmatprep.subr.bf16.mxu0 0
      %3400 = vmatpush1.bf16.xpose.msra.mxu0 %v3373
      %3401 = vmatprep.subr.bf16.mxu0 0
      %3402 = vmatpush1.bf16.xpose.msra.mxu0 %v3370
      %3403 = vmatprep.subr.bf16.mxu0 0
      %3404 = vmatpush1.bf16.xpose.msra.mxu0 %v3367
      %3405 = vmatprep.subr.bf16.mxu0 0
      %3406 = vmatpush1.bf16.xpose.msra.mxu0 %v3364
      %3407 = vmatprep.subr.bf16.mxu0 0
      %3408 = vmatpush1.bf16.xpose.msra.mxu0 %v3361
      %3409 = vmatprep.subr.bf16.mxu0 0
      %3410 = vmatpush1.bf16.xpose.msra.mxu0 %v3358
      %3411 = vmatprep.subr.bf16.mxu0 0
      %3412 = vmatpush1.bf16.xpose.msra.mxu0 %v3355
      %3413 = vmatprep.subr.bf16.mxu0 0
      %3414 = vmatpush1.bf16.xpose.msra.mxu0 %v3352
      %3415 = vmatprep.subr.bf16.mxu0 0
      %3416 = vmatpush2.bf16.xpose.msra.mxu0 %v3397
      %3417 = vmatprep.subr.bf16.mxu0 0
      %3418 = vmatpush2.bf16.xpose.msra.mxu0 %v3394
      %3419 = vmatprep.subr.bf16.mxu0 0
      %3420 = vmatpush2.bf16.xpose.msra.mxu0 %v3391
      %3421 = vmatprep.subr.bf16.mxu0 0
      %3422 = vmatpush2.bf16.xpose.msra.mxu0 %v3388
      %3423 = vmatprep.subr.bf16.mxu0 0
      %3424 = vmatpush2.bf16.xpose.msra.mxu0 %v3385
      %3425 = vmatprep.subr.bf16.mxu0 0
      %3426 = vmatpush2.bf16.xpose.msra.mxu0 %v3382
      %3427 = vmatprep.subr.bf16.mxu0 0
      %3428 = vmatpush2.bf16.xpose.msra.mxu0 %v3379
      %3429 = vmatprep.subr.bf16.mxu0 0
      %3430 = vmatpush2.bf16.xpose.msra.mxu0 %v3376
      %3431 = vmatprep.mubr.bf16.mxu0 0
      %3432 = vmatmul.mubr.bf16.gmra.mxu0 %v3304
      %v3433 = vpop.f32.mrf.mxu0
      %v3434 = vadd.f32 0.0, %v3433
      %v3435 = vpop.f32.mrf.mxu0
      %v3436 = vadd.f32 0.0, %v3435
      %v3437 = vpop.f32.mrf.mxu0
      %v3438 = vadd.f32 0.0, %v3437
      %v3439 = vpop.f32.mrf.mxu0
      %v3440 = vadd.f32 0.0, %v3439
      %3441 = vmatprep.mubr.bf16.mxu0 0
      %3442 = vmatmul.mubr.bf16.gmra.mxu0 %v3307
      %v3443 = vpop.f32.mrf.mxu0
      %v3444 = vadd.f32 0.0, %v3443
      %v3445 = vpop.f32.mrf.mxu0
      %v3446 = vadd.f32 0.0, %v3445
      %v3447 = vpop.f32.mrf.mxu0
      %v3448 = vadd.f32 0.0, %v3447
      %v3449 = vpop.f32.mrf.mxu0
      %v3450 = vadd.f32 0.0, %v3449
      %3451 = vmatprep.mubr.bf16.mxu0 0
      %3452 = vmatmul.mubr.bf16.gmra.mxu0 %v3310
      %v3453 = vpop.f32.mrf.mxu0
      %v3454 = vadd.f32 0.0, %v3453
      %v3455 = vpop.f32.mrf.mxu0
      %v3456 = vadd.f32 0.0, %v3455
      %v3457 = vpop.f32.mrf.mxu0
      %v3458 = vadd.f32 0.0, %v3457
      %v3459 = vpop.f32.mrf.mxu0
      %v3460 = vadd.f32 0.0, %v3459
      %3461 = vmatprep.mubr.bf16.mxu0 0
      %3462 = vmatmul.mubr.bf16.gmra.mxu0 %v3313
      %v3463 = vpop.f32.mrf.mxu0
      %v3464 = vadd.f32 0.0, %v3463
      %v3465 = vpop.f32.mrf.mxu0
      %v3466 = vadd.f32 0.0, %v3465
      %v3467 = vpop.f32.mrf.mxu0
      %v3468 = vadd.f32 0.0, %v3467
      %v3469 = vpop.f32.mrf.mxu0
      %v3470 = vadd.f32 0.0, %v3469
      %3471 = vmatprep.mubr.bf16.mxu0 0
      %3472 = vmatmul.mubr.bf16.gmra.mxu0 %v3316
      %v3473 = vpop.f32.mrf.mxu0
      %v3474 = vadd.f32 0.0, %v3473
      %v3475 = vpop.f32.mrf.mxu0
      %v3476 = vadd.f32 0.0, %v3475
      %v3477 = vpop.f32.mrf.mxu0
      %v3478 = vadd.f32 0.0, %v3477
      %v3479 = vpop.f32.mrf.mxu0
      %v3480 = vadd.f32 0.0, %v3479
      %3481 = vmatprep.mubr.bf16.mxu0 0
      %3482 = vmatmul.mubr.bf16.gmra.mxu0 %v3319
      %v3483 = vpop.f32.mrf.mxu0
      %v3484 = vadd.f32 0.0, %v3483
      %v3485 = vpop.f32.mrf.mxu0
      %v3486 = vadd.f32 0.0, %v3485
      %v3487 = vpop.f32.mrf.mxu0
      %v3488 = vadd.f32 0.0, %v3487
      %v3489 = vpop.f32.mrf.mxu0
      %v3490 = vadd.f32 0.0, %v3489
      %3491 = vmatprep.mubr.bf16.mxu0 0
      %3492 = vmatmul.mubr.bf16.gmra.mxu0 %v3322
      %v3493 = vpop.f32.mrf.mxu0
      %v3494 = vadd.f32 0.0, %v3493
      %v3495 = vpop.f32.mrf.mxu0
      %v3496 = vadd.f32 0.0, %v3495
      %v3497 = vpop.f32.mrf.mxu0
      %v3498 = vadd.f32 0.0, %v3497
      %v3499 = vpop.f32.mrf.mxu0
      %v3500 = vadd.f32 0.0, %v3499
      %3501 = vmatprep.mubr.bf16.mxu0 0
      %3502 = vmatmul.mubr.bf16.gmra.mxu0 %v3325
      %v3503 = vpop.f32.mrf.mxu0
      %v3504 = vadd.f32 0.0, %v3503
      %v3505 = vpop.f32.mrf.mxu0
      %v3506 = vadd.f32 0.0, %v3505
      %v3507 = vpop.f32.mrf.mxu0
      %v3508 = vadd.f32 0.0, %v3507
      %v3509 = vpop.f32.mrf.mxu0
      %v3510 = vadd.f32 0.0, %v3509
      %3511 = vmatprep.mubr.bf16.mxu0 0
      %3512 = vmatmul.mubr.bf16.gmra.mxu0 %v3328
      %v3513 = vpop.f32.mrf.mxu0
      %v3514 = vadd.f32 0.0, %v3513
      %v3515 = vpop.f32.mrf.mxu0
      %v3516 = vadd.f32 0.0, %v3515
      %v3517 = vpop.f32.mrf.mxu0
      %v3518 = vadd.f32 0.0, %v3517
      %v3519 = vpop.f32.mrf.mxu0
      %v3520 = vadd.f32 0.0, %v3519
      %3521 = vmatprep.mubr.bf16.mxu0 0
      %3522 = vmatmul.mubr.bf16.gmra.mxu0 %v3331
      %v3523 = vpop.f32.mrf.mxu0
      %v3524 = vadd.f32 0.0, %v3523
      %v3525 = vpop.f32.mrf.mxu0
      %v3526 = vadd.f32 0.0, %v3525
      %v3527 = vpop.f32.mrf.mxu0
      %v3528 = vadd.f32 0.0, %v3527
      %v3529 = vpop.f32.mrf.mxu0
      %v3530 = vadd.f32 0.0, %v3529
      %3531 = vmatprep.mubr.bf16.mxu0 0
      %3532 = vmatmul.mubr.bf16.gmra.mxu0 %v3334
      %v3533 = vpop.f32.mrf.mxu0
      %v3534 = vadd.f32 0.0, %v3533
      %v3535 = vpop.f32.mrf.mxu0
      %v3536 = vadd.f32 0.0, %v3535
      %v3537 = vpop.f32.mrf.mxu0
      %v3538 = vadd.f32 0.0, %v3537
      %v3539 = vpop.f32.mrf.mxu0
      %v3540 = vadd.f32 0.0, %v3539
      %3541 = vmatprep.mubr.bf16.mxu0 0
      %3542 = vmatmul.mubr.bf16.gmra.mxu0 %v3337
      %v3543 = vpop.f32.mrf.mxu0
      %v3544 = vadd.f32 0.0, %v3543
      %v3545 = vpop.f32.mrf.mxu0
      %v3546 = vadd.f32 0.0, %v3545
      %v3547 = vpop.f32.mrf.mxu0
      %v3548 = vadd.f32 0.0, %v3547
      %v3549 = vpop.f32.mrf.mxu0
      %v3550 = vadd.f32 0.0, %v3549
      %3551 = vmatprep.mubr.bf16.mxu0 0
      %3552 = vmatmul.mubr.bf16.gmra.mxu0 %v3340
      %v3553 = vpop.f32.mrf.mxu0
      %v3554 = vadd.f32 0.0, %v3553
      %v3555 = vpop.f32.mrf.mxu0
      %v3556 = vadd.f32 0.0, %v3555
      %v3557 = vpop.f32.mrf.mxu0
      %v3558 = vadd.f32 0.0, %v3557
      %v3559 = vpop.f32.mrf.mxu0
      %v3560 = vadd.f32 0.0, %v3559
      %3561 = vmatprep.mubr.bf16.mxu0 0
      %3562 = vmatmul.mubr.bf16.gmra.mxu0 %v3343
      %v3563 = vpop.f32.mrf.mxu0
      %v3564 = vadd.f32 0.0, %v3563
      %v3565 = vpop.f32.mrf.mxu0
      %v3566 = vadd.f32 0.0, %v3565
      %v3567 = vpop.f32.mrf.mxu0
      %v3568 = vadd.f32 0.0, %v3567
      %v3569 = vpop.f32.mrf.mxu0
      %v3570 = vadd.f32 0.0, %v3569
      %3571 = vmatprep.mubr.bf16.mxu0 0
      %3572 = vmatmul.mubr.bf16.gmra.mxu0 %v3346
      %v3573 = vpop.f32.mrf.mxu0
      %v3574 = vadd.f32 0.0, %v3573
      %v3575 = vpop.f32.mrf.mxu0
      %v3576 = vadd.f32 0.0, %v3575
      %v3577 = vpop.f32.mrf.mxu0
      %v3578 = vadd.f32 0.0, %v3577
      %v3579 = vpop.f32.mrf.mxu0
      %v3580 = vadd.f32 0.0, %v3579
      %3581 = vmatprep.mubr.bf16.mxu0 0
      %3582 = vmatmul.mubr.bf16.gmra.mxu0 %v3349
      %v3583 = vpop.f32.mrf.mxu0
      %v3584 = vadd.f32 0.0, %v3583
      %v3585 = vpop.f32.mrf.mxu0
      %v3586 = vadd.f32 0.0, %v3585
      %v3587 = vpop.f32.mrf.mxu0
      %v3588 = vadd.f32 0.0, %v3587
      %v3589 = vpop.f32.mrf.mxu0
      %v3590 = vadd.f32 0.0, %v3589
      %3591 = vdwg.mxu0
      %v3592 = vmax.f32 %v3434, %v3436
      %3593 = vmax.xlane.f32.xlu0 %v3592
      %v3594 = vpop.xlane.xlu0 %3593
      %v3595 = vmax.f32 %v3438, %v3440
      %3596 = vmax.xlane.f32.xlu0 %v3595
      %v3597 = vpop.xlane.xlu0 %3596
      %v3598 = vmax.f32 %v3444, %v3446
      %3599 = vmax.xlane.f32.xlu0 %v3598
      %v3600 = vpop.xlane.xlu0 %3599
      %v3601 = vmax.f32 %v3448, %v3450
      %3602 = vmax.xlane.f32.xlu0 %v3601
      %v3603 = vpop.xlane.xlu0 %3602
      %v3604 = vmax.f32 %v3454, %v3456
      %3605 = vmax.xlane.f32.xlu0 %v3604
      %v3606 = vpop.xlane.xlu0 %3605
      %v3607 = vmax.f32 %v3458, %v3460
      %3608 = vmax.xlane.f32.xlu0 %v3607
      %v3609 = vpop.xlane.xlu0 %3608
      %v3610 = vmax.f32 %v3464, %v3466
      %3611 = vmax.xlane.f32.xlu0 %v3610
      %v3612 = vpop.xlane.xlu0 %3611
      %v3613 = vmax.f32 %v3468, %v3470
      %3614 = vmax.xlane.f32.xlu0 %v3613
      %v3615 = vpop.xlane.xlu0 %3614
      %v3616 = vmax.f32 %v3474, %v3476
      %3617 = vmax.xlane.f32.xlu0 %v3616
      %v3618 = vpop.xlane.xlu0 %3617
      %v3619 = vmax.f32 %v3478, %v3480
      %3620 = vmax.xlane.f32.xlu0 %v3619
      %v3621 = vpop.xlane.xlu0 %3620
      %v3622 = vmax.f32 %v3484, %v3486
      %3623 = vmax.xlane.f32.xlu0 %v3622
      %v3624 = vpop.xlane.xlu0 %3623
      %v3625 = vmax.f32 %v3488, %v3490
      %3626 = vmax.xlane.f32.xlu0 %v3625
      %v3627 = vpop.xlane.xlu0 %3626
      %v3628 = vmax.f32 %v3494, %v3496
      %3629 = vmax.xlane.f32.xlu0 %v3628
      %v3630 = vpop.xlane.xlu0 %3629
      %v3631 = vmax.f32 %v3498, %v3500
      %3632 = vmax.xlane.f32.xlu0 %v3631
      %v3633 = vpop.xlane.xlu0 %3632
      %v3634 = vmax.f32 %v3504, %v3506
      %3635 = vmax.xlane.f32.xlu0 %v3634
      %v3636 = vpop.xlane.xlu0 %3635
      %v3637 = vmax.f32 %v3508, %v3510
      %3638 = vmax.xlane.f32.xlu0 %v3637
      %v3639 = vpop.xlane.xlu0 %3638
      %v3640 = vmax.f32 %v3514, %v3516
      %3641 = vmax.xlane.f32.xlu0 %v3640
      %v3642 = vpop.xlane.xlu0 %3641
      %v3643 = vmax.f32 %v3518, %v3520
      %3644 = vmax.xlane.f32.xlu0 %v3643
      %v3645 = vpop.xlane.xlu0 %3644
      %v3646 = vmax.f32 %v3524, %v3526
      %3647 = vmax.xlane.f32.xlu0 %v3646
      %v3648 = vpop.xlane.xlu0 %3647
      %v3649 = vmax.f32 %v3528, %v3530
      %3650 = vmax.xlane.f32.xlu0 %v3649
      %v3651 = vpop.xlane.xlu0 %3650
      %v3652 = vmax.f32 %v3534, %v3536
      %3653 = vmax.xlane.f32.xlu0 %v3652
      %v3654 = vpop.xlane.xlu0 %3653
      %v3655 = vmax.f32 %v3538, %v3540
      %3656 = vmax.xlane.f32.xlu0 %v3655
      %v3657 = vpop.xlane.xlu0 %3656
      %v3658 = vmax.f32 %v3544, %v3546
      %3659 = vmax.xlane.f32.xlu0 %v3658
      %v3660 = vpop.xlane.xlu0 %3659
      %v3661 = vmax.f32 %v3548, %v3550
      %3662 = vmax.xlane.f32.xlu0 %v3661
      %v3663 = vpop.xlane.xlu0 %3662
      %v3664 = vmax.f32 %v3554, %v3556
      %3665 = vmax.xlane.f32.xlu0 %v3664
      %v3666 = vpop.xlane.xlu0 %3665
      %v3667 = vmax.f32 %v3558, %v3560
      %3668 = vmax.xlane.f32.xlu0 %v3667
      %v3669 = vpop.xlane.xlu0 %3668
      %v3670 = vmax.f32 %v3564, %v3566
      %3671 = vmax.xlane.f32.xlu0 %v3670
      %v3672 = vpop.xlane.xlu0 %3671
      %v3673 = vmax.f32 %v3568, %v3570
      %3674 = vmax.xlane.f32.xlu0 %v3673
      %v3675 = vpop.xlane.xlu0 %3674
      %v3676 = vmax.f32 %v3574, %v3576
      %3677 = vmax.xlane.f32.xlu0 %v3676
      %v3678 = vpop.xlane.xlu0 %3677
      %v3679 = vmax.f32 %v3578, %v3580
      %3680 = vmax.xlane.f32.xlu0 %v3679
      %v3681 = vpop.xlane.xlu0 %3680
      %v3682 = vmax.f32 %v3584, %v3586
      %3683 = vmax.xlane.f32.xlu0 %v3682
      %v3684 = vpop.xlane.xlu0 %3683
      %v3685 = vmax.f32 %v3588, %v3590
      %3686 = vmax.xlane.f32.xlu0 %v3685
      %v3687 = vpop.xlane.xlu0 %3686
      %v3688 = vsub.f32 %v3434, %v3594
      %v3689 = vsub.f32 %v3436, %v3594
      %v3690 = vsub.f32 %v3438, %v3597
      %v3691 = vsub.f32 %v3440, %v3597
      %v3692 = vsub.f32 %v3444, %v3600
      %v3693 = vsub.f32 %v3446, %v3600
      %v3694 = vsub.f32 %v3448, %v3603
      %v3695 = vsub.f32 %v3450, %v3603
      %v3696 = vsub.f32 %v3454, %v3606
      %v3697 = vsub.f32 %v3456, %v3606
      %v3698 = vsub.f32 %v3458, %v3609
      %v3699 = vsub.f32 %v3460, %v3609
      %v3700 = vsub.f32 %v3464, %v3612
      %v3701 = vsub.f32 %v3466, %v3612
      %v3702 = vsub.f32 %v3468, %v3615
      %v3703 = vsub.f32 %v3470, %v3615
      %v3704 = vsub.f32 %v3474, %v3618
      %v3705 = vsub.f32 %v3476, %v3618
      %v3706 = vsub.f32 %v3478, %v3621
      %v3707 = vsub.f32 %v3480, %v3621
      %v3708 = vsub.f32 %v3484, %v3624
      %v3709 = vsub.f32 %v3486, %v3624
      %v3710 = vsub.f32 %v3488, %v3627
      %v3711 = vsub.f32 %v3490, %v3627
      %v3712 = vsub.f32 %v3494, %v3630
      %v3713 = vsub.f32 %v3496, %v3630
      %v3714 = vsub.f32 %v3498, %v3633
      %v3715 = vsub.f32 %v3500, %v3633
      %v3716 = vsub.f32 %v3504, %v3636
      %v3717 = vsub.f32 %v3506, %v3636
      %v3718 = vsub.f32 %v3508, %v3639
      %v3719 = vsub.f32 %v3510, %v3639
      %v3720 = vsub.f32 %v3514, %v3642
      %v3721 = vsub.f32 %v3516, %v3642
      %v3722 = vsub.f32 %v3518, %v3645
      %v3723 = vsub.f32 %v3520, %v3645
      %v3724 = vsub.f32 %v3524, %v3648
      %v3725 = vsub.f32 %v3526, %v3648
      %v3726 = vsub.f32 %v3528, %v3651
      %v3727 = vsub.f32 %v3530, %v3651
      %v3728 = vsub.f32 %v3534, %v3654
      %v3729 = vsub.f32 %v3536, %v3654
      %v3730 = vsub.f32 %v3538, %v3657
      %v3731 = vsub.f32 %v3540, %v3657
      %v3732 = vsub.f32 %v3544, %v3660
      %v3733 = vsub.f32 %v3546, %v3660
      %v3734 = vsub.f32 %v3548, %v3663
      %v3735 = vsub.f32 %v3550, %v3663
      %v3736 = vsub.f32 %v3554, %v3666
      %v3737 = vsub.f32 %v3556, %v3666
      %v3738 = vsub.f32 %v3558, %v3669
      %v3739 = vsub.f32 %v3560, %v3669
      %v3740 = vsub.f32 %v3564, %v3672
      %v3741 = vsub.f32 %v3566, %v3672
      %v3742 = vsub.f32 %v3568, %v3675
      %v3743 = vsub.f32 %v3570, %v3675
      %v3744 = vsub.f32 %v3574, %v3678
      %v3745 = vsub.f32 %v3576, %v3678
      %v3746 = vsub.f32 %v3578, %v3681
      %v3747 = vsub.f32 %v3580, %v3681
      %v3748 = vsub.f32 %v3584, %v3684
      %v3749 = vsub.f32 %v3586, %v3684
      %v3750 = vsub.f32 %v3588, %v3687
      %v3751 = vsub.f32 %v3590, %v3687
      %v3752 = vmul.f32 %v3688, 1.442695
      %v3753 = vpow.pop %v3752
      %v3754 = vmul.f32 %v3689, 1.442695
      %v3755 = vpow.pop %v3754
      %v3756 = vmul.f32 %v3690, 1.442695
      %v3757 = vpow.pop %v3756
      %v3758 = vmul.f32 %v3691, 1.442695
      %v3759 = vpow.pop %v3758
      %v3760 = vmul.f32 %v3692, 1.442695
      %v3761 = vpow.pop %v3760
      %v3762 = vmul.f32 %v3693, 1.442695
      %v3763 = vpow.pop %v3762
      %v3764 = vmul.f32 %v3694, 1.442695
      %v3765 = vpow.pop %v3764
      %v3766 = vmul.f32 %v3695, 1.442695
      %v3767 = vpow.pop %v3766
      %v3768 = vmul.f32 %v3696, 1.442695
      %v3769 = vpow.pop %v3768
      %v3770 = vmul.f32 %v3697, 1.442695
      %v3771 = vpow.pop %v3770
      %v3772 = vmul.f32 %v3698, 1.442695
      %v3773 = vpow.pop %v3772
      %v3774 = vmul.f32 %v3699, 1.442695
      %v3775 = vpow.pop %v3774
      %v3776 = vmul.f32 %v3700, 1.442695
      %v3777 = vpow.pop %v3776
      %v3778 = vmul.f32 %v3701, 1.442695
      %v3779 = vpow.pop %v3778
      %v3780 = vmul.f32 %v3702, 1.442695
      %v3781 = vpow.pop %v3780
      %v3782 = vmul.f32 %v3703, 1.442695
      %v3783 = vpow.pop %v3782
      %v3784 = vmul.f32 %v3704, 1.442695
      %v3785 = vpow.pop %v3784
      %v3786 = vmul.f32 %v3705, 1.442695
      %v3787 = vpow.pop %v3786
      %v3788 = vmul.f32 %v3706, 1.442695
      %v3789 = vpow.pop %v3788
      %v3790 = vmul.f32 %v3707, 1.442695
      %v3791 = vpow.pop %v3790
      %v3792 = vmul.f32 %v3708, 1.442695
      %v3793 = vpow.pop %v3792
      %v3794 = vmul.f32 %v3709, 1.442695
      %v3795 = vpow.pop %v3794
      %v3796 = vmul.f32 %v3710, 1.442695
      %v3797 = vpow.pop %v3796
      %v3798 = vmul.f32 %v3711, 1.442695
      %v3799 = vpow.pop %v3798
      %v3800 = vmul.f32 %v3712, 1.442695
      %v3801 = vpow.pop %v3800
      %v3802 = vmul.f32 %v3713, 1.442695
      %v3803 = vpow.pop %v3802
      %v3804 = vmul.f32 %v3714, 1.442695
      %v3805 = vpow.pop %v3804
      %v3806 = vmul.f32 %v3715, 1.442695
      %v3807 = vpow.pop %v3806
      %v3808 = vmul.f32 %v3716, 1.442695
      %v3809 = vpow.pop %v3808
      %v3810 = vmul.f32 %v3717, 1.442695
      %v3811 = vpow.pop %v3810
      %v3812 = vmul.f32 %v3718, 1.442695
      %v3813 = vpow.pop %v3812
      %v3814 = vmul.f32 %v3719, 1.442695
      %v3815 = vpow.pop %v3814
      %v3816 = vmul.f32 %v3720, 1.442695
      %v3817 = vpow.pop %v3816
      %v3818 = vmul.f32 %v3721, 1.442695
      %v3819 = vpow.pop %v3818
      %v3820 = vmul.f32 %v3722, 1.442695
      %v3821 = vpow.pop %v3820
      %v3822 = vmul.f32 %v3723, 1.442695
      %v3823 = vpow.pop %v3822
      %v3824 = vmul.f32 %v3724, 1.442695
      %v3825 = vpow.pop %v3824
      %v3826 = vmul.f32 %v3725, 1.442695
      %v3827 = vpow.pop %v3826
      %v3828 = vmul.f32 %v3726, 1.442695
      %v3829 = vpow.pop %v3828
      %v3830 = vmul.f32 %v3727, 1.442695
      %v3831 = vpow.pop %v3830
      %v3832 = vmul.f32 %v3728, 1.442695
      %v3833 = vpow.pop %v3832
      %v3834 = vmul.f32 %v3729, 1.442695
      %v3835 = vpow.pop %v3834
      %v3836 = vmul.f32 %v3730, 1.442695
      %v3837 = vpow.pop %v3836
      %v3838 = vmul.f32 %v3731, 1.442695
      %v3839 = vpow.pop %v3838
      %v3840 = vmul.f32 %v3732, 1.442695
      %v3841 = vpow.pop %v3840
      %v3842 = vmul.f32 %v3733, 1.442695
      %v3843 = vpow.pop %v3842
      %v3844 = vmul.f32 %v3734, 1.442695
      %v3845 = vpow.pop %v3844
      %v3846 = vmul.f32 %v3735, 1.442695
      %v3847 = vpow.pop %v3846
      %v3848 = vmul.f32 %v3736, 1.442695
      %v3849 = vpow.pop %v3848
      %v3850 = vmul.f32 %v3737, 1.442695
      %v3851 = vpow.pop %v3850
      %v3852 = vmul.f32 %v3738, 1.442695
      %v3853 = vpow.pop %v3852
      %v3854 = vmul.f32 %v3739, 1.442695
      %v3855 = vpow.pop %v3854
      %v3856 = vmul.f32 %v3740, 1.442695
      %v3857 = vpow.pop %v3856
      %v3858 = vmul.f32 %v3741, 1.442695
      %v3859 = vpow.pop %v3858
      %v3860 = vmul.f32 %v3742, 1.442695
      %v3861 = vpow.pop %v3860
      %v3862 = vmul.f32 %v3743, 1.442695
      %v3863 = vpow.pop %v3862
      %v3864 = vmul.f32 %v3744, 1.442695
      %v3865 = vpow.pop %v3864
      %v3866 = vmul.f32 %v3745, 1.442695
      %v3867 = vpow.pop %v3866
      %v3868 = vmul.f32 %v3746, 1.442695
      %v3869 = vpow.pop %v3868
      %v3870 = vmul.f32 %v3747, 1.442695
      %v3871 = vpow.pop %v3870
      %v3872 = vmul.f32 %v3748, 1.442695
      %v3873 = vpow.pop %v3872
      %v3874 = vmul.f32 %v3749, 1.442695
      %v3875 = vpow.pop %v3874
      %v3876 = vmul.f32 %v3750, 1.442695
      %v3877 = vpow.pop %v3876
      %v3878 = vmul.f32 %v3751, 1.442695
      %v3879 = vpow.pop %v3878
      %v3880 = vadd.f32 %v3753, %v3755
      %3881 = vadd.xlane.f32.xlu0 %v3880
      %v3882 = vpop.xlane.xlu0 %3881
      %v3883 = vadd.f32 %v3757, %v3759
      %3884 = vadd.xlane.f32.xlu0 %v3883
      %v3885 = vpop.xlane.xlu0 %3884
      %v3886 = vadd.f32 %v3761, %v3763
      %3887 = vadd.xlane.f32.xlu0 %v3886
      %v3888 = vpop.xlane.xlu0 %3887
      %v3889 = vadd.f32 %v3765, %v3767
      %3890 = vadd.xlane.f32.xlu0 %v3889
      %v3891 = vpop.xlane.xlu0 %3890
      %v3892 = vadd.f32 %v3769, %v3771
      %3893 = vadd.xlane.f32.xlu0 %v3892
      %v3894 = vpop.xlane.xlu0 %3893
      %v3895 = vadd.f32 %v3773, %v3775
      %3896 = vadd.xlane.f32.xlu0 %v3895
      %v3897 = vpop.xlane.xlu0 %3896
      %v3898 = vadd.f32 %v3777, %v3779
      %3899 = vadd.xlane.f32.xlu0 %v3898
      %v3900 = vpop.xlane.xlu0 %3899
      %v3901 = vadd.f32 %v3781, %v3783
      %3902 = vadd.xlane.f32.xlu0 %v3901
      %v3903 = vpop.xlane.xlu0 %3902
      %v3904 = vadd.f32 %v3785, %v3787
      %3905 = vadd.xlane.f32.xlu0 %v3904
      %v3906 = vpop.xlane.xlu0 %3905
      %v3907 = vadd.f32 %v3789, %v3791
      %3908 = vadd.xlane.f32.xlu0 %v3907
      %v3909 = vpop.xlane.xlu0 %3908
      %v3910 = vadd.f32 %v3793, %v3795
      %3911 = vadd.xlane.f32.xlu0 %v3910
      %v3912 = vpop.xlane.xlu0 %3911
      %v3913 = vadd.f32 %v3797, %v3799
      %3914 = vadd.xlane.f32.xlu0 %v3913
      %v3915 = vpop.xlane.xlu0 %3914
      %v3916 = vadd.f32 %v3801, %v3803
      %3917 = vadd.xlane.f32.xlu0 %v3916
      %v3918 = vpop.xlane.xlu0 %3917
      %v3919 = vadd.f32 %v3805, %v3807
      %3920 = vadd.xlane.f32.xlu0 %v3919
      %v3921 = vpop.xlane.xlu0 %3920
      %v3922 = vadd.f32 %v3809, %v3811
      %3923 = vadd.xlane.f32.xlu0 %v3922
      %v3924 = vpop.xlane.xlu0 %3923
      %v3925 = vadd.f32 %v3813, %v3815
      %3926 = vadd.xlane.f32.xlu0 %v3925
      %v3927 = vpop.xlane.xlu0 %3926
      %v3928 = vadd.f32 %v3817, %v3819
      %3929 = vadd.xlane.f32.xlu0 %v3928
      %v3930 = vpop.xlane.xlu0 %3929
      %v3931 = vadd.f32 %v3821, %v3823
      %3932 = vadd.xlane.f32.xlu0 %v3931
      %v3933 = vpop.xlane.xlu0 %3932
      %v3934 = vadd.f32 %v3825, %v3827
      %3935 = vadd.xlane.f32.xlu0 %v3934
      %v3936 = vpop.xlane.xlu0 %3935
      %v3937 = vadd.f32 %v3829, %v3831
      %3938 = vadd.xlane.f32.xlu0 %v3937
      %v3939 = vpop.xlane.xlu0 %3938
      %v3940 = vadd.f32 %v3833, %v3835
      %3941 = vadd.xlane.f32.xlu0 %v3940
      %v3942 = vpop.xlane.xlu0 %3941
      %v3943 = vadd.f32 %v3837, %v3839
      %3944 = vadd.xlane.f32.xlu0 %v3943
      %v3945 = vpop.xlane.xlu0 %3944
      %v3946 = vadd.f32 %v3841, %v3843
      %3947 = vadd.xlane.f32.xlu0 %v3946
      %v3948 = vpop.xlane.xlu0 %3947
      %v3949 = vadd.f32 %v3845, %v3847
      %3950 = vadd.xlane.f32.xlu0 %v3949
      %v3951 = vpop.xlane.xlu0 %3950
      %v3952 = vadd.f32 %v3849, %v3851
      %3953 = vadd.xlane.f32.xlu0 %v3952
      %v3954 = vpop.xlane.xlu0 %3953
      %v3955 = vadd.f32 %v3853, %v3855
      %3956 = vadd.xlane.f32.xlu0 %v3955
      %v3957 = vpop.xlane.xlu0 %3956
      %v3958 = vadd.f32 %v3857, %v3859
      %3959 = vadd.xlane.f32.xlu0 %v3958
      %v3960 = vpop.xlane.xlu0 %3959
      %v3961 = vadd.f32 %v3861, %v3863
      %3962 = vadd.xlane.f32.xlu0 %v3961
      %v3963 = vpop.xlane.xlu0 %3962
      %v3964 = vadd.f32 %v3865, %v3867
      %3965 = vadd.xlane.f32.xlu0 %v3964
      %v3966 = vpop.xlane.xlu0 %3965
      %v3967 = vadd.f32 %v3869, %v3871
      %3968 = vadd.xlane.f32.xlu0 %v3967
      %v3969 = vpop.xlane.xlu0 %3968
      %v3970 = vadd.f32 %v3873, %v3875
      %3971 = vadd.xlane.f32.xlu0 %v3970
      %v3972 = vpop.xlane.xlu0 %3971
      %v3973 = vadd.f32 %v3877, %v3879
      %3974 = vadd.xlane.f32.xlu0 %v3973
      %v3975 = vpop.xlane.xlu0 %3974
      %v3976 = vpack.c.bf16 %v3757, %v3753
      %v3977 = vpack.c.bf16 %v3759, %v3755
      %v3978 = vpack.c.bf16 %v3765, %v3761
      %v3979 = vpack.c.bf16 %v3767, %v3763
      %v3980 = vpack.c.bf16 %v3773, %v3769
      %v3981 = vpack.c.bf16 %v3775, %v3771
      %v3982 = vpack.c.bf16 %v3781, %v3777
      %v3983 = vpack.c.bf16 %v3783, %v3779
      %v3984 = vpack.c.bf16 %v3789, %v3785
      %v3985 = vpack.c.bf16 %v3791, %v3787
      %v3986 = vpack.c.bf16 %v3797, %v3793
      %v3987 = vpack.c.bf16 %v3799, %v3795
      %v3988 = vpack.c.bf16 %v3805, %v3801
      %v3989 = vpack.c.bf16 %v3807, %v3803
      %v3990 = vpack.c.bf16 %v3813, %v3809
      %v3991 = vpack.c.bf16 %v3815, %v3811
      %v3992 = vpack.c.bf16 %v3821, %v3817
      %v3993 = vpack.c.bf16 %v3823, %v3819
      %v3994 = vpack.c.bf16 %v3829, %v3825
      %v3995 = vpack.c.bf16 %v3831, %v3827
      %v3996 = vpack.c.bf16 %v3837, %v3833
      %v3997 = vpack.c.bf16 %v3839, %v3835
      %v3998 = vpack.c.bf16 %v3845, %v3841
      %v3999 = vpack.c.bf16 %v3847, %v3843
      %v4000 = vpack.c.bf16 %v3853, %v3849
      %v4001 = vpack.c.bf16 %v3855, %v3851
      %v4002 = vpack.c.bf16 %v3861, %v3857
      %v4003 = vpack.c.bf16 %v3863, %v3859
      %v4004 = vpack.c.bf16 %v3869, %v3865
      %v4005 = vpack.c.bf16 %v3871, %v3867
      %v4006 = vpack.c.bf16 %v3877, %v3873
      %v4007 = vpack.c.bf16 %v3879, %v3875
      %4008 = vrot.lane.b32.xlu0 %v708, 96
      %v4009 = vpop.permute.xlu0 %4008
      %4010 = vrot.lane.b32.xlu0 %v709, 96
      %v4011 = vpop.permute.xlu0 %4010
      %4012 = vrot.lane.b32.xlu0 %v710, 96
      %v4013 = vpop.permute.xlu0 %4012
      %4014 = vrot.lane.b32.xlu0 %v711, 96
      %v4015 = vpop.permute.xlu0 %4014
      %4016 = vrot.lane.b32.xlu0 %v712, 96
      %v4017 = vpop.permute.xlu0 %4016
      %4018 = vrot.lane.b32.xlu0 %v713, 96
      %v4019 = vpop.permute.xlu0 %4018
      %4020 = vrot.lane.b32.xlu0 %v714, 96
      %v4021 = vpop.permute.xlu0 %4020
      %4022 = vrot.lane.b32.xlu0 %v715, 96
      %v4023 = vpop.permute.xlu0 %4022
      %4024 = vrot.lane.b32.xlu0 %v716, 96
      %v4025 = vpop.permute.xlu0 %4024
      %4026 = vrot.lane.b32.xlu0 %v717, 96
      %v4027 = vpop.permute.xlu0 %4026
      %4028 = vrot.lane.b32.xlu0 %v718, 96
      %v4029 = vpop.permute.xlu0 %4028
      %4030 = vrot.lane.b32.xlu0 %v719, 96
      %v4031 = vpop.permute.xlu0 %4030
      %4032 = vrot.lane.b32.xlu0 %v720, 96
      %v4033 = vpop.permute.xlu0 %4032
      %4034 = vrot.lane.b32.xlu0 %v721, 96
      %v4035 = vpop.permute.xlu0 %4034
      %4036 = vrot.lane.b32.xlu0 %v722, 96
      %v4037 = vpop.permute.xlu0 %4036
      %4038 = vrot.lane.b32.xlu0 %v723, 96
      %v4039 = vpop.permute.xlu0 %4038
      %4056 = vmatprep.subr.bf16.mxu0 0
      %4057 = vmatpush1.bf16.msra.mxu0 %v4023
      %4058 = vmatprep.subr.bf16.mxu0 0
      %4059 = vmatpush1.bf16.msra.mxu0 %v4021
      %4060 = vmatprep.subr.bf16.mxu0 0
      %4061 = vmatpush1.bf16.msra.mxu0 %v4019
      %4062 = vmatprep.subr.bf16.mxu0 0
      %4063 = vmatpush1.bf16.msra.mxu0 %v4017
      %4064 = vmatprep.subr.bf16.mxu0 0
      %4065 = vmatpush1.bf16.msra.mxu0 %v4015
      %4066 = vmatprep.subr.bf16.mxu0 0
      %4067 = vmatpush1.bf16.msra.mxu0 %v4013
      %4068 = vmatprep.subr.bf16.mxu0 0
      %4069 = vmatpush1.bf16.msra.mxu0 %v4011
      %4070 = vmatprep.subr.bf16.mxu0 0
      %4071 = vmatpush1.bf16.msra.mxu0 %v4009
      %4072 = vmatprep.subr.bf16.mxu0 0
      %4073 = vmatpush2.bf16.msra.mxu0 %v4039
      %4074 = vmatprep.subr.bf16.mxu0 0
      %4075 = vmatpush2.bf16.msra.mxu0 %v4037
      %4076 = vmatprep.subr.bf16.mxu0 0
      %4077 = vmatpush2.bf16.msra.mxu0 %v4035
      %4078 = vmatprep.subr.bf16.mxu0 0
      %4079 = vmatpush2.bf16.msra.mxu0 %v4033
      %4080 = vmatprep.subr.bf16.mxu0 0
      %4081 = vmatpush2.bf16.msra.mxu0 %v4031
      %4082 = vmatprep.subr.bf16.mxu0 0
      %4083 = vmatpush2.bf16.msra.mxu0 %v4029
      %4084 = vmatprep.subr.bf16.mxu0 0
      %4085 = vmatpush2.bf16.msra.mxu0 %v4027
      %4086 = vmatprep.subr.bf16.mxu0 0
      %4087 = vmatpush2.bf16.msra.mxu0 %v4025
      %4088 = vmatprep.mubr.bf16.mxu0 %v3977
      %4089 = vmatmul.mubr.bf16.gmra.mxu0 %v3976
      %v4090 = vpop.f32.mrf.mxu0
      %v4091 = vadd.f32 0.0, %v4090
      %v4092 = vpop.f32.mrf.mxu0
      %v4093 = vpop.f32.mrf.mxu0
      %v4094 = vadd.f32 0.0, %v4093
      %v4095 = vpop.f32.mrf.mxu0
      %4096 = vmatprep.mubr.bf16.mxu0 %v3979
      %4097 = vmatmul.mubr.bf16.gmra.mxu0 %v3978
      %v4098 = vpop.f32.mrf.mxu0
      %v4099 = vadd.f32 0.0, %v4098
      %v4100 = vpop.f32.mrf.mxu0
      %v4101 = vpop.f32.mrf.mxu0
      %v4102 = vadd.f32 0.0, %v4101
      %v4103 = vpop.f32.mrf.mxu0
      %4104 = vmatprep.mubr.bf16.mxu0 %v3981
      %4105 = vmatmul.mubr.bf16.gmra.mxu0 %v3980
      %v4106 = vpop.f32.mrf.mxu0
      %v4107 = vadd.f32 0.0, %v4106
      %v4108 = vpop.f32.mrf.mxu0
      %v4109 = vpop.f32.mrf.mxu0
      %v4110 = vadd.f32 0.0, %v4109
      %v4111 = vpop.f32.mrf.mxu0
      %4112 = vmatprep.mubr.bf16.mxu0 %v3983
      %4113 = vmatmul.mubr.bf16.gmra.mxu0 %v3982
      %v4114 = vpop.f32.mrf.mxu0
      %v4115 = vadd.f32 0.0, %v4114
      %v4116 = vpop.f32.mrf.mxu0
      %v4117 = vpop.f32.mrf.mxu0
      %v4118 = vadd.f32 0.0, %v4117
      %v4119 = vpop.f32.mrf.mxu0
      %4120 = vmatprep.mubr.bf16.mxu0 %v3985
      %4121 = vmatmul.mubr.bf16.gmra.mxu0 %v3984
      %v4122 = vpop.f32.mrf.mxu0
      %v4123 = vadd.f32 0.0, %v4122
      %v4124 = vpop.f32.mrf.mxu0
      %v4125 = vpop.f32.mrf.mxu0
      %v4126 = vadd.f32 0.0, %v4125
      %v4127 = vpop.f32.mrf.mxu0
      %4128 = vmatprep.mubr.bf16.mxu0 %v3987
      %4129 = vmatmul.mubr.bf16.gmra.mxu0 %v3986
      %v4130 = vpop.f32.mrf.mxu0
      %v4131 = vadd.f32 0.0, %v4130
      %v4132 = vpop.f32.mrf.mxu0
      %v4133 = vpop.f32.mrf.mxu0
      %v4134 = vadd.f32 0.0, %v4133
      %v4135 = vpop.f32.mrf.mxu0
      %4136 = vmatprep.mubr.bf16.mxu0 %v3989
      %4137 = vmatmul.mubr.bf16.gmra.mxu0 %v3988
      %v4138 = vpop.f32.mrf.mxu0
      %v4139 = vadd.f32 0.0, %v4138
      %v4140 = vpop.f32.mrf.mxu0
      %v4141 = vpop.f32.mrf.mxu0
      %v4142 = vadd.f32 0.0, %v4141
      %v4143 = vpop.f32.mrf.mxu0
      %4144 = vmatprep.mubr.bf16.mxu0 %v3991
      %4145 = vmatmul.mubr.bf16.gmra.mxu0 %v3990
      %v4146 = vpop.f32.mrf.mxu0
      %v4147 = vadd.f32 0.0, %v4146
      %v4148 = vpop.f32.mrf.mxu0
      %v4149 = vpop.f32.mrf.mxu0
      %v4150 = vadd.f32 0.0, %v4149
      %v4151 = vpop.f32.mrf.mxu0
      %4152 = vmatprep.mubr.bf16.mxu0 %v3993
      %4153 = vmatmul.mubr.bf16.gmra.mxu0 %v3992
      %v4154 = vpop.f32.mrf.mxu0
      %v4155 = vadd.f32 0.0, %v4154
      %v4156 = vpop.f32.mrf.mxu0
      %v4157 = vpop.f32.mrf.mxu0
      %v4158 = vadd.f32 0.0, %v4157
      %v4159 = vpop.f32.mrf.mxu0
      %4160 = vmatprep.mubr.bf16.mxu0 %v3995
      %4161 = vmatmul.mubr.bf16.gmra.mxu0 %v3994
      %v4162 = vpop.f32.mrf.mxu0
      %v4163 = vadd.f32 0.0, %v4162
      %v4164 = vpop.f32.mrf.mxu0
      %v4165 = vpop.f32.mrf.mxu0
      %v4166 = vadd.f32 0.0, %v4165
      %v4167 = vpop.f32.mrf.mxu0
      %4168 = vmatprep.mubr.bf16.mxu0 %v3997
      %4169 = vmatmul.mubr.bf16.gmra.mxu0 %v3996
      %v4170 = vpop.f32.mrf.mxu0
      %v4171 = vadd.f32 0.0, %v4170
      %v4172 = vpop.f32.mrf.mxu0
      %v4173 = vpop.f32.mrf.mxu0
      %v4174 = vadd.f32 0.0, %v4173
      %v4175 = vpop.f32.mrf.mxu0
      %4176 = vmatprep.mubr.bf16.mxu0 %v3999
      %4177 = vmatmul.mubr.bf16.gmra.mxu0 %v3998
      %v4178 = vpop.f32.mrf.mxu0
      %v4179 = vadd.f32 0.0, %v4178
      %v4180 = vpop.f32.mrf.mxu0
      %v4181 = vpop.f32.mrf.mxu0
      %v4182 = vadd.f32 0.0, %v4181
      %v4183 = vpop.f32.mrf.mxu0
      %4184 = vmatprep.mubr.bf16.mxu0 %v4001
      %4185 = vmatmul.mubr.bf16.gmra.mxu0 %v4000
      %v4186 = vpop.f32.mrf.mxu0
      %v4187 = vadd.f32 0.0, %v4186
      %v4188 = vpop.f32.mrf.mxu0
      %v4189 = vpop.f32.mrf.mxu0
      %v4190 = vadd.f32 0.0, %v4189
      %v4191 = vpop.f32.mrf.mxu0
      %4192 = vmatprep.mubr.bf16.mxu0 %v4003
      %4193 = vmatmul.mubr.bf16.gmra.mxu0 %v4002
      %v4194 = vpop.f32.mrf.mxu0
      %v4195 = vadd.f32 0.0, %v4194
      %v4196 = vpop.f32.mrf.mxu0
      %v4197 = vpop.f32.mrf.mxu0
      %v4198 = vadd.f32 0.0, %v4197
      %v4199 = vpop.f32.mrf.mxu0
      %4200 = vmatprep.mubr.bf16.mxu0 %v4005
      %4201 = vmatmul.mubr.bf16.gmra.mxu0 %v4004
      %v4202 = vpop.f32.mrf.mxu0
      %v4203 = vadd.f32 0.0, %v4202
      %v4204 = vpop.f32.mrf.mxu0
      %v4205 = vpop.f32.mrf.mxu0
      %v4206 = vadd.f32 0.0, %v4205
      %v4207 = vpop.f32.mrf.mxu0
      %4208 = vmatprep.mubr.bf16.mxu0 %v4007
      %4209 = vmatmul.mubr.bf16.gmra.mxu0 %v4006
      %v4210 = vpop.f32.mrf.mxu0
      %v4211 = vadd.f32 0.0, %v4210
      %v4212 = vpop.f32.mrf.mxu0
      %v4213 = vpop.f32.mrf.mxu0
      %v4214 = vadd.f32 0.0, %v4213
      %v4215 = vpop.f32.mrf.mxu0
      %4216 = vdwg.mxu0
      %v4217 = vrcp.pop %v3882
      %v4218 = vmul.f32 %v4091, %v4217
      %v4219 = vrcp.pop %v3885
      %v4220 = vmul.f32 %v4094, %v4219
      %v4221 = vrcp.pop %v3888
      %v4222 = vmul.f32 %v4099, %v4221
      %v4223 = vrcp.pop %v3891
      %v4224 = vmul.f32 %v4102, %v4223
      %v4225 = vrcp.pop %v3894
      %v4226 = vmul.f32 %v4107, %v4225
      %v4227 = vrcp.pop %v3897
      %v4228 = vmul.f32 %v4110, %v4227
      %v4229 = vrcp.pop %v3900
      %v4230 = vmul.f32 %v4115, %v4229
      %v4231 = vrcp.pop %v3903
      %v4232 = vmul.f32 %v4118, %v4231
      %v4233 = vrcp.pop %v3906
      %v4234 = vmul.f32 %v4123, %v4233
      %v4235 = vrcp.pop %v3909
      %v4236 = vmul.f32 %v4126, %v4235
      %v4237 = vrcp.pop %v3912
      %v4238 = vmul.f32 %v4131, %v4237
      %v4239 = vrcp.pop %v3915
      %v4240 = vmul.f32 %v4134, %v4239
      %v4241 = vrcp.pop %v3918
      %v4242 = vmul.f32 %v4139, %v4241
      %v4243 = vrcp.pop %v3921
      %v4244 = vmul.f32 %v4142, %v4243
      %v4245 = vrcp.pop %v3924
      %v4246 = vmul.f32 %v4147, %v4245
      %v4247 = vrcp.pop %v3927
      %v4248 = vmul.f32 %v4150, %v4247
      %v4249 = vrcp.pop %v3930
      %v4250 = vmul.f32 %v4155, %v4249
      %v4251 = vrcp.pop %v3933
      %v4252 = vmul.f32 %v4158, %v4251
      %v4253 = vrcp.pop %v3936
      %v4254 = vmul.f32 %v4163, %v4253
      %v4255 = vrcp.pop %v3939
      %v4256 = vmul.f32 %v4166, %v4255
      %v4257 = vrcp.pop %v3942
      %v4258 = vmul.f32 %v4171, %v4257
      %v4259 = vrcp.pop %v3945
      %v4260 = vmul.f32 %v4174, %v4259
      %v4261 = vrcp.pop %v3948
      %v4262 = vmul.f32 %v4179, %v4261
      %v4263 = vrcp.pop %v3951
      %v4264 = vmul.f32 %v4182, %v4263
      %v4265 = vrcp.pop %v3954
      %v4266 = vmul.f32 %v4187, %v4265
      %v4267 = vrcp.pop %v3957
      %v4268 = vmul.f32 %v4190, %v4267
      %v4269 = vrcp.pop %v3960
      %v4270 = vmul.f32 %v4195, %v4269
      %v4271 = vrcp.pop %v3963
      %v4272 = vmul.f32 %v4198, %v4271
      %v4273 = vrcp.pop %v3966
      %v4274 = vmul.f32 %v4203, %v4273
      %v4275 = vrcp.pop %v3969
      %v4276 = vmul.f32 %v4206, %v4275
      %v4277 = vrcp.pop %v3972
      %v4278 = vmul.f32 %v4211, %v4277
      %v4279 = vrcp.pop %v3975
      %v4280 = vmul.f32 %v4214, %v4279
      %v4281 = vpack.c.bf16 %v4220, %v4218
      %v4282 = vpack.c.bf16 %v4224, %v4222
      %v4283 = vpack.c.bf16 %v4228, %v4226
      %v4284 = vpack.c.bf16 %v4232, %v4230
      %v4285 = vpack.c.bf16 %v4236, %v4234
      %v4286 = vpack.c.bf16 %v4240, %v4238
      %v4287 = vpack.c.bf16 %v4244, %v4242
      %v4288 = vpack.c.bf16 %v4248, %v4246
      %v4289 = vpack.c.bf16 %v4252, %v4250
      %v4290 = vpack.c.bf16 %v4256, %v4254
      %v4291 = vpack.c.bf16 %v4260, %v4258
      %v4292 = vpack.c.bf16 %v4264, %v4262
      %v4293 = vpack.c.bf16 %v4268, %v4266
      %v4294 = vpack.c.bf16 %v4272, %v4270
      %v4295 = vpack.c.bf16 %v4276, %v4274
      %v4296 = vpack.c.bf16 %v4280, %v4278
      %v4299 = vunpack.c.l.b16 %v640
      %v4300 = vunpack.c.l.b16 %v641
      %v4301 = vpack.c.b16 %v4300, %v4299
      %v4304 = vsel %vm772, %v4281, 0
      %v4307 = vsel %vm772, %v4282, 0
      %v4310 = vsel %vm772, %v4283, 0
      %v4313 = vsel %vm772, %v4284, 0
      %v4316 = vsel %vm772, %v4285, 0
      %v4319 = vsel %vm772, %v4286, 0
      %v4322 = vsel %vm772, %v4287, 0
      %v4325 = vsel %vm772, %v4288, 0
      %v4328 = vsel %vm772, %v4289, 0
      %v4331 = vsel %vm772, %v4290, 0
      %v4334 = vsel %vm772, %v4291, 0
      %v4337 = vsel %vm772, %v4292, 0
      %v4340 = vsel %vm772, %v4293, 0
      %v4343 = vsel %vm772, %v4294, 0
      %v4346 = vsel %vm772, %v4295, 0
      %v4349 = vsel %vm772, %v4296, 0
      %4351 = vmatprep.subr.bf16.mxu0 0
      %4352 = vmatpush1.bf16.msra.mxu0 0
      %4353 = vmatprep.subr.bf16.mxu0 0
      %4354 = vmatpush1.bf16.msra.mxu0 0
      %4355 = vmatprep.subr.bf16.mxu0 0
      %4356 = vmatpush1.bf16.msra.mxu0 0
      %4357 = vmatprep.subr.bf16.mxu0 0
      %4358 = vmatpush1.bf16.msra.mxu0 0
      %4359 = vmatprep.subr.bf16.mxu0 0
      %4360 = vmatpush1.bf16.msra.mxu0 0
      %4361 = vmatprep.subr.bf16.mxu0 0
      %4362 = vmatpush1.bf16.msra.mxu0 0
      %4363 = vmatprep.subr.bf16.mxu0 0
      %4364 = vmatpush1.bf16.msra.mxu0 0
      %4365 = vmatprep.subr.bf16.mxu0 0
      %4366 = vmatpush1.bf16.msra.mxu0 %v4301
      %4367 = vmatprep.subr.bf16.mxu0 0
      %4368 = vmatpush2.bf16.msra.mxu0 0
      %4369 = vmatprep.subr.bf16.mxu0 0
      %4370 = vmatpush2.bf16.msra.mxu0 0
      %4371 = vmatprep.subr.bf16.mxu0 0
      %4372 = vmatpush2.bf16.msra.mxu0 0
      %4373 = vmatprep.subr.bf16.mxu0 0
      %4374 = vmatpush2.bf16.msra.mxu0 0
      %4375 = vmatprep.subr.bf16.mxu0 0
      %4376 = vmatpush2.bf16.msra.mxu0 0
      %4377 = vmatprep.subr.bf16.mxu0 0
      %4378 = vmatpush2.bf16.msra.mxu0 0
      %4379 = vmatprep.subr.bf16.mxu0 0
      %4380 = vmatpush2.bf16.msra.mxu0 0
      %4381 = vmatprep.subr.bf16.mxu0 0
      %4382 = vmatpush2.bf16.msra.mxu0 0
      %4383 = vmatprep.mubr.bf16.mxu0 0
      %4384 = vmatmul.mubr.bf16.gmra.mxu0 %v4304
      %v4385 = vpop.f32.mrf.mxu0
      %v4386 = vadd.f32 0.0, %v4385
      %v4387 = vpop.f32.mrf.mxu0
      %v4388 = vpop.f32.mrf.mxu0
      %v4389 = vadd.f32 0.0, %v4388
      %v4390 = vpop.f32.mrf.mxu0
      %4391 = vmatprep.mubr.bf16.mxu0 0
      %4392 = vmatmul.mubr.bf16.gmra.mxu0 %v4307
      %v4393 = vpop.f32.mrf.mxu0
      %v4394 = vadd.f32 0.0, %v4393
      %v4395 = vpop.f32.mrf.mxu0
      %v4396 = vpop.f32.mrf.mxu0
      %v4397 = vadd.f32 0.0, %v4396
      %v4398 = vpop.f32.mrf.mxu0
      %4399 = vmatprep.mubr.bf16.mxu0 0
      %4400 = vmatmul.mubr.bf16.gmra.mxu0 %v4310
      %v4401 = vpop.f32.mrf.mxu0
      %v4402 = vadd.f32 0.0, %v4401
      %v4403 = vpop.f32.mrf.mxu0
      %v4404 = vpop.f32.mrf.mxu0
      %v4405 = vadd.f32 0.0, %v4404
      %v4406 = vpop.f32.mrf.mxu0
      %4407 = vmatprep.mubr.bf16.mxu0 0
      %4408 = vmatmul.mubr.bf16.gmra.mxu0 %v4313
      %v4409 = vpop.f32.mrf.mxu0
      %v4410 = vadd.f32 0.0, %v4409
      %v4411 = vpop.f32.mrf.mxu0
      %v4412 = vpop.f32.mrf.mxu0
      %v4413 = vadd.f32 0.0, %v4412
      %v4414 = vpop.f32.mrf.mxu0
      %4415 = vmatprep.mubr.bf16.mxu0 0
      %4416 = vmatmul.mubr.bf16.gmra.mxu0 %v4316
      %v4417 = vpop.f32.mrf.mxu0
      %v4418 = vadd.f32 0.0, %v4417
      %v4419 = vpop.f32.mrf.mxu0
      %v4420 = vpop.f32.mrf.mxu0
      %v4421 = vadd.f32 0.0, %v4420
      %v4422 = vpop.f32.mrf.mxu0
      %4423 = vmatprep.mubr.bf16.mxu0 0
      %4424 = vmatmul.mubr.bf16.gmra.mxu0 %v4319
      %v4425 = vpop.f32.mrf.mxu0
      %v4426 = vadd.f32 0.0, %v4425
      %v4427 = vpop.f32.mrf.mxu0
      %v4428 = vpop.f32.mrf.mxu0
      %v4429 = vadd.f32 0.0, %v4428
      %v4430 = vpop.f32.mrf.mxu0
      %4431 = vmatprep.mubr.bf16.mxu0 0
      %4432 = vmatmul.mubr.bf16.gmra.mxu0 %v4322
      %v4433 = vpop.f32.mrf.mxu0
      %v4434 = vadd.f32 0.0, %v4433
      %v4435 = vpop.f32.mrf.mxu0
      %v4436 = vpop.f32.mrf.mxu0
      %v4437 = vadd.f32 0.0, %v4436
      %v4438 = vpop.f32.mrf.mxu0
      %4439 = vmatprep.mubr.bf16.mxu0 0
      %4440 = vmatmul.mubr.bf16.gmra.mxu0 %v4325
      %v4441 = vpop.f32.mrf.mxu0
      %v4442 = vadd.f32 0.0, %v4441
      %v4443 = vpop.f32.mrf.mxu0
      %v4444 = vpop.f32.mrf.mxu0
      %v4445 = vadd.f32 0.0, %v4444
      %v4446 = vpop.f32.mrf.mxu0
      %4447 = vmatprep.mubr.bf16.mxu0 0
      %4448 = vmatmul.mubr.bf16.gmra.mxu0 %v4328
      %v4449 = vpop.f32.mrf.mxu0
      %v4450 = vadd.f32 0.0, %v4449
      %v4451 = vpop.f32.mrf.mxu0
      %v4452 = vpop.f32.mrf.mxu0
      %v4453 = vadd.f32 0.0, %v4452
      %v4454 = vpop.f32.mrf.mxu0
      %4455 = vmatprep.mubr.bf16.mxu0 0
      %4456 = vmatmul.mubr.bf16.gmra.mxu0 %v4331
      %v4457 = vpop.f32.mrf.mxu0
      %v4458 = vadd.f32 0.0, %v4457
      %v4459 = vpop.f32.mrf.mxu0
      %v4460 = vpop.f32.mrf.mxu0
      %v4461 = vadd.f32 0.0, %v4460
      %v4462 = vpop.f32.mrf.mxu0
      %4463 = vmatprep.mubr.bf16.mxu0 0
      %4464 = vmatmul.mubr.bf16.gmra.mxu0 %v4334
      %v4465 = vpop.f32.mrf.mxu0
      %v4466 = vadd.f32 0.0, %v4465
      %v4467 = vpop.f32.mrf.mxu0
      %v4468 = vpop.f32.mrf.mxu0
      %v4469 = vadd.f32 0.0, %v4468
      %v4470 = vpop.f32.mrf.mxu0
      %4471 = vmatprep.mubr.bf16.mxu0 0
      %4472 = vmatmul.mubr.bf16.gmra.mxu0 %v4337
      %v4473 = vpop.f32.mrf.mxu0
      %v4474 = vadd.f32 0.0, %v4473
      %v4475 = vpop.f32.mrf.mxu0
      %v4476 = vpop.f32.mrf.mxu0
      %v4477 = vadd.f32 0.0, %v4476
      %v4478 = vpop.f32.mrf.mxu0
      %4479 = vmatprep.mubr.bf16.mxu0 0
      %4480 = vmatmul.mubr.bf16.gmra.mxu0 %v4340
      %v4481 = vpop.f32.mrf.mxu0
      %v4482 = vadd.f32 0.0, %v4481
      %v4483 = vpop.f32.mrf.mxu0
      %v4484 = vpop.f32.mrf.mxu0
      %v4485 = vadd.f32 0.0, %v4484
      %v4486 = vpop.f32.mrf.mxu0
      %4487 = vmatprep.mubr.bf16.mxu0 0
      %4488 = vmatmul.mubr.bf16.gmra.mxu0 %v4343
      %v4489 = vpop.f32.mrf.mxu0
      %v4490 = vadd.f32 0.0, %v4489
      %v4491 = vpop.f32.mrf.mxu0
      %v4492 = vpop.f32.mrf.mxu0
      %v4493 = vadd.f32 0.0, %v4492
      %v4494 = vpop.f32.mrf.mxu0
      %4495 = vmatprep.mubr.bf16.mxu0 0
      %4496 = vmatmul.mubr.bf16.gmra.mxu0 %v4346
      %v4497 = vpop.f32.mrf.mxu0
      %v4498 = vadd.f32 0.0, %v4497
      %v4499 = vpop.f32.mrf.mxu0
      %v4500 = vpop.f32.mrf.mxu0
      %v4501 = vadd.f32 0.0, %v4500
      %v4502 = vpop.f32.mrf.mxu0
      %4503 = vmatprep.mubr.bf16.mxu0 0
      %4504 = vmatmul.mubr.bf16.gmra.mxu0 %v4349
      %v4505 = vpop.f32.mrf.mxu0
      %v4506 = vadd.f32 0.0, %v4505
      %v4507 = vpop.f32.mrf.mxu0
      %v4508 = vpop.f32.mrf.mxu0
      %v4509 = vadd.f32 0.0, %v4508
      %v4510 = vpop.f32.mrf.mxu0
      %4511 = vdwg.mxu0
      %v4512 = vadd.f32 %v3113, %v4386
      %v4513 = vadd.f32 %v3116, %v4389
      %v4514 = vadd.f32 %v3121, %v4394
      %v4515 = vadd.f32 %v3124, %v4397
      %v4516 = vadd.f32 %v3129, %v4402
      %v4517 = vadd.f32 %v3132, %v4405
      %v4518 = vadd.f32 %v3137, %v4410
      %v4519 = vadd.f32 %v3140, %v4413
      %v4520 = vadd.f32 %v3145, %v4418
      %v4521 = vadd.f32 %v3148, %v4421
      %v4522 = vadd.f32 %v3153, %v4426
      %v4523 = vadd.f32 %v3156, %v4429
      %v4524 = vadd.f32 %v3161, %v4434
      %v4525 = vadd.f32 %v3164, %v4437
      %v4526 = vadd.f32 %v3169, %v4442
      %v4527 = vadd.f32 %v3172, %v4445
      %v4528 = vadd.f32 %v3177, %v4450
      %v4529 = vadd.f32 %v3180, %v4453
      %v4530 = vadd.f32 %v3185, %v4458
      %v4531 = vadd.f32 %v3188, %v4461
      %v4532 = vadd.f32 %v3193, %v4466
      %v4533 = vadd.f32 %v3196, %v4469
      %v4534 = vadd.f32 %v3201, %v4474
      %v4535 = vadd.f32 %v3204, %v4477
      %v4536 = vadd.f32 %v3209, %v4482
      %v4537 = vadd.f32 %v3212, %v4485
      %v4538 = vadd.f32 %v3217, %v4490
      %v4539 = vadd.f32 %v3220, %v4493
      %v4540 = vadd.f32 %v3225, %v4498
      %v4541 = vadd.f32 %v3228, %v4501
      %v4542 = vadd.f32 %v3233, %v4506
      %v4543 = vadd.f32 %v3236, %v4509
      %4544 = vrot.lane.b32.xlu0 %v676, 80
      %v4545 = vpop.permute.xlu0 %4544
      %4546 = vrot.lane.b32.xlu0 %v677, 80
      %v4547 = vpop.permute.xlu0 %4546
      %4548 = vrot.lane.b32.xlu0 %v678, 80
      %v4549 = vpop.permute.xlu0 %4548
      %4550 = vrot.lane.b32.xlu0 %v679, 80
      %v4551 = vpop.permute.xlu0 %4550
      %4552 = vrot.lane.b32.xlu0 %v680, 80
      %v4553 = vpop.permute.xlu0 %4552
      %4554 = vrot.lane.b32.xlu0 %v681, 80
      %v4555 = vpop.permute.xlu0 %4554
      %4556 = vrot.lane.b32.xlu0 %v682, 80
      %v4557 = vpop.permute.xlu0 %4556
      %4558 = vrot.lane.b32.xlu0 %v683, 80
      %v4559 = vpop.permute.xlu0 %4558
      %4560 = vrot.lane.b32.xlu0 %v684, 80
      %v4561 = vpop.permute.xlu0 %4560
      %4562 = vrot.lane.b32.xlu0 %v685, 80
      %v4563 = vpop.permute.xlu0 %4562
      %4564 = vrot.lane.b32.xlu0 %v686, 80
      %v4565 = vpop.permute.xlu0 %4564
      %4566 = vrot.lane.b32.xlu0 %v687, 80
      %v4567 = vpop.permute.xlu0 %4566
      %4568 = vrot.lane.b32.xlu0 %v688, 80
      %v4569 = vpop.permute.xlu0 %4568
      %4570 = vrot.lane.b32.xlu0 %v689, 80
      %v4571 = vpop.permute.xlu0 %4570
      %4572 = vrot.lane.b32.xlu0 %v690, 80
      %v4573 = vpop.permute.xlu0 %4572
      %4574 = vrot.lane.b32.xlu0 %v691, 80
      %v4575 = vpop.permute.xlu0 %4574
      %4576 = vrot.lane.b32.xlu0 %v692, 16
      %v4577 = vpop.permute.xlu0 %4576
      %4578 = vrot.lane.b32.xlu0 %v693, 16
      %v4579 = vpop.permute.xlu0 %4578
      %4580 = vrot.lane.b32.xlu0 %v694, 16
      %v4581 = vpop.permute.xlu0 %4580
      %4582 = vrot.lane.b32.xlu0 %v695, 16
      %v4583 = vpop.permute.xlu0 %4582
      %4584 = vrot.lane.b32.xlu0 %v696, 16
      %v4585 = vpop.permute.xlu0 %4584
      %4586 = vrot.lane.b32.xlu0 %v697, 16
      %v4587 = vpop.permute.xlu0 %4586
      %4588 = vrot.lane.b32.xlu0 %v698, 16
      %v4589 = vpop.permute.xlu0 %4588
      %4590 = vrot.lane.b32.xlu0 %v699, 16
      %v4591 = vpop.permute.xlu0 %4590
      %4592 = vrot.lane.b32.xlu0 %v700, 16
      %v4593 = vpop.permute.xlu0 %4592
      %4594 = vrot.lane.b32.xlu0 %v701, 16
      %v4595 = vpop.permute.xlu0 %4594
      %4596 = vrot.lane.b32.xlu0 %v702, 16
      %v4597 = vpop.permute.xlu0 %4596
      %4598 = vrot.lane.b32.xlu0 %v703, 16
      %v4599 = vpop.permute.xlu0 %4598
      %4600 = vrot.lane.b32.xlu0 %v704, 16
      %v4601 = vpop.permute.xlu0 %4600
      %4602 = vrot.lane.b32.xlu0 %v705, 16
      %v4603 = vpop.permute.xlu0 %4602
      %4604 = vrot.lane.b32.xlu0 %v706, 16
      %v4605 = vpop.permute.xlu0 %4604
      %4606 = vrot.lane.b32.xlu0 %v707, 16
      %v4607 = vpop.permute.xlu0 %4606
      %v4609 = vsel %vm772, %v4545, 0
      %v4612 = vsel %vm772, %v4547, 0
      %v4615 = vsel %vm772, %v4549, 0
      %v4618 = vsel %vm772, %v4551, 0
      %v4621 = vsel %vm772, %v4553, 0
      %v4624 = vsel %vm772, %v4555, 0
      %v4627 = vsel %vm772, %v4557, 0
      %v4630 = vsel %vm772, %v4559, 0
      %v4633 = vsel %vm772, %v4561, 0
      %v4636 = vsel %vm772, %v4563, 0
      %v4639 = vsel %vm772, %v4565, 0
      %v4642 = vsel %vm772, %v4567, 0
      %v4645 = vsel %vm772, %v4569, 0
      %v4648 = vsel %vm772, %v4571, 0
      %v4651 = vsel %vm772, %v4573, 0
      %v4654 = vsel %vm772, %v4575, 0
      %v4657 = vsel %vm772, %v4577, 0
      %v4660 = vsel %vm772, %v4579, 0
      %v4663 = vsel %vm772, %v4581, 0
      %v4666 = vsel %vm772, %v4583, 0
      %v4669 = vsel %vm772, %v4585, 0
      %v4672 = vsel %vm772, %v4587, 0
      %v4675 = vsel %vm772, %v4589, 0
      %v4678 = vsel %vm772, %v4591, 0
      %v4681 = vsel %vm772, %v4593, 0
      %v4684 = vsel %vm772, %v4595, 0
      %v4687 = vsel %vm772, %v4597, 0
      %v4690 = vsel %vm772, %v4599, 0
      %v4693 = vsel %vm772, %v4601, 0
      %v4696 = vsel %vm772, %v4603, 0
      %v4699 = vsel %vm772, %v4605, 0
      %v4702 = vsel %vm772, %v4607, 0
      %4704 = vmatprep.subr.bf16.mxu0 0
      %4705 = vmatpush1.bf16.xpose.msra.mxu0 %v4678
      %4706 = vmatprep.subr.bf16.mxu0 0
      %4707 = vmatpush1.bf16.xpose.msra.mxu0 %v4675
      %4708 = vmatprep.subr.bf16.mxu0 0
      %4709 = vmatpush1.bf16.xpose.msra.mxu0 %v4672
      %4710 = vmatprep.subr.bf16.mxu0 0
      %4711 = vmatpush1.bf16.xpose.msra.mxu0 %v4669
      %4712 = vmatprep.subr.bf16.mxu0 0
      %4713 = vmatpush1.bf16.xpose.msra.mxu0 %v4666
      %4714 = vmatprep.subr.bf16.mxu0 0
      %4715 = vmatpush1.bf16.xpose.msra.mxu0 %v4663
      %4716 = vmatprep.subr.bf16.mxu0 0
      %4717 = vmatpush1.bf16.xpose.msra.mxu0 %v4660
      %4718 = vmatprep.subr.bf16.mxu0 0
      %4719 = vmatpush1.bf16.xpose.msra.mxu0 %v4657
      %4720 = vmatprep.subr.bf16.mxu0 0
      %4721 = vmatpush2.bf16.xpose.msra.mxu0 %v4702
      %4722 = vmatprep.subr.bf16.mxu0 0
      %4723 = vmatpush2.bf16.xpose.msra.mxu0 %v4699
      %4724 = vmatprep.subr.bf16.mxu0 0
      %4725 = vmatpush2.bf16.xpose.msra.mxu0 %v4696
      %4726 = vmatprep.subr.bf16.mxu0 0
      %4727 = vmatpush2.bf16.xpose.msra.mxu0 %v4693
      %4728 = vmatprep.subr.bf16.mxu0 0
      %4729 = vmatpush2.bf16.xpose.msra.mxu0 %v4690
      %4730 = vmatprep.subr.bf16.mxu0 0
      %4731 = vmatpush2.bf16.xpose.msra.mxu0 %v4687
      %4732 = vmatprep.subr.bf16.mxu0 0
      %4733 = vmatpush2.bf16.xpose.msra.mxu0 %v4684
      %4734 = vmatprep.subr.bf16.mxu0 0
      %4735 = vmatpush2.bf16.xpose.msra.mxu0 %v4681
      %4736 = vmatprep.mubr.bf16.mxu0 0
      %4737 = vmatmul.mubr.bf16.gmra.mxu0 %v4609
      %v4738 = vpop.f32.mrf.mxu0
      %v4739 = vadd.f32 0.0, %v4738
      %v4740 = vpop.f32.mrf.mxu0
      %v4741 = vadd.f32 0.0, %v4740
      %v4742 = vpop.f32.mrf.mxu0
      %v4743 = vadd.f32 0.0, %v4742
      %v4744 = vpop.f32.mrf.mxu0
      %v4745 = vadd.f32 0.0, %v4744
      %4746 = vmatprep.mubr.bf16.mxu0 0
      %4747 = vmatmul.mubr.bf16.gmra.mxu0 %v4612
      %v4748 = vpop.f32.mrf.mxu0
      %v4749 = vadd.f32 0.0, %v4748
      %v4750 = vpop.f32.mrf.mxu0
      %v4751 = vadd.f32 0.0, %v4750
      %v4752 = vpop.f32.mrf.mxu0
      %v4753 = vadd.f32 0.0, %v4752
      %v4754 = vpop.f32.mrf.mxu0
      %v4755 = vadd.f32 0.0, %v4754
      %4756 = vmatprep.mubr.bf16.mxu0 0
      %4757 = vmatmul.mubr.bf16.gmra.mxu0 %v4615
      %v4758 = vpop.f32.mrf.mxu0
      %v4759 = vadd.f32 0.0, %v4758
      %v4760 = vpop.f32.mrf.mxu0
      %v4761 = vadd.f32 0.0, %v4760
      %v4762 = vpop.f32.mrf.mxu0
      %v4763 = vadd.f32 0.0, %v4762
      %v4764 = vpop.f32.mrf.mxu0
      %v4765 = vadd.f32 0.0, %v4764
      %4766 = vmatprep.mubr.bf16.mxu0 0
      %4767 = vmatmul.mubr.bf16.gmra.mxu0 %v4618
      %v4768 = vpop.f32.mrf.mxu0
      %v4769 = vadd.f32 0.0, %v4768
      %v4770 = vpop.f32.mrf.mxu0
      %v4771 = vadd.f32 0.0, %v4770
      %v4772 = vpop.f32.mrf.mxu0
      %v4773 = vadd.f32 0.0, %v4772
      %v4774 = vpop.f32.mrf.mxu0
      %v4775 = vadd.f32 0.0, %v4774
      %4776 = vmatprep.mubr.bf16.mxu0 0
      %4777 = vmatmul.mubr.bf16.gmra.mxu0 %v4621
      %v4778 = vpop.f32.mrf.mxu0
      %v4779 = vadd.f32 0.0, %v4778
      %v4780 = vpop.f32.mrf.mxu0
      %v4781 = vadd.f32 0.0, %v4780
      %v4782 = vpop.f32.mrf.mxu0
      %v4783 = vadd.f32 0.0, %v4782
      %v4784 = vpop.f32.mrf.mxu0
      %v4785 = vadd.f32 0.0, %v4784
      %4786 = vmatprep.mubr.bf16.mxu0 0
      %4787 = vmatmul.mubr.bf16.gmra.mxu0 %v4624
      %v4788 = vpop.f32.mrf.mxu0
      %v4789 = vadd.f32 0.0, %v4788
      %v4790 = vpop.f32.mrf.mxu0
      %v4791 = vadd.f32 0.0, %v4790
      %v4792 = vpop.f32.mrf.mxu0
      %v4793 = vadd.f32 0.0, %v4792
      %v4794 = vpop.f32.mrf.mxu0
      %v4795 = vadd.f32 0.0, %v4794
      %4796 = vmatprep.mubr.bf16.mxu0 0
      %4797 = vmatmul.mubr.bf16.gmra.mxu0 %v4627
      %v4798 = vpop.f32.mrf.mxu0
      %v4799 = vadd.f32 0.0, %v4798
      %v4800 = vpop.f32.mrf.mxu0
      %v4801 = vadd.f32 0.0, %v4800
      %v4802 = vpop.f32.mrf.mxu0
      %v4803 = vadd.f32 0.0, %v4802
      %v4804 = vpop.f32.mrf.mxu0
      %v4805 = vadd.f32 0.0, %v4804
      %4806 = vmatprep.mubr.bf16.mxu0 0
      %4807 = vmatmul.mubr.bf16.gmra.mxu0 %v4630
      %v4808 = vpop.f32.mrf.mxu0
      %v4809 = vadd.f32 0.0, %v4808
      %v4810 = vpop.f32.mrf.mxu0
      %v4811 = vadd.f32 0.0, %v4810
      %v4812 = vpop.f32.mrf.mxu0
      %v4813 = vadd.f32 0.0, %v4812
      %v4814 = vpop.f32.mrf.mxu0
      %v4815 = vadd.f32 0.0, %v4814
      %4816 = vmatprep.mubr.bf16.mxu0 0
      %4817 = vmatmul.mubr.bf16.gmra.mxu0 %v4633
      %v4818 = vpop.f32.mrf.mxu0
      %v4819 = vadd.f32 0.0, %v4818
      %v4820 = vpop.f32.mrf.mxu0
      %v4821 = vadd.f32 0.0, %v4820
      %v4822 = vpop.f32.mrf.mxu0
      %v4823 = vadd.f32 0.0, %v4822
      %v4824 = vpop.f32.mrf.mxu0
      %v4825 = vadd.f32 0.0, %v4824
      %4826 = vmatprep.mubr.bf16.mxu0 0
      %4827 = vmatmul.mubr.bf16.gmra.mxu0 %v4636
      %v4828 = vpop.f32.mrf.mxu0
      %v4829 = vadd.f32 0.0, %v4828
      %v4830 = vpop.f32.mrf.mxu0
      %v4831 = vadd.f32 0.0, %v4830
      %v4832 = vpop.f32.mrf.mxu0
      %v4833 = vadd.f32 0.0, %v4832
      %v4834 = vpop.f32.mrf.mxu0
      %v4835 = vadd.f32 0.0, %v4834
      %4836 = vmatprep.mubr.bf16.mxu0 0
      %4837 = vmatmul.mubr.bf16.gmra.mxu0 %v4639
      %v4838 = vpop.f32.mrf.mxu0
      %v4839 = vadd.f32 0.0, %v4838
      %v4840 = vpop.f32.mrf.mxu0
      %v4841 = vadd.f32 0.0, %v4840
      %v4842 = vpop.f32.mrf.mxu0
      %v4843 = vadd.f32 0.0, %v4842
      %v4844 = vpop.f32.mrf.mxu0
      %v4845 = vadd.f32 0.0, %v4844
      %4846 = vmatprep.mubr.bf16.mxu0 0
      %4847 = vmatmul.mubr.bf16.gmra.mxu0 %v4642
      %v4848 = vpop.f32.mrf.mxu0
      %v4849 = vadd.f32 0.0, %v4848
      %v4850 = vpop.f32.mrf.mxu0
      %v4851 = vadd.f32 0.0, %v4850
      %v4852 = vpop.f32.mrf.mxu0
      %v4853 = vadd.f32 0.0, %v4852
      %v4854 = vpop.f32.mrf.mxu0
      %v4855 = vadd.f32 0.0, %v4854
      %4856 = vmatprep.mubr.bf16.mxu0 0
      %4857 = vmatmul.mubr.bf16.gmra.mxu0 %v4645
      %v4858 = vpop.f32.mrf.mxu0
      %v4859 = vadd.f32 0.0, %v4858
      %v4860 = vpop.f32.mrf.mxu0
      %v4861 = vadd.f32 0.0, %v4860
      %v4862 = vpop.f32.mrf.mxu0
      %v4863 = vadd.f32 0.0, %v4862
      %v4864 = vpop.f32.mrf.mxu0
      %v4865 = vadd.f32 0.0, %v4864
      %4866 = vmatprep.mubr.bf16.mxu0 0
      %4867 = vmatmul.mubr.bf16.gmra.mxu0 %v4648
      %v4868 = vpop.f32.mrf.mxu0
      %v4869 = vadd.f32 0.0, %v4868
      %v4870 = vpop.f32.mrf.mxu0
      %v4871 = vadd.f32 0.0, %v4870
      %v4872 = vpop.f32.mrf.mxu0
      %v4873 = vadd.f32 0.0, %v4872
      %v4874 = vpop.f32.mrf.mxu0
      %v4875 = vadd.f32 0.0, %v4874
      %4876 = vmatprep.mubr.bf16.mxu0 0
      %4877 = vmatmul.mubr.bf16.gmra.mxu0 %v4651
      %v4878 = vpop.f32.mrf.mxu0
      %v4879 = vadd.f32 0.0, %v4878
      %v4880 = vpop.f32.mrf.mxu0
      %v4881 = vadd.f32 0.0, %v4880
      %v4882 = vpop.f32.mrf.mxu0
      %v4883 = vadd.f32 0.0, %v4882
      %v4884 = vpop.f32.mrf.mxu0
      %v4885 = vadd.f32 0.0, %v4884
      %4886 = vmatprep.mubr.bf16.mxu0 0
      %4887 = vmatmul.mubr.bf16.gmra.mxu0 %v4654
      %v4888 = vpop.f32.mrf.mxu0
      %v4889 = vadd.f32 0.0, %v4888
      %v4890 = vpop.f32.mrf.mxu0
      %v4891 = vadd.f32 0.0, %v4890
      %v4892 = vpop.f32.mrf.mxu0
      %v4893 = vadd.f32 0.0, %v4892
      %v4894 = vpop.f32.mrf.mxu0
      %v4895 = vadd.f32 0.0, %v4894
      %4896 = vdwg.mxu0
      %v4897 = vmax.f32 %v4739, %v4741
      %4898 = vmax.xlane.f32.xlu0 %v4897
      %v4899 = vpop.xlane.xlu0 %4898
      %v4900 = vmax.f32 %v4743, %v4745
      %4901 = vmax.xlane.f32.xlu0 %v4900
      %v4902 = vpop.xlane.xlu0 %4901
      %v4903 = vmax.f32 %v4749, %v4751
      %4904 = vmax.xlane.f32.xlu0 %v4903
      %v4905 = vpop.xlane.xlu0 %4904
      %v4906 = vmax.f32 %v4753, %v4755
      %4907 = vmax.xlane.f32.xlu0 %v4906
      %v4908 = vpop.xlane.xlu0 %4907
      %v4909 = vmax.f32 %v4759, %v4761
      %4910 = vmax.xlane.f32.xlu0 %v4909
      %v4911 = vpop.xlane.xlu0 %4910
      %v4912 = vmax.f32 %v4763, %v4765
      %4913 = vmax.xlane.f32.xlu0 %v4912
      %v4914 = vpop.xlane.xlu0 %4913
      %v4915 = vmax.f32 %v4769, %v4771
      %4916 = vmax.xlane.f32.xlu0 %v4915
      %v4917 = vpop.xlane.xlu0 %4916
      %v4918 = vmax.f32 %v4773, %v4775
      %4919 = vmax.xlane.f32.xlu0 %v4918
      %v4920 = vpop.xlane.xlu0 %4919
      %v4921 = vmax.f32 %v4779, %v4781
      %4922 = vmax.xlane.f32.xlu0 %v4921
      %v4923 = vpop.xlane.xlu0 %4922
      %v4924 = vmax.f32 %v4783, %v4785
      %4925 = vmax.xlane.f32.xlu0 %v4924
      %v4926 = vpop.xlane.xlu0 %4925
      %v4927 = vmax.f32 %v4789, %v4791
      %4928 = vmax.xlane.f32.xlu0 %v4927
      %v4929 = vpop.xlane.xlu0 %4928
      %v4930 = vmax.f32 %v4793, %v4795
      %4931 = vmax.xlane.f32.xlu0 %v4930
      %v4932 = vpop.xlane.xlu0 %4931
      %v4933 = vmax.f32 %v4799, %v4801
      %4934 = vmax.xlane.f32.xlu0 %v4933
      %v4935 = vpop.xlane.xlu0 %4934
      %v4936 = vmax.f32 %v4803, %v4805
      %4937 = vmax.xlane.f32.xlu0 %v4936
      %v4938 = vpop.xlane.xlu0 %4937
      %v4939 = vmax.f32 %v4809, %v4811
      %4940 = vmax.xlane.f32.xlu0 %v4939
      %v4941 = vpop.xlane.xlu0 %4940
      %v4942 = vmax.f32 %v4813, %v4815
      %4943 = vmax.xlane.f32.xlu0 %v4942
      %v4944 = vpop.xlane.xlu0 %4943
      %v4945 = vmax.f32 %v4819, %v4821
      %4946 = vmax.xlane.f32.xlu0 %v4945
      %v4947 = vpop.xlane.xlu0 %4946
      %v4948 = vmax.f32 %v4823, %v4825
      %4949 = vmax.xlane.f32.xlu0 %v4948
      %v4950 = vpop.xlane.xlu0 %4949
      %v4951 = vmax.f32 %v4829, %v4831
      %4952 = vmax.xlane.f32.xlu0 %v4951
      %v4953 = vpop.xlane.xlu0 %4952
      %v4954 = vmax.f32 %v4833, %v4835
      %4955 = vmax.xlane.f32.xlu0 %v4954
      %v4956 = vpop.xlane.xlu0 %4955
      %v4957 = vmax.f32 %v4839, %v4841
      %4958 = vmax.xlane.f32.xlu0 %v4957
      %v4959 = vpop.xlane.xlu0 %4958
      %v4960 = vmax.f32 %v4843, %v4845
      %4961 = vmax.xlane.f32.xlu0 %v4960
      %v4962 = vpop.xlane.xlu0 %4961
      %v4963 = vmax.f32 %v4849, %v4851
      %4964 = vmax.xlane.f32.xlu0 %v4963
      %v4965 = vpop.xlane.xlu0 %4964
      %v4966 = vmax.f32 %v4853, %v4855
      %4967 = vmax.xlane.f32.xlu0 %v4966
      %v4968 = vpop.xlane.xlu0 %4967
      %v4969 = vmax.f32 %v4859, %v4861
      %4970 = vmax.xlane.f32.xlu0 %v4969
      %v4971 = vpop.xlane.xlu0 %4970
      %v4972 = vmax.f32 %v4863, %v4865
      %4973 = vmax.xlane.f32.xlu0 %v4972
      %v4974 = vpop.xlane.xlu0 %4973
      %v4975 = vmax.f32 %v4869, %v4871
      %4976 = vmax.xlane.f32.xlu0 %v4975
      %v4977 = vpop.xlane.xlu0 %4976
      %v4978 = vmax.f32 %v4873, %v4875
      %4979 = vmax.xlane.f32.xlu0 %v4978
      %v4980 = vpop.xlane.xlu0 %4979
      %v4981 = vmax.f32 %v4879, %v4881
      %4982 = vmax.xlane.f32.xlu0 %v4981
      %v4983 = vpop.xlane.xlu0 %4982
      %v4984 = vmax.f32 %v4883, %v4885
      %4985 = vmax.xlane.f32.xlu0 %v4984
      %v4986 = vpop.xlane.xlu0 %4985
      %v4987 = vmax.f32 %v4889, %v4891
      %4988 = vmax.xlane.f32.xlu0 %v4987
      %v4989 = vpop.xlane.xlu0 %4988
      %v4990 = vmax.f32 %v4893, %v4895
      %4991 = vmax.xlane.f32.xlu0 %v4990
      %v4992 = vpop.xlane.xlu0 %4991
      %v4993 = vsub.f32 %v4739, %v4899
      %v4994 = vsub.f32 %v4741, %v4899
      %v4995 = vsub.f32 %v4743, %v4902
      %v4996 = vsub.f32 %v4745, %v4902
      %v4997 = vsub.f32 %v4749, %v4905
      %v4998 = vsub.f32 %v4751, %v4905
      %v4999 = vsub.f32 %v4753, %v4908
      %v5000 = vsub.f32 %v4755, %v4908
      %v5001 = vsub.f32 %v4759, %v4911
      %v5002 = vsub.f32 %v4761, %v4911
      %v5003 = vsub.f32 %v4763, %v4914
      %v5004 = vsub.f32 %v4765, %v4914
      %v5005 = vsub.f32 %v4769, %v4917
      %v5006 = vsub.f32 %v4771, %v4917
      %v5007 = vsub.f32 %v4773, %v4920
      %v5008 = vsub.f32 %v4775, %v4920
      %v5009 = vsub.f32 %v4779, %v4923
      %v5010 = vsub.f32 %v4781, %v4923
      %v5011 = vsub.f32 %v4783, %v4926
      %v5012 = vsub.f32 %v4785, %v4926
      %v5013 = vsub.f32 %v4789, %v4929
      %v5014 = vsub.f32 %v4791, %v4929
      %v5015 = vsub.f32 %v4793, %v4932
      %v5016 = vsub.f32 %v4795, %v4932
      %v5017 = vsub.f32 %v4799, %v4935
      %v5018 = vsub.f32 %v4801, %v4935
      %v5019 = vsub.f32 %v4803, %v4938
      %v5020 = vsub.f32 %v4805, %v4938
      %v5021 = vsub.f32 %v4809, %v4941
      %v5022 = vsub.f32 %v4811, %v4941
      %v5023 = vsub.f32 %v4813, %v4944
      %v5024 = vsub.f32 %v4815, %v4944
      %v5025 = vsub.f32 %v4819, %v4947
      %v5026 = vsub.f32 %v4821, %v4947
      %v5027 = vsub.f32 %v4823, %v4950
      %v5028 = vsub.f32 %v4825, %v4950
      %v5029 = vsub.f32 %v4829, %v4953
      %v5030 = vsub.f32 %v4831, %v4953
      %v5031 = vsub.f32 %v4833, %v4956
      %v5032 = vsub.f32 %v4835, %v4956
      %v5033 = vsub.f32 %v4839, %v4959
      %v5034 = vsub.f32 %v4841, %v4959
      %v5035 = vsub.f32 %v4843, %v4962
      %v5036 = vsub.f32 %v4845, %v4962
      %v5037 = vsub.f32 %v4849, %v4965
      %v5038 = vsub.f32 %v4851, %v4965
      %v5039 = vsub.f32 %v4853, %v4968
      %v5040 = vsub.f32 %v4855, %v4968
      %v5041 = vsub.f32 %v4859, %v4971
      %v5042 = vsub.f32 %v4861, %v4971
      %v5043 = vsub.f32 %v4863, %v4974
      %v5044 = vsub.f32 %v4865, %v4974
      %v5045 = vsub.f32 %v4869, %v4977
      %v5046 = vsub.f32 %v4871, %v4977
      %v5047 = vsub.f32 %v4873, %v4980
      %v5048 = vsub.f32 %v4875, %v4980
      %v5049 = vsub.f32 %v4879, %v4983
      %v5050 = vsub.f32 %v4881, %v4983
      %v5051 = vsub.f32 %v4883, %v4986
      %v5052 = vsub.f32 %v4885, %v4986
      %v5053 = vsub.f32 %v4889, %v4989
      %v5054 = vsub.f32 %v4891, %v4989
      %v5055 = vsub.f32 %v4893, %v4992
      %v5056 = vsub.f32 %v4895, %v4992
      %v5057 = vmul.f32 %v4993, 1.442695
      %v5058 = vpow.pop %v5057
      %v5059 = vmul.f32 %v4994, 1.442695
      %v5060 = vpow.pop %v5059
      %v5061 = vmul.f32 %v4995, 1.442695
      %v5062 = vpow.pop %v5061
      %v5063 = vmul.f32 %v4996, 1.442695
      %v5064 = vpow.pop %v5063
      %v5065 = vmul.f32 %v4997, 1.442695
      %v5066 = vpow.pop %v5065
      %v5067 = vmul.f32 %v4998, 1.442695
      %v5068 = vpow.pop %v5067
      %v5069 = vmul.f32 %v4999, 1.442695
      %v5070 = vpow.pop %v5069
      %v5071 = vmul.f32 %v5000, 1.442695
      %v5072 = vpow.pop %v5071
      %v5073 = vmul.f32 %v5001, 1.442695
      %v5074 = vpow.pop %v5073
      %v5075 = vmul.f32 %v5002, 1.442695
      %v5076 = vpow.pop %v5075
      %v5077 = vmul.f32 %v5003, 1.442695
      %v5078 = vpow.pop %v5077
      %v5079 = vmul.f32 %v5004, 1.442695
      %v5080 = vpow.pop %v5079
      %v5081 = vmul.f32 %v5005, 1.442695
      %v5082 = vpow.pop %v5081
      %v5083 = vmul.f32 %v5006, 1.442695
      %v5084 = vpow.pop %v5083
      %v5085 = vmul.f32 %v5007, 1.442695
      %v5086 = vpow.pop %v5085
      %v5087 = vmul.f32 %v5008, 1.442695
      %v5088 = vpow.pop %v5087
      %v5089 = vmul.f32 %v5009, 1.442695
      %v5090 = vpow.pop %v5089
      %v5091 = vmul.f32 %v5010, 1.442695
      %v5092 = vpow.pop %v5091
      %v5093 = vmul.f32 %v5011, 1.442695
      %v5094 = vpow.pop %v5093
      %v5095 = vmul.f32 %v5012, 1.442695
      %v5096 = vpow.pop %v5095
      %v5097 = vmul.f32 %v5013, 1.442695
      %v5098 = vpow.pop %v5097
      %v5099 = vmul.f32 %v5014, 1.442695
      %v5100 = vpow.pop %v5099
      %v5101 = vmul.f32 %v5015, 1.442695
      %v5102 = vpow.pop %v5101
      %v5103 = vmul.f32 %v5016, 1.442695
      %v5104 = vpow.pop %v5103
      %v5105 = vmul.f32 %v5017, 1.442695
      %v5106 = vpow.pop %v5105
      %v5107 = vmul.f32 %v5018, 1.442695
      %v5108 = vpow.pop %v5107
      %v5109 = vmul.f32 %v5019, 1.442695
      %v5110 = vpow.pop %v5109
      %v5111 = vmul.f32 %v5020, 1.442695
      %v5112 = vpow.pop %v5111
      %v5113 = vmul.f32 %v5021, 1.442695
      %v5114 = vpow.pop %v5113
      %v5115 = vmul.f32 %v5022, 1.442695
      %v5116 = vpow.pop %v5115
      %v5117 = vmul.f32 %v5023, 1.442695
      %v5118 = vpow.pop %v5117
      %v5119 = vmul.f32 %v5024, 1.442695
      %v5120 = vpow.pop %v5119
      %v5121 = vmul.f32 %v5025, 1.442695
      %v5122 = vpow.pop %v5121
      %v5123 = vmul.f32 %v5026, 1.442695
      %v5124 = vpow.pop %v5123
      %v5125 = vmul.f32 %v5027, 1.442695
      %v5126 = vpow.pop %v5125
      %v5127 = vmul.f32 %v5028, 1.442695
      %v5128 = vpow.pop %v5127
      %v5129 = vmul.f32 %v5029, 1.442695
      %v5130 = vpow.pop %v5129
      %v5131 = vmul.f32 %v5030, 1.442695
      %v5132 = vpow.pop %v5131
      %v5133 = vmul.f32 %v5031, 1.442695
      %v5134 = vpow.pop %v5133
      %v5135 = vmul.f32 %v5032, 1.442695
      %v5136 = vpow.pop %v5135
      %v5137 = vmul.f32 %v5033, 1.442695
      %v5138 = vpow.pop %v5137
      %v5139 = vmul.f32 %v5034, 1.442695
      %v5140 = vpow.pop %v5139
      %v5141 = vmul.f32 %v5035, 1.442695
      %v5142 = vpow.pop %v5141
      %v5143 = vmul.f32 %v5036, 1.442695
      %v5144 = vpow.pop %v5143
      %v5145 = vmul.f32 %v5037, 1.442695
      %v5146 = vpow.pop %v5145
      %v5147 = vmul.f32 %v5038, 1.442695
      %v5148 = vpow.pop %v5147
      %v5149 = vmul.f32 %v5039, 1.442695
      %v5150 = vpow.pop %v5149
      %v5151 = vmul.f32 %v5040, 1.442695
      %v5152 = vpow.pop %v5151
      %v5153 = vmul.f32 %v5041, 1.442695
      %v5154 = vpow.pop %v5153
      %v5155 = vmul.f32 %v5042, 1.442695
      %v5156 = vpow.pop %v5155
      %v5157 = vmul.f32 %v5043, 1.442695
      %v5158 = vpow.pop %v5157
      %v5159 = vmul.f32 %v5044, 1.442695
      %v5160 = vpow.pop %v5159
      %v5161 = vmul.f32 %v5045, 1.442695
      %v5162 = vpow.pop %v5161
      %v5163 = vmul.f32 %v5046, 1.442695
      %v5164 = vpow.pop %v5163
      %v5165 = vmul.f32 %v5047, 1.442695
      %v5166 = vpow.pop %v5165
      %v5167 = vmul.f32 %v5048, 1.442695
      %v5168 = vpow.pop %v5167
      %v5169 = vmul.f32 %v5049, 1.442695
      %v5170 = vpow.pop %v5169
      %v5171 = vmul.f32 %v5050, 1.442695
      %v5172 = vpow.pop %v5171
      %v5173 = vmul.f32 %v5051, 1.442695
      %v5174 = vpow.pop %v5173
      %v5175 = vmul.f32 %v5052, 1.442695
      %v5176 = vpow.pop %v5175
      %v5177 = vmul.f32 %v5053, 1.442695
      %v5178 = vpow.pop %v5177
      %v5179 = vmul.f32 %v5054, 1.442695
      %v5180 = vpow.pop %v5179
      %v5181 = vmul.f32 %v5055, 1.442695
      %v5182 = vpow.pop %v5181
      %v5183 = vmul.f32 %v5056, 1.442695
      %v5184 = vpow.pop %v5183
      %v5185 = vadd.f32 %v5058, %v5060
      %5186 = vadd.xlane.f32.xlu0 %v5185
      %v5187 = vpop.xlane.xlu0 %5186
      %v5188 = vadd.f32 %v5062, %v5064
      %5189 = vadd.xlane.f32.xlu0 %v5188
      %v5190 = vpop.xlane.xlu0 %5189
      %v5191 = vadd.f32 %v5066, %v5068
      %5192 = vadd.xlane.f32.xlu0 %v5191
      %v5193 = vpop.xlane.xlu0 %5192
      %v5194 = vadd.f32 %v5070, %v5072
      %5195 = vadd.xlane.f32.xlu0 %v5194
      %v5196 = vpop.xlane.xlu0 %5195
      %v5197 = vadd.f32 %v5074, %v5076
      %5198 = vadd.xlane.f32.xlu0 %v5197
      %v5199 = vpop.xlane.xlu0 %5198
      %v5200 = vadd.f32 %v5078, %v5080
      %5201 = vadd.xlane.f32.xlu0 %v5200
      %v5202 = vpop.xlane.xlu0 %5201
      %v5203 = vadd.f32 %v5082, %v5084
      %5204 = vadd.xlane.f32.xlu0 %v5203
      %v5205 = vpop.xlane.xlu0 %5204
      %v5206 = vadd.f32 %v5086, %v5088
      %5207 = vadd.xlane.f32.xlu0 %v5206
      %v5208 = vpop.xlane.xlu0 %5207
      %v5209 = vadd.f32 %v5090, %v5092
      %5210 = vadd.xlane.f32.xlu0 %v5209
      %v5211 = vpop.xlane.xlu0 %5210
      %v5212 = vadd.f32 %v5094, %v5096
      %5213 = vadd.xlane.f32.xlu0 %v5212
      %v5214 = vpop.xlane.xlu0 %5213
      %v5215 = vadd.f32 %v5098, %v5100
      %5216 = vadd.xlane.f32.xlu0 %v5215
      %v5217 = vpop.xlane.xlu0 %5216
      %v5218 = vadd.f32 %v5102, %v5104
      %5219 = vadd.xlane.f32.xlu0 %v5218
      %v5220 = vpop.xlane.xlu0 %5219
      %v5221 = vadd.f32 %v5106, %v5108
      %5222 = vadd.xlane.f32.xlu0 %v5221
      %v5223 = vpop.xlane.xlu0 %5222
      %v5224 = vadd.f32 %v5110, %v5112
      %5225 = vadd.xlane.f32.xlu0 %v5224
      %v5226 = vpop.xlane.xlu0 %5225
      %v5227 = vadd.f32 %v5114, %v5116
      %5228 = vadd.xlane.f32.xlu0 %v5227
      %v5229 = vpop.xlane.xlu0 %5228
      %v5230 = vadd.f32 %v5118, %v5120
      %5231 = vadd.xlane.f32.xlu0 %v5230
      %v5232 = vpop.xlane.xlu0 %5231
      %v5233 = vadd.f32 %v5122, %v5124
      %5234 = vadd.xlane.f32.xlu0 %v5233
      %v5235 = vpop.xlane.xlu0 %5234
      %v5236 = vadd.f32 %v5126, %v5128
      %5237 = vadd.xlane.f32.xlu0 %v5236
      %v5238 = vpop.xlane.xlu0 %5237
      %v5239 = vadd.f32 %v5130, %v5132
      %5240 = vadd.xlane.f32.xlu0 %v5239
      %v5241 = vpop.xlane.xlu0 %5240
      %v5242 = vadd.f32 %v5134, %v5136
      %5243 = vadd.xlane.f32.xlu0 %v5242
      %v5244 = vpop.xlane.xlu0 %5243
      %v5245 = vadd.f32 %v5138, %v5140
      %5246 = vadd.xlane.f32.xlu0 %v5245
      %v5247 = vpop.xlane.xlu0 %5246
      %v5248 = vadd.f32 %v5142, %v5144
      %5249 = vadd.xlane.f32.xlu0 %v5248
      %v5250 = vpop.xlane.xlu0 %5249
      %v5251 = vadd.f32 %v5146, %v5148
      %5252 = vadd.xlane.f32.xlu0 %v5251
      %v5253 = vpop.xlane.xlu0 %5252
      %v5254 = vadd.f32 %v5150, %v5152
      %5255 = vadd.xlane.f32.xlu0 %v5254
      %v5256 = vpop.xlane.xlu0 %5255
      %v5257 = vadd.f32 %v5154, %v5156
      %5258 = vadd.xlane.f32.xlu0 %v5257
      %v5259 = vpop.xlane.xlu0 %5258
      %v5260 = vadd.f32 %v5158, %v5160
      %5261 = vadd.xlane.f32.xlu0 %v5260
      %v5262 = vpop.xlane.xlu0 %5261
      %v5263 = vadd.f32 %v5162, %v5164
      %5264 = vadd.xlane.f32.xlu0 %v5263
      %v5265 = vpop.xlane.xlu0 %5264
      %v5266 = vadd.f32 %v5166, %v5168
      %5267 = vadd.xlane.f32.xlu0 %v5266
      %v5268 = vpop.xlane.xlu0 %5267
      %v5269 = vadd.f32 %v5170, %v5172
      %5270 = vadd.xlane.f32.xlu0 %v5269
      %v5271 = vpop.xlane.xlu0 %5270
      %v5272 = vadd.f32 %v5174, %v5176
      %5273 = vadd.xlane.f32.xlu0 %v5272
      %v5274 = vpop.xlane.xlu0 %5273
      %v5275 = vadd.f32 %v5178, %v5180
      %5276 = vadd.xlane.f32.xlu0 %v5275
      %v5277 = vpop.xlane.xlu0 %5276
      %v5278 = vadd.f32 %v5182, %v5184
      %5279 = vadd.xlane.f32.xlu0 %v5278
      %v5280 = vpop.xlane.xlu0 %5279
      %v5281 = vpack.c.bf16 %v5062, %v5058
      %v5282 = vpack.c.bf16 %v5064, %v5060
      %v5283 = vpack.c.bf16 %v5070, %v5066
      %v5284 = vpack.c.bf16 %v5072, %v5068
      %v5285 = vpack.c.bf16 %v5078, %v5074
      %v5286 = vpack.c.bf16 %v5080, %v5076
      %v5287 = vpack.c.bf16 %v5086, %v5082
      %v5288 = vpack.c.bf16 %v5088, %v5084
      %v5289 = vpack.c.bf16 %v5094, %v5090
      %v5290 = vpack.c.bf16 %v5096, %v5092
      %v5291 = vpack.c.bf16 %v5102, %v5098
      %v5292 = vpack.c.bf16 %v5104, %v5100
      %v5293 = vpack.c.bf16 %v5110, %v5106
      %v5294 = vpack.c.bf16 %v5112, %v5108
      %v5295 = vpack.c.bf16 %v5118, %v5114
      %v5296 = vpack.c.bf16 %v5120, %v5116
      %v5297 = vpack.c.bf16 %v5126, %v5122
      %v5298 = vpack.c.bf16 %v5128, %v5124
      %v5299 = vpack.c.bf16 %v5134, %v5130
      %v5300 = vpack.c.bf16 %v5136, %v5132
      %v5301 = vpack.c.bf16 %v5142, %v5138
      %v5302 = vpack.c.bf16 %v5144, %v5140
      %v5303 = vpack.c.bf16 %v5150, %v5146
      %v5304 = vpack.c.bf16 %v5152, %v5148
      %v5305 = vpack.c.bf16 %v5158, %v5154
      %v5306 = vpack.c.bf16 %v5160, %v5156
      %v5307 = vpack.c.bf16 %v5166, %v5162
      %v5308 = vpack.c.bf16 %v5168, %v5164
      %v5309 = vpack.c.bf16 %v5174, %v5170
      %v5310 = vpack.c.bf16 %v5176, %v5172
      %v5311 = vpack.c.bf16 %v5182, %v5178
      %v5312 = vpack.c.bf16 %v5184, %v5180
      %5313 = vrot.lane.b32.xlu0 %v708, 80
      %v5314 = vpop.permute.xlu0 %5313
      %5315 = vrot.lane.b32.xlu0 %v709, 80
      %v5316 = vpop.permute.xlu0 %5315
      %5317 = vrot.lane.b32.xlu0 %v710, 80
      %v5318 = vpop.permute.xlu0 %5317
      %5319 = vrot.lane.b32.xlu0 %v711, 80
      %v5320 = vpop.permute.xlu0 %5319
      %5321 = vrot.lane.b32.xlu0 %v712, 80
      %v5322 = vpop.permute.xlu0 %5321
      %5323 = vrot.lane.b32.xlu0 %v713, 80
      %v5324 = vpop.permute.xlu0 %5323
      %5325 = vrot.lane.b32.xlu0 %v714, 80
      %v5326 = vpop.permute.xlu0 %5325
      %5327 = vrot.lane.b32.xlu0 %v715, 80
      %v5328 = vpop.permute.xlu0 %5327
      %5329 = vrot.lane.b32.xlu0 %v716, 80
      %v5330 = vpop.permute.xlu0 %5329
      %5331 = vrot.lane.b32.xlu0 %v717, 80
      %v5332 = vpop.permute.xlu0 %5331
      %5333 = vrot.lane.b32.xlu0 %v718, 80
      %v5334 = vpop.permute.xlu0 %5333
      %5335 = vrot.lane.b32.xlu0 %v719, 80
      %v5336 = vpop.permute.xlu0 %5335
      %5337 = vrot.lane.b32.xlu0 %v720, 80
      %v5338 = vpop.permute.xlu0 %5337
      %5339 = vrot.lane.b32.xlu0 %v721, 80
      %v5340 = vpop.permute.xlu0 %5339
      %5341 = vrot.lane.b32.xlu0 %v722, 80
      %v5342 = vpop.permute.xlu0 %5341
      %5343 = vrot.lane.b32.xlu0 %v723, 80
      %v5344 = vpop.permute.xlu0 %5343
      %5361 = vmatprep.subr.bf16.mxu0 0
      %5362 = vmatpush1.bf16.msra.mxu0 %v5328
      %5363 = vmatprep.subr.bf16.mxu0 0
      %5364 = vmatpush1.bf16.msra.mxu0 %v5326
      %5365 = vmatprep.subr.bf16.mxu0 0
      %5366 = vmatpush1.bf16.msra.mxu0 %v5324
      %5367 = vmatprep.subr.bf16.mxu0 0
      %5368 = vmatpush1.bf16.msra.mxu0 %v5322
      %5369 = vmatprep.subr.bf16.mxu0 0
      %5370 = vmatpush1.bf16.msra.mxu0 %v5320
      %5371 = vmatprep.subr.bf16.mxu0 0
      %5372 = vmatpush1.bf16.msra.mxu0 %v5318
      %5373 = vmatprep.subr.bf16.mxu0 0
      %5374 = vmatpush1.bf16.msra.mxu0 %v5316
      %5375 = vmatprep.subr.bf16.mxu0 0
      %5376 = vmatpush1.bf16.msra.mxu0 %v5314
      %5377 = vmatprep.subr.bf16.mxu0 0
      %5378 = vmatpush2.bf16.msra.mxu0 %v5344
      %5379 = vmatprep.subr.bf16.mxu0 0
      %5380 = vmatpush2.bf16.msra.mxu0 %v5342
      %5381 = vmatprep.subr.bf16.mxu0 0
      %5382 = vmatpush2.bf16.msra.mxu0 %v5340
      %5383 = vmatprep.subr.bf16.mxu0 0
      %5384 = vmatpush2.bf16.msra.mxu0 %v5338
      %5385 = vmatprep.subr.bf16.mxu0 0
      %5386 = vmatpush2.bf16.msra.mxu0 %v5336
      %5387 = vmatprep.subr.bf16.mxu0 0
      %5388 = vmatpush2.bf16.msra.mxu0 %v5334
      %5389 = vmatprep.subr.bf16.mxu0 0
      %5390 = vmatpush2.bf16.msra.mxu0 %v5332
      %5391 = vmatprep.subr.bf16.mxu0 0
      %5392 = vmatpush2.bf16.msra.mxu0 %v5330
      %5393 = vmatprep.mubr.bf16.mxu0 %v5282
      %5394 = vmatmul.mubr.bf16.gmra.mxu0 %v5281
      %v5395 = vpop.f32.mrf.mxu0
      %v5396 = vadd.f32 0.0, %v5395
      %v5397 = vpop.f32.mrf.mxu0
      %v5398 = vpop.f32.mrf.mxu0
      %v5399 = vadd.f32 0.0, %v5398
      %v5400 = vpop.f32.mrf.mxu0
      %5401 = vmatprep.mubr.bf16.mxu0 %v5284
      %5402 = vmatmul.mubr.bf16.gmra.mxu0 %v5283
      %v5403 = vpop.f32.mrf.mxu0
      %v5404 = vadd.f32 0.0, %v5403
      %v5405 = vpop.f32.mrf.mxu0
      %v5406 = vpop.f32.mrf.mxu0
      %v5407 = vadd.f32 0.0, %v5406
      %v5408 = vpop.f32.mrf.mxu0
      %5409 = vmatprep.mubr.bf16.mxu0 %v5286
      %5410 = vmatmul.mubr.bf16.gmra.mxu0 %v5285
      %v5411 = vpop.f32.mrf.mxu0
      %v5412 = vadd.f32 0.0, %v5411
      %v5413 = vpop.f32.mrf.mxu0
      %v5414 = vpop.f32.mrf.mxu0
      %v5415 = vadd.f32 0.0, %v5414
      %v5416 = vpop.f32.mrf.mxu0
      %5417 = vmatprep.mubr.bf16.mxu0 %v5288
      %5418 = vmatmul.mubr.bf16.gmra.mxu0 %v5287
      %v5419 = vpop.f32.mrf.mxu0
      %v5420 = vadd.f32 0.0, %v5419
      %v5421 = vpop.f32.mrf.mxu0
      %v5422 = vpop.f32.mrf.mxu0
      %v5423 = vadd.f32 0.0, %v5422
      %v5424 = vpop.f32.mrf.mxu0
      %5425 = vmatprep.mubr.bf16.mxu0 %v5290
      %5426 = vmatmul.mubr.bf16.gmra.mxu0 %v5289
      %v5427 = vpop.f32.mrf.mxu0
      %v5428 = vadd.f32 0.0, %v5427
      %v5429 = vpop.f32.mrf.mxu0
      %v5430 = vpop.f32.mrf.mxu0
      %v5431 = vadd.f32 0.0, %v5430
      %v5432 = vpop.f32.mrf.mxu0
      %5433 = vmatprep.mubr.bf16.mxu0 %v5292
      %5434 = vmatmul.mubr.bf16.gmra.mxu0 %v5291
      %v5435 = vpop.f32.mrf.mxu0
      %v5436 = vadd.f32 0.0, %v5435
      %v5437 = vpop.f32.mrf.mxu0
      %v5438 = vpop.f32.mrf.mxu0
      %v5439 = vadd.f32 0.0, %v5438
      %v5440 = vpop.f32.mrf.mxu0
      %5441 = vmatprep.mubr.bf16.mxu0 %v5294
      %5442 = vmatmul.mubr.bf16.gmra.mxu0 %v5293
      %v5443 = vpop.f32.mrf.mxu0
      %v5444 = vadd.f32 0.0, %v5443
      %v5445 = vpop.f32.mrf.mxu0
      %v5446 = vpop.f32.mrf.mxu0
      %v5447 = vadd.f32 0.0, %v5446
      %v5448 = vpop.f32.mrf.mxu0
      %5449 = vmatprep.mubr.bf16.mxu0 %v5296
      %5450 = vmatmul.mubr.bf16.gmra.mxu0 %v5295
      %v5451 = vpop.f32.mrf.mxu0
      %v5452 = vadd.f32 0.0, %v5451
      %v5453 = vpop.f32.mrf.mxu0
      %v5454 = vpop.f32.mrf.mxu0
      %v5455 = vadd.f32 0.0, %v5454
      %v5456 = vpop.f32.mrf.mxu0
      %5457 = vmatprep.mubr.bf16.mxu0 %v5298
      %5458 = vmatmul.mubr.bf16.gmra.mxu0 %v5297
      %v5459 = vpop.f32.mrf.mxu0
      %v5460 = vadd.f32 0.0, %v5459
      %v5461 = vpop.f32.mrf.mxu0
      %v5462 = vpop.f32.mrf.mxu0
      %v5463 = vadd.f32 0.0, %v5462
      %v5464 = vpop.f32.mrf.mxu0
      %5465 = vmatprep.mubr.bf16.mxu0 %v5300
      %5466 = vmatmul.mubr.bf16.gmra.mxu0 %v5299
      %v5467 = vpop.f32.mrf.mxu0
      %v5468 = vadd.f32 0.0, %v5467
      %v5469 = vpop.f32.mrf.mxu0
      %v5470 = vpop.f32.mrf.mxu0
      %v5471 = vadd.f32 0.0, %v5470
      %v5472 = vpop.f32.mrf.mxu0
      %5473 = vmatprep.mubr.bf16.mxu0 %v5302
      %5474 = vmatmul.mubr.bf16.gmra.mxu0 %v5301
      %v5475 = vpop.f32.mrf.mxu0
      %v5476 = vadd.f32 0.0, %v5475
      %v5477 = vpop.f32.mrf.mxu0
      %v5478 = vpop.f32.mrf.mxu0
      %v5479 = vadd.f32 0.0, %v5478
      %v5480 = vpop.f32.mrf.mxu0
      %5481 = vmatprep.mubr.bf16.mxu0 %v5304
      %5482 = vmatmul.mubr.bf16.gmra.mxu0 %v5303
      %v5483 = vpop.f32.mrf.mxu0
      %v5484 = vadd.f32 0.0, %v5483
      %v5485 = vpop.f32.mrf.mxu0
      %v5486 = vpop.f32.mrf.mxu0
      %v5487 = vadd.f32 0.0, %v5486
      %v5488 = vpop.f32.mrf.mxu0
      %5489 = vmatprep.mubr.bf16.mxu0 %v5306
      %5490 = vmatmul.mubr.bf16.gmra.mxu0 %v5305
      %v5491 = vpop.f32.mrf.mxu0
      %v5492 = vadd.f32 0.0, %v5491
      %v5493 = vpop.f32.mrf.mxu0
      %v5494 = vpop.f32.mrf.mxu0
      %v5495 = vadd.f32 0.0, %v5494
      %v5496 = vpop.f32.mrf.mxu0
      %5497 = vmatprep.mubr.bf16.mxu0 %v5308
      %5498 = vmatmul.mubr.bf16.gmra.mxu0 %v5307
      %v5499 = vpop.f32.mrf.mxu0
      %v5500 = vadd.f32 0.0, %v5499
      %v5501 = vpop.f32.mrf.mxu0
      %v5502 = vpop.f32.mrf.mxu0
      %v5503 = vadd.f32 0.0, %v5502
      %v5504 = vpop.f32.mrf.mxu0
      %5505 = vmatprep.mubr.bf16.mxu0 %v5310
      %5506 = vmatmul.mubr.bf16.gmra.mxu0 %v5309
      %v5507 = vpop.f32.mrf.mxu0
      %v5508 = vadd.f32 0.0, %v5507
      %v5509 = vpop.f32.mrf.mxu0
      %v5510 = vpop.f32.mrf.mxu0
      %v5511 = vadd.f32 0.0, %v5510
      %v5512 = vpop.f32.mrf.mxu0
      %5513 = vmatprep.mubr.bf16.mxu0 %v5312
      %5514 = vmatmul.mubr.bf16.gmra.mxu0 %v5311
      %v5515 = vpop.f32.mrf.mxu0
      %v5516 = vadd.f32 0.0, %v5515
      %v5517 = vpop.f32.mrf.mxu0
      %v5518 = vpop.f32.mrf.mxu0
      %v5519 = vadd.f32 0.0, %v5518
      %v5520 = vpop.f32.mrf.mxu0
      %5521 = vdwg.mxu0
      %v5522 = vrcp.pop %v5187
      %v5523 = vmul.f32 %v5396, %v5522
      %v5524 = vrcp.pop %v5190
      %v5525 = vmul.f32 %v5399, %v5524
      %v5526 = vrcp.pop %v5193
      %v5527 = vmul.f32 %v5404, %v5526
      %v5528 = vrcp.pop %v5196
      %v5529 = vmul.f32 %v5407, %v5528
      %v5530 = vrcp.pop %v5199
      %v5531 = vmul.f32 %v5412, %v5530
      %v5532 = vrcp.pop %v5202
      %v5533 = vmul.f32 %v5415, %v5532
      %v5534 = vrcp.pop %v5205
      %v5535 = vmul.f32 %v5420, %v5534
      %v5536 = vrcp.pop %v5208
      %v5537 = vmul.f32 %v5423, %v5536
      %v5538 = vrcp.pop %v5211
      %v5539 = vmul.f32 %v5428, %v5538
      %v5540 = vrcp.pop %v5214
      %v5541 = vmul.f32 %v5431, %v5540
      %v5542 = vrcp.pop %v5217
      %v5543 = vmul.f32 %v5436, %v5542
      %v5544 = vrcp.pop %v5220
      %v5545 = vmul.f32 %v5439, %v5544
      %v5546 = vrcp.pop %v5223
      %v5547 = vmul.f32 %v5444, %v5546
      %v5548 = vrcp.pop %v5226
      %v5549 = vmul.f32 %v5447, %v5548
      %v5550 = vrcp.pop %v5229
      %v5551 = vmul.f32 %v5452, %v5550
      %v5552 = vrcp.pop %v5232
      %v5553 = vmul.f32 %v5455, %v5552
      %v5554 = vrcp.pop %v5235
      %v5555 = vmul.f32 %v5460, %v5554
      %v5556 = vrcp.pop %v5238
      %v5557 = vmul.f32 %v5463, %v5556
      %v5558 = vrcp.pop %v5241
      %v5559 = vmul.f32 %v5468, %v5558
      %v5560 = vrcp.pop %v5244
      %v5561 = vmul.f32 %v5471, %v5560
      %v5562 = vrcp.pop %v5247
      %v5563 = vmul.f32 %v5476, %v5562
      %v5564 = vrcp.pop %v5250
      %v5565 = vmul.f32 %v5479, %v5564
      %v5566 = vrcp.pop %v5253
      %v5567 = vmul.f32 %v5484, %v5566
      %v5568 = vrcp.pop %v5256
      %v5569 = vmul.f32 %v5487, %v5568
      %v5570 = vrcp.pop %v5259
      %v5571 = vmul.f32 %v5492, %v5570
      %v5572 = vrcp.pop %v5262
      %v5573 = vmul.f32 %v5495, %v5572
      %v5574 = vrcp.pop %v5265
      %v5575 = vmul.f32 %v5500, %v5574
      %v5576 = vrcp.pop %v5268
      %v5577 = vmul.f32 %v5503, %v5576
      %v5578 = vrcp.pop %v5271
      %v5579 = vmul.f32 %v5508, %v5578
      %v5580 = vrcp.pop %v5274
      %v5581 = vmul.f32 %v5511, %v5580
      %v5582 = vrcp.pop %v5277
      %v5583 = vmul.f32 %v5516, %v5582
      %v5584 = vrcp.pop %v5280
      %v5585 = vmul.f32 %v5519, %v5584
      %v5586 = vpack.c.bf16 %v5525, %v5523
      %v5587 = vpack.c.bf16 %v5529, %v5527
      %v5588 = vpack.c.bf16 %v5533, %v5531
      %v5589 = vpack.c.bf16 %v5537, %v5535
      %v5590 = vpack.c.bf16 %v5541, %v5539
      %v5591 = vpack.c.bf16 %v5545, %v5543
      %v5592 = vpack.c.bf16 %v5549, %v5547
      %v5593 = vpack.c.bf16 %v5553, %v5551
      %v5594 = vpack.c.bf16 %v5557, %v5555
      %v5595 = vpack.c.bf16 %v5561, %v5559
      %v5596 = vpack.c.bf16 %v5565, %v5563
      %v5597 = vpack.c.bf16 %v5569, %v5567
      %v5598 = vpack.c.bf16 %v5573, %v5571
      %v5599 = vpack.c.bf16 %v5577, %v5575
      %v5600 = vpack.c.bf16 %v5581, %v5579
      %v5601 = vpack.c.bf16 %v5585, %v5583
      %v5604 = vunpack.c.l.b16 %v642
      %v5605 = vunpack.c.l.b16 %v643
      %v5606 = vpack.c.b16 %v5605, %v5604
      %v5609 = vsel %vm772, %v5586, 0
      %v5612 = vsel %vm772, %v5587, 0
      %v5615 = vsel %vm772, %v5588, 0
      %v5618 = vsel %vm772, %v5589, 0
      %v5621 = vsel %vm772, %v5590, 0
      %v5624 = vsel %vm772, %v5591, 0
      %v5627 = vsel %vm772, %v5592, 0
      %v5630 = vsel %vm772, %v5593, 0
      %v5633 = vsel %vm772, %v5594, 0
      %v5636 = vsel %vm772, %v5595, 0
      %v5639 = vsel %vm772, %v5596, 0
      %v5642 = vsel %vm772, %v5597, 0
      %v5645 = vsel %vm772, %v5598, 0
      %v5648 = vsel %vm772, %v5599, 0
      %v5651 = vsel %vm772, %v5600, 0
      %v5654 = vsel %vm772, %v5601, 0
      %5656 = vmatprep.subr.bf16.mxu0 0
      %5657 = vmatpush1.bf16.msra.mxu0 0
      %5658 = vmatprep.subr.bf16.mxu0 0
      %5659 = vmatpush1.bf16.msra.mxu0 0
      %5660 = vmatprep.subr.bf16.mxu0 0
      %5661 = vmatpush1.bf16.msra.mxu0 0
      %5662 = vmatprep.subr.bf16.mxu0 0
      %5663 = vmatpush1.bf16.msra.mxu0 0
      %5664 = vmatprep.subr.bf16.mxu0 0
      %5665 = vmatpush1.bf16.msra.mxu0 0
      %5666 = vmatprep.subr.bf16.mxu0 0
      %5667 = vmatpush1.bf16.msra.mxu0 0
      %5668 = vmatprep.subr.bf16.mxu0 0
      %5669 = vmatpush1.bf16.msra.mxu0 0
      %5670 = vmatprep.subr.bf16.mxu0 0
      %5671 = vmatpush1.bf16.msra.mxu0 %v5606
      %5672 = vmatprep.subr.bf16.mxu0 0
      %5673 = vmatpush2.bf16.msra.mxu0 0
      %5674 = vmatprep.subr.bf16.mxu0 0
      %5675 = vmatpush2.bf16.msra.mxu0 0
      %5676 = vmatprep.subr.bf16.mxu0 0
      %5677 = vmatpush2.bf16.msra.mxu0 0
      %5678 = vmatprep.subr.bf16.mxu0 0
      %5679 = vmatpush2.bf16.msra.mxu0 0
      %5680 = vmatprep.subr.bf16.mxu0 0
      %5681 = vmatpush2.bf16.msra.mxu0 0
      %5682 = vmatprep.subr.bf16.mxu0 0
      %5683 = vmatpush2.bf16.msra.mxu0 0
      %5684 = vmatprep.subr.bf16.mxu0 0
      %5685 = vmatpush2.bf16.msra.mxu0 0
      %5686 = vmatprep.subr.bf16.mxu0 0
      %5687 = vmatpush2.bf16.msra.mxu0 0
      %5688 = vmatprep.mubr.bf16.mxu0 0
      %5689 = vmatmul.mubr.bf16.gmra.mxu0 %v5609
      %v5690 = vpop.f32.mrf.mxu0
      %v5691 = vadd.f32 0.0, %v5690
      %v5692 = vpop.f32.mrf.mxu0
      %v5693 = vpop.f32.mrf.mxu0
      %v5694 = vadd.f32 0.0, %v5693
      %v5695 = vpop.f32.mrf.mxu0
      %5696 = vmatprep.mubr.bf16.mxu0 0
      %5697 = vmatmul.mubr.bf16.gmra.mxu0 %v5612
      %v5698 = vpop.f32.mrf.mxu0
      %v5699 = vadd.f32 0.0, %v5698
      %v5700 = vpop.f32.mrf.mxu0
      %v5701 = vpop.f32.mrf.mxu0
      %v5702 = vadd.f32 0.0, %v5701
      %v5703 = vpop.f32.mrf.mxu0
      %5704 = vmatprep.mubr.bf16.mxu0 0
      %5705 = vmatmul.mubr.bf16.gmra.mxu0 %v5615
      %v5706 = vpop.f32.mrf.mxu0
      %v5707 = vadd.f32 0.0, %v5706
      %v5708 = vpop.f32.mrf.mxu0
      %v5709 = vpop.f32.mrf.mxu0
      %v5710 = vadd.f32 0.0, %v5709
      %v5711 = vpop.f32.mrf.mxu0
      %5712 = vmatprep.mubr.bf16.mxu0 0
      %5713 = vmatmul.mubr.bf16.gmra.mxu0 %v5618
      %v5714 = vpop.f32.mrf.mxu0
      %v5715 = vadd.f32 0.0, %v5714
      %v5716 = vpop.f32.mrf.mxu0
      %v5717 = vpop.f32.mrf.mxu0
      %v5718 = vadd.f32 0.0, %v5717
      %v5719 = vpop.f32.mrf.mxu0
      %5720 = vmatprep.mubr.bf16.mxu0 0
      %5721 = vmatmul.mubr.bf16.gmra.mxu0 %v5621
      %v5722 = vpop.f32.mrf.mxu0
      %v5723 = vadd.f32 0.0, %v5722
      %v5724 = vpop.f32.mrf.mxu0
      %v5725 = vpop.f32.mrf.mxu0
      %v5726 = vadd.f32 0.0, %v5725
      %v5727 = vpop.f32.mrf.mxu0
      %5728 = vmatprep.mubr.bf16.mxu0 0
      %5729 = vmatmul.mubr.bf16.gmra.mxu0 %v5624
      %v5730 = vpop.f32.mrf.mxu0
      %v5731 = vadd.f32 0.0, %v5730
      %v5732 = vpop.f32.mrf.mxu0
      %v5733 = vpop.f32.mrf.mxu0
      %v5734 = vadd.f32 0.0, %v5733
      %v5735 = vpop.f32.mrf.mxu0
      %5736 = vmatprep.mubr.bf16.mxu0 0
      %5737 = vmatmul.mubr.bf16.gmra.mxu0 %v5627
      %v5738 = vpop.f32.mrf.mxu0
      %v5739 = vadd.f32 0.0, %v5738
      %v5740 = vpop.f32.mrf.mxu0
      %v5741 = vpop.f32.mrf.mxu0
      %v5742 = vadd.f32 0.0, %v5741
      %v5743 = vpop.f32.mrf.mxu0
      %5744 = vmatprep.mubr.bf16.mxu0 0
      %5745 = vmatmul.mubr.bf16.gmra.mxu0 %v5630
      %v5746 = vpop.f32.mrf.mxu0
      %v5747 = vadd.f32 0.0, %v5746
      %v5748 = vpop.f32.mrf.mxu0
      %v5749 = vpop.f32.mrf.mxu0
      %v5750 = vadd.f32 0.0, %v5749
      %v5751 = vpop.f32.mrf.mxu0
      %5752 = vmatprep.mubr.bf16.mxu0 0
      %5753 = vmatmul.mubr.bf16.gmra.mxu0 %v5633
      %v5754 = vpop.f32.mrf.mxu0
      %v5755 = vadd.f32 0.0, %v5754
      %v5756 = vpop.f32.mrf.mxu0
      %v5757 = vpop.f32.mrf.mxu0
      %v5758 = vadd.f32 0.0, %v5757
      %v5759 = vpop.f32.mrf.mxu0
      %5760 = vmatprep.mubr.bf16.mxu0 0
      %5761 = vmatmul.mubr.bf16.gmra.mxu0 %v5636
      %v5762 = vpop.f32.mrf.mxu0
      %v5763 = vadd.f32 0.0, %v5762
      %v5764 = vpop.f32.mrf.mxu0
      %v5765 = vpop.f32.mrf.mxu0
      %v5766 = vadd.f32 0.0, %v5765
      %v5767 = vpop.f32.mrf.mxu0
      %5768 = vmatprep.mubr.bf16.mxu0 0
      %5769 = vmatmul.mubr.bf16.gmra.mxu0 %v5639
      %v5770 = vpop.f32.mrf.mxu0
      %v5771 = vadd.f32 0.0, %v5770
      %v5772 = vpop.f32.mrf.mxu0
      %v5773 = vpop.f32.mrf.mxu0
      %v5774 = vadd.f32 0.0, %v5773
      %v5775 = vpop.f32.mrf.mxu0
      %5776 = vmatprep.mubr.bf16.mxu0 0
      %5777 = vmatmul.mubr.bf16.gmra.mxu0 %v5642
      %v5778 = vpop.f32.mrf.mxu0
      %v5779 = vadd.f32 0.0, %v5778
      %v5780 = vpop.f32.mrf.mxu0
      %v5781 = vpop.f32.mrf.mxu0
      %v5782 = vadd.f32 0.0, %v5781
      %v5783 = vpop.f32.mrf.mxu0
      %5784 = vmatprep.mubr.bf16.mxu0 0
      %5785 = vmatmul.mubr.bf16.gmra.mxu0 %v5645
      %v5786 = vpop.f32.mrf.mxu0
      %v5787 = vadd.f32 0.0, %v5786
      %v5788 = vpop.f32.mrf.mxu0
      %v5789 = vpop.f32.mrf.mxu0
      %v5790 = vadd.f32 0.0, %v5789
      %v5791 = vpop.f32.mrf.mxu0
      %5792 = vmatprep.mubr.bf16.mxu0 0
      %5793 = vmatmul.mubr.bf16.gmra.mxu0 %v5648
      %v5794 = vpop.f32.mrf.mxu0
      %v5795 = vadd.f32 0.0, %v5794
      %v5796 = vpop.f32.mrf.mxu0
      %v5797 = vpop.f32.mrf.mxu0
      %v5798 = vadd.f32 0.0, %v5797
      %v5799 = vpop.f32.mrf.mxu0
      %5800 = vmatprep.mubr.bf16.mxu0 0
      %5801 = vmatmul.mubr.bf16.gmra.mxu0 %v5651
      %v5802 = vpop.f32.mrf.mxu0
      %v5803 = vadd.f32 0.0, %v5802
      %v5804 = vpop.f32.mrf.mxu0
      %v5805 = vpop.f32.mrf.mxu0
      %v5806 = vadd.f32 0.0, %v5805
      %v5807 = vpop.f32.mrf.mxu0
      %5808 = vmatprep.mubr.bf16.mxu0 0
      %5809 = vmatmul.mubr.bf16.gmra.mxu0 %v5654
      %v5810 = vpop.f32.mrf.mxu0
      %v5811 = vadd.f32 0.0, %v5810
      %v5812 = vpop.f32.mrf.mxu0
      %v5813 = vpop.f32.mrf.mxu0
      %v5814 = vadd.f32 0.0, %v5813
      %v5815 = vpop.f32.mrf.mxu0
      %5816 = vdwg.mxu0
      %v5817 = vadd.f32 %v4512, %v5691
      %v5818 = vadd.f32 %v4513, %v5694
      %v5819 = vadd.f32 %v4514, %v5699
      %v5820 = vadd.f32 %v4515, %v5702
      %v5821 = vadd.f32 %v4516, %v5707
      %v5822 = vadd.f32 %v4517, %v5710
      %v5823 = vadd.f32 %v4518, %v5715
      %v5824 = vadd.f32 %v4519, %v5718
      %v5825 = vadd.f32 %v4520, %v5723
      %v5826 = vadd.f32 %v4521, %v5726
      %v5827 = vadd.f32 %v4522, %v5731
      %v5828 = vadd.f32 %v4523, %v5734
      %v5829 = vadd.f32 %v4524, %v5739
      %v5830 = vadd.f32 %v4525, %v5742
      %v5831 = vadd.f32 %v4526, %v5747
      %v5832 = vadd.f32 %v4527, %v5750
      %v5833 = vadd.f32 %v4528, %v5755
      %v5834 = vadd.f32 %v4529, %v5758
      %v5835 = vadd.f32 %v4530, %v5763
      %v5836 = vadd.f32 %v4531, %v5766
      %v5837 = vadd.f32 %v4532, %v5771
      %v5838 = vadd.f32 %v4533, %v5774
      %v5839 = vadd.f32 %v4534, %v5779
      %v5840 = vadd.f32 %v4535, %v5782
      %v5841 = vadd.f32 %v4536, %v5787
      %v5842 = vadd.f32 %v4537, %v5790
      %v5843 = vadd.f32 %v4538, %v5795
      %v5844 = vadd.f32 %v4539, %v5798
      %v5845 = vadd.f32 %v4540, %v5803
      %v5846 = vadd.f32 %v4541, %v5806
      %v5847 = vadd.f32 %v4542, %v5811
      %v5848 = vadd.f32 %v4543, %v5814
      %v5849 = vld [vmem:[%s4] sm:$0x1]
      %v5851 = vlaneseq
      %v5852 = vshrl.u32 %v5851, 7
      %v5853 = vsub.s32 0, %v5852
      %v5854 = vrot.slane %v5849, %v5853
      %v5856 = vadd.f32 %v5817, %v5854
      %v5857 = vadd.f32 %v5818, %v5854
      %v5858 = vadd.f32 %v5819, %v5854
      %v5859 = vadd.f32 %v5820, %v5854
      %v5860 = vadd.f32 %v5821, %v5854
      %v5861 = vadd.f32 %v5822, %v5854
      %v5862 = vadd.f32 %v5823, %v5854
      %v5863 = vadd.f32 %v5824, %v5854
      %v5864 = vadd.f32 %v5825, %v5854
      %v5865 = vadd.f32 %v5826, %v5854
      %v5866 = vadd.f32 %v5827, %v5854
      %v5867 = vadd.f32 %v5828, %v5854
      %v5868 = vadd.f32 %v5829, %v5854
      %v5869 = vadd.f32 %v5830, %v5854
      %v5870 = vadd.f32 %v5831, %v5854
      %v5871 = vadd.f32 %v5832, %v5854
      %v5872 = vadd.f32 %v5833, %v5854
      %v5873 = vadd.f32 %v5834, %v5854
      %v5874 = vadd.f32 %v5835, %v5854
      %v5875 = vadd.f32 %v5836, %v5854
      %v5876 = vadd.f32 %v5837, %v5854
      %v5877 = vadd.f32 %v5838, %v5854
      %v5878 = vadd.f32 %v5839, %v5854
      %v5879 = vadd.f32 %v5840, %v5854
      %v5880 = vadd.f32 %v5841, %v5854
      %v5881 = vadd.f32 %v5842, %v5854
      %v5882 = vadd.f32 %v5843, %v5854
      %v5883 = vadd.f32 %v5844, %v5854
      %v5884 = vadd.f32 %v5845, %v5854
      %v5885 = vadd.f32 %v5846, %v5854
      %v5886 = vadd.f32 %v5847, %v5854
      %v5887 = vadd.f32 %v5848, %v5854
      %v5888 = vsel %vm394, %v5856, 0.0
      %v5889 = vsel %vm394, %v5857, 0.0
      %v5890 = vadd.f32 %v5888, %v5889
      %v5891 = vsel %vm394, %v5858, 0.0
      %v5892 = vadd.f32 %v5890, %v5891
      %v5893 = vsel %vm394, %v5859, 0.0
      %v5894 = vadd.f32 %v5892, %v5893
      %v5895 = vsel %vm394, %v5860, 0.0
      %v5896 = vadd.f32 %v5894, %v5895
      %v5897 = vsel %vm394, %v5861, 0.0
      %v5898 = vadd.f32 %v5896, %v5897
      %v5899 = vsel %vm394, %v5862, 0.0
      %v5900 = vadd.f32 %v5898, %v5899
      %v5901 = vsel %vm394, %v5863, 0.0
      %v5902 = vadd.f32 %v5900, %v5901
      %v5903 = vsel %vm394, %v5864, 0.0
      %v5904 = vadd.f32 %v5902, %v5903
      %v5905 = vsel %vm394, %v5865, 0.0
      %v5906 = vadd.f32 %v5904, %v5905
      %v5907 = vsel %vm394, %v5866, 0.0
      %v5908 = vadd.f32 %v5906, %v5907
      %v5909 = vsel %vm394, %v5867, 0.0
      %v5910 = vadd.f32 %v5908, %v5909
      %v5911 = vsel %vm394, %v5868, 0.0
      %v5912 = vadd.f32 %v5910, %v5911
      %v5913 = vsel %vm394, %v5869, 0.0
      %v5914 = vadd.f32 %v5912, %v5913
      %v5915 = vsel %vm394, %v5870, 0.0
      %v5916 = vadd.f32 %v5914, %v5915
      %v5917 = vsel %vm394, %v5871, 0.0
      %v5918 = vadd.f32 %v5916, %v5917
      %v5919 = vsel %vm394, %v5872, 0.0
      %v5920 = vadd.f32 %v5918, %v5919
      %v5921 = vsel %vm394, %v5873, 0.0
      %v5922 = vadd.f32 %v5920, %v5921
      %v5923 = vsel %vm394, %v5874, 0.0
      %v5924 = vadd.f32 %v5922, %v5923
      %v5925 = vsel %vm394, %v5875, 0.0
      %v5926 = vadd.f32 %v5924, %v5925
      %v5927 = vsel %vm394, %v5876, 0.0
      %v5928 = vadd.f32 %v5926, %v5927
      %v5929 = vsel %vm394, %v5877, 0.0
      %v5930 = vadd.f32 %v5928, %v5929
      %v5931 = vsel %vm394, %v5878, 0.0
      %v5932 = vadd.f32 %v5930, %v5931
      %v5933 = vsel %vm394, %v5879, 0.0
      %v5934 = vadd.f32 %v5932, %v5933
      %v5935 = vsel %vm394, %v5880, 0.0
      %v5936 = vadd.f32 %v5934, %v5935
      %v5937 = vsel %vm394, %v5881, 0.0
      %v5938 = vadd.f32 %v5936, %v5937
      %v5939 = vsel %vm394, %v5882, 0.0
      %v5940 = vadd.f32 %v5938, %v5939
      %v5941 = vsel %vm394, %v5883, 0.0
      %v5942 = vadd.f32 %v5940, %v5941
      %v5943 = vsel %vm394, %v5884, 0.0
      %v5944 = vadd.f32 %v5942, %v5943
      %v5945 = vsel %vm394, %v5885, 0.0
      %v5946 = vadd.f32 %v5944, %v5945
      %v5947 = vsel %vm394, %v5886, 0.0
      %v5948 = vadd.f32 %v5946, %v5947
      %v5949 = vsel %vm394, %v5887, 0.0
      %v5950 = vadd.f32 %v5948, %v5949
      %v5951 = vrot.slane %v5950, 4
      %v5952 = vadd.f32 %v5950, %v5951
      %v5953 = vrot.slane %v5952, 2
      %v5954 = vadd.f32 %v5952, %v5953
      %v5955 = vrot.slane %v5954, 1
      %v5956 = vadd.f32 %v5954, %v5955
      %v5957 = vrcp.pop 256.0
      %v5958 = vmul.f32 %v5956, %v5957
      %vm5959 = vcmask 516096
      %5960 = vst.msk [vmem:[%s220] sm:$0x1] %vm5959, %v5958
      %p5961 = scmp.lt.s32.totalorder %s16, 1
      %s5962 = scalar_select %p5961, %s16, 1
      %s5963 = scalar_lea.vmem %s5, %s5962
      // Predicated region
      $region41: #{forward.13} parent=39 // pred_check
        %p5964 = pneg %p144
      $region42: #{forward.13} parent=39 // pred_check_branch
        %5966 = sbr.rel (%p5964) target = $region44
      $region43: #{forward.13} parent=39 // pred_region
        _
      $region44: #{forward.13} parent=39 // pred_fallthru
        _
    $region40: #{forward.13} parent=5 // pred_fallthru
      _
    %p5967 = scmp.le.s32.totalorder 2, %s11
    // Predicated region
    $region45: #{forward.13} parent=5 // pred_check
      %p5968 = pneg %p5967
    $region46: #{forward.13} parent=5 // pred_check_branch
      %5970 = sbr.rel (%p5968) target = $region48
    $region47: #{forward.13} parent=5 // pred_region
      %s5971 = ssub.s32 %s11, 2
      // Predicated region
      $region49: #{forward.13} parent=47 // pred_check
        %p5972 = pneg %p150
      $region50: #{forward.13} parent=47 // pred_check_branch
        %5974 = sbr.rel (%p5972) target = $region52
      $region51: #{forward.13} parent=47 // pred_region
        %p5975 = scmp.lt.s32.totalorder %s17, 1
        %s5976 = scalar_select %p5975, %s17, 1
        %s5977 = scalar_lea.vmem %s5, %s5976
      $region52: #{forward.13} parent=47 // pred_fallthru
        _
    $region48: #{forward.13} parent=5 // pred_fallthru
      _
  $region6: #{forward.13} parent=0 // loop_footer
    %s15 = sadd.s32 1, %s11
  $region7: #{forward.13} parent=0 // loop_footer_branch
    %10 = sbr.rel target = $region3
  $region8: #{forward.13} parent=0 // loop_exit
    _

</llo_original>
